<compile_context>
chip_gen: v6e
topology: v6e:2x2x1
jax: 0.10.0
libtpu: 0.0.40
codegen_flags: <defaults>
</compile_context>

<pallas_src>
import jax
import jax.numpy as jnp
from jax.experimental import pallas as pl
from jax.experimental.pallas import tpu as pltpu

NUM_LAYERS = 10
OUT_FEATURES = 10


def lstm_linear_kernel(x_proj_ref, w_hh0_ref, w_fused_ref, b_ref, w_out_ref, b_out_ref, o_ref):
    # x_proj_ref:  (S, B, 4H)    f32  time-major layer-0 input projection x @ W_ih0^T
    # w_hh0_ref:   (H, 4H)       bf16 layer-0 hidden->gates weights (transposed)
    # w_fused_ref: (L-1, 2H, 4H) bf16 layers 1..L-1 fused [W_ih^T ; W_hh^T]
    # b_ref:       (L, 1, 4H)    f32  combined bias (b_ih + b_hh)
    # w_out_ref:   (H, 10)       f32  final Linear weight (transposed)
    # b_out_ref:   (1, 10)       f32  final Linear bias
    # o_ref:       (B, 10)       f32
    # Gate column order everywhere: [i, f, o, g]  (sigmoid | sigmoid | sigmoid | tanh).
    S, B, G = x_proj_ref.shape
    H = G // 4
    L = w_fused_ref.shape[0] + 1

    def cell(gates, c_prev):
        sig = jax.nn.sigmoid(gates[:, : 3 * H])   # [i | f | o] in one 192-lane sigmoid
        g_g = jnp.tanh(gates[:, 3 * H:])          # g in one 64-lane tanh
        i_g = sig[:, 0 * H:1 * H]
        f_g = sig[:, 1 * H:2 * H]
        o_g = sig[:, 2 * H:3 * H]
        c_new = f_g * c_prev + i_g * g_g
        h_new = o_g * jnp.tanh(c_new)
        return h_new, c_new

    hs = [jnp.zeros((B, H), jnp.float32) for _ in range(L)]
    cs = [jnp.zeros((B, H), jnp.float32) for _ in range(L)]

    for t in range(S):            # static unroll over time (exposes the wavefront)
        # Layer 0: input projection was precomputed, only the h2h matmul is serial.
        gates0 = (
            x_proj_ref[t]
            + jnp.dot(hs[0].astype(jnp.bfloat16), w_hh0_ref[...],
                      preferred_element_type=jnp.float32)
            + b_ref[0]
        )
        hs[0], cs[0] = cell(gates0, cs[0])
        inp = hs[0]
        for l in range(1, L):     # static unroll over the stacked layers
            # Per-layer weight slice read straight from the VMEM ref (streamed, not
            # held live across the whole kernel).
            cat = jnp.concatenate([inp, hs[l]], axis=-1).astype(jnp.bfloat16)  # (B, 2H)
            gates = (
                jnp.dot(cat, w_fused_ref[l - 1], preferred_element_type=jnp.float32)
                + b_ref[l]
            )
            hs[l], cs[l] = cell(gates, cs[l])
            inp = hs[l]

    h_last = hs[L - 1]            # == h_n[-1, :, :]
    o_ref[...] = (
        jnp.dot(h_last, w_out_ref[...], preferred_element_type=jnp.float32)
        + b_out_ref[...]
    )


def _reorder_gates(w, H):
    """Reorder the last axis (size 4H) from PyTorch [i, f, g, o] to [i, f, o, g]."""
    return jnp.concatenate([w[..., : 2 * H], w[..., 3 * H:], w[..., 2 * H:3 * H]], axis=-1)


def rnn_forward(x, params):
    """x: (B, S, input_dim) float32, batch_first like the PyTorch module."""
    (w_ih_list, w_hh_list, b_ih_list, b_hh_list, w_out, b_out) = params
    B, S, Din = x.shape
    H = w_hh_list[0].shape[1]
    L = len(w_ih_list)
    G = 4 * H

    # --- wrapper glue (plain JAX) ---------------------------------------------------
    # Hoisted layer-0 input projection: one big (B*S, Din) x (Din, 4H) matmul,
    # delivered to the kernel time-major.
    w_ih0_t = _reorder_gates(w_ih_list[0].T, H)                     # (Din, 4H) f32
    x_proj = jnp.einsum("bsd,dg->sbg", x, w_ih0_t)                  # (S, B, 4H) f32

    # Layer-0 hidden weights and fused weights for layers 1..L-1, bf16, gate-reordered.
    w_hh0 = _reorder_gates(w_hh_list[0].T, H).astype(jnp.bfloat16)  # (H, 4H)
    w_fused = jnp.stack([
        _reorder_gates(jnp.concatenate([w_ih_list[l].T, w_hh_list[l].T], axis=0), H)
        for l in range(1, L)
    ]).astype(jnp.bfloat16)                                         # (L-1, 2H, 4H)

    b_stack = jnp.stack([
        _reorder_gates(b_ih_list[l] + b_hh_list[l], H).reshape(1, G)
        for l in range(L)
    ])                                                              # (L, 1, 4H) f32

    w_out_t = w_out.T                    # (H, 10)
    b_out_row = b_out.reshape(1, -1)     # (1, 10)

    vmem = pl.BlockSpec(memory_space=pltpu.MemorySpace.VMEM)
    return pl.pallas_call(
        lstm_linear_kernel,
        out_shape=jax.ShapeDtypeStruct((B, OUT_FEATURES), jnp.float32),
        in_specs=[vmem] * 6,
        out_specs=vmem,
    )(x_proj, w_hh0, w_fused, b_stack, w_out_t, b_out_row)


def init_params(key, input_dim, hidden_dim):
    """Deterministic init matching PyTorch default shapes (uniform(-1/sqrt(H), 1/sqrt(H)))."""
    H = hidden_dim
    k_lstm = 1.0 / jnp.sqrt(jnp.float32(H))
    k_lin = 1.0 / jnp.sqrt(jnp.float32(64))
    keys = jax.random.split(key, 4 * NUM_LAYERS + 2)
    w_ih_list, w_hh_list, b_ih_list, b_hh_list = [], [], [], []
    for l in range(NUM_LAYERS):
        in_f = input_dim if l == 0 else H
        kk = keys[4 * l: 4 * l + 4]
        w_ih_list.append(jax.random.uniform(kk[0], (4 * H, in_f), jnp.float32, -k_lstm, k_lstm))
        w_hh_list.append(jax.random.uniform(kk[1], (4 * H, H), jnp.float32, -k_lstm, k_lstm))
        b_ih_list.append(jax.random.uniform(kk[2], (4 * H,), jnp.float32, -k_lstm, k_lstm))
        b_hh_list.append(jax.random.uniform(kk[3], (4 * H,), jnp.float32, -k_lstm, k_lstm))
    w_out = jax.random.uniform(keys[-2], (OUT_FEATURES, 64), jnp.float32, -k_lin, k_lin)
    b_out = jax.random.uniform(keys[-1], (OUT_FEATURES,), jnp.float32, -k_lin, k_lin)
    return (w_ih_list, w_hh_list, b_ih_list, b_hh_list, w_out, b_out)


def rnn_reference(x, params):
    """Pure-JAX reference reproducing torch.nn.LSTM(num_layers=10) + Linear semantics.

    The LSTM weights that the kernel stores in bf16 are quantized identically here so
    the comparison isolates kernel structure (gate order, fusion, recurrence) from the
    intended bf16 weight-storage optimization.
    """
    (w_ih_list, w_hh_list, b_ih_list, b_hh_list, w_out, b_out) = params
    B, S, _ = x.shape
    H = w_hh_list[0].shape[1]

    def q(w):  # mirror the kernel's bf16 weight storage
        return w.astype(jnp.bfloat16).astype(jnp.float32)

    hs = [jnp.zeros((B, H), jnp.float32) for _ in range(NUM_LAYERS)]
    cs = [jnp.zeros((B, H), jnp.float32) for _ in range(NUM_LAYERS)]
    for t in range(S):
        inp = x[:, t, :]
        for l in range(NUM_LAYERS):
            w_ih = w_ih_list[l] if l == 0 else q(w_ih_list[l])   # layer-0 i2h is f32 in the wrapper
            w_hh = q(w_hh_list[l])
            gates = inp @ w_ih.T + hs[l] @ w_hh.T + b_ih_list[l] + b_hh_list[l]
            i_g = jax.nn.sigmoid(gates[:, 0 * H:1 * H])
            f_g = jax.nn.sigmoid(gates[:, 1 * H:2 * H])
            g_g = jnp.tanh(gates[:, 2 * H:3 * H])
            o_g = jax.nn.sigmoid(gates[:, 3 * H:4 * H])
            cs[l] = f_g * cs[l] + i_g * g_g
            hs[l] = o_g * jnp.tanh(cs[l])
            inp = hs[l]
    return hs[-1] @ w_out.T + b_out


if __name__ == "__main__":
    B, S = 2, 8
    input_dim, hidden_dim, output_dim = 32, 64, 10  # Linear(64, 10) forces hidden_dim=64

    root = jax.random.PRNGKey(0)
    k_param, k_x = jax.random.split(root)
    params = init_params(k_param, input_dim, hidden_dim)
    x = jax.random.normal(k_x, (B, S, input_dim), jnp.float32)

    out = jax.block_until_ready(rnn_forward(x, params))
    ref = jax.block_until_ready(rnn_reference(x, params))

    assert out.shape == (B, OUT_FEATURES), out.shape
    assert jnp.all(jnp.isfinite(out))
    # bf16 activation casts at the MXU inputs introduce small (~1e-3) deviations vs the
    # f32-activation reference; 2e-2 tolerance still catches any structural bug.
    assert jnp.allclose(out, ref, rtol=2e-2, atol=2e-2), jnp.max(jnp.abs(out - ref))
    print("KERNEL_OK")
</pallas_src>

<mosaic_0001>
module attributes {stable_mosaic.version = 11 : i64} {
  func.func @lstm_linear_kernel(%arg0: memref<8x2x256xf32, #tpu.memory_space<vmem>>, %arg1: memref<64x256xbf16, #tpu.memory_space<vmem>>, %arg2: memref<9x128x256xbf16, #tpu.memory_space<vmem>>, %arg3: memref<10x1x256xf32, #tpu.memory_space<vmem>>, %arg4: memref<64x10xf32, #tpu.memory_space<vmem>>, %arg5: memref<1x10xf32, #tpu.memory_space<vmem>>, %arg6: memref<2x10xf32, #tpu.memory_space<vmem>>) attributes {dimension_semantics = [], scalar_prefetch = 0 : i64, scratch_operands = 0 : i64, tpu.core_type = #tpu.core_type<tc>} {
    %cst = arith.constant 0.000000e+00 : f32
    %0 = vector.broadcast %cst : f32 to vector<2x64xf32>
    %cst_0 = arith.constant 0.000000e+00 : f32
    %1 = vector.broadcast %cst_0 : f32 to vector<2x64xf32>
    %cst_1 = arith.constant 0.000000e+00 : f32
    %2 = vector.broadcast %cst_1 : f32 to vector<2x64xf32>
    %cst_2 = arith.constant 0.000000e+00 : f32
    %3 = vector.broadcast %cst_2 : f32 to vector<2x64xf32>
    %cst_3 = arith.constant 0.000000e+00 : f32
    %4 = vector.broadcast %cst_3 : f32 to vector<2x64xf32>
    %cst_4 = arith.constant 0.000000e+00 : f32
    %5 = vector.broadcast %cst_4 : f32 to vector<2x64xf32>
    %cst_5 = arith.constant 0.000000e+00 : f32
    %6 = vector.broadcast %cst_5 : f32 to vector<2x64xf32>
    %cst_6 = arith.constant 0.000000e+00 : f32
    %7 = vector.broadcast %cst_6 : f32 to vector<2x64xf32>
    %cst_7 = arith.constant 0.000000e+00 : f32
    %8 = vector.broadcast %cst_7 : f32 to vector<2x64xf32>
    %cst_8 = arith.constant 0.000000e+00 : f32
    %9 = vector.broadcast %cst_8 : f32 to vector<2x64xf32>
    %cst_9 = arith.constant 0.000000e+00 : f32
    %10 = vector.broadcast %cst_9 : f32 to vector<2x64xf32>
    %cst_10 = arith.constant 0.000000e+00 : f32
    %11 = vector.broadcast %cst_10 : f32 to vector<2x64xf32>
    %cst_11 = arith.constant 0.000000e+00 : f32
    %12 = vector.broadcast %cst_11 : f32 to vector<2x64xf32>
    %cst_12 = arith.constant 0.000000e+00 : f32
    %13 = vector.broadcast %cst_12 : f32 to vector<2x64xf32>
    %cst_13 = arith.constant 0.000000e+00 : f32
    %14 = vector.broadcast %cst_13 : f32 to vector<2x64xf32>
    %cst_14 = arith.constant 0.000000e+00 : f32
    %15 = vector.broadcast %cst_14 : f32 to vector<2x64xf32>
    %cst_15 = arith.constant 0.000000e+00 : f32
    %16 = vector.broadcast %cst_15 : f32 to vector<2x64xf32>
    %cst_16 = arith.constant 0.000000e+00 : f32
    %17 = vector.broadcast %cst_16 : f32 to vector<2x64xf32>
    %cst_17 = arith.constant 0.000000e+00 : f32
    %18 = vector.broadcast %cst_17 : f32 to vector<2x64xf32>
    %cst_18 = arith.constant 0.000000e+00 : f32
    %19 = vector.broadcast %cst_18 : f32 to vector<2x64xf32>
    %c0 = arith.constant 0 : index
    %c0_19 = arith.constant 0 : index
    %c0_20 = arith.constant 0 : index
    %20 = vector.load %arg0[%c0, %c0_19, %c0_20] : memref<8x2x256xf32, #tpu.memory_space<vmem>>, vector<1x2x256xf32>
    %21 = vector.shape_cast %20 : vector<1x2x256xf32> to vector<2x256xf32>
    %22 = arith.truncf %0 : vector<2x64xf32> to vector<2x64xbf16>
    %c0_21 = arith.constant 0 : index
    %c0_22 = arith.constant 0 : index
    %23 = vector.load %arg1[%c0_21, %c0_22] : memref<64x256xbf16, #tpu.memory_space<vmem>>, vector<64x256xbf16>
    %cst_23 = arith.constant dense<0.000000e+00> : vector<2x256xf32>
    %24 = tpu.matmul %22, %23, %cst_23 {dimension_numbers = #tpu.dot_dimension_numbers<[1], [0], [0], [1], [0, 0, 1, 1], [], []>} : vector<2x64xbf16>, vector<64x256xbf16>, vector<2x256xf32> -> vector<2x256xf32>
    %25 = arith.addf %21, %24 : vector<2x256xf32>
    %c0_24 = arith.constant 0 : index
    %c0_25 = arith.constant 0 : index
    %c0_26 = arith.constant 0 : index
    %26 = vector.load %arg3[%c0_24, %c0_25, %c0_26] : memref<10x1x256xf32, #tpu.memory_space<vmem>>, vector<1x1x256xf32>
    %27 = vector.shape_cast %26 : vector<1x1x256xf32> to vector<1x256xf32>
    %28 = vector.broadcast %27 : vector<1x256xf32> to vector<2x256xf32>
    %29 = arith.addf %25, %28 : vector<2x256xf32>
    %30 = vector.extract_strided_slice %29 {offsets = [0, 0], sizes = [2, 192], strides = [1, 1]} : vector<2x256xf32> to vector<2x192xf32>
    %31 = arith.negf %30 : vector<2x192xf32>
    %32 = math.exp %31 : vector<2x192xf32>
    %cst_27 = arith.constant 1.000000e+00 : f32
    %33 = vector.broadcast %cst_27 : f32 to vector<2x192xf32>
    %34 = arith.addf %33, %32 : vector<2x192xf32>
    %35 = arith.divf %33, %34 : vector<2x192xf32>
    %36 = vector.extract_strided_slice %29 {offsets = [0, 192], sizes = [2, 64], strides = [1, 1]} : vector<2x256xf32> to vector<2x64xf32>
    %37 = math.tanh %36 : vector<2x64xf32>
    %38 = vector.extract_strided_slice %35 {offsets = [0, 0], sizes = [2, 64], strides = [1, 1]} : vector<2x192xf32> to vector<2x64xf32>
    %39 = vector.extract_strided_slice %35 {offsets = [0, 64], sizes = [2, 64], strides = [1, 1]} : vector<2x192xf32> to vector<2x64xf32>
    %40 = vector.extract_strided_slice %35 {offsets = [0, 128], sizes = [2, 64], strides = [1, 1]} : vector<2x192xf32> to vector<2x64xf32>
    %41 = arith.mulf %39, %10 : vector<2x64xf32>
    %42 = arith.mulf %38, %37 : vector<2x64xf32>
    %43 = arith.addf %41, %42 : vector<2x64xf32>
    %44 = math.tanh %43 : vector<2x64xf32>
    %45 = arith.mulf %40, %44 : vector<2x64xf32>
    %46 = tpu.concatenate %45, %1 in 1 : vector<2x64xf32>, vector<2x64xf32> -> vector<2x128xf32>
    %47 = arith.truncf %46 : vector<2x128xf32> to vector<2x128xbf16>
    %c0_28 = arith.constant 0 : index
    %c0_29 = arith.constant 0 : index
    %c0_30 = arith.constant 0 : index
    %48 = vector.load %arg2[%c0_28, %c0_29, %c0_30] : memref<9x128x256xbf16, #tpu.memory_space<vmem>>, vector<1x128x256xbf16>
    %49 = vector.shape_cast %48 : vector<1x128x256xbf16> to vector<128x256xbf16>
    %cst_31 = arith.constant dense<0.000000e+00> : vector<2x256xf32>
    %50 = tpu.matmul %47, %49, %cst_31 {dimension_numbers = #tpu.dot_dimension_numbers<[1], [0], [0], [1], [0, 0, 1, 1], [], []>} : vector<2x128xbf16>, vector<128x256xbf16>, vector<2x256xf32> -> vector<2x256xf32>
    %c1 = arith.constant 1 : index
    %c0_32 = arith.constant 0 : index
    %c0_33 = arith.constant 0 : index
    %51 = vector.load %arg3[%c1, %c0_32, %c0_33] : memref<10x1x256xf32, #tpu.memory_space<vmem>>, vector<1x1x256xf32>
    %52 = vector.shape_cast %51 : vector<1x1x256xf32> to vector<1x256xf32>
    %53 = vector.broadcast %52 : vector<1x256xf32> to vector<2x256xf32>
    %54 = arith.addf %50, %53 : vector<2x256xf32>
    %55 = vector.extract_strided_slice %54 {offsets = [0, 0], sizes = [2, 192], strides = [1, 1]} : vector<2x256xf32> to vector<2x192xf32>
    %56 = arith.negf %55 : vector<2x192xf32>
    %57 = math.exp %56 : vector<2x192xf32>
    %cst_34 = arith.constant 1.000000e+00 : f32
    %58 = vector.broadcast %cst_34 : f32 to vector<2x192xf32>
    %59 = arith.addf %58, %57 : vector<2x192xf32>
    %60 = arith.divf %58, %59 : vector<2x192xf32>
    %61 = vector.extract_strided_slice %54 {offsets = [0, 192], sizes = [2, 64], strides = [1, 1]} : vector<2x256xf32> to vector<2x64xf32>
    %62 = math.tanh %61 : vector<2x64xf32>
    %63 = vector.extract_strided_slice %60 {offsets = [0, 0], sizes = [2, 64], strides = [1, 1]} : vector<2x192xf32> to vector<2x64xf32>
    %64 = vector.extract_strided_slice %60 {offsets = [0, 64], sizes = [2, 64], strides = [1, 1]} : vector<2x192xf32> to vector<2x64xf32>
    %65 = vector.extract_strided_slice %60 {offsets = [0, 128], sizes = [2, 64], strides = [1, 1]} : vector<2x192xf32> to vector<2x64xf32>
    %66 = arith.mulf %64, %11 : vector<2x64xf32>
    %67 = arith.mulf %63, %62 : vector<2x64xf32>
    %68 = arith.addf %66, %67 : vector<2x64xf32>
    %69 = math.tanh %68 : vector<2x64xf32>
    %70 = arith.mulf %65, %69 : vector<2x64xf32>
    %71 = tpu.concatenate %70, %2 in 1 : vector<2x64xf32>, vector<2x64xf32> -> vector<2x128xf32>
    %72 = arith.truncf %71 : vector<2x128xf32> to vector<2x128xbf16>
    %c1_35 = arith.constant 1 : index
    %c0_36 = arith.constant 0 : index
    %c0_37 = arith.constant 0 : index
    %73 = vector.load %arg2[%c1_35, %c0_36, %c0_37] : memref<9x128x256xbf16, #tpu.memory_space<vmem>>, vector<1x128x256xbf16>
    %74 = vector.shape_cast %73 : vector<1x128x256xbf16> to vector<128x256xbf16>
    %cst_38 = arith.constant dense<0.000000e+00> : vector<2x256xf32>
    %75 = tpu.matmul %72, %74, %cst_38 {dimension_numbers = #tpu.dot_dimension_numbers<[1], [0], [0], [1], [0, 0, 1, 1], [], []>} : vector<2x128xbf16>, vector<128x256xbf16>, vector<2x256xf32> -> vector<2x256xf32>
    %c2 = arith.constant 2 : index
    %c0_39 = arith.constant 0 : index
    %c0_40 = arith.constant 0 : index
    %76 = vector.load %arg3[%c2, %c0_39, %c0_40] : memref<10x1x256xf32, #tpu.memory_space<vmem>>, vector<1x1x256xf32>
    %77 = vector.shape_cast %76 : vector<1x1x256xf32> to vector<1x256xf32>
    %78 = vector.broadcast %77 : vector<1x256xf32> to vector<2x256xf32>
    %79 = arith.addf %75, %78 : vector<2x256xf32>
    %80 = vector.extract_strided_slice %79 {offsets = [0, 0], sizes = [2, 192], strides = [1, 1]} : vector<2x256xf32> to vector<2x192xf32>
    %81 = arith.negf %80 : vector<2x192xf32>
    %82 = math.exp %81 : vector<2x192xf32>
    %cst_41 = arith.constant 1.000000e+00 : f32
    %83 = vector.broadcast %cst_41 : f32 to vector<2x192xf32>
    %84 = arith.addf %83, %82 : vector<2x192xf32>
    %85 = arith.divf %83, %84 : vector<2x192xf32>
    %86 = vector.extract_strided_slice %79 {offsets = [0, 192], sizes = [2, 64], strides = [1, 1]} : vector<2x256xf32> to vector<2x64xf32>
    %87 = math.tanh %86 : vector<2x64xf32>
    %88 = vector.extract_strided_slice %85 {offsets = [0, 0], sizes = [2, 64], strides = [1, 1]} : vector<2x192xf32> to vector<2x64xf32>
    %89 = vector.extract_strided_slice %85 {offsets = [0, 64], sizes = [2, 64], strides = [1, 1]} : vector<2x192xf32> to vector<2x64xf32>
    %90 = vector.extract_strided_slice %85 {offsets = [0, 128], sizes = [2, 64], strides = [1, 1]} : vector<2x192xf32> to vector<2x64xf32>
    %91 = arith.mulf %89, %12 : vector<2x64xf32>
    %92 = arith.mulf %88, %87 : vector<2x64xf32>
    %93 = arith.addf %91, %92 : vector<2x64xf32>
    %94 = math.tanh %93 : vector<2x64xf32>
    %95 = arith.mulf %90, %94 : vector<2x64xf32>
    %96 = tpu.concatenate %95, %3 in 1 : vector<2x64xf32>, vector<2x64xf32> -> vector<2x128xf32>
    %97 = arith.truncf %96 : vector<2x128xf32> to vector<2x128xbf16>
    %c2_42 = arith.constant 2 : index
    %c0_43 = arith.constant 0 : index
    %c0_44 = arith.constant 0 : index
    %98 = vector.load %arg2[%c2_42, %c0_43, %c0_44] : memref<9x128x256xbf16, #tpu.memory_space<vmem>>, vector<1x128x256xbf16>
    %99 = vector.shape_cast %98 : vector<1x128x256xbf16> to vector<128x256xbf16>
    %cst_45 = arith.constant dense<0.000000e+00> : vector<2x256xf32>
    %100 = tpu.matmul %97, %99, %cst_45 {dimension_numbers = #tpu.dot_dimension_numbers<[1], [0], [0], [1], [0, 0, 1, 1], [], []>} : vector<2x128xbf16>, vector<128x256xbf16>, vector<2x256xf32> -> vector<2x256xf32>
    %c3 = arith.constant 3 : index
    %c0_46 = arith.constant 0 : index
    %c0_47 = arith.constant 0 : index
    %101 = vector.load %arg3[%c3, %c0_46, %c0_47] : memref<10x1x256xf32, #tpu.memory_space<vmem>>, vector<1x1x256xf32>
    %102 = vector.shape_cast %101 : vector<1x1x256xf32> to vector<1x256xf32>
    %103 = vector.broadcast %102 : vector<1x256xf32> to vector<2x256xf32>
    %104 = arith.addf %100, %103 : vector<2x256xf32>
    %105 = vector.extract_strided_slice %104 {offsets = [0, 0], sizes = [2, 192], strides = [1, 1]} : vector<2x256xf32> to vector<2x192xf32>
    %106 = arith.negf %105 : vector<2x192xf32>
    %107 = math.exp %106 : vector<2x192xf32>
    %cst_48 = arith.constant 1.000000e+00 : f32
    %108 = vector.broadcast %cst_48 : f32 to vector<2x192xf32>
    %109 = arith.addf %108, %107 : vector<2x192xf32>
    %110 = arith.divf %108, %109 : vector<2x192xf32>
    %111 = vector.extract_strided_slice %104 {offsets = [0, 192], sizes = [2, 64], strides = [1, 1]} : vector<2x256xf32> to vector<2x64xf32>
    %112 = math.tanh %111 : vector<2x64xf32>
    %113 = vector.extract_strided_slice %110 {offsets = [0, 0], sizes = [2, 64], strides = [1, 1]} : vector<2x192xf32> to vector<2x64xf32>
    %114 = vector.extract_strided_slice %110 {offsets = [0, 64], sizes = [2, 64], strides = [1, 1]} : vector<2x192xf32> to vector<2x64xf32>
    %115 = vector.extract_strided_slice %110 {offsets = [0, 128], sizes = [2, 64], strides = [1, 1]} : vector<2x192xf32> to vector<2x64xf32>
    %116 = arith.mulf %114, %13 : vector<2x64xf32>
    %117 = arith.mulf %113, %112 : vector<2x64xf32>
    %118 = arith.addf %116, %117 : vector<2x64xf32>
    %119 = math.tanh %118 : vector<2x64xf32>
    %120 = arith.mulf %115, %119 : vector<2x64xf32>
    %121 = tpu.concatenate %120, %4 in 1 : vector<2x64xf32>, vector<2x64xf32> -> vector<2x128xf32>
    %122 = arith.truncf %121 : vector<2x128xf32> to vector<2x128xbf16>
    %c3_49 = arith.constant 3 : index
    %c0_50 = arith.constant 0 : index
    %c0_51 = arith.constant 0 : index
    %123 = vector.load %arg2[%c3_49, %c0_50, %c0_51] : memref<9x128x256xbf16, #tpu.memory_space<vmem>>, vector<1x128x256xbf16>
    %124 = vector.shape_cast %123 : vector<1x128x256xbf16> to vector<128x256xbf16>
    %cst_52 = arith.constant dense<0.000000e+00> : vector<2x256xf32>
    %125 = tpu.matmul %122, %124, %cst_52 {dimension_numbers = #tpu.dot_dimension_numbers<[1], [0], [0], [1], [0, 0, 1, 1], [], []>} : vector<2x128xbf16>, vector<128x256xbf16>, vector<2x256xf32> -> vector<2x256xf32>
    %c4 = arith.constant 4 : index
    %c0_53 = arith.constant 0 : index
    %c0_54 = arith.constant 0 : index
    %126 = vector.load %arg3[%c4, %c0_53, %c0_54] : memref<10x1x256xf32, #tpu.memory_space<vmem>>, vector<1x1x256xf32>
    %127 = vector.shape_cast %126 : vector<1x1x256xf32> to vector<1x256xf32>
    %128 = vector.broadcast %127 : vector<1x256xf32> to vector<2x256xf32>
    %129 = arith.addf %125, %128 : vector<2x256xf32>
    %130 = vector.extract_strided_slice %129 {offsets = [0, 0], sizes = [2, 192], strides = [1, 1]} : vector<2x256xf32> to vector<2x192xf32>
    %131 = arith.negf %130 : vector<2x192xf32>
    %132 = math.exp %131 : vector<2x192xf32>
    %cst_55 = arith.constant 1.000000e+00 : f32
    %133 = vector.broadcast %cst_55 : f32 to vector<2x192xf32>
    %134 = arith.addf %133, %132 : vector<2x192xf32>
    %135 = arith.divf %133, %134 : vector<2x192xf32>
    %136 = vector.extract_strided_slice %129 {offsets = [0, 192], sizes = [2, 64], strides = [1, 1]} : vector<2x256xf32> to vector<2x64xf32>
    %137 = math.tanh %136 : vector<2x64xf32>
    %138 = vector.extract_strided_slice %135 {offsets = [0, 0], sizes = [2, 64], strides = [1, 1]} : vector<2x192xf32> to vector<2x64xf32>
    %139 = vector.extract_strided_slice %135 {offsets = [0, 64], sizes = [2, 64], strides = [1, 1]} : vector<2x192xf32> to vector<2x64xf32>
    %140 = vector.extract_strided_slice %135 {offsets = [0, 128], sizes = [2, 64], strides = [1, 1]} : vector<2x192xf32> to vector<2x64xf32>
    %141 = arith.mulf %139, %14 : vector<2x64xf32>
    %142 = arith.mulf %138, %137 : vector<2x64xf32>
    %143 = arith.addf %141, %142 : vector<2x64xf32>
    %144 = math.tanh %143 : vector<2x64xf32>
    %145 = arith.mulf %140, %144 : vector<2x64xf32>
    %146 = tpu.concatenate %145, %5 in 1 : vector<2x64xf32>, vector<2x64xf32> -> vector<2x128xf32>
    %147 = arith.truncf %146 : vector<2x128xf32> to vector<2x128xbf16>
    %c4_56 = arith.constant 4 : index
    %c0_57 = arith.constant 0 : index
    %c0_58 = arith.constant 0 : index
    %148 = vector.load %arg2[%c4_56, %c0_57, %c0_58] : memref<9x128x256xbf16, #tpu.memory_space<vmem>>, vector<1x128x256xbf16>
    %149 = vector.shape_cast %148 : vector<1x128x256xbf16> to vector<128x256xbf16>
    %cst_59 = arith.constant dense<0.000000e+00> : vector<2x256xf32>
    %150 = tpu.matmul %147, %149, %cst_59 {dimension_numbers = #tpu.dot_dimension_numbers<[1], [0], [0], [1], [0, 0, 1, 1], [], []>} : vector<2x128xbf16>, vector<128x256xbf16>, vector<2x256xf32> -> vector<2x256xf32>
    %c5 = arith.constant 5 : index
    %c0_60 = arith.constant 0 : index
    %c0_61 = arith.constant 0 : index
    %151 = vector.load %arg3[%c5, %c0_60, %c0_61] : memref<10x1x256xf32, #tpu.memory_space<vmem>>, vector<1x1x256xf32>
    %152 = vector.shape_cast %151 : vector<1x1x256xf32> to vector<1x256xf32>
    %153 = vector.broadcast %152 : vector<1x256xf32> to vector<2x256xf32>
    %154 = arith.addf %150, %153 : vector<2x256xf32>
    %155 = vector.extract_strided_slice %154 {offsets = [0, 0], sizes = [2, 192], strides = [1, 1]} : vector<2x256xf32> to vector<2x192xf32>
    %156 = arith.negf %155 : vector<2x192xf32>
    %157 = math.exp %156 : vector<2x192xf32>
    %cst_62 = arith.constant 1.000000e+00 : f32
    %158 = vector.broadcast %cst_62 : f32 to vector<2x192xf32>
    %159 = arith.addf %158, %157 : vector<2x192xf32>
    %160 = arith.divf %158, %159 : vector<2x192xf32>
    %161 = vector.extract_strided_slice %154 {offsets = [0, 192], sizes = [2, 64], strides = [1, 1]} : vector<2x256xf32> to vector<2x64xf32>
    %162 = math.tanh %161 : vector<2x64xf32>
    %163 = vector.extract_strided_slice %160 {offsets = [0, 0], sizes = [2, 64], strides = [1, 1]} : vector<2x192xf32> to vector<2x64xf32>
    %164 = vector.extract_strided_slice %160 {offsets = [0, 64], sizes = [2, 64], strides = [1, 1]} : vector<2x192xf32> to vector<2x64xf32>
    %165 = vector.extract_strided_slice %160 {offsets = [0, 128], sizes = [2, 64], strides = [1, 1]} : vector<2x192xf32> to vector<2x64xf32>
    %166 = arith.mulf %164, %15 : vector<2x64xf32>
    %167 = arith.mulf %163, %162 : vector<2x64xf32>
    %168 = arith.addf %166, %167 : vector<2x64xf32>
    %169 = math.tanh %168 : vector<2x64xf32>
    %170 = arith.mulf %165, %169 : vector<2x64xf32>
    %171 = tpu.concatenate %170, %6 in 1 : vector<2x64xf32>, vector<2x64xf32> -> vector<2x128xf32>
    %172 = arith.truncf %171 : vector<2x128xf32> to vector<2x128xbf16>
    %c5_63 = arith.constant 5 : index
    %c0_64 = arith.constant 0 : index
    %c0_65 = arith.constant 0 : index
    %173 = vector.load %arg2[%c5_63, %c0_64, %c0_65] : memref<9x128x256xbf16, #tpu.memory_space<vmem>>, vector<1x128x256xbf16>
    %174 = vector.shape_cast %173 : vector<1x128x256xbf16> to vector<128x256xbf16>
    %cst_66 = arith.constant dense<0.000000e+00> : vector<2x256xf32>
    %175 = tpu.matmul %172, %174, %cst_66 {dimension_numbers = #tpu.dot_dimension_numbers<[1], [0], [0], [1], [0, 0, 1, 1], [], []>} : vector<2x128xbf16>, vector<128x256xbf16>, vector<2x256xf32> -> vector<2x256xf32>
    %c6 = arith.constant 6 : index
    %c0_67 = arith.constant 0 : index
    %c0_68 = arith.constant 0 : index
    %176 = vector.load %arg3[%c6, %c0_67, %c0_68] : memref<10x1x256xf32, #tpu.memory_space<vmem>>, vector<1x1x256xf32>
    %177 = vector.shape_cast %176 : vector<1x1x256xf32> to vector<1x256xf32>
    %178 = vector.broadcast %177 : vector<1x256xf32> to vector<2x256xf32>
    %179 = arith.addf %175, %178 : vector<2x256xf32>
    %180 = vector.extract_strided_slice %179 {offsets = [0, 0], sizes = [2, 192], strides = [1, 1]} : vector<2x256xf32> to vector<2x192xf32>
    %181 = arith.negf %180 : vector<2x192xf32>
    %182 = math.exp %181 : vector<2x192xf32>
    %cst_69 = arith.constant 1.000000e+00 : f32
    %183 = vector.broadcast %cst_69 : f32 to vector<2x192xf32>
    %184 = arith.addf %183, %182 : vector<2x192xf32>
    %185 = arith.divf %183, %184 : vector<2x192xf32>
    %186 = vector.extract_strided_slice %179 {offsets = [0, 192], sizes = [2, 64], strides = [1, 1]} : vector<2x256xf32> to vector<2x64xf32>
    %187 = math.tanh %186 : vector<2x64xf32>
    %188 = vector.extract_strided_slice %185 {offsets = [0, 0], sizes = [2, 64], strides = [1, 1]} : vector<2x192xf32> to vector<2x64xf32>
    %189 = vector.extract_strided_slice %185 {offsets = [0, 64], sizes = [2, 64], strides = [1, 1]} : vector<2x192xf32> to vector<2x64xf32>
    %190 = vector.extract_strided_slice %185 {offsets = [0, 128], sizes = [2, 64], strides = [1, 1]} : vector<2x192xf32> to vector<2x64xf32>
    %191 = arith.mulf %189, %16 : vector<2x64xf32>
    %192 = arith.mulf %188, %187 : vector<2x64xf32>
    %193 = arith.addf %191, %192 : vector<2x64xf32>
    %194 = math.tanh %193 : vector<2x64xf32>
    %195 = arith.mulf %190, %194 : vector<2x64xf32>
    %196 = tpu.concatenate %195, %7 in 1 : vector<2x64xf32>, vector<2x64xf32> -> vector<2x128xf32>
    %197 = arith.truncf %196 : vector<2x128xf32> to vector<2x128xbf16>
    %c6_70 = arith.constant 6 : index
    %c0_71 = arith.constant 0 : index
    %c0_72 = arith.constant 0 : index
    %198 = vector.load %arg2[%c6_70, %c0_71, %c0_72] : memref<9x128x256xbf16, #tpu.memory_space<vmem>>, vector<1x128x256xbf16>
    %199 = vector.shape_cast %198 : vector<1x128x256xbf16> to vector<128x256xbf16>
    %cst_73 = arith.constant dense<0.000000e+00> : vector<2x256xf32>
    %200 = tpu.matmul %197, %199, %cst_73 {dimension_numbers = #tpu.dot_dimension_numbers<[1], [0], [0], [1], [0, 0, 1, 1], [], []>} : vector<2x128xbf16>, vector<128x256xbf16>, vector<2x256xf32> -> vector<2x256xf32>
    %c7 = arith.constant 7 : index
    %c0_74 = arith.constant 0 : index
    %c0_75 = arith.constant 0 : index
    %201 = vector.load %arg3[%c7, %c0_74, %c0_75] : memref<10x1x256xf32, #tpu.memory_space<vmem>>, vector<1x1x256xf32>
    %202 = vector.shape_cast %201 : vector<1x1x256xf32> to vector<1x256xf32>
    %203 = vector.broadcast %202 : vector<1x256xf32> to vector<2x256xf32>
    %204 = arith.addf %200, %203 : vector<2x256xf32>
    %205 = vector.extract_strided_slice %204 {offsets = [0, 0], sizes = [2, 192], strides = [1, 1]} : vector<2x256xf32> to vector<2x192xf32>
    %206 = arith.negf %205 : vector<2x192xf32>
    %207 = math.exp %206 : vector<2x192xf32>
    %cst_76 = arith.constant 1.000000e+00 : f32
    %208 = vector.broadcast %cst_76 : f32 to vector<2x192xf32>
    %209 = arith.addf %208, %207 : vector<2x192xf32>
    %210 = arith.divf %208, %209 : vector<2x192xf32>
    %211 = vector.extract_strided_slice %204 {offsets = [0, 192], sizes = [2, 64], strides = [1, 1]} : vector<2x256xf32> to vector<2x64xf32>
    %212 = math.tanh %211 : vector<2x64xf32>
    %213 = vector.extract_strided_slice %210 {offsets = [0, 0], sizes = [2, 64], strides = [1, 1]} : vector<2x192xf32> to vector<2x64xf32>
    %214 = vector.extract_strided_slice %210 {offsets = [0, 64], sizes = [2, 64], strides = [1, 1]} : vector<2x192xf32> to vector<2x64xf32>
    %215 = vector.extract_strided_slice %210 {offsets = [0, 128], sizes = [2, 64], strides = [1, 1]} : vector<2x192xf32> to vector<2x64xf32>
    %216 = arith.mulf %214, %17 : vector<2x64xf32>
    %217 = arith.mulf %213, %212 : vector<2x64xf32>
    %218 = arith.addf %216, %217 : vector<2x64xf32>
    %219 = math.tanh %218 : vector<2x64xf32>
    %220 = arith.mulf %215, %219 : vector<2x64xf32>
    %221 = tpu.concatenate %220, %8 in 1 : vector<2x64xf32>, vector<2x64xf32> -> vector<2x128xf32>
    %222 = arith.truncf %221 : vector<2x128xf32> to vector<2x128xbf16>
    %c7_77 = arith.constant 7 : index
    %c0_78 = arith.constant 0 : index
    %c0_79 = arith.constant 0 : index
    %223 = vector.load %arg2[%c7_77, %c0_78, %c0_79] : memref<9x128x256xbf16, #tpu.memory_space<vmem>>, vector<1x128x256xbf16>
    %224 = vector.shape_cast %223 : vector<1x128x256xbf16> to vector<128x256xbf16>
    %cst_80 = arith.constant dense<0.000000e+00> : vector<2x256xf32>
    %225 = tpu.matmul %222, %224, %cst_80 {dimension_numbers = #tpu.dot_dimension_numbers<[1], [0], [0], [1], [0, 0, 1, 1], [], []>} : vector<2x128xbf16>, vector<128x256xbf16>, vector<2x256xf32> -> vector<2x256xf32>
    %c8 = arith.constant 8 : index
    %c0_81 = arith.constant 0 : index
    %c0_82 = arith.constant 0 : index
    %226 = vector.load %arg3[%c8, %c0_81, %c0_82] : memref<10x1x256xf32, #tpu.memory_space<vmem>>, vector<1x1x256xf32>
    %227 = vector.shape_cast %226 : vector<1x1x256xf32> to vector<1x256xf32>
    %228 = vector.broadcast %227 : vector<1x256xf32> to vector<2x256xf32>
    %229 = arith.addf %225, %228 : vector<2x256xf32>
    %230 = vector.extract_strided_slice %229 {offsets = [0, 0], sizes = [2, 192], strides = [1, 1]} : vector<2x256xf32> to vector<2x192xf32>
    %231 = arith.negf %230 : vector<2x192xf32>
    %232 = math.exp %231 : vector<2x192xf32>
    %cst_83 = arith.constant 1.000000e+00 : f32
    %233 = vector.broadcast %cst_83 : f32 to vector<2x192xf32>
    %234 = arith.addf %233, %232 : vector<2x192xf32>
    %235 = arith.divf %233, %234 : vector<2x192xf32>
    %236 = vector.extract_strided_slice %229 {offsets = [0, 192], sizes = [2, 64], strides = [1, 1]} : vector<2x256xf32> to vector<2x64xf32>
    %237 = math.tanh %236 : vector<2x64xf32>
    %238 = vector.extract_strided_slice %235 {offsets = [0, 0], sizes = [2, 64], strides = [1, 1]} : vector<2x192xf32> to vector<2x64xf32>
    %239 = vector.extract_strided_slice %235 {offsets = [0, 64], sizes = [2, 64], strides = [1, 1]} : vector<2x192xf32> to vector<2x64xf32>
    %240 = vector.extract_strided_slice %235 {offsets = [0, 128], sizes = [2, 64], strides = [1, 1]} : vector<2x192xf32> to vector<2x64xf32>
    %241 = arith.mulf %239, %18 : vector<2x64xf32>
    %242 = arith.mulf %238, %237 : vector<2x64xf32>
    %243 = arith.addf %241, %242 : vector<2x64xf32>
    %244 = math.tanh %243 : vector<2x64xf32>
    %245 = arith.mulf %240, %244 : vector<2x64xf32>
    %246 = tpu.concatenate %245, %9 in 1 : vector<2x64xf32>, vector<2x64xf32> -> vector<2x128xf32>
    %247 = arith.truncf %246 : vector<2x128xf32> to vector<2x128xbf16>
    %c8_84 = arith.constant 8 : index
    %c0_85 = arith.constant 0 : index
    %c0_86 = arith.constant 0 : index
    %248 = vector.load %arg2[%c8_84, %c0_85, %c0_86] : memref<9x128x256xbf16, #tpu.memory_space<vmem>>, vector<1x128x256xbf16>
    %249 = vector.shape_cast %248 : vector<1x128x256xbf16> to vector<128x256xbf16>
    %cst_87 = arith.constant dense<0.000000e+00> : vector<2x256xf32>
    %250 = tpu.matmul %247, %249, %cst_87 {dimension_numbers = #tpu.dot_dimension_numbers<[1], [0], [0], [1], [0, 0, 1, 1], [], []>} : vector<2x128xbf16>, vector<128x256xbf16>, vector<2x256xf32> -> vector<2x256xf32>
    %c9 = arith.constant 9 : index
    %c0_88 = arith.constant 0 : index
    %c0_89 = arith.constant 0 : index
    %251 = vector.load %arg3[%c9, %c0_88, %c0_89] : memref<10x1x256xf32, #tpu.memory_space<vmem>>, vector<1x1x256xf32>
    %252 = vector.shape_cast %251 : vector<1x1x256xf32> to vector<1x256xf32>
    %253 = vector.broadcast %252 : vector<1x256xf32> to vector<2x256xf32>
    %254 = arith.addf %250, %253 : vector<2x256xf32>
    %255 = vector.extract_strided_slice %254 {offsets = [0, 0], sizes = [2, 192], strides = [1, 1]} : vector<2x256xf32> to vector<2x192xf32>
    %256 = arith.negf %255 : vector<2x192xf32>
    %257 = math.exp %256 : vector<2x192xf32>
    %cst_90 = arith.constant 1.000000e+00 : f32
    %258 = vector.broadcast %cst_90 : f32 to vector<2x192xf32>
    %259 = arith.addf %258, %257 : vector<2x192xf32>
    %260 = arith.divf %258, %259 : vector<2x192xf32>
    %261 = vector.extract_strided_slice %254 {offsets = [0, 192], sizes = [2, 64], strides = [1, 1]} : vector<2x256xf32> to vector<2x64xf32>
    %262 = math.tanh %261 : vector<2x64xf32>
    %263 = vector.extract_strided_slice %260 {offsets = [0, 0], sizes = [2, 64], strides = [1, 1]} : vector<2x192xf32> to vector<2x64xf32>
    %264 = vector.extract_strided_slice %260 {offsets = [0, 64], sizes = [2, 64], strides = [1, 1]} : vector<2x192xf32> to vector<2x64xf32>
    %265 = vector.extract_strided_slice %260 {offsets = [0, 128], sizes = [2, 64], strides = [1, 1]} : vector<2x192xf32> to vector<2x64xf32>
    %266 = arith.mulf %264, %19 : vector<2x64xf32>
    %267 = arith.mulf %263, %262 : vector<2x64xf32>
    %268 = arith.addf %266, %267 : vector<2x64xf32>
    %269 = math.tanh %268 : vector<2x64xf32>
    %270 = arith.mulf %265, %269 : vector<2x64xf32>
    %c1_91 = arith.constant 1 : index
    %c0_92 = arith.constant 0 : index
    %c0_93 = arith.constant 0 : index
    %271 = vector.load %arg0[%c1_91, %c0_92, %c0_93] : memref<8x2x256xf32, #tpu.memory_space<vmem>>, vector<1x2x256xf32>
    %272 = vector.shape_cast %271 : vector<1x2x256xf32> to vector<2x256xf32>
    %273 = arith.truncf %45 : vector<2x64xf32> to vector<2x64xbf16>
    %c0_94 = arith.constant 0 : index
    %c0_95 = arith.constant 0 : index
    %274 = vector.load %arg1[%c0_94, %c0_95] : memref<64x256xbf16, #tpu.memory_space<vmem>>, vector<64x256xbf16>
    %cst_96 = arith.constant dense<0.000000e+00> : vector<2x256xf32>
    %275 = tpu.matmul %273, %274, %cst_96 {dimension_numbers = #tpu.dot_dimension_numbers<[1], [0], [0], [1], [0, 0, 1, 1], [], []>} : vector<2x64xbf16>, vector<64x256xbf16>, vector<2x256xf32> -> vector<2x256xf32>
    %276 = arith.addf %272, %275 : vector<2x256xf32>
    %c0_97 = arith.constant 0 : index
    %c0_98 = arith.constant 0 : index
    %c0_99 = arith.constant 0 : index
    %277 = vector.load %arg3[%c0_97, %c0_98, %c0_99] : memref<10x1x256xf32, #tpu.memory_space<vmem>>, vector<1x1x256xf32>
    %278 = vector.shape_cast %277 : vector<1x1x256xf32> to vector<1x256xf32>
    %279 = vector.broadcast %278 : vector<1x256xf32> to vector<2x256xf32>
    %280 = arith.addf %276, %279 : vector<2x256xf32>
    %281 = vector.extract_strided_slice %280 {offsets = [0, 0], sizes = [2, 192], strides = [1, 1]} : vector<2x256xf32> to vector<2x192xf32>
    %282 = arith.negf %281 : vector<2x192xf32>
    %283 = math.exp %282 : vector<2x192xf32>
    %cst_100 = arith.constant 1.000000e+00 : f32
    %284 = vector.broadcast %cst_100 : f32 to vector<2x192xf32>
    %285 = arith.addf %284, %283 : vector<2x192xf32>
    %286 = arith.divf %284, %285 : vector<2x192xf32>
    %287 = vector.extract_strided_slice %280 {offsets = [0, 192], sizes = [2, 64], strides = [1, 1]} : vector<2x256xf32> to vector<2x64xf32>
    %288 = math.tanh %287 : vector<2x64xf32>
    %289 = vector.extract_strided_slice %286 {offsets = [0, 0], sizes = [2, 64], strides = [1, 1]} : vector<2x192xf32> to vector<2x64xf32>
    %290 = vector.extract_strided_slice %286 {offsets = [0, 64], sizes = [2, 64], strides = [1, 1]} : vector<2x192xf32> to vector<2x64xf32>
    %291 = vector.extract_strided_slice %286 {offsets = [0, 128], sizes = [2, 64], strides = [1, 1]} : vector<2x192xf32> to vector<2x64xf32>
    %292 = arith.mulf %290, %43 : vector<2x64xf32>
    %293 = arith.mulf %289, %288 : vector<2x64xf32>
    %294 = arith.addf %292, %293 : vector<2x64xf32>
    %295 = math.tanh %294 : vector<2x64xf32>
    %296 = arith.mulf %291, %295 : vector<2x64xf32>
    %297 = tpu.concatenate %296, %70 in 1 : vector<2x64xf32>, vector<2x64xf32> -> vector<2x128xf32>
    %298 = arith.truncf %297 : vector<2x128xf32> to vector<2x128xbf16>
    %c0_101 = arith.constant 0 : index
    %c0_102 = arith.constant 0 : index
    %c0_103 = arith.constant 0 : index
    %299 = vector.load %arg2[%c0_101, %c0_102, %c0_103] : memref<9x128x256xbf16, #tpu.memory_space<vmem>>, vector<1x128x256xbf16>
    %300 = vector.shape_cast %299 : vector<1x128x256xbf16> to vector<128x256xbf16>
    %cst_104 = arith.constant dense<0.000000e+00> : vector<2x256xf32>
    %301 = tpu.matmul %298, %300, %cst_104 {dimension_numbers = #tpu.dot_dimension_numbers<[1], [0], [0], [1], [0, 0, 1, 1], [], []>} : vector<2x128xbf16>, vector<128x256xbf16>, vector<2x256xf32> -> vector<2x256xf32>
    %c1_105 = arith.constant 1 : index
    %c0_106 = arith.constant 0 : index
    %c0_107 = arith.constant 0 : index
    %302 = vector.load %arg3[%c1_105, %c0_106, %c0_107] : memref<10x1x256xf32, #tpu.memory_space<vmem>>, vector<1x1x256xf32>
    %303 = vector.shape_cast %302 : vector<1x1x256xf32> to vector<1x256xf32>
    %304 = vector.broadcast %303 : vector<1x256xf32> to vector<2x256xf32>
    %305 = arith.addf %301, %304 : vector<2x256xf32>
    %306 = vector.extract_strided_slice %305 {offsets = [0, 0], sizes = [2, 192], strides = [1, 1]} : vector<2x256xf32> to vector<2x192xf32>
    %307 = arith.negf %306 : vector<2x192xf32>
    %308 = math.exp %307 : vector<2x192xf32>
    %cst_108 = arith.constant 1.000000e+00 : f32
    %309 = vector.broadcast %cst_108 : f32 to vector<2x192xf32>
    %310 = arith.addf %309, %308 : vector<2x192xf32>
    %311 = arith.divf %309, %310 : vector<2x192xf32>
    %312 = vector.extract_strided_slice %305 {offsets = [0, 192], sizes = [2, 64], strides = [1, 1]} : vector<2x256xf32> to vector<2x64xf32>
    %313 = math.tanh %312 : vector<2x64xf32>
    %314 = vector.extract_strided_slice %311 {offsets = [0, 0], sizes = [2, 64], strides = [1, 1]} : vector<2x192xf32> to vector<2x64xf32>
    %315 = vector.extract_strided_slice %311 {offsets = [0, 64], sizes = [2, 64], strides = [1, 1]} : vector<2x192xf32> to vector<2x64xf32>
    %316 = vector.extract_strided_slice %311 {offsets = [0, 128], sizes = [2, 64], strides = [1, 1]} : vector<2x192xf32> to vector<2x64xf32>
    %317 = arith.mulf %315, %68 : vector<2x64xf32>
    %318 = arith.mulf %314, %313 : vector<2x64xf32>
    %319 = arith.addf %317, %318 : vector<2x64xf32>
    %320 = math.tanh %319 : vector<2x64xf32>
    %321 = arith.mulf %316, %320 : vector<2x64xf32>
    %322 = tpu.concatenate %321, %95 in 1 : vector<2x64xf32>, vector<2x64xf32> -> vector<2x128xf32>
    %323 = arith.truncf %322 : vector<2x128xf32> to vector<2x128xbf16>
    %c1_109 = arith.constant 1 : index
    %c0_110 = arith.constant 0 : index
    %c0_111 = arith.constant 0 : index
    %324 = vector.load %arg2[%c1_109, %c0_110, %c0_111] : memref<9x128x256xbf16, #tpu.memory_space<vmem>>, vector<1x128x256xbf16>
    %325 = vector.shape_cast %324 : vector<1x128x256xbf16> to vector<128x256xbf16>
    %cst_112 = arith.constant dense<0.000000e+00> : vector<2x256xf32>
    %326 = tpu.matmul %323, %325, %cst_112 {dimension_numbers = #tpu.dot_dimension_numbers<[1], [0], [0], [1], [0, 0, 1, 1], [], []>} : vector<2x128xbf16>, vector<128x256xbf16>, vector<2x256xf32> -> vector<2x256xf32>
    %c2_113 = arith.constant 2 : index
    %c0_114 = arith.constant 0 : index
    %c0_115 = arith.constant 0 : index
    %327 = vector.load %arg3[%c2_113, %c0_114, %c0_115] : memref<10x1x256xf32, #tpu.memory_space<vmem>>, vector<1x1x256xf32>
    %328 = vector.shape_cast %327 : vector<1x1x256xf32> to vector<1x256xf32>
    %329 = vector.broadcast %328 : vector<1x256xf32> to vector<2x256xf32>
    %330 = arith.addf %326, %329 : vector<2x256xf32>
    %331 = vector.extract_strided_slice %330 {offsets = [0, 0], sizes = [2, 192], strides = [1, 1]} : vector<2x256xf32> to vector<2x192xf32>
    %332 = arith.negf %331 : vector<2x192xf32>
    %333 = math.exp %332 : vector<2x192xf32>
    %cst_116 = arith.constant 1.000000e+00 : f32
    %334 = vector.broadcast %cst_116 : f32 to vector<2x192xf32>
    %335 = arith.addf %334, %333 : vector<2x192xf32>
    %336 = arith.divf %334, %335 : vector<2x192xf32>
    %337 = vector.extract_strided_slice %330 {offsets = [0, 192], sizes = [2, 64], strides = [1, 1]} : vector<2x256xf32> to vector<2x64xf32>
    %338 = math.tanh %337 : vector<2x64xf32>
    %339 = vector.extract_strided_slice %336 {offsets = [0, 0], sizes = [2, 64], strides = [1, 1]} : vector<2x192xf32> to vector<2x64xf32>
    %340 = vector.extract_strided_slice %336 {offsets = [0, 64], sizes = [2, 64], strides = [1, 1]} : vector<2x192xf32> to vector<2x64xf32>
    %341 = vector.extract_strided_slice %336 {offsets = [0, 128], sizes = [2, 64], strides = [1, 1]} : vector<2x192xf32> to vector<2x64xf32>
    %342 = arith.mulf %340, %93 : vector<2x64xf32>
    %343 = arith.mulf %339, %338 : vector<2x64xf32>
    %344 = arith.addf %342, %343 : vector<2x64xf32>
    %345 = math.tanh %344 : vector<2x64xf32>
    %346 = arith.mulf %341, %345 : vector<2x64xf32>
    %347 = tpu.concatenate %346, %120 in 1 : vector<2x64xf32>, vector<2x64xf32> -> vector<2x128xf32>
    %348 = arith.truncf %347 : vector<2x128xf32> to vector<2x128xbf16>
    %c2_117 = arith.constant 2 : index
    %c0_118 = arith.constant 0 : index
    %c0_119 = arith.constant 0 : index
    %349 = vector.load %arg2[%c2_117, %c0_118, %c0_119] : memref<9x128x256xbf16, #tpu.memory_space<vmem>>, vector<1x128x256xbf16>
    %350 = vector.shape_cast %349 : vector<1x128x256xbf16> to vector<128x256xbf16>
    %cst_120 = arith.constant dense<0.000000e+00> : vector<2x256xf32>
    %351 = tpu.matmul %348, %350, %cst_120 {dimension_numbers = #tpu.dot_dimension_numbers<[1], [0], [0], [1], [0, 0, 1, 1], [], []>} : vector<2x128xbf16>, vector<128x256xbf16>, vector<2x256xf32> -> vector<2x256xf32>
    %c3_121 = arith.constant 3 : index
    %c0_122 = arith.constant 0 : index
    %c0_123 = arith.constant 0 : index
    %352 = vector.load %arg3[%c3_121, %c0_122, %c0_123] : memref<10x1x256xf32, #tpu.memory_space<vmem>>, vector<1x1x256xf32>
    %353 = vector.shape_cast %352 : vector<1x1x256xf32> to vector<1x256xf32>
    %354 = vector.broadcast %353 : vector<1x256xf32> to vector<2x256xf32>
    %355 = arith.addf %351, %354 : vector<2x256xf32>
    %356 = vector.extract_strided_slice %355 {offsets = [0, 0], sizes = [2, 192], strides = [1, 1]} : vector<2x256xf32> to vector<2x192xf32>
    %357 = arith.negf %356 : vector<2x192xf32>
    %358 = math.exp %357 : vector<2x192xf32>
    %cst_124 = arith.constant 1.000000e+00 : f32
    %359 = vector.broadcast %cst_124 : f32 to vector<2x192xf32>
    %360 = arith.addf %359, %358 : vector<2x192xf32>
    %361 = arith.divf %359, %360 : vector<2x192xf32>
    %362 = vector.extract_strided_slice %355 {offsets = [0, 192], sizes = [2, 64], strides = [1, 1]} : vector<2x256xf32> to vector<2x64xf32>
    %363 = math.tanh %362 : vector<2x64xf32>
    %364 = vector.extract_strided_slice %361 {offsets = [0, 0], sizes = [2, 64], strides = [1, 1]} : vector<2x192xf32> to vector<2x64xf32>
    %365 = vector.extract_strided_slice %361 {offsets = [0, 64], sizes = [2, 64], strides = [1, 1]} : vector<2x192xf32> to vector<2x64xf32>
    %366 = vector.extract_strided_slice %361 {offsets = [0, 128], sizes = [2, 64], strides = [1, 1]} : vector<2x192xf32> to vector<2x64xf32>
    %367 = arith.mulf %365, %118 : vector<2x64xf32>
    %368 = arith.mulf %364, %363 : vector<2x64xf32>
    %369 = arith.addf %367, %368 : vector<2x64xf32>
    %370 = math.tanh %369 : vector<2x64xf32>
    %371 = arith.mulf %366, %370 : vector<2x64xf32>
    %372 = tpu.concatenate %371, %145 in 1 : vector<2x64xf32>, vector<2x64xf32> -> vector<2x128xf32>
    %373 = arith.truncf %372 : vector<2x128xf32> to vector<2x128xbf16>
    %c3_125 = arith.constant 3 : index
    %c0_126 = arith.constant 0 : index
    %c0_127 = arith.constant 0 : index
    %374 = vector.load %arg2[%c3_125, %c0_126, %c0_127] : memref<9x128x256xbf16, #tpu.memory_space<vmem>>, vector<1x128x256xbf16>
    %375 = vector.shape_cast %374 : vector<1x128x256xbf16> to vector<128x256xbf16>
    %cst_128 = arith.constant dense<0.000000e+00> : vector<2x256xf32>
    %376 = tpu.matmul %373, %375, %cst_128 {dimension_numbers = #tpu.dot_dimension_numbers<[1], [0], [0], [1], [0, 0, 1, 1], [], []>} : vector<2x128xbf16>, vector<128x256xbf16>, vector<2x256xf32> -> vector<2x256xf32>
    %c4_129 = arith.constant 4 : index
    %c0_130 = arith.constant 0 : index
    %c0_131 = arith.constant 0 : index
    %377 = vector.load %arg3[%c4_129, %c0_130, %c0_131] : memref<10x1x256xf32, #tpu.memory_space<vmem>>, vector<1x1x256xf32>
    %378 = vector.shape_cast %377 : vector<1x1x256xf32> to vector<1x256xf32>
    %379 = vector.broadcast %378 : vector<1x256xf32> to vector<2x256xf32>
    %380 = arith.addf %376, %379 : vector<2x256xf32>
    %381 = vector.extract_strided_slice %380 {offsets = [0, 0], sizes = [2, 192], strides = [1, 1]} : vector<2x256xf32> to vector<2x192xf32>
    %382 = arith.negf %381 : vector<2x192xf32>
    %383 = math.exp %382 : vector<2x192xf32>
    %cst_132 = arith.constant 1.000000e+00 : f32
    %384 = vector.broadcast %cst_132 : f32 to vector<2x192xf32>
    %385 = arith.addf %384, %383 : vector<2x192xf32>
    %386 = arith.divf %384, %385 : vector<2x192xf32>
    %387 = vector.extract_strided_slice %380 {offsets = [0, 192], sizes = [2, 64], strides = [1, 1]} : vector<2x256xf32> to vector<2x64xf32>
    %388 = math.tanh %387 : vector<2x64xf32>
    %389 = vector.extract_strided_slice %386 {offsets = [0, 0], sizes = [2, 64], strides = [1, 1]} : vector<2x192xf32> to vector<2x64xf32>
    %390 = vector.extract_strided_slice %386 {offsets = [0, 64], sizes = [2, 64], strides = [1, 1]} : vector<2x192xf32> to vector<2x64xf32>
    %391 = vector.extract_strided_slice %386 {offsets = [0, 128], sizes = [2, 64], strides = [1, 1]} : vector<2x192xf32> to vector<2x64xf32>
    %392 = arith.mulf %390, %143 : vector<2x64xf32>
    %393 = arith.mulf %389, %388 : vector<2x64xf32>
    %394 = arith.addf %392, %393 : vector<2x64xf32>
    %395 = math.tanh %394 : vector<2x64xf32>
    %396 = arith.mulf %391, %395 : vector<2x64xf32>
    %397 = tpu.concatenate %396, %170 in 1 : vector<2x64xf32>, vector<2x64xf32> -> vector<2x128xf32>
    %398 = arith.truncf %397 : vector<2x128xf32> to vector<2x128xbf16>
    %c4_133 = arith.constant 4 : index
    %c0_134 = arith.constant 0 : index
    %c0_135 = arith.constant 0 : index
    %399 = vector.load %arg2[%c4_133, %c0_134, %c0_135] : memref<9x128x256xbf16, #tpu.memory_space<vmem>>, vector<1x128x256xbf16>
    %400 = vector.shape_cast %399 : vector<1x128x256xbf16> to vector<128x256xbf16>
    %cst_136 = arith.constant dense<0.000000e+00> : vector<2x256xf32>
    %401 = tpu.matmul %398, %400, %cst_136 {dimension_numbers = #tpu.dot_dimension_numbers<[1], [0], [0], [1], [0, 0, 1, 1], [], []>} : vector<2x128xbf16>, vector<128x256xbf16>, vector<2x256xf32> -> vector<2x256xf32>
    %c5_137 = arith.constant 5 : index
    %c0_138 = arith.constant 0 : index
    %c0_139 = arith.constant 0 : index
    %402 = vector.load %arg3[%c5_137, %c0_138, %c0_139] : memref<10x1x256xf32, #tpu.memory_space<vmem>>, vector<1x1x256xf32>
    %403 = vector.shape_cast %402 : vector<1x1x256xf32> to vector<1x256xf32>
    %404 = vector.broadcast %403 : vector<1x256xf32> to vector<2x256xf32>
    %405 = arith.addf %401, %404 : vector<2x256xf32>
    %406 = vector.extract_strided_slice %405 {offsets = [0, 0], sizes = [2, 192], strides = [1, 1]} : vector<2x256xf32> to vector<2x192xf32>
    %407 = arith.negf %406 : vector<2x192xf32>
    %408 = math.exp %407 : vector<2x192xf32>
    %cst_140 = arith.constant 1.000000e+00 : f32
    %409 = vector.broadcast %cst_140 : f32 to vector<2x192xf32>
    %410 = arith.addf %409, %408 : vector<2x192xf32>
    %411 = arith.divf %409, %410 : vector<2x192xf32>
    %412 = vector.extract_strided_slice %405 {offsets = [0, 192], sizes = [2, 64], strides = [1, 1]} : vector<2x256xf32> to vector<2x64xf32>
    %413 = math.tanh %412 : vector<2x64xf32>
    %414 = vector.extract_strided_slice %411 {offsets = [0, 0], sizes = [2, 64], strides = [1, 1]} : vector<2x192xf32> to vector<2x64xf32>
    %415 = vector.extract_strided_slice %411 {offsets = [0, 64], sizes = [2, 64], strides = [1, 1]} : vector<2x192xf32> to vector<2x64xf32>
    %416 = vector.extract_strided_slice %411 {offsets = [0, 128], sizes = [2, 64], strides = [1, 1]} : vector<2x192xf32> to vector<2x64xf32>
    %417 = arith.mulf %415, %168 : vector<2x64xf32>
    %418 = arith.mulf %414, %413 : vector<2x64xf32>
    %419 = arith.addf %417, %418 : vector<2x64xf32>
    %420 = math.tanh %419 : vector<2x64xf32>
    %421 = arith.mulf %416, %420 : vector<2x64xf32>
    %422 = tpu.concatenate %421, %195 in 1 : vector<2x64xf32>, vector<2x64xf32> -> vector<2x128xf32>
    %423 = arith.truncf %422 : vector<2x128xf32> to vector<2x128xbf16>
    %c5_141 = arith.constant 5 : index
    %c0_142 = arith.constant 0 : index
    %c0_143 = arith.constant 0 : index
    %424 = vector.load %arg2[%c5_141, %c0_142, %c0_143] : memref<9x128x256xbf16, #tpu.memory_space<vmem>>, vector<1x128x256xbf16>
    %425 = vector.shape_cast %424 : vector<1x128x256xbf16> to vector<128x256xbf16>
    %cst_144 = arith.constant dense<0.000000e+00> : vector<2x256xf32>
    %426 = tpu.matmul %423, %425, %cst_144 {dimension_numbers = #tpu.dot_dimension_numbers<[1], [0], [0], [1], [0, 0, 1, 1], [], []>} : vector<2x128xbf16>, vector<128x256xbf16>, vector<2x256xf32> -> vector<2x256xf32>
    %c6_145 = arith.constant 6 : index
    %c0_146 = arith.constant 0 : index
    %c0_147 = arith.constant 0 : index
    %427 = vector.load %arg3[%c6_145, %c0_146, %c0_147] : memref<10x1x256xf32, #tpu.memory_space<vmem>>, vector<1x1x256xf32>
    %428 = vector.shape_cast %427 : vector<1x1x256xf32> to vector<1x256xf32>
    %429 = vector.broadcast %428 : vector<1x256xf32> to vector<2x256xf32>
    %430 = arith.addf %426, %429 : vector<2x256xf32>
    %431 = vector.extract_strided_slice %430 {offsets = [0, 0], sizes = [2, 192], strides = [1, 1]} : vector<2x256xf32> to vector<2x192xf32>
    %432 = arith.negf %431 : vector<2x192xf32>
    %433 = math.exp %432 : vector<2x192xf32>
    %cst_148 = arith.constant 1.000000e+00 : f32
    %434 = vector.broadcast %cst_148 : f32 to vector<2x192xf32>
    %435 = arith.addf %434, %433 : vector<2x192xf32>
    %436 = arith.divf %434, %435 : vector<2x192xf32>
    %437 = vector.extract_strided_slice %430 {offsets = [0, 192], sizes = [2, 64], strides = [1, 1]} : vector<2x256xf32> to vector<2x64xf32>
    %438 = math.tanh %437 : vector<2x64xf32>
    %439 = vector.extract_strided_slice %436 {offsets = [0, 0], sizes = [2, 64], strides = [1, 1]} : vector<2x192xf32> to vector<2x64xf32>
    %440 = vector.extract_strided_slice %436 {offsets = [0, 64], sizes = [2, 64], strides = [1, 1]} : vector<2x192xf32> to vector<2x64xf32>
    %441 = vector.extract_strided_slice %436 {offsets = [0, 128], sizes = [2, 64], strides = [1, 1]} : vector<2x192xf32> to vector<2x64xf32>
    %442 = arith.mulf %440, %193 : vector<2x64xf32>
    %443 = arith.mulf %439, %438 : vector<2x64xf32>
    %444 = arith.addf %442, %443 : vector<2x64xf32>
    %445 = math.tanh %444 : vector<2x64xf32>
    %446 = arith.mulf %441, %445 : vector<2x64xf32>
    %447 = tpu.concatenate %446, %220 in 1 : vector<2x64xf32>, vector<2x64xf32> -> vector<2x128xf32>
    %448 = arith.truncf %447 : vector<2x128xf32> to vector<2x128xbf16>
    %c6_149 = arith.constant 6 : index
    %c0_150 = arith.constant 0 : index
    %c0_151 = arith.constant 0 : index
    %449 = vector.load %arg2[%c6_149, %c0_150, %c0_151] : memref<9x128x256xbf16, #tpu.memory_space<vmem>>, vector<1x128x256xbf16>
    %450 = vector.shape_cast %449 : vector<1x128x256xbf16> to vector<128x256xbf16>
    %cst_152 = arith.constant dense<0.000000e+00> : vector<2x256xf32>
    %451 = tpu.matmul %448, %450, %cst_152 {dimension_numbers = #tpu.dot_dimension_numbers<[1], [0], [0], [1], [0, 0, 1, 1], [], []>} : vector<2x128xbf16>, vector<128x256xbf16>, vector<2x256xf32> -> vector<2x256xf32>
    %c7_153 = arith.constant 7 : index
    %c0_154 = arith.constant 0 : index
    %c0_155 = arith.constant 0 : index
    %452 = vector.load %arg3[%c7_153, %c0_154, %c0_155] : memref<10x1x256xf32, #tpu.memory_space<vmem>>, vector<1x1x256xf32>
    %453 = vector.shape_cast %452 : vector<1x1x256xf32> to vector<1x256xf32>
    %454 = vector.broadcast %453 : vector<1x256xf32> to vector<2x256xf32>
    %455 = arith.addf %451, %454 : vector<2x256xf32>
    %456 = vector.extract_strided_slice %455 {offsets = [0, 0], sizes = [2, 192], strides = [1, 1]} : vector<2x256xf32> to vector<2x192xf32>
    %457 = arith.negf %456 : vector<2x192xf32>
    %458 = math.exp %457 : vector<2x192xf32>
    %cst_156 = arith.constant 1.000000e+00 : f32
    %459 = vector.broadcast %cst_156 : f32 to vector<2x192xf32>
    %460 = arith.addf %459, %458 : vector<2x192xf32>
    %461 = arith.divf %459, %460 : vector<2x192xf32>
    %462 = vector.extract_strided_slice %455 {offsets = [0, 192], sizes = [2, 64], strides = [1, 1]} : vector<2x256xf32> to vector<2x64xf32>
    %463 = math.tanh %462 : vector<2x64xf32>
    %464 = vector.extract_strided_slice %461 {offsets = [0, 0], sizes = [2, 64], strides = [1, 1]} : vector<2x192xf32> to vector<2x64xf32>
    %465 = vector.extract_strided_slice %461 {offsets = [0, 64], sizes = [2, 64], strides = [1, 1]} : vector<2x192xf32> to vector<2x64xf32>
    %466 = vector.extract_strided_slice %461 {offsets = [0, 128], sizes = [2, 64], strides = [1, 1]} : vector<2x192xf32> to vector<2x64xf32>
    %467 = arith.mulf %465, %218 : vector<2x64xf32>
    %468 = arith.mulf %464, %463 : vector<2x64xf32>
    %469 = arith.addf %467, %468 : vector<2x64xf32>
    %470 = math.tanh %469 : vector<2x64xf32>
    %471 = arith.mulf %466, %470 : vector<2x64xf32>
    %472 = tpu.concatenate %471, %245 in 1 : vector<2x64xf32>, vector<2x64xf32> -> vector<2x128xf32>
    %473 = arith.truncf %472 : vector<2x128xf32> to vector<2x128xbf16>
    %c7_157 = arith.constant 7 : index
    %c0_158 = arith.constant 0 : index
    %c0_159 = arith.constant 0 : index
    %474 = vector.load %arg2[%c7_157, %c0_158, %c0_159] : memref<9x128x256xbf16, #tpu.memory_space<vmem>>, vector<1x128x256xbf16>
    %475 = vector.shape_cast %474 : vector<1x128x256xbf16> to vector<128x256xbf16>
    %cst_160 = arith.constant dense<0.000000e+00> : vector<2x256xf32>
    %476 = tpu.matmul %473, %475, %cst_160 {dimension_numbers = #tpu.dot_dimension_numbers<[1], [0], [0], [1], [0, 0, 1, 1], [], []>} : vector<2x128xbf16>, vector<128x256xbf16>, vector<2x256xf32> -> vector<2x256xf32>
    %c8_161 = arith.constant 8 : index
    %c0_162 = arith.constant 0 : index
    %c0_163 = arith.constant 0 : index
    %477 = vector.load %arg3[%c8_161, %c0_162, %c0_163] : memref<10x1x256xf32, #tpu.memory_space<vmem>>, vector<1x1x256xf32>
    %478 = vector.shape_cast %477 : vector<1x1x256xf32> to vector<1x256xf32>
    %479 = vector.broadcast %478 : vector<1x256xf32> to vector<2x256xf32>
    %480 = arith.addf %476, %479 : vector<2x256xf32>
    %481 = vector.extract_strided_slice %480 {offsets = [0, 0], sizes = [2, 192], strides = [1, 1]} : vector<2x256xf32> to vector<2x192xf32>
    %482 = arith.negf %481 : vector<2x192xf32>
    %483 = math.exp %482 : vector<2x192xf32>
    %cst_164 = arith.constant 1.000000e+00 : f32
    %484 = vector.broadcast %cst_164 : f32 to vector<2x192xf32>
    %485 = arith.addf %484, %483 : vector<2x192xf32>
    %486 = arith.divf %484, %485 : vector<2x192xf32>
    %487 = vector.extract_strided_slice %480 {offsets = [0, 192], sizes = [2, 64], strides = [1, 1]} : vector<2x256xf32> to vector<2x64xf32>
    %488 = math.tanh %487 : vector<2x64xf32>
    %489 = vector.extract_strided_slice %486 {offsets = [0, 0], sizes = [2, 64], strides = [1, 1]} : vector<2x192xf32> to vector<2x64xf32>
    %490 = vector.extract_strided_slice %486 {offsets = [0, 64], sizes = [2, 64], strides = [1, 1]} : vector<2x192xf32> to vector<2x64xf32>
    %491 = vector.extract_strided_slice %486 {offsets = [0, 128], sizes = [2, 64], strides = [1, 1]} : vector<2x192xf32> to vector<2x64xf32>
    %492 = arith.mulf %490, %243 : vector<2x64xf32>
    %493 = arith.mulf %489, %488 : vector<2x64xf32>
    %494 = arith.addf %492, %493 : vector<2x64xf32>
    %495 = math.tanh %494 : vector<2x64xf32>
    %496 = arith.mulf %491, %495 : vector<2x64xf32>
    %497 = tpu.concatenate %496, %270 in 1 : vector<2x64xf32>, vector<2x64xf32> -> vector<2x128xf32>
    %498 = arith.truncf %497 : vector<2x128xf32> to vector<2x128xbf16>
    %c8_165 = arith.constant 8 : index
    %c0_166 = arith.constant 0 : index
    %c0_167 = arith.constant 0 : index
    %499 = vector.load %arg2[%c8_165, %c0_166, %c0_167] : memref<9x128x256xbf16, #tpu.memory_space<vmem>>, vector<1x128x256xbf16>
    %500 = vector.shape_cast %499 : vector<1x128x256xbf16> to vector<128x256xbf16>
    %cst_168 = arith.constant dense<0.000000e+00> : vector<2x256xf32>
    %501 = tpu.matmul %498, %500, %cst_168 {dimension_numbers = #tpu.dot_dimension_numbers<[1], [0], [0], [1], [0, 0, 1, 1], [], []>} : vector<2x128xbf16>, vector<128x256xbf16>, vector<2x256xf32> -> vector<2x256xf32>
    %c9_169 = arith.constant 9 : index
    %c0_170 = arith.constant 0 : index
    %c0_171 = arith.constant 0 : index
    %502 = vector.load %arg3[%c9_169, %c0_170, %c0_171] : memref<10x1x256xf32, #tpu.memory_space<vmem>>, vector<1x1x256xf32>
    %503 = vector.shape_cast %502 : vector<1x1x256xf32> to vector<1x256xf32>
    %504 = vector.broadcast %503 : vector<1x256xf32> to vector<2x256xf32>
    %505 = arith.addf %501, %504 : vector<2x256xf32>
    %506 = vector.extract_strided_slice %505 {offsets = [0, 0], sizes = [2, 192], strides = [1, 1]} : vector<2x256xf32> to vector<2x192xf32>
    %507 = arith.negf %506 : vector<2x192xf32>
    %508 = math.exp %507 : vector<2x192xf32>
    %cst_172 = arith.constant 1.000000e+00 : f32
    %509 = vector.broadcast %cst_172 : f32 to vector<2x192xf32>
    %510 = arith.addf %509, %508 : vector<2x192xf32>
    %511 = arith.divf %509, %510 : vector<2x192xf32>
    %512 = vector.extract_strided_slice %505 {offsets = [0, 192], sizes = [2, 64], strides = [1, 1]} : vector<2x256xf32> to vector<2x64xf32>
    %513 = math.tanh %512 : vector<2x64xf32>
    %514 = vector.extract_strided_slice %511 {offsets = [0, 0], sizes = [2, 64], strides = [1, 1]} : vector<2x192xf32> to vector<2x64xf32>
    %515 = vector.extract_strided_slice %511 {offsets = [0, 64], sizes = [2, 64], strides = [1, 1]} : vector<2x192xf32> to vector<2x64xf32>
    %516 = vector.extract_strided_slice %511 {offsets = [0, 128], sizes = [2, 64], strides = [1, 1]} : vector<2x192xf32> to vector<2x64xf32>
    %517 = arith.mulf %515, %268 : vector<2x64xf32>
    %518 = arith.mulf %514, %513 : vector<2x64xf32>
    %519 = arith.addf %517, %518 : vector<2x64xf32>
    %520 = math.tanh %519 : vector<2x64xf32>
    %521 = arith.mulf %516, %520 : vector<2x64xf32>
    %c2_173 = arith.constant 2 : index
    %c0_174 = arith.constant 0 : index
    %c0_175 = arith.constant 0 : index
    %522 = vector.load %arg0[%c2_173, %c0_174, %c0_175] : memref<8x2x256xf32, #tpu.memory_space<vmem>>, vector<1x2x256xf32>
    %523 = vector.shape_cast %522 : vector<1x2x256xf32> to vector<2x256xf32>
    %524 = arith.truncf %296 : vector<2x64xf32> to vector<2x64xbf16>
    %c0_176 = arith.constant 0 : index
    %c0_177 = arith.constant 0 : index
    %525 = vector.load %arg1[%c0_176, %c0_177] : memref<64x256xbf16, #tpu.memory_space<vmem>>, vector<64x256xbf16>
    %cst_178 = arith.constant dense<0.000000e+00> : vector<2x256xf32>
    %526 = tpu.matmul %524, %525, %cst_178 {dimension_numbers = #tpu.dot_dimension_numbers<[1], [0], [0], [1], [0, 0, 1, 1], [], []>} : vector<2x64xbf16>, vector<64x256xbf16>, vector<2x256xf32> -> vector<2x256xf32>
    %527 = arith.addf %523, %526 : vector<2x256xf32>
    %c0_179 = arith.constant 0 : index
    %c0_180 = arith.constant 0 : index
    %c0_181 = arith.constant 0 : index
    %528 = vector.load %arg3[%c0_179, %c0_180, %c0_181] : memref<10x1x256xf32, #tpu.memory_space<vmem>>, vector<1x1x256xf32>
    %529 = vector.shape_cast %528 : vector<1x1x256xf32> to vector<1x256xf32>
    %530 = vector.broadcast %529 : vector<1x256xf32> to vector<2x256xf32>
    %531 = arith.addf %527, %530 : vector<2x256xf32>
    %532 = vector.extract_strided_slice %531 {offsets = [0, 0], sizes = [2, 192], strides = [1, 1]} : vector<2x256xf32> to vector<2x192xf32>
    %533 = arith.negf %532 : vector<2x192xf32>
    %534 = math.exp %533 : vector<2x192xf32>
    %cst_182 = arith.constant 1.000000e+00 : f32
    %535 = vector.broadcast %cst_182 : f32 to vector<2x192xf32>
    %536 = arith.addf %535, %534 : vector<2x192xf32>
    %537 = arith.divf %535, %536 : vector<2x192xf32>
    %538 = vector.extract_strided_slice %531 {offsets = [0, 192], sizes = [2, 64], strides = [1, 1]} : vector<2x256xf32> to vector<2x64xf32>
    %539 = math.tanh %538 : vector<2x64xf32>
    %540 = vector.extract_strided_slice %537 {offsets = [0, 0], sizes = [2, 64], strides = [1, 1]} : vector<2x192xf32> to vector<2x64xf32>
    %541 = vector.extract_strided_slice %537 {offsets = [0, 64], sizes = [2, 64], strides = [1, 1]} : vector<2x192xf32> to vector<2x64xf32>
    %542 = vector.extract_strided_slice %537 {offsets = [0, 128], sizes = [2, 64], strides = [1, 1]} : vector<2x192xf32> to vector<2x64xf32>
    %543 = arith.mulf %541, %294 : vector<2x64xf32>
    %544 = arith.mulf %540, %539 : vector<2x64xf32>
    %545 = arith.addf %543, %544 : vector<2x64xf32>
    %546 = math.tanh %545 : vector<2x64xf32>
    %547 = arith.mulf %542, %546 : vector<2x64xf32>
    %548 = tpu.concatenate %547, %321 in 1 : vector<2x64xf32>, vector<2x64xf32> -> vector<2x128xf32>
    %549 = arith.truncf %548 : vector<2x128xf32> to vector<2x128xbf16>
    %c0_183 = arith.constant 0 : index
    %c0_184 = arith.constant 0 : index
    %c0_185 = arith.constant 0 : index
    %550 = vector.load %arg2[%c0_183, %c0_184, %c0_185] : memref<9x128x256xbf16, #tpu.memory_space<vmem>>, vector<1x128x256xbf16>
    %551 = vector.shape_cast %550 : vector<1x128x256xbf16> to vector<128x256xbf16>
    %cst_186 = arith.constant dense<0.000000e+00> : vector<2x256xf32>
    %552 = tpu.matmul %549, %551, %cst_186 {dimension_numbers = #tpu.dot_dimension_numbers<[1], [0], [0], [1], [0, 0, 1, 1], [], []>} : vector<2x128xbf16>, vector<128x256xbf16>, vector<2x256xf32> -> vector<2x256xf32>
    %c1_187 = arith.constant 1 : index
    %c0_188 = arith.constant 0 : index
    %c0_189 = arith.constant 0 : index
    %553 = vector.load %arg3[%c1_187, %c0_188, %c0_189] : memref<10x1x256xf32, #tpu.memory_space<vmem>>, vector<1x1x256xf32>
    %554 = vector.shape_cast %553 : vector<1x1x256xf32> to vector<1x256xf32>
    %555 = vector.broadcast %554 : vector<1x256xf32> to vector<2x256xf32>
    %556 = arith.addf %552, %555 : vector<2x256xf32>
    %557 = vector.extract_strided_slice %556 {offsets = [0, 0], sizes = [2, 192], strides = [1, 1]} : vector<2x256xf32> to vector<2x192xf32>
    %558 = arith.negf %557 : vector<2x192xf32>
    %559 = math.exp %558 : vector<2x192xf32>
    %cst_190 = arith.constant 1.000000e+00 : f32
    %560 = vector.broadcast %cst_190 : f32 to vector<2x192xf32>
    %561 = arith.addf %560, %559 : vector<2x192xf32>
    %562 = arith.divf %560, %561 : vector<2x192xf32>
    %563 = vector.extract_strided_slice %556 {offsets = [0, 192], sizes = [2, 64], strides = [1, 1]} : vector<2x256xf32> to vector<2x64xf32>
    %564 = math.tanh %563 : vector<2x64xf32>
    %565 = vector.extract_strided_slice %562 {offsets = [0, 0], sizes = [2, 64], strides = [1, 1]} : vector<2x192xf32> to vector<2x64xf32>
    %566 = vector.extract_strided_slice %562 {offsets = [0, 64], sizes = [2, 64], strides = [1, 1]} : vector<2x192xf32> to vector<2x64xf32>
    %567 = vector.extract_strided_slice %562 {offsets = [0, 128], sizes = [2, 64], strides = [1, 1]} : vector<2x192xf32> to vector<2x64xf32>
    %568 = arith.mulf %566, %319 : vector<2x64xf32>
    %569 = arith.mulf %565, %564 : vector<2x64xf32>
    %570 = arith.addf %568, %569 : vector<2x64xf32>
    %571 = math.tanh %570 : vector<2x64xf32>
    %572 = arith.mulf %567, %571 : vector<2x64xf32>
    %573 = tpu.concatenate %572, %346 in 1 : vector<2x64xf32>, vector<2x64xf32> -> vector<2x128xf32>
    %574 = arith.truncf %573 : vector<2x128xf32> to vector<2x128xbf16>
    %c1_191 = arith.constant 1 : index
    %c0_192 = arith.constant 0 : index
    %c0_193 = arith.constant 0 : index
    %575 = vector.load %arg2[%c1_191, %c0_192, %c0_193] : memref<9x128x256xbf16, #tpu.memory_space<vmem>>, vector<1x128x256xbf16>
    %576 = vector.shape_cast %575 : vector<1x128x256xbf16> to vector<128x256xbf16>
    %cst_194 = arith.constant dense<0.000000e+00> : vector<2x256xf32>
    %577 = tpu.matmul %574, %576, %cst_194 {dimension_numbers = #tpu.dot_dimension_numbers<[1], [0], [0], [1], [0, 0, 1, 1], [], []>} : vector<2x128xbf16>, vector<128x256xbf16>, vector<2x256xf32> -> vector<2x256xf32>
    %c2_195 = arith.constant 2 : index
    %c0_196 = arith.constant 0 : index
    %c0_197 = arith.constant 0 : index
    %578 = vector.load %arg3[%c2_195, %c0_196, %c0_197] : memref<10x1x256xf32, #tpu.memory_space<vmem>>, vector<1x1x256xf32>
    %579 = vector.shape_cast %578 : vector<1x1x256xf32> to vector<1x256xf32>
    %580 = vector.broadcast %579 : vector<1x256xf32> to vector<2x256xf32>
    %581 = arith.addf %577, %580 : vector<2x256xf32>
    %582 = vector.extract_strided_slice %581 {offsets = [0, 0], sizes = [2, 192], strides = [1, 1]} : vector<2x256xf32> to vector<2x192xf32>
    %583 = arith.negf %582 : vector<2x192xf32>
    %584 = math.exp %583 : vector<2x192xf32>
    %cst_198 = arith.constant 1.000000e+00 : f32
    %585 = vector.broadcast %cst_198 : f32 to vector<2x192xf32>
    %586 = arith.addf %585, %584 : vector<2x192xf32>
    %587 = arith.divf %585, %586 : vector<2x192xf32>
    %588 = vector.extract_strided_slice %581 {offsets = [0, 192], sizes = [2, 64], strides = [1, 1]} : vector<2x256xf32> to vector<2x64xf32>
    %589 = math.tanh %588 : vector<2x64xf32>
    %590 = vector.extract_strided_slice %587 {offsets = [0, 0], sizes = [2, 64], strides = [1, 1]} : vector<2x192xf32> to vector<2x64xf32>
    %591 = vector.extract_strided_slice %587 {offsets = [0, 64], sizes = [2, 64], strides = [1, 1]} : vector<2x192xf32> to vector<2x64xf32>
    %592 = vector.extract_strided_slice %587 {offsets = [0, 128], sizes = [2, 64], strides = [1, 1]} : vector<2x192xf32> to vector<2x64xf32>
    %593 = arith.mulf %591, %344 : vector<2x64xf32>
    %594 = arith.mulf %590, %589 : vector<2x64xf32>
    %595 = arith.addf %593, %594 : vector<2x64xf32>
    %596 = math.tanh %595 : vector<2x64xf32>
    %597 = arith.mulf %592, %596 : vector<2x64xf32>
    %598 = tpu.concatenate %597, %371 in 1 : vector<2x64xf32>, vector<2x64xf32> -> vector<2x128xf32>
    %599 = arith.truncf %598 : vector<2x128xf32> to vector<2x128xbf16>
    %c2_199 = arith.constant 2 : index
    %c0_200 = arith.constant 0 : index
    %c0_201 = arith.constant 0 : index
    %600 = vector.load %arg2[%c2_199, %c0_200, %c0_201] : memref<9x128x256xbf16, #tpu.memory_space<vmem>>, vector<1x128x256xbf16>
    %601 = vector.shape_cast %600 : vector<1x128x256xbf16> to vector<128x256xbf16>
    %cst_202 = arith.constant dense<0.000000e+00> : vector<2x256xf32>
    %602 = tpu.matmul %599, %601, %cst_202 {dimension_numbers = #tpu.dot_dimension_numbers<[1], [0], [0], [1], [0, 0, 1, 1], [], []>} : vector<2x128xbf16>, vector<128x256xbf16>, vector<2x256xf32> -> vector<2x256xf32>
    %c3_203 = arith.constant 3 : index
    %c0_204 = arith.constant 0 : index
    %c0_205 = arith.constant 0 : index
    %603 = vector.load %arg3[%c3_203, %c0_204, %c0_205] : memref<10x1x256xf32, #tpu.memory_space<vmem>>, vector<1x1x256xf32>
    %604 = vector.shape_cast %603 : vector<1x1x256xf32> to vector<1x256xf32>
    %605 = vector.broadcast %604 : vector<1x256xf32> to vector<2x256xf32>
    %606 = arith.addf %602, %605 : vector<2x256xf32>
    %607 = vector.extract_strided_slice %606 {offsets = [0, 0], sizes = [2, 192], strides = [1, 1]} : vector<2x256xf32> to vector<2x192xf32>
    %608 = arith.negf %607 : vector<2x192xf32>
    %609 = math.exp %608 : vector<2x192xf32>
    %cst_206 = arith.constant 1.000000e+00 : f32
    %610 = vector.broadcast %cst_206 : f32 to vector<2x192xf32>
    %611 = arith.addf %610, %609 : vector<2x192xf32>
    %612 = arith.divf %610, %611 : vector<2x192xf32>
    %613 = vector.extract_strided_slice %606 {offsets = [0, 192], sizes = [2, 64], strides = [1, 1]} : vector<2x256xf32> to vector<2x64xf32>
    %614 = math.tanh %613 : vector<2x64xf32>
    %615 = vector.extract_strided_slice %612 {offsets = [0, 0], sizes = [2, 64], strides = [1, 1]} : vector<2x192xf32> to vector<2x64xf32>
    %616 = vector.extract_strided_slice %612 {offsets = [0, 64], sizes = [2, 64], strides = [1, 1]} : vector<2x192xf32> to vector<2x64xf32>
    %617 = vector.extract_strided_slice %612 {offsets = [0, 128], sizes = [2, 64], strides = [1, 1]} : vector<2x192xf32> to vector<2x64xf32>
    %618 = arith.mulf %616, %369 : vector<2x64xf32>
    %619 = arith.mulf %615, %614 : vector<2x64xf32>
    %620 = arith.addf %618, %619 : vector<2x64xf32>
    %621 = math.tanh %620 : vector<2x64xf32>
    %622 = arith.mulf %617, %621 : vector<2x64xf32>
    %623 = tpu.concatenate %622, %396 in 1 : vector<2x64xf32>, vector<2x64xf32> -> vector<2x128xf32>
    %624 = arith.truncf %623 : vector<2x128xf32> to vector<2x128xbf16>
    %c3_207 = arith.constant 3 : index
    %c0_208 = arith.constant 0 : index
    %c0_209 = arith.constant 0 : index
    %625 = vector.load %arg2[%c3_207, %c0_208, %c0_209] : memref<9x128x256xbf16, #tpu.memory_space<vmem>>, vector<1x128x256xbf16>
    %626 = vector.shape_cast %625 : vector<1x128x256xbf16> to vector<128x256xbf16>
    %cst_210 = arith.constant dense<0.000000e+00> : vector<2x256xf32>
    %627 = tpu.matmul %624, %626, %cst_210 {dimension_numbers = #tpu.dot_dimension_numbers<[1], [0], [0], [1], [0, 0, 1, 1], [], []>} : vector<2x128xbf16>, vector<128x256xbf16>, vector<2x256xf32> -> vector<2x256xf32>
    %c4_211 = arith.constant 4 : index
    %c0_212 = arith.constant 0 : index
    %c0_213 = arith.constant 0 : index
    %628 = vector.load %arg3[%c4_211, %c0_212, %c0_213] : memref<10x1x256xf32, #tpu.memory_space<vmem>>, vector<1x1x256xf32>
    %629 = vector.shape_cast %628 : vector<1x1x256xf32> to vector<1x256xf32>
    %630 = vector.broadcast %629 : vector<1x256xf32> to vector<2x256xf32>
    %631 = arith.addf %627, %630 : vector<2x256xf32>
    %632 = vector.extract_strided_slice %631 {offsets = [0, 0], sizes = [2, 192], strides = [1, 1]} : vector<2x256xf32> to vector<2x192xf32>
    %633 = arith.negf %632 : vector<2x192xf32>
    %634 = math.exp %633 : vector<2x192xf32>
    %cst_214 = arith.constant 1.000000e+00 : f32
    %635 = vector.broadcast %cst_214 : f32 to vector<2x192xf32>
    %636 = arith.addf %635, %634 : vector<2x192xf32>
    %637 = arith.divf %635, %636 : vector<2x192xf32>
    %638 = vector.extract_strided_slice %631 {offsets = [0, 192], sizes = [2, 64], strides = [1, 1]} : vector<2x256xf32> to vector<2x64xf32>
    %639 = math.tanh %638 : vector<2x64xf32>
    %640 = vector.extract_strided_slice %637 {offsets = [0, 0], sizes = [2, 64], strides = [1, 1]} : vector<2x192xf32> to vector<2x64xf32>
    %641 = vector.extract_strided_slice %637 {offsets = [0, 64], sizes = [2, 64], strides = [1, 1]} : vector<2x192xf32> to vector<2x64xf32>
    %642 = vector.extract_strided_slice %637 {offsets = [0, 128], sizes = [2, 64], strides = [1, 1]} : vector<2x192xf32> to vector<2x64xf32>
    %643 = arith.mulf %641, %394 : vector<2x64xf32>
    %644 = arith.mulf %640, %639 : vector<2x64xf32>
    %645 = arith.addf %643, %644 : vector<2x64xf32>
    %646 = math.tanh %645 : vector<2x64xf32>
    %647 = arith.mulf %642, %646 : vector<2x64xf32>
    %648 = tpu.concatenate %647, %421 in 1 : vector<2x64xf32>, vector<2x64xf32> -> vector<2x128xf32>
    %649 = arith.truncf %648 : vector<2x128xf32> to vector<2x128xbf16>
    %c4_215 = arith.constant 4 : index
    %c0_216 = arith.constant 0 : index
    %c0_217 = arith.constant 0 : index
    %650 = vector.load %arg2[%c4_215, %c0_216, %c0_217] : memref<9x128x256xbf16, #tpu.memory_space<vmem>>, vector<1x128x256xbf16>
    %651 = vector.shape_cast %650 : vector<1x128x256xbf16> to vector<128x256xbf16>
    %cst_218 = arith.constant dense<0.000000e+00> : vector<2x256xf32>
    %652 = tpu.matmul %649, %651, %cst_218 {dimension_numbers = #tpu.dot_dimension_numbers<[1], [0], [0], [1], [0, 0, 1, 1], [], []>} : vector<2x128xbf16>, vector<128x256xbf16>, vector<2x256xf32> -> vector<2x256xf32>
    %c5_219 = arith.constant 5 : index
    %c0_220 = arith.constant 0 : index
    %c0_221 = arith.constant 0 : index
    %653 = vector.load %arg3[%c5_219, %c0_220, %c0_221] : memref<10x1x256xf32, #tpu.memory_space<vmem>>, vector<1x1x256xf32>
    %654 = vector.shape_cast %653 : vector<1x1x256xf32> to vector<1x256xf32>
    %655 = vector.broadcast %654 : vector<1x256xf32> to vector<2x256xf32>
    %656 = arith.addf %652, %655 : vector<2x256xf32>
    %657 = vector.extract_strided_slice %656 {offsets = [0, 0], sizes = [2, 192], strides = [1, 1]} : vector<2x256xf32> to vector<2x192xf32>
    %658 = arith.negf %657 : vector<2x192xf32>
    %659 = math.exp %658 : vector<2x192xf32>
    %cst_222 = arith.constant 1.000000e+00 : f32
    %660 = vector.broadcast %cst_222 : f32 to vector<2x192xf32>
    %661 = arith.addf %660, %659 : vector<2x192xf32>
    %662 = arith.divf %660, %661 : vector<2x192xf32>
    %663 = vector.extract_strided_slice %656 {offsets = [0, 192], sizes = [2, 64], strides = [1, 1]} : vector<2x256xf32> to vector<2x64xf32>
    %664 = math.tanh %663 : vector<2x64xf32>
    %665 = vector.extract_strided_slice %662 {offsets = [0, 0], sizes = [2, 64], strides = [1, 1]} : vector<2x192xf32> to vector<2x64xf32>
    %666 = vector.extract_strided_slice %662 {offsets = [0, 64], sizes = [2, 64], strides = [1, 1]} : vector<2x192xf32> to vector<2x64xf32>
    %667 = vector.extract_strided_slice %662 {offsets = [0, 128], sizes = [2, 64], strides = [1, 1]} : vector<2x192xf32> to vector<2x64xf32>
    %668 = arith.mulf %666, %419 : vector<2x64xf32>
    %669 = arith.mulf %665, %664 : vector<2x64xf32>
    %670 = arith.addf %668, %669 : vector<2x64xf32>
    %671 = math.tanh %670 : vector<2x64xf32>
    %672 = arith.mulf %667, %671 : vector<2x64xf32>
    %673 = tpu.concatenate %672, %446 in 1 : vector<2x64xf32>, vector<2x64xf32> -> vector<2x128xf32>
    %674 = arith.truncf %673 : vector<2x128xf32> to vector<2x128xbf16>
    %c5_223 = arith.constant 5 : index
    %c0_224 = arith.constant 0 : index
    %c0_225 = arith.constant 0 : index
    %675 = vector.load %arg2[%c5_223, %c0_224, %c0_225] : memref<9x128x256xbf16, #tpu.memory_space<vmem>>, vector<1x128x256xbf16>
    %676 = vector.shape_cast %675 : vector<1x128x256xbf16> to vector<128x256xbf16>
    %cst_226 = arith.constant dense<0.000000e+00> : vector<2x256xf32>
    %677 = tpu.matmul %674, %676, %cst_226 {dimension_numbers = #tpu.dot_dimension_numbers<[1], [0], [0], [1], [0, 0, 1, 1], [], []>} : vector<2x128xbf16>, vector<128x256xbf16>, vector<2x256xf32> -> vector<2x256xf32>
    %c6_227 = arith.constant 6 : index
    %c0_228 = arith.constant 0 : index
    %c0_229 = arith.constant 0 : index
    %678 = vector.load %arg3[%c6_227, %c0_228, %c0_229] : memref<10x1x256xf32, #tpu.memory_space<vmem>>, vector<1x1x256xf32>
    %679 = vector.shape_cast %678 : vector<1x1x256xf32> to vector<1x256xf32>
    %680 = vector.broadcast %679 : vector<1x256xf32> to vector<2x256xf32>
    %681 = arith.addf %677, %680 : vector<2x256xf32>
    %682 = vector.extract_strided_slice %681 {offsets = [0, 0], sizes = [2, 192], strides = [1, 1]} : vector<2x256xf32> to vector<2x192xf32>
    %683 = arith.negf %682 : vector<2x192xf32>
    %684 = math.exp %683 : vector<2x192xf32>
    %cst_230 = arith.constant 1.000000e+00 : f32
    %685 = vector.broadcast %cst_230 : f32 to vector<2x192xf32>
    %686 = arith.addf %685, %684 : vector<2x192xf32>
    %687 = arith.divf %685, %686 : vector<2x192xf32>
    %688 = vector.extract_strided_slice %681 {offsets = [0, 192], sizes = [2, 64], strides = [1, 1]} : vector<2x256xf32> to vector<2x64xf32>
    %689 = math.tanh %688 : vector<2x64xf32>
    %690 = vector.extract_strided_slice %687 {offsets = [0, 0], sizes = [2, 64], strides = [1, 1]} : vector<2x192xf32> to vector<2x64xf32>
    %691 = vector.extract_strided_slice %687 {offsets = [0, 64], sizes = [2, 64], strides = [1, 1]} : vector<2x192xf32> to vector<2x64xf32>
    %692 = vector.extract_strided_slice %687 {offsets = [0, 128], sizes = [2, 64], strides = [1, 1]} : vector<2x192xf32> to vector<2x64xf32>
    %693 = arith.mulf %691, %444 : vector<2x64xf32>
    %694 = arith.mulf %690, %689 : vector<2x64xf32>
    %695 = arith.addf %693, %694 : vector<2x64xf32>
    %696 = math.tanh %695 : vector<2x64xf32>
    %697 = arith.mulf %692, %696 : vector<2x64xf32>
    %698 = tpu.concatenate %697, %471 in 1 : vector<2x64xf32>, vector<2x64xf32> -> vector<2x128xf32>
    %699 = arith.truncf %698 : vector<2x128xf32> to vector<2x128xbf16>
    %c6_231 = arith.constant 6 : index
    %c0_232 = arith.constant 0 : index
    %c0_233 = arith.constant 0 : index
    %700 = vector.load %arg2[%c6_231, %c0_232, %c0_233] : memref<9x128x256xbf16, #tpu.memory_space<vmem>>, vector<1x128x256xbf16>
    %701 = vector.shape_cast %700 : vector<1x128x256xbf16> to vector<128x256xbf16>
    %cst_234 = arith.constant dense<0.000000e+00> : vector<2x256xf32>
    %702 = tpu.matmul %699, %701, %cst_234 {dimension_numbers = #tpu.dot_dimension_numbers<[1], [0], [0], [1], [0, 0, 1, 1], [], []>} : vector<2x128xbf16>, vector<128x256xbf16>, vector<2x256xf32> -> vector<2x256xf32>
    %c7_235 = arith.constant 7 : index
    %c0_236 = arith.constant 0 : index
    %c0_237 = arith.constant 0 : index
    %703 = vector.load %arg3[%c7_235, %c0_236, %c0_237] : memref<10x1x256xf32, #tpu.memory_space<vmem>>, vector<1x1x256xf32>
    %704 = vector.shape_cast %703 : vector<1x1x256xf32> to vector<1x256xf32>
    %705 = vector.broadcast %704 : vector<1x256xf32> to vector<2x256xf32>
    %706 = arith.addf %702, %705 : vector<2x256xf32>
    %707 = vector.extract_strided_slice %706 {offsets = [0, 0], sizes = [2, 192], strides = [1, 1]} : vector<2x256xf32> to vector<2x192xf32>
    %708 = arith.negf %707 : vector<2x192xf32>
    %709 = math.exp %708 : vector<2x192xf32>
    %cst_238 = arith.constant 1.000000e+00 : f32
    %710 = vector.broadcast %cst_238 : f32 to vector<2x192xf32>
    %711 = arith.addf %710, %709 : vector<2x192xf32>
    %712 = arith.divf %710, %711 : vector<2x192xf32>
    %713 = vector.extract_strided_slice %706 {offsets = [0, 192], sizes = [2, 64], strides = [1, 1]} : vector<2x256xf32> to vector<2x64xf32>
    %714 = math.tanh %713 : vector<2x64xf32>
    %715 = vector.extract_strided_slice %712 {offsets = [0, 0], sizes = [2, 64], strides = [1, 1]} : vector<2x192xf32> to vector<2x64xf32>
    %716 = vector.extract_strided_slice %712 {offsets = [0, 64], sizes = [2, 64], strides = [1, 1]} : vector<2x192xf32> to vector<2x64xf32>
    %717 = vector.extract_strided_slice %712 {offsets = [0, 128], sizes = [2, 64], strides = [1, 1]} : vector<2x192xf32> to vector<2x64xf32>
    %718 = arith.mulf %716, %469 : vector<2x64xf32>
    %719 = arith.mulf %715, %714 : vector<2x64xf32>
    %720 = arith.addf %718, %719 : vector<2x64xf32>
    %721 = math.tanh %720 : vector<2x64xf32>
    %722 = arith.mulf %717, %721 : vector<2x64xf32>
    %723 = tpu.concatenate %722, %496 in 1 : vector<2x64xf32>, vector<2x64xf32> -> vector<2x128xf32>
    %724 = arith.truncf %723 : vector<2x128xf32> to vector<2x128xbf16>
    %c7_239 = arith.constant 7 : index
    %c0_240 = arith.constant 0 : index
    %c0_241 = arith.constant 0 : index
    %725 = vector.load %arg2[%c7_239, %c0_240, %c0_241] : memref<9x128x256xbf16, #tpu.memory_space<vmem>>, vector<1x128x256xbf16>
    %726 = vector.shape_cast %725 : vector<1x128x256xbf16> to vector<128x256xbf16>
    %cst_242 = arith.constant dense<0.000000e+00> : vector<2x256xf32>
    %727 = tpu.matmul %724, %726, %cst_242 {dimension_numbers = #tpu.dot_dimension_numbers<[1], [0], [0], [1], [0, 0, 1, 1], [], []>} : vector<2x128xbf16>, vector<128x256xbf16>, vector<2x256xf32> -> vector<2x256xf32>
    %c8_243 = arith.constant 8 : index
    %c0_244 = arith.constant 0 : index
    %c0_245 = arith.constant 0 : index
    %728 = vector.load %arg3[%c8_243, %c0_244, %c0_245] : memref<10x1x256xf32, #tpu.memory_space<vmem>>, vector<1x1x256xf32>
    %729 = vector.shape_cast %728 : vector<1x1x256xf32> to vector<1x256xf32>
    %730 = vector.broadcast %729 : vector<1x256xf32> to vector<2x256xf32>
    %731 = arith.addf %727, %730 : vector<2x256xf32>
    %732 = vector.extract_strided_slice %731 {offsets = [0, 0], sizes = [2, 192], strides = [1, 1]} : vector<2x256xf32> to vector<2x192xf32>
    %733 = arith.negf %732 : vector<2x192xf32>
    %734 = math.exp %733 : vector<2x192xf32>
    %cst_246 = arith.constant 1.000000e+00 : f32
    %735 = vector.broadcast %cst_246 : f32 to vector<2x192xf32>
    %736 = arith.addf %735, %734 : vector<2x192xf32>
    %737 = arith.divf %735, %736 : vector<2x192xf32>
    %738 = vector.extract_strided_slice %731 {offsets = [0, 192], sizes = [2, 64], strides = [1, 1]} : vector<2x256xf32> to vector<2x64xf32>
    %739 = math.tanh %738 : vector<2x64xf32>
    %740 = vector.extract_strided_slice %737 {offsets = [0, 0], sizes = [2, 64], strides = [1, 1]} : vector<2x192xf32> to vector<2x64xf32>
    %741 = vector.extract_strided_slice %737 {offsets = [0, 64], sizes = [2, 64], strides = [1, 1]} : vector<2x192xf32> to vector<2x64xf32>
    %742 = vector.extract_strided_slice %737 {offsets = [0, 128], sizes = [2, 64], strides = [1, 1]} : vector<2x192xf32> to vector<2x64xf32>
    %743 = arith.mulf %741, %494 : vector<2x64xf32>
    %744 = arith.mulf %740, %739 : vector<2x64xf32>
    %745 = arith.addf %743, %744 : vector<2x64xf32>
    %746 = math.tanh %745 : vector<2x64xf32>
    %747 = arith.mulf %742, %746 : vector<2x64xf32>
    %748 = tpu.concatenate %747, %521 in 1 : vector<2x64xf32>, vector<2x64xf32> -> vector<2x128xf32>
    %749 = arith.truncf %748 : vector<2x128xf32> to vector<2x128xbf16>
    %c8_247 = arith.constant 8 : index
    %c0_248 = arith.constant 0 : index
    %c0_249 = arith.constant 0 : index
    %750 = vector.load %arg2[%c8_247, %c0_248, %c0_249] : memref<9x128x256xbf16, #tpu.memory_space<vmem>>, vector<1x128x256xbf16>
    %751 = vector.shape_cast %750 : vector<1x128x256xbf16> to vector<128x256xbf16>
    %cst_250 = arith.constant dense<0.000000e+00> : vector<2x256xf32>
    %752 = tpu.matmul %749, %751, %cst_250 {dimension_numbers = #tpu.dot_dimension_numbers<[1], [0], [0], [1], [0, 0, 1, 1], [], []>} : vector<2x128xbf16>, vector<128x256xbf16>, vector<2x256xf32> -> vector<2x256xf32>
    %c9_251 = arith.constant 9 : index
    %c0_252 = arith.constant 0 : index
    %c0_253 = arith.constant 0 : index
    %753 = vector.load %arg3[%c9_251, %c0_252, %c0_253] : memref<10x1x256xf32, #tpu.memory_space<vmem>>, vector<1x1x256xf32>
    %754 = vector.shape_cast %753 : vector<1x1x256xf32> to vector<1x256xf32>
    %755 = vector.broadcast %754 : vector<1x256xf32> to vector<2x256xf32>
    %756 = arith.addf %752, %755 : vector<2x256xf32>
    %757 = vector.extract_strided_slice %756 {offsets = [0, 0], sizes = [2, 192], strides = [1, 1]} : vector<2x256xf32> to vector<2x192xf32>
    %758 = arith.negf %757 : vector<2x192xf32>
    %759 = math.exp %758 : vector<2x192xf32>
    %cst_254 = arith.constant 1.000000e+00 : f32
    %760 = vector.broadcast %cst_254 : f32 to vector<2x192xf32>
    %761 = arith.addf %760, %759 : vector<2x192xf32>
    %762 = arith.divf %760, %761 : vector<2x192xf32>
    %763 = vector.extract_strided_slice %756 {offsets = [0, 192], sizes = [2, 64], strides = [1, 1]} : vector<2x256xf32> to vector<2x64xf32>
    %764 = math.tanh %763 : vector<2x64xf32>
    %765 = vector.extract_strided_slice %762 {offsets = [0, 0], sizes = [2, 64], strides = [1, 1]} : vector<2x192xf32> to vector<2x64xf32>
    %766 = vector.extract_strided_slice %762 {offsets = [0, 64], sizes = [2, 64], strides = [1, 1]} : vector<2x192xf32> to vector<2x64xf32>
    %767 = vector.extract_strided_slice %762 {offsets = [0, 128], sizes = [2, 64], strides = [1, 1]} : vector<2x192xf32> to vector<2x64xf32>
    %768 = arith.mulf %766, %519 : vector<2x64xf32>
    %769 = arith.mulf %765, %764 : vector<2x64xf32>
    %770 = arith.addf %768, %769 : vector<2x64xf32>
    %771 = math.tanh %770 : vector<2x64xf32>
    %772 = arith.mulf %767, %771 : vector<2x64xf32>
    %c3_255 = arith.constant 3 : index
    %c0_256 = arith.constant 0 : index
    %c0_257 = arith.constant 0 : index
    %773 = vector.load %arg0[%c3_255, %c0_256, %c0_257] : memref<8x2x256xf32, #tpu.memory_space<vmem>>, vector<1x2x256xf32>
    %774 = vector.shape_cast %773 : vector<1x2x256xf32> to vector<2x256xf32>
    %775 = arith.truncf %547 : vector<2x64xf32> to vector<2x64xbf16>
    %c0_258 = arith.constant 0 : index
    %c0_259 = arith.constant 0 : index
    %776 = vector.load %arg1[%c0_258, %c0_259] : memref<64x256xbf16, #tpu.memory_space<vmem>>, vector<64x256xbf16>
    %cst_260 = arith.constant dense<0.000000e+00> : vector<2x256xf32>
    %777 = tpu.matmul %775, %776, %cst_260 {dimension_numbers = #tpu.dot_dimension_numbers<[1], [0], [0], [1], [0, 0, 1, 1], [], []>} : vector<2x64xbf16>, vector<64x256xbf16>, vector<2x256xf32> -> vector<2x256xf32>
    %778 = arith.addf %774, %777 : vector<2x256xf32>
    %c0_261 = arith.constant 0 : index
    %c0_262 = arith.constant 0 : index
    %c0_263 = arith.constant 0 : index
    %779 = vector.load %arg3[%c0_261, %c0_262, %c0_263] : memref<10x1x256xf32, #tpu.memory_space<vmem>>, vector<1x1x256xf32>
    %780 = vector.shape_cast %779 : vector<1x1x256xf32> to vector<1x256xf32>
    %781 = vector.broadcast %780 : vector<1x256xf32> to vector<2x256xf32>
    %782 = arith.addf %778, %781 : vector<2x256xf32>
    %783 = vector.extract_strided_slice %782 {offsets = [0, 0], sizes = [2, 192], strides = [1, 1]} : vector<2x256xf32> to vector<2x192xf32>
    %784 = arith.negf %783 : vector<2x192xf32>
    %785 = math.exp %784 : vector<2x192xf32>
    %cst_264 = arith.constant 1.000000e+00 : f32
    %786 = vector.broadcast %cst_264 : f32 to vector<2x192xf32>
    %787 = arith.addf %786, %785 : vector<2x192xf32>
    %788 = arith.divf %786, %787 : vector<2x192xf32>
    %789 = vector.extract_strided_slice %782 {offsets = [0, 192], sizes = [2, 64], strides = [1, 1]} : vector<2x256xf32> to vector<2x64xf32>
    %790 = math.tanh %789 : vector<2x64xf32>
    %791 = vector.extract_strided_slice %788 {offsets = [0, 0], sizes = [2, 64], strides = [1, 1]} : vector<2x192xf32> to vector<2x64xf32>
    %792 = vector.extract_strided_slice %788 {offsets = [0, 64], sizes = [2, 64], strides = [1, 1]} : vector<2x192xf32> to vector<2x64xf32>
    %793 = vector.extract_strided_slice %788 {offsets = [0, 128], sizes = [2, 64], strides = [1, 1]} : vector<2x192xf32> to vector<2x64xf32>
    %794 = arith.mulf %792, %545 : vector<2x64xf32>
    %795 = arith.mulf %791, %790 : vector<2x64xf32>
    %796 = arith.addf %794, %795 : vector<2x64xf32>
    %797 = math.tanh %796 : vector<2x64xf32>
    %798 = arith.mulf %793, %797 : vector<2x64xf32>
    %799 = tpu.concatenate %798, %572 in 1 : vector<2x64xf32>, vector<2x64xf32> -> vector<2x128xf32>
    %800 = arith.truncf %799 : vector<2x128xf32> to vector<2x128xbf16>
    %c0_265 = arith.constant 0 : index
    %c0_266 = arith.constant 0 : index
    %c0_267 = arith.constant 0 : index
    %801 = vector.load %arg2[%c0_265, %c0_266, %c0_267] : memref<9x128x256xbf16, #tpu.memory_space<vmem>>, vector<1x128x256xbf16>
    %802 = vector.shape_cast %801 : vector<1x128x256xbf16> to vector<128x256xbf16>
    %cst_268 = arith.constant dense<0.000000e+00> : vector<2x256xf32>
    %803 = tpu.matmul %800, %802, %cst_268 {dimension_numbers = #tpu.dot_dimension_numbers<[1], [0], [0], [1], [0, 0, 1, 1], [], []>} : vector<2x128xbf16>, vector<128x256xbf16>, vector<2x256xf32> -> vector<2x256xf32>
    %c1_269 = arith.constant 1 : index
    %c0_270 = arith.constant 0 : index
    %c0_271 = arith.constant 0 : index
    %804 = vector.load %arg3[%c1_269, %c0_270, %c0_271] : memref<10x1x256xf32, #tpu.memory_space<vmem>>, vector<1x1x256xf32>
    %805 = vector.shape_cast %804 : vector<1x1x256xf32> to vector<1x256xf32>
    %806 = vector.broadcast %805 : vector<1x256xf32> to vector<2x256xf32>
    %807 = arith.addf %803, %806 : vector<2x256xf32>
    %808 = vector.extract_strided_slice %807 {offsets = [0, 0], sizes = [2, 192], strides = [1, 1]} : vector<2x256xf32> to vector<2x192xf32>
    %809 = arith.negf %808 : vector<2x192xf32>
    %810 = math.exp %809 : vector<2x192xf32>
    %cst_272 = arith.constant 1.000000e+00 : f32
    %811 = vector.broadcast %cst_272 : f32 to vector<2x192xf32>
    %812 = arith.addf %811, %810 : vector<2x192xf32>
    %813 = arith.divf %811, %812 : vector<2x192xf32>
    %814 = vector.extract_strided_slice %807 {offsets = [0, 192], sizes = [2, 64], strides = [1, 1]} : vector<2x256xf32> to vector<2x64xf32>
    %815 = math.tanh %814 : vector<2x64xf32>
    %816 = vector.extract_strided_slice %813 {offsets = [0, 0], sizes = [2, 64], strides = [1, 1]} : vector<2x192xf32> to vector<2x64xf32>
    %817 = vector.extract_strided_slice %813 {offsets = [0, 64], sizes = [2, 64], strides = [1, 1]} : vector<2x192xf32> to vector<2x64xf32>
    %818 = vector.extract_strided_slice %813 {offsets = [0, 128], sizes = [2, 64], strides = [1, 1]} : vector<2x192xf32> to vector<2x64xf32>
    %819 = arith.mulf %817, %570 : vector<2x64xf32>
    %820 = arith.mulf %816, %815 : vector<2x64xf32>
    %821 = arith.addf %819, %820 : vector<2x64xf32>
    %822 = math.tanh %821 : vector<2x64xf32>
    %823 = arith.mulf %818, %822 : vector<2x64xf32>
    %824 = tpu.concatenate %823, %597 in 1 : vector<2x64xf32>, vector<2x64xf32> -> vector<2x128xf32>
    %825 = arith.truncf %824 : vector<2x128xf32> to vector<2x128xbf16>
    %c1_273 = arith.constant 1 : index
    %c0_274 = arith.constant 0 : index
    %c0_275 = arith.constant 0 : index
    %826 = vector.load %arg2[%c1_273, %c0_274, %c0_275] : memref<9x128x256xbf16, #tpu.memory_space<vmem>>, vector<1x128x256xbf16>
    %827 = vector.shape_cast %826 : vector<1x128x256xbf16> to vector<128x256xbf16>
    %cst_276 = arith.constant dense<0.000000e+00> : vector<2x256xf32>
    %828 = tpu.matmul %825, %827, %cst_276 {dimension_numbers = #tpu.dot_dimension_numbers<[1], [0], [0], [1], [0, 0, 1, 1], [], []>} : vector<2x128xbf16>, vector<128x256xbf16>, vector<2x256xf32> -> vector<2x256xf32>
    %c2_277 = arith.constant 2 : index
    %c0_278 = arith.constant 0 : index
    %c0_279 = arith.constant 0 : index
    %829 = vector.load %arg3[%c2_277, %c0_278, %c0_279] : memref<10x1x256xf32, #tpu.memory_space<vmem>>, vector<1x1x256xf32>
    %830 = vector.shape_cast %829 : vector<1x1x256xf32> to vector<1x256xf32>
    %831 = vector.broadcast %830 : vector<1x256xf32> to vector<2x256xf32>
    %832 = arith.addf %828, %831 : vector<2x256xf32>
    %833 = vector.extract_strided_slice %832 {offsets = [0, 0], sizes = [2, 192], strides = [1, 1]} : vector<2x256xf32> to vector<2x192xf32>
    %834 = arith.negf %833 : vector<2x192xf32>
    %835 = math.exp %834 : vector<2x192xf32>
    %cst_280 = arith.constant 1.000000e+00 : f32
    %836 = vector.broadcast %cst_280 : f32 to vector<2x192xf32>
    %837 = arith.addf %836, %835 : vector<2x192xf32>
    %838 = arith.divf %836, %837 : vector<2x192xf32>
    %839 = vector.extract_strided_slice %832 {offsets = [0, 192], sizes = [2, 64], strides = [1, 1]} : vector<2x256xf32> to vector<2x64xf32>
    %840 = math.tanh %839 : vector<2x64xf32>
    %841 = vector.extract_strided_slice %838 {offsets = [0, 0], sizes = [2, 64], strides = [1, 1]} : vector<2x192xf32> to vector<2x64xf32>
    %842 = vector.extract_strided_slice %838 {offsets = [0, 64], sizes = [2, 64], strides = [1, 1]} : vector<2x192xf32> to vector<2x64xf32>
    %843 = vector.extract_strided_slice %838 {offsets = [0, 128], sizes = [2, 64], strides = [1, 1]} : vector<2x192xf32> to vector<2x64xf32>
    %844 = arith.mulf %842, %595 : vector<2x64xf32>
    %845 = arith.mulf %841, %840 : vector<2x64xf32>
    %846 = arith.addf %844, %845 : vector<2x64xf32>
    %847 = math.tanh %846 : vector<2x64xf32>
    %848 = arith.mulf %843, %847 : vector<2x64xf32>
    %849 = tpu.concatenate %848, %622 in 1 : vector<2x64xf32>, vector<2x64xf32> -> vector<2x128xf32>
    %850 = arith.truncf %849 : vector<2x128xf32> to vector<2x128xbf16>
    %c2_281 = arith.constant 2 : index
    %c0_282 = arith.constant 0 : index
    %c0_283 = arith.constant 0 : index
    %851 = vector.load %arg2[%c2_281, %c0_282, %c0_283] : memref<9x128x256xbf16, #tpu.memory_space<vmem>>, vector<1x128x256xbf16>
    %852 = vector.shape_cast %851 : vector<1x128x256xbf16> to vector<128x256xbf16>
    %cst_284 = arith.constant dense<0.000000e+00> : vector<2x256xf32>
    %853 = tpu.matmul %850, %852, %cst_284 {dimension_numbers = #tpu.dot_dimension_numbers<[1], [0], [0], [1], [0, 0, 1, 1], [], []>} : vector<2x128xbf16>, vector<128x256xbf16>, vector<2x256xf32> -> vector<2x256xf32>
    %c3_285 = arith.constant 3 : index
    %c0_286 = arith.constant 0 : index
    %c0_287 = arith.constant 0 : index
    %854 = vector.load %arg3[%c3_285, %c0_286, %c0_287] : memref<10x1x256xf32, #tpu.memory_space<vmem>>, vector<1x1x256xf32>
    %855 = vector.shape_cast %854 : vector<1x1x256xf32> to vector<1x256xf32>
    %856 = vector.broadcast %855 : vector<1x256xf32> to vector<2x256xf32>
    %857 = arith.addf %853, %856 : vector<2x256xf32>
    %858 = vector.extract_strided_slice %857 {offsets = [0, 0], sizes = [2, 192], strides = [1, 1]} : vector<2x256xf32> to vector<2x192xf32>
    %859 = arith.negf %858 : vector<2x192xf32>
    %860 = math.exp %859 : vector<2x192xf32>
    %cst_288 = arith.constant 1.000000e+00 : f32
    %861 = vector.broadcast %cst_288 : f32 to vector<2x192xf32>
    %862 = arith.addf %861, %860 : vector<2x192xf32>
    %863 = arith.divf %861, %862 : vector<2x192xf32>
    %864 = vector.extract_strided_slice %857 {offsets = [0, 192], sizes = [2, 64], strides = [1, 1]} : vector<2x256xf32> to vector<2x64xf32>
    %865 = math.tanh %864 : vector<2x64xf32>
    %866 = vector.extract_strided_slice %863 {offsets = [0, 0], sizes = [2, 64], strides = [1, 1]} : vector<2x192xf32> to vector<2x64xf32>
    %867 = vector.extract_strided_slice %863 {offsets = [0, 64], sizes = [2, 64], strides = [1, 1]} : vector<2x192xf32> to vector<2x64xf32>
    %868 = vector.extract_strided_slice %863 {offsets = [0, 128], sizes = [2, 64], strides = [1, 1]} : vector<2x192xf32> to vector<2x64xf32>
    %869 = arith.mulf %867, %620 : vector<2x64xf32>
    %870 = arith.mulf %866, %865 : vector<2x64xf32>
    %871 = arith.addf %869, %870 : vector<2x64xf32>
    %872 = math.tanh %871 : vector<2x64xf32>
    %873 = arith.mulf %868, %872 : vector<2x64xf32>
    %874 = tpu.concatenate %873, %647 in 1 : vector<2x64xf32>, vector<2x64xf32> -> vector<2x128xf32>
    %875 = arith.truncf %874 : vector<2x128xf32> to vector<2x128xbf16>
    %c3_289 = arith.constant 3 : index
    %c0_290 = arith.constant 0 : index
    %c0_291 = arith.constant 0 : index
    %876 = vector.load %arg2[%c3_289, %c0_290, %c0_291] : memref<9x128x256xbf16, #tpu.memory_space<vmem>>, vector<1x128x256xbf16>
    %877 = vector.shape_cast %876 : vector<1x128x256xbf16> to vector<128x256xbf16>
    %cst_292 = arith.constant dense<0.000000e+00> : vector<2x256xf32>
    %878 = tpu.matmul %875, %877, %cst_292 {dimension_numbers = #tpu.dot_dimension_numbers<[1], [0], [0], [1], [0, 0, 1, 1], [], []>} : vector<2x128xbf16>, vector<128x256xbf16>, vector<2x256xf32> -> vector<2x256xf32>
    %c4_293 = arith.constant 4 : index
    %c0_294 = arith.constant 0 : index
    %c0_295 = arith.constant 0 : index
    %879 = vector.load %arg3[%c4_293, %c0_294, %c0_295] : memref<10x1x256xf32, #tpu.memory_space<vmem>>, vector<1x1x256xf32>
    %880 = vector.shape_cast %879 : vector<1x1x256xf32> to vector<1x256xf32>
    %881 = vector.broadcast %880 : vector<1x256xf32> to vector<2x256xf32>
    %882 = arith.addf %878, %881 : vector<2x256xf32>
    %883 = vector.extract_strided_slice %882 {offsets = [0, 0], sizes = [2, 192], strides = [1, 1]} : vector<2x256xf32> to vector<2x192xf32>
    %884 = arith.negf %883 : vector<2x192xf32>
    %885 = math.exp %884 : vector<2x192xf32>
    %cst_296 = arith.constant 1.000000e+00 : f32
    %886 = vector.broadcast %cst_296 : f32 to vector<2x192xf32>
    %887 = arith.addf %886, %885 : vector<2x192xf32>
    %888 = arith.divf %886, %887 : vector<2x192xf32>
    %889 = vector.extract_strided_slice %882 {offsets = [0, 192], sizes = [2, 64], strides = [1, 1]} : vector<2x256xf32> to vector<2x64xf32>
    %890 = math.tanh %889 : vector<2x64xf32>
    %891 = vector.extract_strided_slice %888 {offsets = [0, 0], sizes = [2, 64], strides = [1, 1]} : vector<2x192xf32> to vector<2x64xf32>
    %892 = vector.extract_strided_slice %888 {offsets = [0, 64], sizes = [2, 64], strides = [1, 1]} : vector<2x192xf32> to vector<2x64xf32>
    %893 = vector.extract_strided_slice %888 {offsets = [0, 128], sizes = [2, 64], strides = [1, 1]} : vector<2x192xf32> to vector<2x64xf32>
    %894 = arith.mulf %892, %645 : vector<2x64xf32>
    %895 = arith.mulf %891, %890 : vector<2x64xf32>
    %896 = arith.addf %894, %895 : vector<2x64xf32>
    %897 = math.tanh %896 : vector<2x64xf32>
    %898 = arith.mulf %893, %897 : vector<2x64xf32>
    %899 = tpu.concatenate %898, %672 in 1 : vector<2x64xf32>, vector<2x64xf32> -> vector<2x128xf32>
    %900 = arith.truncf %899 : vector<2x128xf32> to vector<2x128xbf16>
    %c4_297 = arith.constant 4 : index
    %c0_298 = arith.constant 0 : index
    %c0_299 = arith.constant 0 : index
    %901 = vector.load %arg2[%c4_297, %c0_298, %c0_299] : memref<9x128x256xbf16, #tpu.memory_space<vmem>>, vector<1x128x256xbf16>
    %902 = vector.shape_cast %901 : vector<1x128x256xbf16> to vector<128x256xbf16>
    %cst_300 = arith.constant dense<0.000000e+00> : vector<2x256xf32>
    %903 = tpu.matmul %900, %902, %cst_300 {dimension_numbers = #tpu.dot_dimension_numbers<[1], [0], [0], [1], [0, 0, 1, 1], [], []>} : vector<2x128xbf16>, vector<128x256xbf16>, vector<2x256xf32> -> vector<2x256xf32>
    %c5_301 = arith.constant 5 : index
    %c0_302 = arith.constant 0 : index
    %c0_303 = arith.constant 0 : index
    %904 = vector.load %arg3[%c5_301, %c0_302, %c0_303] : memref<10x1x256xf32, #tpu.memory_space<vmem>>, vector<1x1x256xf32>
    %905 = vector.shape_cast %904 : vector<1x1x256xf32> to vector<1x256xf32>
    %906 = vector.broadcast %905 : vector<1x256xf32> to vector<2x256xf32>
    %907 = arith.addf %903, %906 : vector<2x256xf32>
    %908 = vector.extract_strided_slice %907 {offsets = [0, 0], sizes = [2, 192], strides = [1, 1]} : vector<2x256xf32> to vector<2x192xf32>
    %909 = arith.negf %908 : vector<2x192xf32>
    %910 = math.exp %909 : vector<2x192xf32>
    %cst_304 = arith.constant 1.000000e+00 : f32
    %911 = vector.broadcast %cst_304 : f32 to vector<2x192xf32>
    %912 = arith.addf %911, %910 : vector<2x192xf32>
    %913 = arith.divf %911, %912 : vector<2x192xf32>
    %914 = vector.extract_strided_slice %907 {offsets = [0, 192], sizes = [2, 64], strides = [1, 1]} : vector<2x256xf32> to vector<2x64xf32>
    %915 = math.tanh %914 : vector<2x64xf32>
    %916 = vector.extract_strided_slice %913 {offsets = [0, 0], sizes = [2, 64], strides = [1, 1]} : vector<2x192xf32> to vector<2x64xf32>
    %917 = vector.extract_strided_slice %913 {offsets = [0, 64], sizes = [2, 64], strides = [1, 1]} : vector<2x192xf32> to vector<2x64xf32>
    %918 = vector.extract_strided_slice %913 {offsets = [0, 128], sizes = [2, 64], strides = [1, 1]} : vector<2x192xf32> to vector<2x64xf32>
    %919 = arith.mulf %917, %670 : vector<2x64xf32>
    %920 = arith.mulf %916, %915 : vector<2x64xf32>
    %921 = arith.addf %919, %920 : vector<2x64xf32>
    %922 = math.tanh %921 : vector<2x64xf32>
    %923 = arith.mulf %918, %922 : vector<2x64xf32>
    %924 = tpu.concatenate %923, %697 in 1 : vector<2x64xf32>, vector<2x64xf32> -> vector<2x128xf32>
    %925 = arith.truncf %924 : vector<2x128xf32> to vector<2x128xbf16>
    %c5_305 = arith.constant 5 : index
    %c0_306 = arith.constant 0 : index
    %c0_307 = arith.constant 0 : index
    %926 = vector.load %arg2[%c5_305, %c0_306, %c0_307] : memref<9x128x256xbf16, #tpu.memory_space<vmem>>, vector<1x128x256xbf16>
    %927 = vector.shape_cast %926 : vector<1x128x256xbf16> to vector<128x256xbf16>
    %cst_308 = arith.constant dense<0.000000e+00> : vector<2x256xf32>
    %928 = tpu.matmul %925, %927, %cst_308 {dimension_numbers = #tpu.dot_dimension_numbers<[1], [0], [0], [1], [0, 0, 1, 1], [], []>} : vector<2x128xbf16>, vector<128x256xbf16>, vector<2x256xf32> -> vector<2x256xf32>
    %c6_309 = arith.constant 6 : index
    %c0_310 = arith.constant 0 : index
    %c0_311 = arith.constant 0 : index
    %929 = vector.load %arg3[%c6_309, %c0_310, %c0_311] : memref<10x1x256xf32, #tpu.memory_space<vmem>>, vector<1x1x256xf32>
    %930 = vector.shape_cast %929 : vector<1x1x256xf32> to vector<1x256xf32>
    %931 = vector.broadcast %930 : vector<1x256xf32> to vector<2x256xf32>
    %932 = arith.addf %928, %931 : vector<2x256xf32>
    %933 = vector.extract_strided_slice %932 {offsets = [0, 0], sizes = [2, 192], strides = [1, 1]} : vector<2x256xf32> to vector<2x192xf32>
    %934 = arith.negf %933 : vector<2x192xf32>
    %935 = math.exp %934 : vector<2x192xf32>
    %cst_312 = arith.constant 1.000000e+00 : f32
    %936 = vector.broadcast %cst_312 : f32 to vector<2x192xf32>
    %937 = arith.addf %936, %935 : vector<2x192xf32>
    %938 = arith.divf %936, %937 : vector<2x192xf32>
    %939 = vector.extract_strided_slice %932 {offsets = [0, 192], sizes = [2, 64], strides = [1, 1]} : vector<2x256xf32> to vector<2x64xf32>
    %940 = math.tanh %939 : vector<2x64xf32>
    %941 = vector.extract_strided_slice %938 {offsets = [0, 0], sizes = [2, 64], strides = [1, 1]} : vector<2x192xf32> to vector<2x64xf32>
    %942 = vector.extract_strided_slice %938 {offsets = [0, 64], sizes = [2, 64], strides = [1, 1]} : vector<2x192xf32> to vector<2x64xf32>
    %943 = vector.extract_strided_slice %938 {offsets = [0, 128], sizes = [2, 64], strides = [1, 1]} : vector<2x192xf32> to vector<2x64xf32>
    %944 = arith.mulf %942, %695 : vector<2x64xf32>
    %945 = arith.mulf %941, %940 : vector<2x64xf32>
    %946 = arith.addf %944, %945 : vector<2x64xf32>
    %947 = math.tanh %946 : vector<2x64xf32>
    %948 = arith.mulf %943, %947 : vector<2x64xf32>
    %949 = tpu.concatenate %948, %722 in 1 : vector<2x64xf32>, vector<2x64xf32> -> vector<2x128xf32>
    %950 = arith.truncf %949 : vector<2x128xf32> to vector<2x128xbf16>
    %c6_313 = arith.constant 6 : index
    %c0_314 = arith.constant 0 : index
    %c0_315 = arith.constant 0 : index
    %951 = vector.load %arg2[%c6_313, %c0_314, %c0_315] : memref<9x128x256xbf16, #tpu.memory_space<vmem>>, vector<1x128x256xbf16>
    %952 = vector.shape_cast %951 : vector<1x128x256xbf16> to vector<128x256xbf16>
    %cst_316 = arith.constant dense<0.000000e+00> : vector<2x256xf32>
    %953 = tpu.matmul %950, %952, %cst_316 {dimension_numbers = #tpu.dot_dimension_numbers<[1], [0], [0], [1], [0, 0, 1, 1], [], []>} : vector<2x128xbf16>, vector<128x256xbf16>, vector<2x256xf32> -> vector<2x256xf32>
    %c7_317 = arith.constant 7 : index
    %c0_318 = arith.constant 0 : index
    %c0_319 = arith.constant 0 : index
    %954 = vector.load %arg3[%c7_317, %c0_318, %c0_319] : memref<10x1x256xf32, #tpu.memory_space<vmem>>, vector<1x1x256xf32>
    %955 = vector.shape_cast %954 : vector<1x1x256xf32> to vector<1x256xf32>
    %956 = vector.broadcast %955 : vector<1x256xf32> to vector<2x256xf32>
    %957 = arith.addf %953, %956 : vector<2x256xf32>
    %958 = vector.extract_strided_slice %957 {offsets = [0, 0], sizes = [2, 192], strides = [1, 1]} : vector<2x256xf32> to vector<2x192xf32>
    %959 = arith.negf %958 : vector<2x192xf32>
    %960 = math.exp %959 : vector<2x192xf32>
    %cst_320 = arith.constant 1.000000e+00 : f32
    %961 = vector.broadcast %cst_320 : f32 to vector<2x192xf32>
    %962 = arith.addf %961, %960 : vector<2x192xf32>
    %963 = arith.divf %961, %962 : vector<2x192xf32>
    %964 = vector.extract_strided_slice %957 {offsets = [0, 192], sizes = [2, 64], strides = [1, 1]} : vector<2x256xf32> to vector<2x64xf32>
    %965 = math.tanh %964 : vector<2x64xf32>
    %966 = vector.extract_strided_slice %963 {offsets = [0, 0], sizes = [2, 64], strides = [1, 1]} : vector<2x192xf32> to vector<2x64xf32>
    %967 = vector.extract_strided_slice %963 {offsets = [0, 64], sizes = [2, 64], strides = [1, 1]} : vector<2x192xf32> to vector<2x64xf32>
    %968 = vector.extract_strided_slice %963 {offsets = [0, 128], sizes = [2, 64], strides = [1, 1]} : vector<2x192xf32> to vector<2x64xf32>
    %969 = arith.mulf %967, %720 : vector<2x64xf32>
    %970 = arith.mulf %966, %965 : vector<2x64xf32>
    %971 = arith.addf %969, %970 : vector<2x64xf32>
    %972 = math.tanh %971 : vector<2x64xf32>
    %973 = arith.mulf %968, %972 : vector<2x64xf32>
    %974 = tpu.concatenate %973, %747 in 1 : vector<2x64xf32>, vector<2x64xf32> -> vector<2x128xf32>
    %975 = arith.truncf %974 : vector<2x128xf32> to vector<2x128xbf16>
    %c7_321 = arith.constant 7 : index
    %c0_322 = arith.constant 0 : index
    %c0_323 = arith.constant 0 : index
    %976 = vector.load %arg2[%c7_321, %c0_322, %c0_323] : memref<9x128x256xbf16, #tpu.memory_space<vmem>>, vector<1x128x256xbf16>
    %977 = vector.shape_cast %976 : vector<1x128x256xbf16> to vector<128x256xbf16>
    %cst_324 = arith.constant dense<0.000000e+00> : vector<2x256xf32>
    %978 = tpu.matmul %975, %977, %cst_324 {dimension_numbers = #tpu.dot_dimension_numbers<[1], [0], [0], [1], [0, 0, 1, 1], [], []>} : vector<2x128xbf16>, vector<128x256xbf16>, vector<2x256xf32> -> vector<2x256xf32>
    %c8_325 = arith.constant 8 : index
    %c0_326 = arith.constant 0 : index
    %c0_327 = arith.constant 0 : index
    %979 = vector.load %arg3[%c8_325, %c0_326, %c0_327] : memref<10x1x256xf32, #tpu.memory_space<vmem>>, vector<1x1x256xf32>
    %980 = vector.shape_cast %979 : vector<1x1x256xf32> to vector<1x256xf32>
    %981 = vector.broadcast %980 : vector<1x256xf32> to vector<2x256xf32>
    %982 = arith.addf %978, %981 : vector<2x256xf32>
    %983 = vector.extract_strided_slice %982 {offsets = [0, 0], sizes = [2, 192], strides = [1, 1]} : vector<2x256xf32> to vector<2x192xf32>
    %984 = arith.negf %983 : vector<2x192xf32>
    %985 = math.exp %984 : vector<2x192xf32>
    %cst_328 = arith.constant 1.000000e+00 : f32
    %986 = vector.broadcast %cst_328 : f32 to vector<2x192xf32>
    %987 = arith.addf %986, %985 : vector<2x192xf32>
    %988 = arith.divf %986, %987 : vector<2x192xf32>
    %989 = vector.extract_strided_slice %982 {offsets = [0, 192], sizes = [2, 64], strides = [1, 1]} : vector<2x256xf32> to vector<2x64xf32>
    %990 = math.tanh %989 : vector<2x64xf32>
    %991 = vector.extract_strided_slice %988 {offsets = [0, 0], sizes = [2, 64], strides = [1, 1]} : vector<2x192xf32> to vector<2x64xf32>
    %992 = vector.extract_strided_slice %988 {offsets = [0, 64], sizes = [2, 64], strides = [1, 1]} : vector<2x192xf32> to vector<2x64xf32>
    %993 = vector.extract_strided_slice %988 {offsets = [0, 128], sizes = [2, 64], strides = [1, 1]} : vector<2x192xf32> to vector<2x64xf32>
    %994 = arith.mulf %992, %745 : vector<2x64xf32>
    %995 = arith.mulf %991, %990 : vector<2x64xf32>
    %996 = arith.addf %994, %995 : vector<2x64xf32>
    %997 = math.tanh %996 : vector<2x64xf32>
    %998 = arith.mulf %993, %997 : vector<2x64xf32>
    %999 = tpu.concatenate %998, %772 in 1 : vector<2x64xf32>, vector<2x64xf32> -> vector<2x128xf32>
    %1000 = arith.truncf %999 : vector<2x128xf32> to vector<2x128xbf16>
    %c8_329 = arith.constant 8 : index
    %c0_330 = arith.constant 0 : index
    %c0_331 = arith.constant 0 : index
    %1001 = vector.load %arg2[%c8_329, %c0_330, %c0_331] : memref<9x128x256xbf16, #tpu.memory_space<vmem>>, vector<1x128x256xbf16>
    %1002 = vector.shape_cast %1001 : vector<1x128x256xbf16> to vector<128x256xbf16>
    %cst_332 = arith.constant dense<0.000000e+00> : vector<2x256xf32>
    %1003 = tpu.matmul %1000, %1002, %cst_332 {dimension_numbers = #tpu.dot_dimension_numbers<[1], [0], [0], [1], [0, 0, 1, 1], [], []>} : vector<2x128xbf16>, vector<128x256xbf16>, vector<2x256xf32> -> vector<2x256xf32>
    %c9_333 = arith.constant 9 : index
    %c0_334 = arith.constant 0 : index
    %c0_335 = arith.constant 0 : index
    %1004 = vector.load %arg3[%c9_333, %c0_334, %c0_335] : memref<10x1x256xf32, #tpu.memory_space<vmem>>, vector<1x1x256xf32>
    %1005 = vector.shape_cast %1004 : vector<1x1x256xf32> to vector<1x256xf32>
    %1006 = vector.broadcast %1005 : vector<1x256xf32> to vector<2x256xf32>
    %1007 = arith.addf %1003, %1006 : vector<2x256xf32>
    %1008 = vector.extract_strided_slice %1007 {offsets = [0, 0], sizes = [2, 192], strides = [1, 1]} : vector<2x256xf32> to vector<2x192xf32>
    %1009 = arith.negf %1008 : vector<2x192xf32>
    %1010 = math.exp %1009 : vector<2x192xf32>
    %cst_336 = arith.constant 1.000000e+00 : f32
    %1011 = vector.broadcast %cst_336 : f32 to vector<2x192xf32>
    %1012 = arith.addf %1011, %1010 : vector<2x192xf32>
    %1013 = arith.divf %1011, %1012 : vector<2x192xf32>
    %1014 = vector.extract_strided_slice %1007 {offsets = [0, 192], sizes = [2, 64], strides = [1, 1]} : vector<2x256xf32> to vector<2x64xf32>
    %1015 = math.tanh %1014 : vector<2x64xf32>
    %1016 = vector.extract_strided_slice %1013 {offsets = [0, 0], sizes = [2, 64], strides = [1, 1]} : vector<2x192xf32> to vector<2x64xf32>
    %1017 = vector.extract_strided_slice %1013 {offsets = [0, 64], sizes = [2, 64], strides = [1, 1]} : vector<2x192xf32> to vector<2x64xf32>
    %1018 = vector.extract_strided_slice %1013 {offsets = [0, 128], sizes = [2, 64], strides = [1, 1]} : vector<2x192xf32> to vector<2x64xf32>
    %1019 = arith.mulf %1017, %770 : vector<2x64xf32>
    %1020 = arith.mulf %1016, %1015 : vector<2x64xf32>
    %1021 = arith.addf %1019, %1020 : vector<2x64xf32>
    %1022 = math.tanh %1021 : vector<2x64xf32>
    %1023 = arith.mulf %1018, %1022 : vector<2x64xf32>
    %c4_337 = arith.constant 4 : index
    %c0_338 = arith.constant 0 : index
    %c0_339 = arith.constant 0 : index
    %1024 = vector.load %arg0[%c4_337, %c0_338, %c0_339] : memref<8x2x256xf32, #tpu.memory_space<vmem>>, vector<1x2x256xf32>
    %1025 = vector.shape_cast %1024 : vector<1x2x256xf32> to vector<2x256xf32>
    %1026 = arith.truncf %798 : vector<2x64xf32> to vector<2x64xbf16>
    %c0_340 = arith.constant 0 : index
    %c0_341 = arith.constant 0 : index
    %1027 = vector.load %arg1[%c0_340, %c0_341] : memref<64x256xbf16, #tpu.memory_space<vmem>>, vector<64x256xbf16>
    %cst_342 = arith.constant dense<0.000000e+00> : vector<2x256xf32>
    %1028 = tpu.matmul %1026, %1027, %cst_342 {dimension_numbers = #tpu.dot_dimension_numbers<[1], [0], [0], [1], [0, 0, 1, 1], [], []>} : vector<2x64xbf16>, vector<64x256xbf16>, vector<2x256xf32> -> vector<2x256xf32>
    %1029 = arith.addf %1025, %1028 : vector<2x256xf32>
    %c0_343 = arith.constant 0 : index
    %c0_344 = arith.constant 0 : index
    %c0_345 = arith.constant 0 : index
    %1030 = vector.load %arg3[%c0_343, %c0_344, %c0_345] : memref<10x1x256xf32, #tpu.memory_space<vmem>>, vector<1x1x256xf32>
    %1031 = vector.shape_cast %1030 : vector<1x1x256xf32> to vector<1x256xf32>
    %1032 = vector.broadcast %1031 : vector<1x256xf32> to vector<2x256xf32>
    %1033 = arith.addf %1029, %1032 : vector<2x256xf32>
    %1034 = vector.extract_strided_slice %1033 {offsets = [0, 0], sizes = [2, 192], strides = [1, 1]} : vector<2x256xf32> to vector<2x192xf32>
    %1035 = arith.negf %1034 : vector<2x192xf32>
    %1036 = math.exp %1035 : vector<2x192xf32>
    %cst_346 = arith.constant 1.000000e+00 : f32
    %1037 = vector.broadcast %cst_346 : f32 to vector<2x192xf32>
    %1038 = arith.addf %1037, %1036 : vector<2x192xf32>
    %1039 = arith.divf %1037, %1038 : vector<2x192xf32>
    %1040 = vector.extract_strided_slice %1033 {offsets = [0, 192], sizes = [2, 64], strides = [1, 1]} : vector<2x256xf32> to vector<2x64xf32>
    %1041 = math.tanh %1040 : vector<2x64xf32>
    %1042 = vector.extract_strided_slice %1039 {offsets = [0, 0], sizes = [2, 64], strides = [1, 1]} : vector<2x192xf32> to vector<2x64xf32>
    %1043 = vector.extract_strided_slice %1039 {offsets = [0, 64], sizes = [2, 64], strides = [1, 1]} : vector<2x192xf32> to vector<2x64xf32>
    %1044 = vector.extract_strided_slice %1039 {offsets = [0, 128], sizes = [2, 64], strides = [1, 1]} : vector<2x192xf32> to vector<2x64xf32>
    %1045 = arith.mulf %1043, %796 : vector<2x64xf32>
    %1046 = arith.mulf %1042, %1041 : vector<2x64xf32>
    %1047 = arith.addf %1045, %1046 : vector<2x64xf32>
    %1048 = math.tanh %1047 : vector<2x64xf32>
    %1049 = arith.mulf %1044, %1048 : vector<2x64xf32>
    %1050 = tpu.concatenate %1049, %823 in 1 : vector<2x64xf32>, vector<2x64xf32> -> vector<2x128xf32>
    %1051 = arith.truncf %1050 : vector<2x128xf32> to vector<2x128xbf16>
    %c0_347 = arith.constant 0 : index
    %c0_348 = arith.constant 0 : index
    %c0_349 = arith.constant 0 : index
    %1052 = vector.load %arg2[%c0_347, %c0_348, %c0_349] : memref<9x128x256xbf16, #tpu.memory_space<vmem>>, vector<1x128x256xbf16>
    %1053 = vector.shape_cast %1052 : vector<1x128x256xbf16> to vector<128x256xbf16>
    %cst_350 = arith.constant dense<0.000000e+00> : vector<2x256xf32>
    %1054 = tpu.matmul %1051, %1053, %cst_350 {dimension_numbers = #tpu.dot_dimension_numbers<[1], [0], [0], [1], [0, 0, 1, 1], [], []>} : vector<2x128xbf16>, vector<128x256xbf16>, vector<2x256xf32> -> vector<2x256xf32>
    %c1_351 = arith.constant 1 : index
    %c0_352 = arith.constant 0 : index
    %c0_353 = arith.constant 0 : index
    %1055 = vector.load %arg3[%c1_351, %c0_352, %c0_353] : memref<10x1x256xf32, #tpu.memory_space<vmem>>, vector<1x1x256xf32>
    %1056 = vector.shape_cast %1055 : vector<1x1x256xf32> to vector<1x256xf32>
    %1057 = vector.broadcast %1056 : vector<1x256xf32> to vector<2x256xf32>
    %1058 = arith.addf %1054, %1057 : vector<2x256xf32>
    %1059 = vector.extract_strided_slice %1058 {offsets = [0, 0], sizes = [2, 192], strides = [1, 1]} : vector<2x256xf32> to vector<2x192xf32>
    %1060 = arith.negf %1059 : vector<2x192xf32>
    %1061 = math.exp %1060 : vector<2x192xf32>
    %cst_354 = arith.constant 1.000000e+00 : f32
    %1062 = vector.broadcast %cst_354 : f32 to vector<2x192xf32>
    %1063 = arith.addf %1062, %1061 : vector<2x192xf32>
    %1064 = arith.divf %1062, %1063 : vector<2x192xf32>
    %1065 = vector.extract_strided_slice %1058 {offsets = [0, 192], sizes = [2, 64], strides = [1, 1]} : vector<2x256xf32> to vector<2x64xf32>
    %1066 = math.tanh %1065 : vector<2x64xf32>
    %1067 = vector.extract_strided_slice %1064 {offsets = [0, 0], sizes = [2, 64], strides = [1, 1]} : vector<2x192xf32> to vector<2x64xf32>
    %1068 = vector.extract_strided_slice %1064 {offsets = [0, 64], sizes = [2, 64], strides = [1, 1]} : vector<2x192xf32> to vector<2x64xf32>
    %1069 = vector.extract_strided_slice %1064 {offsets = [0, 128], sizes = [2, 64], strides = [1, 1]} : vector<2x192xf32> to vector<2x64xf32>
    %1070 = arith.mulf %1068, %821 : vector<2x64xf32>
    %1071 = arith.mulf %1067, %1066 : vector<2x64xf32>
    %1072 = arith.addf %1070, %1071 : vector<2x64xf32>
    %1073 = math.tanh %1072 : vector<2x64xf32>
    %1074 = arith.mulf %1069, %1073 : vector<2x64xf32>
    %1075 = tpu.concatenate %1074, %848 in 1 : vector<2x64xf32>, vector<2x64xf32> -> vector<2x128xf32>
    %1076 = arith.truncf %1075 : vector<2x128xf32> to vector<2x128xbf16>
    %c1_355 = arith.constant 1 : index
    %c0_356 = arith.constant 0 : index
    %c0_357 = arith.constant 0 : index
    %1077 = vector.load %arg2[%c1_355, %c0_356, %c0_357] : memref<9x128x256xbf16, #tpu.memory_space<vmem>>, vector<1x128x256xbf16>
    %1078 = vector.shape_cast %1077 : vector<1x128x256xbf16> to vector<128x256xbf16>
    %cst_358 = arith.constant dense<0.000000e+00> : vector<2x256xf32>
    %1079 = tpu.matmul %1076, %1078, %cst_358 {dimension_numbers = #tpu.dot_dimension_numbers<[1], [0], [0], [1], [0, 0, 1, 1], [], []>} : vector<2x128xbf16>, vector<128x256xbf16>, vector<2x256xf32> -> vector<2x256xf32>
    %c2_359 = arith.constant 2 : index
    %c0_360 = arith.constant 0 : index
    %c0_361 = arith.constant 0 : index
    %1080 = vector.load %arg3[%c2_359, %c0_360, %c0_361] : memref<10x1x256xf32, #tpu.memory_space<vmem>>, vector<1x1x256xf32>
    %1081 = vector.shape_cast %1080 : vector<1x1x256xf32> to vector<1x256xf32>
    %1082 = vector.broadcast %1081 : vector<1x256xf32> to vector<2x256xf32>
    %1083 = arith.addf %1079, %1082 : vector<2x256xf32>
    %1084 = vector.extract_strided_slice %1083 {offsets = [0, 0], sizes = [2, 192], strides = [1, 1]} : vector<2x256xf32> to vector<2x192xf32>
    %1085 = arith.negf %1084 : vector<2x192xf32>
    %1086 = math.exp %1085 : vector<2x192xf32>
    %cst_362 = arith.constant 1.000000e+00 : f32
    %1087 = vector.broadcast %cst_362 : f32 to vector<2x192xf32>
    %1088 = arith.addf %1087, %1086 : vector<2x192xf32>
    %1089 = arith.divf %1087, %1088 : vector<2x192xf32>
    %1090 = vector.extract_strided_slice %1083 {offsets = [0, 192], sizes = [2, 64], strides = [1, 1]} : vector<2x256xf32> to vector<2x64xf32>
    %1091 = math.tanh %1090 : vector<2x64xf32>
    %1092 = vector.extract_strided_slice %1089 {offsets = [0, 0], sizes = [2, 64], strides = [1, 1]} : vector<2x192xf32> to vector<2x64xf32>
    %1093 = vector.extract_strided_slice %1089 {offsets = [0, 64], sizes = [2, 64], strides = [1, 1]} : vector<2x192xf32> to vector<2x64xf32>
    %1094 = vector.extract_strided_slice %1089 {offsets = [0, 128], sizes = [2, 64], strides = [1, 1]} : vector<2x192xf32> to vector<2x64xf32>
    %1095 = arith.mulf %1093, %846 : vector<2x64xf32>
    %1096 = arith.mulf %1092, %1091 : vector<2x64xf32>
    %1097 = arith.addf %1095, %1096 : vector<2x64xf32>
    %1098 = math.tanh %1097 : vector<2x64xf32>
    %1099 = arith.mulf %1094, %1098 : vector<2x64xf32>
    %1100 = tpu.concatenate %1099, %873 in 1 : vector<2x64xf32>, vector<2x64xf32> -> vector<2x128xf32>
    %1101 = arith.truncf %1100 : vector<2x128xf32> to vector<2x128xbf16>
    %c2_363 = arith.constant 2 : index
    %c0_364 = arith.constant 0 : index
    %c0_365 = arith.constant 0 : index
    %1102 = vector.load %arg2[%c2_363, %c0_364, %c0_365] : memref<9x128x256xbf16, #tpu.memory_space<vmem>>, vector<1x128x256xbf16>
    %1103 = vector.shape_cast %1102 : vector<1x128x256xbf16> to vector<128x256xbf16>
    %cst_366 = arith.constant dense<0.000000e+00> : vector<2x256xf32>
    %1104 = tpu.matmul %1101, %1103, %cst_366 {dimension_numbers = #tpu.dot_dimension_numbers<[1], [0], [0], [1], [0, 0, 1, 1], [], []>} : vector<2x128xbf16>, vector<128x256xbf16>, vector<2x256xf32> -> vector<2x256xf32>
    %c3_367 = arith.constant 3 : index
    %c0_368 = arith.constant 0 : index
    %c0_369 = arith.constant 0 : index
    %1105 = vector.load %arg3[%c3_367, %c0_368, %c0_369] : memref<10x1x256xf32, #tpu.memory_space<vmem>>, vector<1x1x256xf32>
    %1106 = vector.shape_cast %1105 : vector<1x1x256xf32> to vector<1x256xf32>
    %1107 = vector.broadcast %1106 : vector<1x256xf32> to vector<2x256xf32>
    %1108 = arith.addf %1104, %1107 : vector<2x256xf32>
    %1109 = vector.extract_strided_slice %1108 {offsets = [0, 0], sizes = [2, 192], strides = [1, 1]} : vector<2x256xf32> to vector<2x192xf32>
    %1110 = arith.negf %1109 : vector<2x192xf32>
    %1111 = math.exp %1110 : vector<2x192xf32>
    %cst_370 = arith.constant 1.000000e+00 : f32
    %1112 = vector.broadcast %cst_370 : f32 to vector<2x192xf32>
    %1113 = arith.addf %1112, %1111 : vector<2x192xf32>
    %1114 = arith.divf %1112, %1113 : vector<2x192xf32>
    %1115 = vector.extract_strided_slice %1108 {offsets = [0, 192], sizes = [2, 64], strides = [1, 1]} : vector<2x256xf32> to vector<2x64xf32>
    %1116 = math.tanh %1115 : vector<2x64xf32>
    %1117 = vector.extract_strided_slice %1114 {offsets = [0, 0], sizes = [2, 64], strides = [1, 1]} : vector<2x192xf32> to vector<2x64xf32>
    %1118 = vector.extract_strided_slice %1114 {offsets = [0, 64], sizes = [2, 64], strides = [1, 1]} : vector<2x192xf32> to vector<2x64xf32>
    %1119 = vector.extract_strided_slice %1114 {offsets = [0, 128], sizes = [2, 64], strides = [1, 1]} : vector<2x192xf32> to vector<2x64xf32>
    %1120 = arith.mulf %1118, %871 : vector<2x64xf32>
    %1121 = arith.mulf %1117, %1116 : vector<2x64xf32>
    %1122 = arith.addf %1120, %1121 : vector<2x64xf32>
    %1123 = math.tanh %1122 : vector<2x64xf32>
    %1124 = arith.mulf %1119, %1123 : vector<2x64xf32>
    %1125 = tpu.concatenate %1124, %898 in 1 : vector<2x64xf32>, vector<2x64xf32> -> vector<2x128xf32>
    %1126 = arith.truncf %1125 : vector<2x128xf32> to vector<2x128xbf16>
    %c3_371 = arith.constant 3 : index
    %c0_372 = arith.constant 0 : index
    %c0_373 = arith.constant 0 : index
    %1127 = vector.load %arg2[%c3_371, %c0_372, %c0_373] : memref<9x128x256xbf16, #tpu.memory_space<vmem>>, vector<1x128x256xbf16>
    %1128 = vector.shape_cast %1127 : vector<1x128x256xbf16> to vector<128x256xbf16>
    %cst_374 = arith.constant dense<0.000000e+00> : vector<2x256xf32>
    %1129 = tpu.matmul %1126, %1128, %cst_374 {dimension_numbers = #tpu.dot_dimension_numbers<[1], [0], [0], [1], [0, 0, 1, 1], [], []>} : vector<2x128xbf16>, vector<128x256xbf16>, vector<2x256xf32> -> vector<2x256xf32>
    %c4_375 = arith.constant 4 : index
    %c0_376 = arith.constant 0 : index
    %c0_377 = arith.constant 0 : index
    %1130 = vector.load %arg3[%c4_375, %c0_376, %c0_377] : memref<10x1x256xf32, #tpu.memory_space<vmem>>, vector<1x1x256xf32>
    %1131 = vector.shape_cast %1130 : vector<1x1x256xf32> to vector<1x256xf32>
    %1132 = vector.broadcast %1131 : vector<1x256xf32> to vector<2x256xf32>
    %1133 = arith.addf %1129, %1132 : vector<2x256xf32>
    %1134 = vector.extract_strided_slice %1133 {offsets = [0, 0], sizes = [2, 192], strides = [1, 1]} : vector<2x256xf32> to vector<2x192xf32>
    %1135 = arith.negf %1134 : vector<2x192xf32>
    %1136 = math.exp %1135 : vector<2x192xf32>
    %cst_378 = arith.constant 1.000000e+00 : f32
    %1137 = vector.broadcast %cst_378 : f32 to vector<2x192xf32>
    %1138 = arith.addf %1137, %1136 : vector<2x192xf32>
    %1139 = arith.divf %1137, %1138 : vector<2x192xf32>
    %1140 = vector.extract_strided_slice %1133 {offsets = [0, 192], sizes = [2, 64], strides = [1, 1]} : vector<2x256xf32> to vector<2x64xf32>
    %1141 = math.tanh %1140 : vector<2x64xf32>
    %1142 = vector.extract_strided_slice %1139 {offsets = [0, 0], sizes = [2, 64], strides = [1, 1]} : vector<2x192xf32> to vector<2x64xf32>
    %1143 = vector.extract_strided_slice %1139 {offsets = [0, 64], sizes = [2, 64], strides = [1, 1]} : vector<2x192xf32> to vector<2x64xf32>
    %1144 = vector.extract_strided_slice %1139 {offsets = [0, 128], sizes = [2, 64], strides = [1, 1]} : vector<2x192xf32> to vector<2x64xf32>
    %1145 = arith.mulf %1143, %896 : vector<2x64xf32>
    %1146 = arith.mulf %1142, %1141 : vector<2x64xf32>
    %1147 = arith.addf %1145, %1146 : vector<2x64xf32>
    %1148 = math.tanh %1147 : vector<2x64xf32>
    %1149 = arith.mulf %1144, %1148 : vector<2x64xf32>
    %1150 = tpu.concatenate %1149, %923 in 1 : vector<2x64xf32>, vector<2x64xf32> -> vector<2x128xf32>
    %1151 = arith.truncf %1150 : vector<2x128xf32> to vector<2x128xbf16>
    %c4_379 = arith.constant 4 : index
    %c0_380 = arith.constant 0 : index
    %c0_381 = arith.constant 0 : index
    %1152 = vector.load %arg2[%c4_379, %c0_380, %c0_381] : memref<9x128x256xbf16, #tpu.memory_space<vmem>>, vector<1x128x256xbf16>
    %1153 = vector.shape_cast %1152 : vector<1x128x256xbf16> to vector<128x256xbf16>
    %cst_382 = arith.constant dense<0.000000e+00> : vector<2x256xf32>
    %1154 = tpu.matmul %1151, %1153, %cst_382 {dimension_numbers = #tpu.dot_dimension_numbers<[1], [0], [0], [1], [0, 0, 1, 1], [], []>} : vector<2x128xbf16>, vector<128x256xbf16>, vector<2x256xf32> -> vector<2x256xf32>
    %c5_383 = arith.constant 5 : index
    %c0_384 = arith.constant 0 : index
    %c0_385 = arith.constant 0 : index
    %1155 = vector.load %arg3[%c5_383, %c0_384, %c0_385] : memref<10x1x256xf32, #tpu.memory_space<vmem>>, vector<1x1x256xf32>
    %1156 = vector.shape_cast %1155 : vector<1x1x256xf32> to vector<1x256xf32>
    %1157 = vector.broadcast %1156 : vector<1x256xf32> to vector<2x256xf32>
    %1158 = arith.addf %1154, %1157 : vector<2x256xf32>
    %1159 = vector.extract_strided_slice %1158 {offsets = [0, 0], sizes = [2, 192], strides = [1, 1]} : vector<2x256xf32> to vector<2x192xf32>
    %1160 = arith.negf %1159 : vector<2x192xf32>
    %1161 = math.exp %1160 : vector<2x192xf32>
    %cst_386 = arith.constant 1.000000e+00 : f32
    %1162 = vector.broadcast %cst_386 : f32 to vector<2x192xf32>
    %1163 = arith.addf %1162, %1161 : vector<2x192xf32>
    %1164 = arith.divf %1162, %1163 : vector<2x192xf32>
    %1165 = vector.extract_strided_slice %1158 {offsets = [0, 192], sizes = [2, 64], strides = [1, 1]} : vector<2x256xf32> to vector<2x64xf32>
    %1166 = math.tanh %1165 : vector<2x64xf32>
    %1167 = vector.extract_strided_slice %1164 {offsets = [0, 0], sizes = [2, 64], strides = [1, 1]} : vector<2x192xf32> to vector<2x64xf32>
    %1168 = vector.extract_strided_slice %1164 {offsets = [0, 64], sizes = [2, 64], strides = [1, 1]} : vector<2x192xf32> to vector<2x64xf32>
    %1169 = vector.extract_strided_slice %1164 {offsets = [0, 128], sizes = [2, 64], strides = [1, 1]} : vector<2x192xf32> to vector<2x64xf32>
    %1170 = arith.mulf %1168, %921 : vector<2x64xf32>
    %1171 = arith.mulf %1167, %1166 : vector<2x64xf32>
    %1172 = arith.addf %1170, %1171 : vector<2x64xf32>
    %1173 = math.tanh %1172 : vector<2x64xf32>
    %1174 = arith.mulf %1169, %1173 : vector<2x64xf32>
    %1175 = tpu.concatenate %1174, %948 in 1 : vector<2x64xf32>, vector<2x64xf32> -> vector<2x128xf32>
    %1176 = arith.truncf %1175 : vector<2x128xf32> to vector<2x128xbf16>
    %c5_387 = arith.constant 5 : index
    %c0_388 = arith.constant 0 : index
    %c0_389 = arith.constant 0 : index
    %1177 = vector.load %arg2[%c5_387, %c0_388, %c0_389] : memref<9x128x256xbf16, #tpu.memory_space<vmem>>, vector<1x128x256xbf16>
    %1178 = vector.shape_cast %1177 : vector<1x128x256xbf16> to vector<128x256xbf16>
    %cst_390 = arith.constant dense<0.000000e+00> : vector<2x256xf32>
    %1179 = tpu.matmul %1176, %1178, %cst_390 {dimension_numbers = #tpu.dot_dimension_numbers<[1], [0], [0], [1], [0, 0, 1, 1], [], []>} : vector<2x128xbf16>, vector<128x256xbf16>, vector<2x256xf32> -> vector<2x256xf32>
    %c6_391 = arith.constant 6 : index
    %c0_392 = arith.constant 0 : index
    %c0_393 = arith.constant 0 : index
    %1180 = vector.load %arg3[%c6_391, %c0_392, %c0_393] : memref<10x1x256xf32, #tpu.memory_space<vmem>>, vector<1x1x256xf32>
    %1181 = vector.shape_cast %1180 : vector<1x1x256xf32> to vector<1x256xf32>
    %1182 = vector.broadcast %1181 : vector<1x256xf32> to vector<2x256xf32>
    %1183 = arith.addf %1179, %1182 : vector<2x256xf32>
    %1184 = vector.extract_strided_slice %1183 {offsets = [0, 0], sizes = [2, 192], strides = [1, 1]} : vector<2x256xf32> to vector<2x192xf32>
    %1185 = arith.negf %1184 : vector<2x192xf32>
    %1186 = math.exp %1185 : vector<2x192xf32>
    %cst_394 = arith.constant 1.000000e+00 : f32
    %1187 = vector.broadcast %cst_394 : f32 to vector<2x192xf32>
    %1188 = arith.addf %1187, %1186 : vector<2x192xf32>
    %1189 = arith.divf %1187, %1188 : vector<2x192xf32>
    %1190 = vector.extract_strided_slice %1183 {offsets = [0, 192], sizes = [2, 64], strides = [1, 1]} : vector<2x256xf32> to vector<2x64xf32>
    %1191 = math.tanh %1190 : vector<2x64xf32>
    %1192 = vector.extract_strided_slice %1189 {offsets = [0, 0], sizes = [2, 64], strides = [1, 1]} : vector<2x192xf32> to vector<2x64xf32>
    %1193 = vector.extract_strided_slice %1189 {offsets = [0, 64], sizes = [2, 64], strides = [1, 1]} : vector<2x192xf32> to vector<2x64xf32>
    %1194 = vector.extract_strided_slice %1189 {offsets = [0, 128], sizes = [2, 64], strides = [1, 1]} : vector<2x192xf32> to vector<2x64xf32>
    %1195 = arith.mulf %1193, %946 : vector<2x64xf32>
    %1196 = arith.mulf %1192, %1191 : vector<2x64xf32>
    %1197 = arith.addf %1195, %1196 : vector<2x64xf32>
    %1198 = math.tanh %1197 : vector<2x64xf32>
    %1199 = arith.mulf %1194, %1198 : vector<2x64xf32>
    %1200 = tpu.concatenate %1199, %973 in 1 : vector<2x64xf32>, vector<2x64xf32> -> vector<2x128xf32>
    %1201 = arith.truncf %1200 : vector<2x128xf32> to vector<2x128xbf16>
    %c6_395 = arith.constant 6 : index
    %c0_396 = arith.constant 0 : index
    %c0_397 = arith.constant 0 : index
    %1202 = vector.load %arg2[%c6_395, %c0_396, %c0_397] : memref<9x128x256xbf16, #tpu.memory_space<vmem>>, vector<1x128x256xbf16>
    %1203 = vector.shape_cast %1202 : vector<1x128x256xbf16> to vector<128x256xbf16>
    %cst_398 = arith.constant dense<0.000000e+00> : vector<2x256xf32>
    %1204 = tpu.matmul %1201, %1203, %cst_398 {dimension_numbers = #tpu.dot_dimension_numbers<[1], [0], [0], [1], [0, 0, 1, 1], [], []>} : vector<2x128xbf16>, vector<128x256xbf16>, vector<2x256xf32> -> vector<2x256xf32>
    %c7_399 = arith.constant 7 : index
    %c0_400 = arith.constant 0 : index
    %c0_401 = arith.constant 0 : index
    %1205 = vector.load %arg3[%c7_399, %c0_400, %c0_401] : memref<10x1x256xf32, #tpu.memory_space<vmem>>, vector<1x1x256xf32>
    %1206 = vector.shape_cast %1205 : vector<1x1x256xf32> to vector<1x256xf32>
    %1207 = vector.broadcast %1206 : vector<1x256xf32> to vector<2x256xf32>
    %1208 = arith.addf %1204, %1207 : vector<2x256xf32>
    %1209 = vector.extract_strided_slice %1208 {offsets = [0, 0], sizes = [2, 192], strides = [1, 1]} : vector<2x256xf32> to vector<2x192xf32>
    %1210 = arith.negf %1209 : vector<2x192xf32>
    %1211 = math.exp %1210 : vector<2x192xf32>
    %cst_402 = arith.constant 1.000000e+00 : f32
    %1212 = vector.broadcast %cst_402 : f32 to vector<2x192xf32>
    %1213 = arith.addf %1212, %1211 : vector<2x192xf32>
    %1214 = arith.divf %1212, %1213 : vector<2x192xf32>
    %1215 = vector.extract_strided_slice %1208 {offsets = [0, 192], sizes = [2, 64], strides = [1, 1]} : vector<2x256xf32> to vector<2x64xf32>
    %1216 = math.tanh %1215 : vector<2x64xf32>
    %1217 = vector.extract_strided_slice %1214 {offsets = [0, 0], sizes = [2, 64], strides = [1, 1]} : vector<2x192xf32> to vector<2x64xf32>
    %1218 = vector.extract_strided_slice %1214 {offsets = [0, 64], sizes = [2, 64], strides = [1, 1]} : vector<2x192xf32> to vector<2x64xf32>
    %1219 = vector.extract_strided_slice %1214 {offsets = [0, 128], sizes = [2, 64], strides = [1, 1]} : vector<2x192xf32> to vector<2x64xf32>
    %1220 = arith.mulf %1218, %971 : vector<2x64xf32>
    %1221 = arith.mulf %1217, %1216 : vector<2x64xf32>
    %1222 = arith.addf %1220, %1221 : vector<2x64xf32>
    %1223 = math.tanh %1222 : vector<2x64xf32>
    %1224 = arith.mulf %1219, %1223 : vector<2x64xf32>
    %1225 = tpu.concatenate %1224, %998 in 1 : vector<2x64xf32>, vector<2x64xf32> -> vector<2x128xf32>
    %1226 = arith.truncf %1225 : vector<2x128xf32> to vector<2x128xbf16>
    %c7_403 = arith.constant 7 : index
    %c0_404 = arith.constant 0 : index
    %c0_405 = arith.constant 0 : index
    %1227 = vector.load %arg2[%c7_403, %c0_404, %c0_405] : memref<9x128x256xbf16, #tpu.memory_space<vmem>>, vector<1x128x256xbf16>
    %1228 = vector.shape_cast %1227 : vector<1x128x256xbf16> to vector<128x256xbf16>
    %cst_406 = arith.constant dense<0.000000e+00> : vector<2x256xf32>
    %1229 = tpu.matmul %1226, %1228, %cst_406 {dimension_numbers = #tpu.dot_dimension_numbers<[1], [0], [0], [1], [0, 0, 1, 1], [], []>} : vector<2x128xbf16>, vector<128x256xbf16>, vector<2x256xf32> -> vector<2x256xf32>
    %c8_407 = arith.constant 8 : index
    %c0_408 = arith.constant 0 : index
    %c0_409 = arith.constant 0 : index
    %1230 = vector.load %arg3[%c8_407, %c0_408, %c0_409] : memref<10x1x256xf32, #tpu.memory_space<vmem>>, vector<1x1x256xf32>
    %1231 = vector.shape_cast %1230 : vector<1x1x256xf32> to vector<1x256xf32>
    %1232 = vector.broadcast %1231 : vector<1x256xf32> to vector<2x256xf32>
    %1233 = arith.addf %1229, %1232 : vector<2x256xf32>
    %1234 = vector.extract_strided_slice %1233 {offsets = [0, 0], sizes = [2, 192], strides = [1, 1]} : vector<2x256xf32> to vector<2x192xf32>
    %1235 = arith.negf %1234 : vector<2x192xf32>
    %1236 = math.exp %1235 : vector<2x192xf32>
    %cst_410 = arith.constant 1.000000e+00 : f32
    %1237 = vector.broadcast %cst_410 : f32 to vector<2x192xf32>
    %1238 = arith.addf %1237, %1236 : vector<2x192xf32>
    %1239 = arith.divf %1237, %1238 : vector<2x192xf32>
    %1240 = vector.extract_strided_slice %1233 {offsets = [0, 192], sizes = [2, 64], strides = [1, 1]} : vector<2x256xf32> to vector<2x64xf32>
    %1241 = math.tanh %1240 : vector<2x64xf32>
    %1242 = vector.extract_strided_slice %1239 {offsets = [0, 0], sizes = [2, 64], strides = [1, 1]} : vector<2x192xf32> to vector<2x64xf32>
    %1243 = vector.extract_strided_slice %1239 {offsets = [0, 64], sizes = [2, 64], strides = [1, 1]} : vector<2x192xf32> to vector<2x64xf32>
    %1244 = vector.extract_strided_slice %1239 {offsets = [0, 128], sizes = [2, 64], strides = [1, 1]} : vector<2x192xf32> to vector<2x64xf32>
    %1245 = arith.mulf %1243, %996 : vector<2x64xf32>
    %1246 = arith.mulf %1242, %1241 : vector<2x64xf32>
    %1247 = arith.addf %1245, %1246 : vector<2x64xf32>
    %1248 = math.tanh %1247 : vector<2x64xf32>
    %1249 = arith.mulf %1244, %1248 : vector<2x64xf32>
    %1250 = tpu.concatenate %1249, %1023 in 1 : vector<2x64xf32>, vector<2x64xf32> -> vector<2x128xf32>
    %1251 = arith.truncf %1250 : vector<2x128xf32> to vector<2x128xbf16>
    %c8_411 = arith.constant 8 : index
    %c0_412 = arith.constant 0 : index
    %c0_413 = arith.constant 0 : index
    %1252 = vector.load %arg2[%c8_411, %c0_412, %c0_413] : memref<9x128x256xbf16, #tpu.memory_space<vmem>>, vector<1x128x256xbf16>
    %1253 = vector.shape_cast %1252 : vector<1x128x256xbf16> to vector<128x256xbf16>
    %cst_414 = arith.constant dense<0.000000e+00> : vector<2x256xf32>
    %1254 = tpu.matmul %1251, %1253, %cst_414 {dimension_numbers = #tpu.dot_dimension_numbers<[1], [0], [0], [1], [0, 0, 1, 1], [], []>} : vector<2x128xbf16>, vector<128x256xbf16>, vector<2x256xf32> -> vector<2x256xf32>
    %c9_415 = arith.constant 9 : index
    %c0_416 = arith.constant 0 : index
    %c0_417 = arith.constant 0 : index
    %1255 = vector.load %arg3[%c9_415, %c0_416, %c0_417] : memref<10x1x256xf32, #tpu.memory_space<vmem>>, vector<1x1x256xf32>
    %1256 = vector.shape_cast %1255 : vector<1x1x256xf32> to vector<1x256xf32>
    %1257 = vector.broadcast %1256 : vector<1x256xf32> to vector<2x256xf32>
    %1258 = arith.addf %1254, %1257 : vector<2x256xf32>
    %1259 = vector.extract_strided_slice %1258 {offsets = [0, 0], sizes = [2, 192], strides = [1, 1]} : vector<2x256xf32> to vector<2x192xf32>
    %1260 = arith.negf %1259 : vector<2x192xf32>
    %1261 = math.exp %1260 : vector<2x192xf32>
    %cst_418 = arith.constant 1.000000e+00 : f32
    %1262 = vector.broadcast %cst_418 : f32 to vector<2x192xf32>
    %1263 = arith.addf %1262, %1261 : vector<2x192xf32>
    %1264 = arith.divf %1262, %1263 : vector<2x192xf32>
    %1265 = vector.extract_strided_slice %1258 {offsets = [0, 192], sizes = [2, 64], strides = [1, 1]} : vector<2x256xf32> to vector<2x64xf32>
    %1266 = math.tanh %1265 : vector<2x64xf32>
    %1267 = vector.extract_strided_slice %1264 {offsets = [0, 0], sizes = [2, 64], strides = [1, 1]} : vector<2x192xf32> to vector<2x64xf32>
    %1268 = vector.extract_strided_slice %1264 {offsets = [0, 64], sizes = [2, 64], strides = [1, 1]} : vector<2x192xf32> to vector<2x64xf32>
    %1269 = vector.extract_strided_slice %1264 {offsets = [0, 128], sizes = [2, 64], strides = [1, 1]} : vector<2x192xf32> to vector<2x64xf32>
    %1270 = arith.mulf %1268, %1021 : vector<2x64xf32>
    %1271 = arith.mulf %1267, %1266 : vector<2x64xf32>
    %1272 = arith.addf %1270, %1271 : vector<2x64xf32>
    %1273 = math.tanh %1272 : vector<2x64xf32>
    %1274 = arith.mulf %1269, %1273 : vector<2x64xf32>
    %c5_419 = arith.constant 5 : index
    %c0_420 = arith.constant 0 : index
    %c0_421 = arith.constant 0 : index
    %1275 = vector.load %arg0[%c5_419, %c0_420, %c0_421] : memref<8x2x256xf32, #tpu.memory_space<vmem>>, vector<1x2x256xf32>
    %1276 = vector.shape_cast %1275 : vector<1x2x256xf32> to vector<2x256xf32>
    %1277 = arith.truncf %1049 : vector<2x64xf32> to vector<2x64xbf16>
    %c0_422 = arith.constant 0 : index
    %c0_423 = arith.constant 0 : index
    %1278 = vector.load %arg1[%c0_422, %c0_423] : memref<64x256xbf16, #tpu.memory_space<vmem>>, vector<64x256xbf16>
    %cst_424 = arith.constant dense<0.000000e+00> : vector<2x256xf32>
    %1279 = tpu.matmul %1277, %1278, %cst_424 {dimension_numbers = #tpu.dot_dimension_numbers<[1], [0], [0], [1], [0, 0, 1, 1], [], []>} : vector<2x64xbf16>, vector<64x256xbf16>, vector<2x256xf32> -> vector<2x256xf32>
    %1280 = arith.addf %1276, %1279 : vector<2x256xf32>
    %c0_425 = arith.constant 0 : index
    %c0_426 = arith.constant 0 : index
    %c0_427 = arith.constant 0 : index
    %1281 = vector.load %arg3[%c0_425, %c0_426, %c0_427] : memref<10x1x256xf32, #tpu.memory_space<vmem>>, vector<1x1x256xf32>
    %1282 = vector.shape_cast %1281 : vector<1x1x256xf32> to vector<1x256xf32>
    %1283 = vector.broadcast %1282 : vector<1x256xf32> to vector<2x256xf32>
    %1284 = arith.addf %1280, %1283 : vector<2x256xf32>
    %1285 = vector.extract_strided_slice %1284 {offsets = [0, 0], sizes = [2, 192], strides = [1, 1]} : vector<2x256xf32> to vector<2x192xf32>
    %1286 = arith.negf %1285 : vector<2x192xf32>
    %1287 = math.exp %1286 : vector<2x192xf32>
    %cst_428 = arith.constant 1.000000e+00 : f32
    %1288 = vector.broadcast %cst_428 : f32 to vector<2x192xf32>
    %1289 = arith.addf %1288, %1287 : vector<2x192xf32>
    %1290 = arith.divf %1288, %1289 : vector<2x192xf32>
    %1291 = vector.extract_strided_slice %1284 {offsets = [0, 192], sizes = [2, 64], strides = [1, 1]} : vector<2x256xf32> to vector<2x64xf32>
    %1292 = math.tanh %1291 : vector<2x64xf32>
    %1293 = vector.extract_strided_slice %1290 {offsets = [0, 0], sizes = [2, 64], strides = [1, 1]} : vector<2x192xf32> to vector<2x64xf32>
    %1294 = vector.extract_strided_slice %1290 {offsets = [0, 64], sizes = [2, 64], strides = [1, 1]} : vector<2x192xf32> to vector<2x64xf32>
    %1295 = vector.extract_strided_slice %1290 {offsets = [0, 128], sizes = [2, 64], strides = [1, 1]} : vector<2x192xf32> to vector<2x64xf32>
    %1296 = arith.mulf %1294, %1047 : vector<2x64xf32>
    %1297 = arith.mulf %1293, %1292 : vector<2x64xf32>
    %1298 = arith.addf %1296, %1297 : vector<2x64xf32>
    %1299 = math.tanh %1298 : vector<2x64xf32>
    %1300 = arith.mulf %1295, %1299 : vector<2x64xf32>
    %1301 = tpu.concatenate %1300, %1074 in 1 : vector<2x64xf32>, vector<2x64xf32> -> vector<2x128xf32>
    %1302 = arith.truncf %1301 : vector<2x128xf32> to vector<2x128xbf16>
    %c0_429 = arith.constant 0 : index
    %c0_430 = arith.constant 0 : index
    %c0_431 = arith.constant 0 : index
    %1303 = vector.load %arg2[%c0_429, %c0_430, %c0_431] : memref<9x128x256xbf16, #tpu.memory_space<vmem>>, vector<1x128x256xbf16>
    %1304 = vector.shape_cast %1303 : vector<1x128x256xbf16> to vector<128x256xbf16>
    %cst_432 = arith.constant dense<0.000000e+00> : vector<2x256xf32>
    %1305 = tpu.matmul %1302, %1304, %cst_432 {dimension_numbers = #tpu.dot_dimension_numbers<[1], [0], [0], [1], [0, 0, 1, 1], [], []>} : vector<2x128xbf16>, vector<128x256xbf16>, vector<2x256xf32> -> vector<2x256xf32>
    %c1_433 = arith.constant 1 : index
    %c0_434 = arith.constant 0 : index
    %c0_435 = arith.constant 0 : index
    %1306 = vector.load %arg3[%c1_433, %c0_434, %c0_435] : memref<10x1x256xf32, #tpu.memory_space<vmem>>, vector<1x1x256xf32>
    %1307 = vector.shape_cast %1306 : vector<1x1x256xf32> to vector<1x256xf32>
    %1308 = vector.broadcast %1307 : vector<1x256xf32> to vector<2x256xf32>
    %1309 = arith.addf %1305, %1308 : vector<2x256xf32>
    %1310 = vector.extract_strided_slice %1309 {offsets = [0, 0], sizes = [2, 192], strides = [1, 1]} : vector<2x256xf32> to vector<2x192xf32>
    %1311 = arith.negf %1310 : vector<2x192xf32>
    %1312 = math.exp %1311 : vector<2x192xf32>
    %cst_436 = arith.constant 1.000000e+00 : f32
    %1313 = vector.broadcast %cst_436 : f32 to vector<2x192xf32>
    %1314 = arith.addf %1313, %1312 : vector<2x192xf32>
    %1315 = arith.divf %1313, %1314 : vector<2x192xf32>
    %1316 = vector.extract_strided_slice %1309 {offsets = [0, 192], sizes = [2, 64], strides = [1, 1]} : vector<2x256xf32> to vector<2x64xf32>
    %1317 = math.tanh %1316 : vector<2x64xf32>
    %1318 = vector.extract_strided_slice %1315 {offsets = [0, 0], sizes = [2, 64], strides = [1, 1]} : vector<2x192xf32> to vector<2x64xf32>
    %1319 = vector.extract_strided_slice %1315 {offsets = [0, 64], sizes = [2, 64], strides = [1, 1]} : vector<2x192xf32> to vector<2x64xf32>
    %1320 = vector.extract_strided_slice %1315 {offsets = [0, 128], sizes = [2, 64], strides = [1, 1]} : vector<2x192xf32> to vector<2x64xf32>
    %1321 = arith.mulf %1319, %1072 : vector<2x64xf32>
    %1322 = arith.mulf %1318, %1317 : vector<2x64xf32>
    %1323 = arith.addf %1321, %1322 : vector<2x64xf32>
    %1324 = math.tanh %1323 : vector<2x64xf32>
    %1325 = arith.mulf %1320, %1324 : vector<2x64xf32>
    %1326 = tpu.concatenate %1325, %1099 in 1 : vector<2x64xf32>, vector<2x64xf32> -> vector<2x128xf32>
    %1327 = arith.truncf %1326 : vector<2x128xf32> to vector<2x128xbf16>
    %c1_437 = arith.constant 1 : index
    %c0_438 = arith.constant 0 : index
    %c0_439 = arith.constant 0 : index
    %1328 = vector.load %arg2[%c1_437, %c0_438, %c0_439] : memref<9x128x256xbf16, #tpu.memory_space<vmem>>, vector<1x128x256xbf16>
    %1329 = vector.shape_cast %1328 : vector<1x128x256xbf16> to vector<128x256xbf16>
    %cst_440 = arith.constant dense<0.000000e+00> : vector<2x256xf32>
    %1330 = tpu.matmul %1327, %1329, %cst_440 {dimension_numbers = #tpu.dot_dimension_numbers<[1], [0], [0], [1], [0, 0, 1, 1], [], []>} : vector<2x128xbf16>, vector<128x256xbf16>, vector<2x256xf32> -> vector<2x256xf32>
    %c2_441 = arith.constant 2 : index
    %c0_442 = arith.constant 0 : index
    %c0_443 = arith.constant 0 : index
    %1331 = vector.load %arg3[%c2_441, %c0_442, %c0_443] : memref<10x1x256xf32, #tpu.memory_space<vmem>>, vector<1x1x256xf32>
    %1332 = vector.shape_cast %1331 : vector<1x1x256xf32> to vector<1x256xf32>
    %1333 = vector.broadcast %1332 : vector<1x256xf32> to vector<2x256xf32>
    %1334 = arith.addf %1330, %1333 : vector<2x256xf32>
    %1335 = vector.extract_strided_slice %1334 {offsets = [0, 0], sizes = [2, 192], strides = [1, 1]} : vector<2x256xf32> to vector<2x192xf32>
    %1336 = arith.negf %1335 : vector<2x192xf32>
    %1337 = math.exp %1336 : vector<2x192xf32>
    %cst_444 = arith.constant 1.000000e+00 : f32
    %1338 = vector.broadcast %cst_444 : f32 to vector<2x192xf32>
    %1339 = arith.addf %1338, %1337 : vector<2x192xf32>
    %1340 = arith.divf %1338, %1339 : vector<2x192xf32>
    %1341 = vector.extract_strided_slice %1334 {offsets = [0, 192], sizes = [2, 64], strides = [1, 1]} : vector<2x256xf32> to vector<2x64xf32>
    %1342 = math.tanh %1341 : vector<2x64xf32>
    %1343 = vector.extract_strided_slice %1340 {offsets = [0, 0], sizes = [2, 64], strides = [1, 1]} : vector<2x192xf32> to vector<2x64xf32>
    %1344 = vector.extract_strided_slice %1340 {offsets = [0, 64], sizes = [2, 64], strides = [1, 1]} : vector<2x192xf32> to vector<2x64xf32>
    %1345 = vector.extract_strided_slice %1340 {offsets = [0, 128], sizes = [2, 64], strides = [1, 1]} : vector<2x192xf32> to vector<2x64xf32>
    %1346 = arith.mulf %1344, %1097 : vector<2x64xf32>
    %1347 = arith.mulf %1343, %1342 : vector<2x64xf32>
    %1348 = arith.addf %1346, %1347 : vector<2x64xf32>
    %1349 = math.tanh %1348 : vector<2x64xf32>
    %1350 = arith.mulf %1345, %1349 : vector<2x64xf32>
    %1351 = tpu.concatenate %1350, %1124 in 1 : vector<2x64xf32>, vector<2x64xf32> -> vector<2x128xf32>
    %1352 = arith.truncf %1351 : vector<2x128xf32> to vector<2x128xbf16>
    %c2_445 = arith.constant 2 : index
    %c0_446 = arith.constant 0 : index
    %c0_447 = arith.constant 0 : index
    %1353 = vector.load %arg2[%c2_445, %c0_446, %c0_447] : memref<9x128x256xbf16, #tpu.memory_space<vmem>>, vector<1x128x256xbf16>
    %1354 = vector.shape_cast %1353 : vector<1x128x256xbf16> to vector<128x256xbf16>
    %cst_448 = arith.constant dense<0.000000e+00> : vector<2x256xf32>
    %1355 = tpu.matmul %1352, %1354, %cst_448 {dimension_numbers = #tpu.dot_dimension_numbers<[1], [0], [0], [1], [0, 0, 1, 1], [], []>} : vector<2x128xbf16>, vector<128x256xbf16>, vector<2x256xf32> -> vector<2x256xf32>
    %c3_449 = arith.constant 3 : index
    %c0_450 = arith.constant 0 : index
    %c0_451 = arith.constant 0 : index
    %1356 = vector.load %arg3[%c3_449, %c0_450, %c0_451] : memref<10x1x256xf32, #tpu.memory_space<vmem>>, vector<1x1x256xf32>
    %1357 = vector.shape_cast %1356 : vector<1x1x256xf32> to vector<1x256xf32>
    %1358 = vector.broadcast %1357 : vector<1x256xf32> to vector<2x256xf32>
    %1359 = arith.addf %1355, %1358 : vector<2x256xf32>
    %1360 = vector.extract_strided_slice %1359 {offsets = [0, 0], sizes = [2, 192], strides = [1, 1]} : vector<2x256xf32> to vector<2x192xf32>
    %1361 = arith.negf %1360 : vector<2x192xf32>
    %1362 = math.exp %1361 : vector<2x192xf32>
    %cst_452 = arith.constant 1.000000e+00 : f32
    %1363 = vector.broadcast %cst_452 : f32 to vector<2x192xf32>
    %1364 = arith.addf %1363, %1362 : vector<2x192xf32>
    %1365 = arith.divf %1363, %1364 : vector<2x192xf32>
    %1366 = vector.extract_strided_slice %1359 {offsets = [0, 192], sizes = [2, 64], strides = [1, 1]} : vector<2x256xf32> to vector<2x64xf32>
    %1367 = math.tanh %1366 : vector<2x64xf32>
    %1368 = vector.extract_strided_slice %1365 {offsets = [0, 0], sizes = [2, 64], strides = [1, 1]} : vector<2x192xf32> to vector<2x64xf32>
    %1369 = vector.extract_strided_slice %1365 {offsets = [0, 64], sizes = [2, 64], strides = [1, 1]} : vector<2x192xf32> to vector<2x64xf32>
    %1370 = vector.extract_strided_slice %1365 {offsets = [0, 128], sizes = [2, 64], strides = [1, 1]} : vector<2x192xf32> to vector<2x64xf32>
    %1371 = arith.mulf %1369, %1122 : vector<2x64xf32>
    %1372 = arith.mulf %1368, %1367 : vector<2x64xf32>
    %1373 = arith.addf %1371, %1372 : vector<2x64xf32>
    %1374 = math.tanh %1373 : vector<2x64xf32>
    %1375 = arith.mulf %1370, %1374 : vector<2x64xf32>
    %1376 = tpu.concatenate %1375, %1149 in 1 : vector<2x64xf32>, vector<2x64xf32> -> vector<2x128xf32>
    %1377 = arith.truncf %1376 : vector<2x128xf32> to vector<2x128xbf16>
    %c3_453 = arith.constant 3 : index
    %c0_454 = arith.constant 0 : index
    %c0_455 = arith.constant 0 : index
    %1378 = vector.load %arg2[%c3_453, %c0_454, %c0_455] : memref<9x128x256xbf16, #tpu.memory_space<vmem>>, vector<1x128x256xbf16>
    %1379 = vector.shape_cast %1378 : vector<1x128x256xbf16> to vector<128x256xbf16>
    %cst_456 = arith.constant dense<0.000000e+00> : vector<2x256xf32>
    %1380 = tpu.matmul %1377, %1379, %cst_456 {dimension_numbers = #tpu.dot_dimension_numbers<[1], [0], [0], [1], [0, 0, 1, 1], [], []>} : vector<2x128xbf16>, vector<128x256xbf16>, vector<2x256xf32> -> vector<2x256xf32>
    %c4_457 = arith.constant 4 : index
    %c0_458 = arith.constant 0 : index
    %c0_459 = arith.constant 0 : index
    %1381 = vector.load %arg3[%c4_457, %c0_458, %c0_459] : memref<10x1x256xf32, #tpu.memory_space<vmem>>, vector<1x1x256xf32>
    %1382 = vector.shape_cast %1381 : vector<1x1x256xf32> to vector<1x256xf32>
    %1383 = vector.broadcast %1382 : vector<1x256xf32> to vector<2x256xf32>
    %1384 = arith.addf %1380, %1383 : vector<2x256xf32>
    %1385 = vector.extract_strided_slice %1384 {offsets = [0, 0], sizes = [2, 192], strides = [1, 1]} : vector<2x256xf32> to vector<2x192xf32>
    %1386 = arith.negf %1385 : vector<2x192xf32>
    %1387 = math.exp %1386 : vector<2x192xf32>
    %cst_460 = arith.constant 1.000000e+00 : f32
    %1388 = vector.broadcast %cst_460 : f32 to vector<2x192xf32>
    %1389 = arith.addf %1388, %1387 : vector<2x192xf32>
    %1390 = arith.divf %1388, %1389 : vector<2x192xf32>
    %1391 = vector.extract_strided_slice %1384 {offsets = [0, 192], sizes = [2, 64], strides = [1, 1]} : vector<2x256xf32> to vector<2x64xf32>
    %1392 = math.tanh %1391 : vector<2x64xf32>
    %1393 = vector.extract_strided_slice %1390 {offsets = [0, 0], sizes = [2, 64], strides = [1, 1]} : vector<2x192xf32> to vector<2x64xf32>
    %1394 = vector.extract_strided_slice %1390 {offsets = [0, 64], sizes = [2, 64], strides = [1, 1]} : vector<2x192xf32> to vector<2x64xf32>
    %1395 = vector.extract_strided_slice %1390 {offsets = [0, 128], sizes = [2, 64], strides = [1, 1]} : vector<2x192xf32> to vector<2x64xf32>
    %1396 = arith.mulf %1394, %1147 : vector<2x64xf32>
    %1397 = arith.mulf %1393, %1392 : vector<2x64xf32>
    %1398 = arith.addf %1396, %1397 : vector<2x64xf32>
    %1399 = math.tanh %1398 : vector<2x64xf32>
    %1400 = arith.mulf %1395, %1399 : vector<2x64xf32>
    %1401 = tpu.concatenate %1400, %1174 in 1 : vector<2x64xf32>, vector<2x64xf32> -> vector<2x128xf32>
    %1402 = arith.truncf %1401 : vector<2x128xf32> to vector<2x128xbf16>
    %c4_461 = arith.constant 4 : index
    %c0_462 = arith.constant 0 : index
    %c0_463 = arith.constant 0 : index
    %1403 = vector.load %arg2[%c4_461, %c0_462, %c0_463] : memref<9x128x256xbf16, #tpu.memory_space<vmem>>, vector<1x128x256xbf16>
    %1404 = vector.shape_cast %1403 : vector<1x128x256xbf16> to vector<128x256xbf16>
    %cst_464 = arith.constant dense<0.000000e+00> : vector<2x256xf32>
    %1405 = tpu.matmul %1402, %1404, %cst_464 {dimension_numbers = #tpu.dot_dimension_numbers<[1], [0], [0], [1], [0, 0, 1, 1], [], []>} : vector<2x128xbf16>, vector<128x256xbf16>, vector<2x256xf32> -> vector<2x256xf32>
    %c5_465 = arith.constant 5 : index
    %c0_466 = arith.constant 0 : index
    %c0_467 = arith.constant 0 : index
    %1406 = vector.load %arg3[%c5_465, %c0_466, %c0_467] : memref<10x1x256xf32, #tpu.memory_space<vmem>>, vector<1x1x256xf32>
    %1407 = vector.shape_cast %1406 : vector<1x1x256xf32> to vector<1x256xf32>
    %1408 = vector.broadcast %1407 : vector<1x256xf32> to vector<2x256xf32>
    %1409 = arith.addf %1405, %1408 : vector<2x256xf32>
    %1410 = vector.extract_strided_slice %1409 {offsets = [0, 0], sizes = [2, 192], strides = [1, 1]} : vector<2x256xf32> to vector<2x192xf32>
    %1411 = arith.negf %1410 : vector<2x192xf32>
    %1412 = math.exp %1411 : vector<2x192xf32>
    %cst_468 = arith.constant 1.000000e+00 : f32
    %1413 = vector.broadcast %cst_468 : f32 to vector<2x192xf32>
    %1414 = arith.addf %1413, %1412 : vector<2x192xf32>
    %1415 = arith.divf %1413, %1414 : vector<2x192xf32>
    %1416 = vector.extract_strided_slice %1409 {offsets = [0, 192], sizes = [2, 64], strides = [1, 1]} : vector<2x256xf32> to vector<2x64xf32>
    %1417 = math.tanh %1416 : vector<2x64xf32>
    %1418 = vector.extract_strided_slice %1415 {offsets = [0, 0], sizes = [2, 64], strides = [1, 1]} : vector<2x192xf32> to vector<2x64xf32>
    %1419 = vector.extract_strided_slice %1415 {offsets = [0, 64], sizes = [2, 64], strides = [1, 1]} : vector<2x192xf32> to vector<2x64xf32>
    %1420 = vector.extract_strided_slice %1415 {offsets = [0, 128], sizes = [2, 64], strides = [1, 1]} : vector<2x192xf32> to vector<2x64xf32>
    %1421 = arith.mulf %1419, %1172 : vector<2x64xf32>
    %1422 = arith.mulf %1418, %1417 : vector<2x64xf32>
    %1423 = arith.addf %1421, %1422 : vector<2x64xf32>
    %1424 = math.tanh %1423 : vector<2x64xf32>
    %1425 = arith.mulf %1420, %1424 : vector<2x64xf32>
    %1426 = tpu.concatenate %1425, %1199 in 1 : vector<2x64xf32>, vector<2x64xf32> -> vector<2x128xf32>
    %1427 = arith.truncf %1426 : vector<2x128xf32> to vector<2x128xbf16>
    %c5_469 = arith.constant 5 : index
    %c0_470 = arith.constant 0 : index
    %c0_471 = arith.constant 0 : index
    %1428 = vector.load %arg2[%c5_469, %c0_470, %c0_471] : memref<9x128x256xbf16, #tpu.memory_space<vmem>>, vector<1x128x256xbf16>
    %1429 = vector.shape_cast %1428 : vector<1x128x256xbf16> to vector<128x256xbf16>
    %cst_472 = arith.constant dense<0.000000e+00> : vector<2x256xf32>
    %1430 = tpu.matmul %1427, %1429, %cst_472 {dimension_numbers = #tpu.dot_dimension_numbers<[1], [0], [0], [1], [0, 0, 1, 1], [], []>} : vector<2x128xbf16>, vector<128x256xbf16>, vector<2x256xf32> -> vector<2x256xf32>
    %c6_473 = arith.constant 6 : index
    %c0_474 = arith.constant 0 : index
    %c0_475 = arith.constant 0 : index
    %1431 = vector.load %arg3[%c6_473, %c0_474, %c0_475] : memref<10x1x256xf32, #tpu.memory_space<vmem>>, vector<1x1x256xf32>
    %1432 = vector.shape_cast %1431 : vector<1x1x256xf32> to vector<1x256xf32>
    %1433 = vector.broadcast %1432 : vector<1x256xf32> to vector<2x256xf32>
    %1434 = arith.addf %1430, %1433 : vector<2x256xf32>
    %1435 = vector.extract_strided_slice %1434 {offsets = [0, 0], sizes = [2, 192], strides = [1, 1]} : vector<2x256xf32> to vector<2x192xf32>
    %1436 = arith.negf %1435 : vector<2x192xf32>
    %1437 = math.exp %1436 : vector<2x192xf32>
    %cst_476 = arith.constant 1.000000e+00 : f32
    %1438 = vector.broadcast %cst_476 : f32 to vector<2x192xf32>
    %1439 = arith.addf %1438, %1437 : vector<2x192xf32>
    %1440 = arith.divf %1438, %1439 : vector<2x192xf32>
    %1441 = vector.extract_strided_slice %1434 {offsets = [0, 192], sizes = [2, 64], strides = [1, 1]} : vector<2x256xf32> to vector<2x64xf32>
    %1442 = math.tanh %1441 : vector<2x64xf32>
    %1443 = vector.extract_strided_slice %1440 {offsets = [0, 0], sizes = [2, 64], strides = [1, 1]} : vector<2x192xf32> to vector<2x64xf32>
    %1444 = vector.extract_strided_slice %1440 {offsets = [0, 64], sizes = [2, 64], strides = [1, 1]} : vector<2x192xf32> to vector<2x64xf32>
    %1445 = vector.extract_strided_slice %1440 {offsets = [0, 128], sizes = [2, 64], strides = [1, 1]} : vector<2x192xf32> to vector<2x64xf32>
    %1446 = arith.mulf %1444, %1197 : vector<2x64xf32>
    %1447 = arith.mulf %1443, %1442 : vector<2x64xf32>
    %1448 = arith.addf %1446, %1447 : vector<2x64xf32>
    %1449 = math.tanh %1448 : vector<2x64xf32>
    %1450 = arith.mulf %1445, %1449 : vector<2x64xf32>
    %1451 = tpu.concatenate %1450, %1224 in 1 : vector<2x64xf32>, vector<2x64xf32> -> vector<2x128xf32>
    %1452 = arith.truncf %1451 : vector<2x128xf32> to vector<2x128xbf16>
    %c6_477 = arith.constant 6 : index
    %c0_478 = arith.constant 0 : index
    %c0_479 = arith.constant 0 : index
    %1453 = vector.load %arg2[%c6_477, %c0_478, %c0_479] : memref<9x128x256xbf16, #tpu.memory_space<vmem>>, vector<1x128x256xbf16>
    %1454 = vector.shape_cast %1453 : vector<1x128x256xbf16> to vector<128x256xbf16>
    %cst_480 = arith.constant dense<0.000000e+00> : vector<2x256xf32>
    %1455 = tpu.matmul %1452, %1454, %cst_480 {dimension_numbers = #tpu.dot_dimension_numbers<[1], [0], [0], [1], [0, 0, 1, 1], [], []>} : vector<2x128xbf16>, vector<128x256xbf16>, vector<2x256xf32> -> vector<2x256xf32>
    %c7_481 = arith.constant 7 : index
    %c0_482 = arith.constant 0 : index
    %c0_483 = arith.constant 0 : index
    %1456 = vector.load %arg3[%c7_481, %c0_482, %c0_483] : memref<10x1x256xf32, #tpu.memory_space<vmem>>, vector<1x1x256xf32>
    %1457 = vector.shape_cast %1456 : vector<1x1x256xf32> to vector<1x256xf32>
    %1458 = vector.broadcast %1457 : vector<1x256xf32> to vector<2x256xf32>
    %1459 = arith.addf %1455, %1458 : vector<2x256xf32>
    %1460 = vector.extract_strided_slice %1459 {offsets = [0, 0], sizes = [2, 192], strides = [1, 1]} : vector<2x256xf32> to vector<2x192xf32>
    %1461 = arith.negf %1460 : vector<2x192xf32>
    %1462 = math.exp %1461 : vector<2x192xf32>
    %cst_484 = arith.constant 1.000000e+00 : f32
    %1463 = vector.broadcast %cst_484 : f32 to vector<2x192xf32>
    %1464 = arith.addf %1463, %1462 : vector<2x192xf32>
    %1465 = arith.divf %1463, %1464 : vector<2x192xf32>
    %1466 = vector.extract_strided_slice %1459 {offsets = [0, 192], sizes = [2, 64], strides = [1, 1]} : vector<2x256xf32> to vector<2x64xf32>
    %1467 = math.tanh %1466 : vector<2x64xf32>
    %1468 = vector.extract_strided_slice %1465 {offsets = [0, 0], sizes = [2, 64], strides = [1, 1]} : vector<2x192xf32> to vector<2x64xf32>
    %1469 = vector.extract_strided_slice %1465 {offsets = [0, 64], sizes = [2, 64], strides = [1, 1]} : vector<2x192xf32> to vector<2x64xf32>
    %1470 = vector.extract_strided_slice %1465 {offsets = [0, 128], sizes = [2, 64], strides = [1, 1]} : vector<2x192xf32> to vector<2x64xf32>
    %1471 = arith.mulf %1469, %1222 : vector<2x64xf32>
    %1472 = arith.mulf %1468, %1467 : vector<2x64xf32>
    %1473 = arith.addf %1471, %1472 : vector<2x64xf32>
    %1474 = math.tanh %1473 : vector<2x64xf32>
    %1475 = arith.mulf %1470, %1474 : vector<2x64xf32>
    %1476 = tpu.concatenate %1475, %1249 in 1 : vector<2x64xf32>, vector<2x64xf32> -> vector<2x128xf32>
    %1477 = arith.truncf %1476 : vector<2x128xf32> to vector<2x128xbf16>
    %c7_485 = arith.constant 7 : index
    %c0_486 = arith.constant 0 : index
    %c0_487 = arith.constant 0 : index
    %1478 = vector.load %arg2[%c7_485, %c0_486, %c0_487] : memref<9x128x256xbf16, #tpu.memory_space<vmem>>, vector<1x128x256xbf16>
    %1479 = vector.shape_cast %1478 : vector<1x128x256xbf16> to vector<128x256xbf16>
    %cst_488 = arith.constant dense<0.000000e+00> : vector<2x256xf32>
    %1480 = tpu.matmul %1477, %1479, %cst_488 {dimension_numbers = #tpu.dot_dimension_numbers<[1], [0], [0], [1], [0, 0, 1, 1], [], []>} : vector<2x128xbf16>, vector<128x256xbf16>, vector<2x256xf32> -> vector<2x256xf32>
    %c8_489 = arith.constant 8 : index
    %c0_490 = arith.constant 0 : index
    %c0_491 = arith.constant 0 : index
    %1481 = vector.load %arg3[%c8_489, %c0_490, %c0_491] : memref<10x1x256xf32, #tpu.memory_space<vmem>>, vector<1x1x256xf32>
    %1482 = vector.shape_cast %1481 : vector<1x1x256xf32> to vector<1x256xf32>
    %1483 = vector.broadcast %1482 : vector<1x256xf32> to vector<2x256xf32>
    %1484 = arith.addf %1480, %1483 : vector<2x256xf32>
    %1485 = vector.extract_strided_slice %1484 {offsets = [0, 0], sizes = [2, 192], strides = [1, 1]} : vector<2x256xf32> to vector<2x192xf32>
    %1486 = arith.negf %1485 : vector<2x192xf32>
    %1487 = math.exp %1486 : vector<2x192xf32>
    %cst_492 = arith.constant 1.000000e+00 : f32
    %1488 = vector.broadcast %cst_492 : f32 to vector<2x192xf32>
    %1489 = arith.addf %1488, %1487 : vector<2x192xf32>
    %1490 = arith.divf %1488, %1489 : vector<2x192xf32>
    %1491 = vector.extract_strided_slice %1484 {offsets = [0, 192], sizes = [2, 64], strides = [1, 1]} : vector<2x256xf32> to vector<2x64xf32>
    %1492 = math.tanh %1491 : vector<2x64xf32>
    %1493 = vector.extract_strided_slice %1490 {offsets = [0, 0], sizes = [2, 64], strides = [1, 1]} : vector<2x192xf32> to vector<2x64xf32>
    %1494 = vector.extract_strided_slice %1490 {offsets = [0, 64], sizes = [2, 64], strides = [1, 1]} : vector<2x192xf32> to vector<2x64xf32>
    %1495 = vector.extract_strided_slice %1490 {offsets = [0, 128], sizes = [2, 64], strides = [1, 1]} : vector<2x192xf32> to vector<2x64xf32>
    %1496 = arith.mulf %1494, %1247 : vector<2x64xf32>
    %1497 = arith.mulf %1493, %1492 : vector<2x64xf32>
    %1498 = arith.addf %1496, %1497 : vector<2x64xf32>
    %1499 = math.tanh %1498 : vector<2x64xf32>
    %1500 = arith.mulf %1495, %1499 : vector<2x64xf32>
    %1501 = tpu.concatenate %1500, %1274 in 1 : vector<2x64xf32>, vector<2x64xf32> -> vector<2x128xf32>
    %1502 = arith.truncf %1501 : vector<2x128xf32> to vector<2x128xbf16>
    %c8_493 = arith.constant 8 : index
    %c0_494 = arith.constant 0 : index
    %c0_495 = arith.constant 0 : index
    %1503 = vector.load %arg2[%c8_493, %c0_494, %c0_495] : memref<9x128x256xbf16, #tpu.memory_space<vmem>>, vector<1x128x256xbf16>
    %1504 = vector.shape_cast %1503 : vector<1x128x256xbf16> to vector<128x256xbf16>
    %cst_496 = arith.constant dense<0.000000e+00> : vector<2x256xf32>
    %1505 = tpu.matmul %1502, %1504, %cst_496 {dimension_numbers = #tpu.dot_dimension_numbers<[1], [0], [0], [1], [0, 0, 1, 1], [], []>} : vector<2x128xbf16>, vector<128x256xbf16>, vector<2x256xf32> -> vector<2x256xf32>
    %c9_497 = arith.constant 9 : index
    %c0_498 = arith.constant 0 : index
    %c0_499 = arith.constant 0 : index
    %1506 = vector.load %arg3[%c9_497, %c0_498, %c0_499] : memref<10x1x256xf32, #tpu.memory_space<vmem>>, vector<1x1x256xf32>
    %1507 = vector.shape_cast %1506 : vector<1x1x256xf32> to vector<1x256xf32>
    %1508 = vector.broadcast %1507 : vector<1x256xf32> to vector<2x256xf32>
    %1509 = arith.addf %1505, %1508 : vector<2x256xf32>
    %1510 = vector.extract_strided_slice %1509 {offsets = [0, 0], sizes = [2, 192], strides = [1, 1]} : vector<2x256xf32> to vector<2x192xf32>
    %1511 = arith.negf %1510 : vector<2x192xf32>
    %1512 = math.exp %1511 : vector<2x192xf32>
    %cst_500 = arith.constant 1.000000e+00 : f32
    %1513 = vector.broadcast %cst_500 : f32 to vector<2x192xf32>
    %1514 = arith.addf %1513, %1512 : vector<2x192xf32>
    %1515 = arith.divf %1513, %1514 : vector<2x192xf32>
    %1516 = vector.extract_strided_slice %1509 {offsets = [0, 192], sizes = [2, 64], strides = [1, 1]} : vector<2x256xf32> to vector<2x64xf32>
    %1517 = math.tanh %1516 : vector<2x64xf32>
    %1518 = vector.extract_strided_slice %1515 {offsets = [0, 0], sizes = [2, 64], strides = [1, 1]} : vector<2x192xf32> to vector<2x64xf32>
    %1519 = vector.extract_strided_slice %1515 {offsets = [0, 64], sizes = [2, 64], strides = [1, 1]} : vector<2x192xf32> to vector<2x64xf32>
    %1520 = vector.extract_strided_slice %1515 {offsets = [0, 128], sizes = [2, 64], strides = [1, 1]} : vector<2x192xf32> to vector<2x64xf32>
    %1521 = arith.mulf %1519, %1272 : vector<2x64xf32>
    %1522 = arith.mulf %1518, %1517 : vector<2x64xf32>
    %1523 = arith.addf %1521, %1522 : vector<2x64xf32>
    %1524 = math.tanh %1523 : vector<2x64xf32>
    %1525 = arith.mulf %1520, %1524 : vector<2x64xf32>
    %c6_501 = arith.constant 6 : index
    %c0_502 = arith.constant 0 : index
    %c0_503 = arith.constant 0 : index
    %1526 = vector.load %arg0[%c6_501, %c0_502, %c0_503] : memref<8x2x256xf32, #tpu.memory_space<vmem>>, vector<1x2x256xf32>
    %1527 = vector.shape_cast %1526 : vector<1x2x256xf32> to vector<2x256xf32>
    %1528 = arith.truncf %1300 : vector<2x64xf32> to vector<2x64xbf16>
    %c0_504 = arith.constant 0 : index
    %c0_505 = arith.constant 0 : index
    %1529 = vector.load %arg1[%c0_504, %c0_505] : memref<64x256xbf16, #tpu.memory_space<vmem>>, vector<64x256xbf16>
    %cst_506 = arith.constant dense<0.000000e+00> : vector<2x256xf32>
    %1530 = tpu.matmul %1528, %1529, %cst_506 {dimension_numbers = #tpu.dot_dimension_numbers<[1], [0], [0], [1], [0, 0, 1, 1], [], []>} : vector<2x64xbf16>, vector<64x256xbf16>, vector<2x256xf32> -> vector<2x256xf32>
    %1531 = arith.addf %1527, %1530 : vector<2x256xf32>
    %c0_507 = arith.constant 0 : index
    %c0_508 = arith.constant 0 : index
    %c0_509 = arith.constant 0 : index
    %1532 = vector.load %arg3[%c0_507, %c0_508, %c0_509] : memref<10x1x256xf32, #tpu.memory_space<vmem>>, vector<1x1x256xf32>
    %1533 = vector.shape_cast %1532 : vector<1x1x256xf32> to vector<1x256xf32>
    %1534 = vector.broadcast %1533 : vector<1x256xf32> to vector<2x256xf32>
    %1535 = arith.addf %1531, %1534 : vector<2x256xf32>
    %1536 = vector.extract_strided_slice %1535 {offsets = [0, 0], sizes = [2, 192], strides = [1, 1]} : vector<2x256xf32> to vector<2x192xf32>
    %1537 = arith.negf %1536 : vector<2x192xf32>
    %1538 = math.exp %1537 : vector<2x192xf32>
    %cst_510 = arith.constant 1.000000e+00 : f32
    %1539 = vector.broadcast %cst_510 : f32 to vector<2x192xf32>
    %1540 = arith.addf %1539, %1538 : vector<2x192xf32>
    %1541 = arith.divf %1539, %1540 : vector<2x192xf32>
    %1542 = vector.extract_strided_slice %1535 {offsets = [0, 192], sizes = [2, 64], strides = [1, 1]} : vector<2x256xf32> to vector<2x64xf32>
    %1543 = math.tanh %1542 : vector<2x64xf32>
    %1544 = vector.extract_strided_slice %1541 {offsets = [0, 0], sizes = [2, 64], strides = [1, 1]} : vector<2x192xf32> to vector<2x64xf32>
    %1545 = vector.extract_strided_slice %1541 {offsets = [0, 64], sizes = [2, 64], strides = [1, 1]} : vector<2x192xf32> to vector<2x64xf32>
    %1546 = vector.extract_strided_slice %1541 {offsets = [0, 128], sizes = [2, 64], strides = [1, 1]} : vector<2x192xf32> to vector<2x64xf32>
    %1547 = arith.mulf %1545, %1298 : vector<2x64xf32>
    %1548 = arith.mulf %1544, %1543 : vector<2x64xf32>
    %1549 = arith.addf %1547, %1548 : vector<2x64xf32>
    %1550 = math.tanh %1549 : vector<2x64xf32>
    %1551 = arith.mulf %1546, %1550 : vector<2x64xf32>
    %1552 = tpu.concatenate %1551, %1325 in 1 : vector<2x64xf32>, vector<2x64xf32> -> vector<2x128xf32>
    %1553 = arith.truncf %1552 : vector<2x128xf32> to vector<2x128xbf16>
    %c0_511 = arith.constant 0 : index
    %c0_512 = arith.constant 0 : index
    %c0_513 = arith.constant 0 : index
    %1554 = vector.load %arg2[%c0_511, %c0_512, %c0_513] : memref<9x128x256xbf16, #tpu.memory_space<vmem>>, vector<1x128x256xbf16>
    %1555 = vector.shape_cast %1554 : vector<1x128x256xbf16> to vector<128x256xbf16>
    %cst_514 = arith.constant dense<0.000000e+00> : vector<2x256xf32>
    %1556 = tpu.matmul %1553, %1555, %cst_514 {dimension_numbers = #tpu.dot_dimension_numbers<[1], [0], [0], [1], [0, 0, 1, 1], [], []>} : vector<2x128xbf16>, vector<128x256xbf16>, vector<2x256xf32> -> vector<2x256xf32>
    %c1_515 = arith.constant 1 : index
    %c0_516 = arith.constant 0 : index
    %c0_517 = arith.constant 0 : index
    %1557 = vector.load %arg3[%c1_515, %c0_516, %c0_517] : memref<10x1x256xf32, #tpu.memory_space<vmem>>, vector<1x1x256xf32>
    %1558 = vector.shape_cast %1557 : vector<1x1x256xf32> to vector<1x256xf32>
    %1559 = vector.broadcast %1558 : vector<1x256xf32> to vector<2x256xf32>
    %1560 = arith.addf %1556, %1559 : vector<2x256xf32>
    %1561 = vector.extract_strided_slice %1560 {offsets = [0, 0], sizes = [2, 192], strides = [1, 1]} : vector<2x256xf32> to vector<2x192xf32>
    %1562 = arith.negf %1561 : vector<2x192xf32>
    %1563 = math.exp %1562 : vector<2x192xf32>
    %cst_518 = arith.constant 1.000000e+00 : f32
    %1564 = vector.broadcast %cst_518 : f32 to vector<2x192xf32>
    %1565 = arith.addf %1564, %1563 : vector<2x192xf32>
    %1566 = arith.divf %1564, %1565 : vector<2x192xf32>
    %1567 = vector.extract_strided_slice %1560 {offsets = [0, 192], sizes = [2, 64], strides = [1, 1]} : vector<2x256xf32> to vector<2x64xf32>
    %1568 = math.tanh %1567 : vector<2x64xf32>
    %1569 = vector.extract_strided_slice %1566 {offsets = [0, 0], sizes = [2, 64], strides = [1, 1]} : vector<2x192xf32> to vector<2x64xf32>
    %1570 = vector.extract_strided_slice %1566 {offsets = [0, 64], sizes = [2, 64], strides = [1, 1]} : vector<2x192xf32> to vector<2x64xf32>
    %1571 = vector.extract_strided_slice %1566 {offsets = [0, 128], sizes = [2, 64], strides = [1, 1]} : vector<2x192xf32> to vector<2x64xf32>
    %1572 = arith.mulf %1570, %1323 : vector<2x64xf32>
    %1573 = arith.mulf %1569, %1568 : vector<2x64xf32>
    %1574 = arith.addf %1572, %1573 : vector<2x64xf32>
    %1575 = math.tanh %1574 : vector<2x64xf32>
    %1576 = arith.mulf %1571, %1575 : vector<2x64xf32>
    %1577 = tpu.concatenate %1576, %1350 in 1 : vector<2x64xf32>, vector<2x64xf32> -> vector<2x128xf32>
    %1578 = arith.truncf %1577 : vector<2x128xf32> to vector<2x128xbf16>
    %c1_519 = arith.constant 1 : index
    %c0_520 = arith.constant 0 : index
    %c0_521 = arith.constant 0 : index
    %1579 = vector.load %arg2[%c1_519, %c0_520, %c0_521] : memref<9x128x256xbf16, #tpu.memory_space<vmem>>, vector<1x128x256xbf16>
    %1580 = vector.shape_cast %1579 : vector<1x128x256xbf16> to vector<128x256xbf16>
    %cst_522 = arith.constant dense<0.000000e+00> : vector<2x256xf32>
    %1581 = tpu.matmul %1578, %1580, %cst_522 {dimension_numbers = #tpu.dot_dimension_numbers<[1], [0], [0], [1], [0, 0, 1, 1], [], []>} : vector<2x128xbf16>, vector<128x256xbf16>, vector<2x256xf32> -> vector<2x256xf32>
    %c2_523 = arith.constant 2 : index
    %c0_524 = arith.constant 0 : index
    %c0_525 = arith.constant 0 : index
    %1582 = vector.load %arg3[%c2_523, %c0_524, %c0_525] : memref<10x1x256xf32, #tpu.memory_space<vmem>>, vector<1x1x256xf32>
    %1583 = vector.shape_cast %1582 : vector<1x1x256xf32> to vector<1x256xf32>
    %1584 = vector.broadcast %1583 : vector<1x256xf32> to vector<2x256xf32>
    %1585 = arith.addf %1581, %1584 : vector<2x256xf32>
    %1586 = vector.extract_strided_slice %1585 {offsets = [0, 0], sizes = [2, 192], strides = [1, 1]} : vector<2x256xf32> to vector<2x192xf32>
    %1587 = arith.negf %1586 : vector<2x192xf32>
    %1588 = math.exp %1587 : vector<2x192xf32>
    %cst_526 = arith.constant 1.000000e+00 : f32
    %1589 = vector.broadcast %cst_526 : f32 to vector<2x192xf32>
    %1590 = arith.addf %1589, %1588 : vector<2x192xf32>
    %1591 = arith.divf %1589, %1590 : vector<2x192xf32>
    %1592 = vector.extract_strided_slice %1585 {offsets = [0, 192], sizes = [2, 64], strides = [1, 1]} : vector<2x256xf32> to vector<2x64xf32>
    %1593 = math.tanh %1592 : vector<2x64xf32>
    %1594 = vector.extract_strided_slice %1591 {offsets = [0, 0], sizes = [2, 64], strides = [1, 1]} : vector<2x192xf32> to vector<2x64xf32>
    %1595 = vector.extract_strided_slice %1591 {offsets = [0, 64], sizes = [2, 64], strides = [1, 1]} : vector<2x192xf32> to vector<2x64xf32>
    %1596 = vector.extract_strided_slice %1591 {offsets = [0, 128], sizes = [2, 64], strides = [1, 1]} : vector<2x192xf32> to vector<2x64xf32>
    %1597 = arith.mulf %1595, %1348 : vector<2x64xf32>
    %1598 = arith.mulf %1594, %1593 : vector<2x64xf32>
    %1599 = arith.addf %1597, %1598 : vector<2x64xf32>
    %1600 = math.tanh %1599 : vector<2x64xf32>
    %1601 = arith.mulf %1596, %1600 : vector<2x64xf32>
    %1602 = tpu.concatenate %1601, %1375 in 1 : vector<2x64xf32>, vector<2x64xf32> -> vector<2x128xf32>
    %1603 = arith.truncf %1602 : vector<2x128xf32> to vector<2x128xbf16>
    %c2_527 = arith.constant 2 : index
    %c0_528 = arith.constant 0 : index
    %c0_529 = arith.constant 0 : index
    %1604 = vector.load %arg2[%c2_527, %c0_528, %c0_529] : memref<9x128x256xbf16, #tpu.memory_space<vmem>>, vector<1x128x256xbf16>
    %1605 = vector.shape_cast %1604 : vector<1x128x256xbf16> to vector<128x256xbf16>
    %cst_530 = arith.constant dense<0.000000e+00> : vector<2x256xf32>
    %1606 = tpu.matmul %1603, %1605, %cst_530 {dimension_numbers = #tpu.dot_dimension_numbers<[1], [0], [0], [1], [0, 0, 1, 1], [], []>} : vector<2x128xbf16>, vector<128x256xbf16>, vector<2x256xf32> -> vector<2x256xf32>
    %c3_531 = arith.constant 3 : index
    %c0_532 = arith.constant 0 : index
    %c0_533 = arith.constant 0 : index
    %1607 = vector.load %arg3[%c3_531, %c0_532, %c0_533] : memref<10x1x256xf32, #tpu.memory_space<vmem>>, vector<1x1x256xf32>
    %1608 = vector.shape_cast %1607 : vector<1x1x256xf32> to vector<1x256xf32>
    %1609 = vector.broadcast %1608 : vector<1x256xf32> to vector<2x256xf32>
    %1610 = arith.addf %1606, %1609 : vector<2x256xf32>
    %1611 = vector.extract_strided_slice %1610 {offsets = [0, 0], sizes = [2, 192], strides = [1, 1]} : vector<2x256xf32> to vector<2x192xf32>
    %1612 = arith.negf %1611 : vector<2x192xf32>
    %1613 = math.exp %1612 : vector<2x192xf32>
    %cst_534 = arith.constant 1.000000e+00 : f32
    %1614 = vector.broadcast %cst_534 : f32 to vector<2x192xf32>
    %1615 = arith.addf %1614, %1613 : vector<2x192xf32>
    %1616 = arith.divf %1614, %1615 : vector<2x192xf32>
    %1617 = vector.extract_strided_slice %1610 {offsets = [0, 192], sizes = [2, 64], strides = [1, 1]} : vector<2x256xf32> to vector<2x64xf32>
    %1618 = math.tanh %1617 : vector<2x64xf32>
    %1619 = vector.extract_strided_slice %1616 {offsets = [0, 0], sizes = [2, 64], strides = [1, 1]} : vector<2x192xf32> to vector<2x64xf32>
    %1620 = vector.extract_strided_slice %1616 {offsets = [0, 64], sizes = [2, 64], strides = [1, 1]} : vector<2x192xf32> to vector<2x64xf32>
    %1621 = vector.extract_strided_slice %1616 {offsets = [0, 128], sizes = [2, 64], strides = [1, 1]} : vector<2x192xf32> to vector<2x64xf32>
    %1622 = arith.mulf %1620, %1373 : vector<2x64xf32>
    %1623 = arith.mulf %1619, %1618 : vector<2x64xf32>
    %1624 = arith.addf %1622, %1623 : vector<2x64xf32>
    %1625 = math.tanh %1624 : vector<2x64xf32>
    %1626 = arith.mulf %1621, %1625 : vector<2x64xf32>
    %1627 = tpu.concatenate %1626, %1400 in 1 : vector<2x64xf32>, vector<2x64xf32> -> vector<2x128xf32>
    %1628 = arith.truncf %1627 : vector<2x128xf32> to vector<2x128xbf16>
    %c3_535 = arith.constant 3 : index
    %c0_536 = arith.constant 0 : index
    %c0_537 = arith.constant 0 : index
    %1629 = vector.load %arg2[%c3_535, %c0_536, %c0_537] : memref<9x128x256xbf16, #tpu.memory_space<vmem>>, vector<1x128x256xbf16>
    %1630 = vector.shape_cast %1629 : vector<1x128x256xbf16> to vector<128x256xbf16>
    %cst_538 = arith.constant dense<0.000000e+00> : vector<2x256xf32>
    %1631 = tpu.matmul %1628, %1630, %cst_538 {dimension_numbers = #tpu.dot_dimension_numbers<[1], [0], [0], [1], [0, 0, 1, 1], [], []>} : vector<2x128xbf16>, vector<128x256xbf16>, vector<2x256xf32> -> vector<2x256xf32>
    %c4_539 = arith.constant 4 : index
    %c0_540 = arith.constant 0 : index
    %c0_541 = arith.constant 0 : index
    %1632 = vector.load %arg3[%c4_539, %c0_540, %c0_541] : memref<10x1x256xf32, #tpu.memory_space<vmem>>, vector<1x1x256xf32>
    %1633 = vector.shape_cast %1632 : vector<1x1x256xf32> to vector<1x256xf32>
    %1634 = vector.broadcast %1633 : vector<1x256xf32> to vector<2x256xf32>
    %1635 = arith.addf %1631, %1634 : vector<2x256xf32>
    %1636 = vector.extract_strided_slice %1635 {offsets = [0, 0], sizes = [2, 192], strides = [1, 1]} : vector<2x256xf32> to vector<2x192xf32>
    %1637 = arith.negf %1636 : vector<2x192xf32>
    %1638 = math.exp %1637 : vector<2x192xf32>
    %cst_542 = arith.constant 1.000000e+00 : f32
    %1639 = vector.broadcast %cst_542 : f32 to vector<2x192xf32>
    %1640 = arith.addf %1639, %1638 : vector<2x192xf32>
    %1641 = arith.divf %1639, %1640 : vector<2x192xf32>
    %1642 = vector.extract_strided_slice %1635 {offsets = [0, 192], sizes = [2, 64], strides = [1, 1]} : vector<2x256xf32> to vector<2x64xf32>
    %1643 = math.tanh %1642 : vector<2x64xf32>
    %1644 = vector.extract_strided_slice %1641 {offsets = [0, 0], sizes = [2, 64], strides = [1, 1]} : vector<2x192xf32> to vector<2x64xf32>
    %1645 = vector.extract_strided_slice %1641 {offsets = [0, 64], sizes = [2, 64], strides = [1, 1]} : vector<2x192xf32> to vector<2x64xf32>
    %1646 = vector.extract_strided_slice %1641 {offsets = [0, 128], sizes = [2, 64], strides = [1, 1]} : vector<2x192xf32> to vector<2x64xf32>
    %1647 = arith.mulf %1645, %1398 : vector<2x64xf32>
    %1648 = arith.mulf %1644, %1643 : vector<2x64xf32>
    %1649 = arith.addf %1647, %1648 : vector<2x64xf32>
    %1650 = math.tanh %1649 : vector<2x64xf32>
    %1651 = arith.mulf %1646, %1650 : vector<2x64xf32>
    %1652 = tpu.concatenate %1651, %1425 in 1 : vector<2x64xf32>, vector<2x64xf32> -> vector<2x128xf32>
    %1653 = arith.truncf %1652 : vector<2x128xf32> to vector<2x128xbf16>
    %c4_543 = arith.constant 4 : index
    %c0_544 = arith.constant 0 : index
    %c0_545 = arith.constant 0 : index
    %1654 = vector.load %arg2[%c4_543, %c0_544, %c0_545] : memref<9x128x256xbf16, #tpu.memory_space<vmem>>, vector<1x128x256xbf16>
    %1655 = vector.shape_cast %1654 : vector<1x128x256xbf16> to vector<128x256xbf16>
    %cst_546 = arith.constant dense<0.000000e+00> : vector<2x256xf32>
    %1656 = tpu.matmul %1653, %1655, %cst_546 {dimension_numbers = #tpu.dot_dimension_numbers<[1], [0], [0], [1], [0, 0, 1, 1], [], []>} : vector<2x128xbf16>, vector<128x256xbf16>, vector<2x256xf32> -> vector<2x256xf32>
    %c5_547 = arith.constant 5 : index
    %c0_548 = arith.constant 0 : index
    %c0_549 = arith.constant 0 : index
    %1657 = vector.load %arg3[%c5_547, %c0_548, %c0_549] : memref<10x1x256xf32, #tpu.memory_space<vmem>>, vector<1x1x256xf32>
    %1658 = vector.shape_cast %1657 : vector<1x1x256xf32> to vector<1x256xf32>
    %1659 = vector.broadcast %1658 : vector<1x256xf32> to vector<2x256xf32>
    %1660 = arith.addf %1656, %1659 : vector<2x256xf32>
    %1661 = vector.extract_strided_slice %1660 {offsets = [0, 0], sizes = [2, 192], strides = [1, 1]} : vector<2x256xf32> to vector<2x192xf32>
    %1662 = arith.negf %1661 : vector<2x192xf32>
    %1663 = math.exp %1662 : vector<2x192xf32>
    %cst_550 = arith.constant 1.000000e+00 : f32
    %1664 = vector.broadcast %cst_550 : f32 to vector<2x192xf32>
    %1665 = arith.addf %1664, %1663 : vector<2x192xf32>
    %1666 = arith.divf %1664, %1665 : vector<2x192xf32>
    %1667 = vector.extract_strided_slice %1660 {offsets = [0, 192], sizes = [2, 64], strides = [1, 1]} : vector<2x256xf32> to vector<2x64xf32>
    %1668 = math.tanh %1667 : vector<2x64xf32>
    %1669 = vector.extract_strided_slice %1666 {offsets = [0, 0], sizes = [2, 64], strides = [1, 1]} : vector<2x192xf32> to vector<2x64xf32>
    %1670 = vector.extract_strided_slice %1666 {offsets = [0, 64], sizes = [2, 64], strides = [1, 1]} : vector<2x192xf32> to vector<2x64xf32>
    %1671 = vector.extract_strided_slice %1666 {offsets = [0, 128], sizes = [2, 64], strides = [1, 1]} : vector<2x192xf32> to vector<2x64xf32>
    %1672 = arith.mulf %1670, %1423 : vector<2x64xf32>
    %1673 = arith.mulf %1669, %1668 : vector<2x64xf32>
    %1674 = arith.addf %1672, %1673 : vector<2x64xf32>
    %1675 = math.tanh %1674 : vector<2x64xf32>
    %1676 = arith.mulf %1671, %1675 : vector<2x64xf32>
    %1677 = tpu.concatenate %1676, %1450 in 1 : vector<2x64xf32>, vector<2x64xf32> -> vector<2x128xf32>
    %1678 = arith.truncf %1677 : vector<2x128xf32> to vector<2x128xbf16>
    %c5_551 = arith.constant 5 : index
    %c0_552 = arith.constant 0 : index
    %c0_553 = arith.constant 0 : index
    %1679 = vector.load %arg2[%c5_551, %c0_552, %c0_553] : memref<9x128x256xbf16, #tpu.memory_space<vmem>>, vector<1x128x256xbf16>
    %1680 = vector.shape_cast %1679 : vector<1x128x256xbf16> to vector<128x256xbf16>
    %cst_554 = arith.constant dense<0.000000e+00> : vector<2x256xf32>
    %1681 = tpu.matmul %1678, %1680, %cst_554 {dimension_numbers = #tpu.dot_dimension_numbers<[1], [0], [0], [1], [0, 0, 1, 1], [], []>} : vector<2x128xbf16>, vector<128x256xbf16>, vector<2x256xf32> -> vector<2x256xf32>
    %c6_555 = arith.constant 6 : index
    %c0_556 = arith.constant 0 : index
    %c0_557 = arith.constant 0 : index
    %1682 = vector.load %arg3[%c6_555, %c0_556, %c0_557] : memref<10x1x256xf32, #tpu.memory_space<vmem>>, vector<1x1x256xf32>
    %1683 = vector.shape_cast %1682 : vector<1x1x256xf32> to vector<1x256xf32>
    %1684 = vector.broadcast %1683 : vector<1x256xf32> to vector<2x256xf32>
    %1685 = arith.addf %1681, %1684 : vector<2x256xf32>
    %1686 = vector.extract_strided_slice %1685 {offsets = [0, 0], sizes = [2, 192], strides = [1, 1]} : vector<2x256xf32> to vector<2x192xf32>
    %1687 = arith.negf %1686 : vector<2x192xf32>
    %1688 = math.exp %1687 : vector<2x192xf32>
    %cst_558 = arith.constant 1.000000e+00 : f32
    %1689 = vector.broadcast %cst_558 : f32 to vector<2x192xf32>
    %1690 = arith.addf %1689, %1688 : vector<2x192xf32>
    %1691 = arith.divf %1689, %1690 : vector<2x192xf32>
    %1692 = vector.extract_strided_slice %1685 {offsets = [0, 192], sizes = [2, 64], strides = [1, 1]} : vector<2x256xf32> to vector<2x64xf32>
    %1693 = math.tanh %1692 : vector<2x64xf32>
    %1694 = vector.extract_strided_slice %1691 {offsets = [0, 0], sizes = [2, 64], strides = [1, 1]} : vector<2x192xf32> to vector<2x64xf32>
    %1695 = vector.extract_strided_slice %1691 {offsets = [0, 64], sizes = [2, 64], strides = [1, 1]} : vector<2x192xf32> to vector<2x64xf32>
    %1696 = vector.extract_strided_slice %1691 {offsets = [0, 128], sizes = [2, 64], strides = [1, 1]} : vector<2x192xf32> to vector<2x64xf32>
    %1697 = arith.mulf %1695, %1448 : vector<2x64xf32>
    %1698 = arith.mulf %1694, %1693 : vector<2x64xf32>
    %1699 = arith.addf %1697, %1698 : vector<2x64xf32>
    %1700 = math.tanh %1699 : vector<2x64xf32>
    %1701 = arith.mulf %1696, %1700 : vector<2x64xf32>
    %1702 = tpu.concatenate %1701, %1475 in 1 : vector<2x64xf32>, vector<2x64xf32> -> vector<2x128xf32>
    %1703 = arith.truncf %1702 : vector<2x128xf32> to vector<2x128xbf16>
    %c6_559 = arith.constant 6 : index
    %c0_560 = arith.constant 0 : index
    %c0_561 = arith.constant 0 : index
    %1704 = vector.load %arg2[%c6_559, %c0_560, %c0_561] : memref<9x128x256xbf16, #tpu.memory_space<vmem>>, vector<1x128x256xbf16>
    %1705 = vector.shape_cast %1704 : vector<1x128x256xbf16> to vector<128x256xbf16>
    %cst_562 = arith.constant dense<0.000000e+00> : vector<2x256xf32>
    %1706 = tpu.matmul %1703, %1705, %cst_562 {dimension_numbers = #tpu.dot_dimension_numbers<[1], [0], [0], [1], [0, 0, 1, 1], [], []>} : vector<2x128xbf16>, vector<128x256xbf16>, vector<2x256xf32> -> vector<2x256xf32>
    %c7_563 = arith.constant 7 : index
    %c0_564 = arith.constant 0 : index
    %c0_565 = arith.constant 0 : index
    %1707 = vector.load %arg3[%c7_563, %c0_564, %c0_565] : memref<10x1x256xf32, #tpu.memory_space<vmem>>, vector<1x1x256xf32>
    %1708 = vector.shape_cast %1707 : vector<1x1x256xf32> to vector<1x256xf32>
    %1709 = vector.broadcast %1708 : vector<1x256xf32> to vector<2x256xf32>
    %1710 = arith.addf %1706, %1709 : vector<2x256xf32>
    %1711 = vector.extract_strided_slice %1710 {offsets = [0, 0], sizes = [2, 192], strides = [1, 1]} : vector<2x256xf32> to vector<2x192xf32>
    %1712 = arith.negf %1711 : vector<2x192xf32>
    %1713 = math.exp %1712 : vector<2x192xf32>
    %cst_566 = arith.constant 1.000000e+00 : f32
    %1714 = vector.broadcast %cst_566 : f32 to vector<2x192xf32>
    %1715 = arith.addf %1714, %1713 : vector<2x192xf32>
    %1716 = arith.divf %1714, %1715 : vector<2x192xf32>
    %1717 = vector.extract_strided_slice %1710 {offsets = [0, 192], sizes = [2, 64], strides = [1, 1]} : vector<2x256xf32> to vector<2x64xf32>
    %1718 = math.tanh %1717 : vector<2x64xf32>
    %1719 = vector.extract_strided_slice %1716 {offsets = [0, 0], sizes = [2, 64], strides = [1, 1]} : vector<2x192xf32> to vector<2x64xf32>
    %1720 = vector.extract_strided_slice %1716 {offsets = [0, 64], sizes = [2, 64], strides = [1, 1]} : vector<2x192xf32> to vector<2x64xf32>
    %1721 = vector.extract_strided_slice %1716 {offsets = [0, 128], sizes = [2, 64], strides = [1, 1]} : vector<2x192xf32> to vector<2x64xf32>
    %1722 = arith.mulf %1720, %1473 : vector<2x64xf32>
    %1723 = arith.mulf %1719, %1718 : vector<2x64xf32>
    %1724 = arith.addf %1722, %1723 : vector<2x64xf32>
    %1725 = math.tanh %1724 : vector<2x64xf32>
    %1726 = arith.mulf %1721, %1725 : vector<2x64xf32>
    %1727 = tpu.concatenate %1726, %1500 in 1 : vector<2x64xf32>, vector<2x64xf32> -> vector<2x128xf32>
    %1728 = arith.truncf %1727 : vector<2x128xf32> to vector<2x128xbf16>
    %c7_567 = arith.constant 7 : index
    %c0_568 = arith.constant 0 : index
    %c0_569 = arith.constant 0 : index
    %1729 = vector.load %arg2[%c7_567, %c0_568, %c0_569] : memref<9x128x256xbf16, #tpu.memory_space<vmem>>, vector<1x128x256xbf16>
    %1730 = vector.shape_cast %1729 : vector<1x128x256xbf16> to vector<128x256xbf16>
    %cst_570 = arith.constant dense<0.000000e+00> : vector<2x256xf32>
    %1731 = tpu.matmul %1728, %1730, %cst_570 {dimension_numbers = #tpu.dot_dimension_numbers<[1], [0], [0], [1], [0, 0, 1, 1], [], []>} : vector<2x128xbf16>, vector<128x256xbf16>, vector<2x256xf32> -> vector<2x256xf32>
    %c8_571 = arith.constant 8 : index
    %c0_572 = arith.constant 0 : index
    %c0_573 = arith.constant 0 : index
    %1732 = vector.load %arg3[%c8_571, %c0_572, %c0_573] : memref<10x1x256xf32, #tpu.memory_space<vmem>>, vector<1x1x256xf32>
    %1733 = vector.shape_cast %1732 : vector<1x1x256xf32> to vector<1x256xf32>
    %1734 = vector.broadcast %1733 : vector<1x256xf32> to vector<2x256xf32>
    %1735 = arith.addf %1731, %1734 : vector<2x256xf32>
    %1736 = vector.extract_strided_slice %1735 {offsets = [0, 0], sizes = [2, 192], strides = [1, 1]} : vector<2x256xf32> to vector<2x192xf32>
    %1737 = arith.negf %1736 : vector<2x192xf32>
    %1738 = math.exp %1737 : vector<2x192xf32>
    %cst_574 = arith.constant 1.000000e+00 : f32
    %1739 = vector.broadcast %cst_574 : f32 to vector<2x192xf32>
    %1740 = arith.addf %1739, %1738 : vector<2x192xf32>
    %1741 = arith.divf %1739, %1740 : vector<2x192xf32>
    %1742 = vector.extract_strided_slice %1735 {offsets = [0, 192], sizes = [2, 64], strides = [1, 1]} : vector<2x256xf32> to vector<2x64xf32>
    %1743 = math.tanh %1742 : vector<2x64xf32>
    %1744 = vector.extract_strided_slice %1741 {offsets = [0, 0], sizes = [2, 64], strides = [1, 1]} : vector<2x192xf32> to vector<2x64xf32>
    %1745 = vector.extract_strided_slice %1741 {offsets = [0, 64], sizes = [2, 64], strides = [1, 1]} : vector<2x192xf32> to vector<2x64xf32>
    %1746 = vector.extract_strided_slice %1741 {offsets = [0, 128], sizes = [2, 64], strides = [1, 1]} : vector<2x192xf32> to vector<2x64xf32>
    %1747 = arith.mulf %1745, %1498 : vector<2x64xf32>
    %1748 = arith.mulf %1744, %1743 : vector<2x64xf32>
    %1749 = arith.addf %1747, %1748 : vector<2x64xf32>
    %1750 = math.tanh %1749 : vector<2x64xf32>
    %1751 = arith.mulf %1746, %1750 : vector<2x64xf32>
    %1752 = tpu.concatenate %1751, %1525 in 1 : vector<2x64xf32>, vector<2x64xf32> -> vector<2x128xf32>
    %1753 = arith.truncf %1752 : vector<2x128xf32> to vector<2x128xbf16>
    %c8_575 = arith.constant 8 : index
    %c0_576 = arith.constant 0 : index
    %c0_577 = arith.constant 0 : index
    %1754 = vector.load %arg2[%c8_575, %c0_576, %c0_577] : memref<9x128x256xbf16, #tpu.memory_space<vmem>>, vector<1x128x256xbf16>
    %1755 = vector.shape_cast %1754 : vector<1x128x256xbf16> to vector<128x256xbf16>
    %cst_578 = arith.constant dense<0.000000e+00> : vector<2x256xf32>
    %1756 = tpu.matmul %1753, %1755, %cst_578 {dimension_numbers = #tpu.dot_dimension_numbers<[1], [0], [0], [1], [0, 0, 1, 1], [], []>} : vector<2x128xbf16>, vector<128x256xbf16>, vector<2x256xf32> -> vector<2x256xf32>
    %c9_579 = arith.constant 9 : index
    %c0_580 = arith.constant 0 : index
    %c0_581 = arith.constant 0 : index
    %1757 = vector.load %arg3[%c9_579, %c0_580, %c0_581] : memref<10x1x256xf32, #tpu.memory_space<vmem>>, vector<1x1x256xf32>
    %1758 = vector.shape_cast %1757 : vector<1x1x256xf32> to vector<1x256xf32>
    %1759 = vector.broadcast %1758 : vector<1x256xf32> to vector<2x256xf32>
    %1760 = arith.addf %1756, %1759 : vector<2x256xf32>
    %1761 = vector.extract_strided_slice %1760 {offsets = [0, 0], sizes = [2, 192], strides = [1, 1]} : vector<2x256xf32> to vector<2x192xf32>
    %1762 = arith.negf %1761 : vector<2x192xf32>
    %1763 = math.exp %1762 : vector<2x192xf32>
    %cst_582 = arith.constant 1.000000e+00 : f32
    %1764 = vector.broadcast %cst_582 : f32 to vector<2x192xf32>
    %1765 = arith.addf %1764, %1763 : vector<2x192xf32>
    %1766 = arith.divf %1764, %1765 : vector<2x192xf32>
    %1767 = vector.extract_strided_slice %1760 {offsets = [0, 192], sizes = [2, 64], strides = [1, 1]} : vector<2x256xf32> to vector<2x64xf32>
    %1768 = math.tanh %1767 : vector<2x64xf32>
    %1769 = vector.extract_strided_slice %1766 {offsets = [0, 0], sizes = [2, 64], strides = [1, 1]} : vector<2x192xf32> to vector<2x64xf32>
    %1770 = vector.extract_strided_slice %1766 {offsets = [0, 64], sizes = [2, 64], strides = [1, 1]} : vector<2x192xf32> to vector<2x64xf32>
    %1771 = vector.extract_strided_slice %1766 {offsets = [0, 128], sizes = [2, 64], strides = [1, 1]} : vector<2x192xf32> to vector<2x64xf32>
    %1772 = arith.mulf %1770, %1523 : vector<2x64xf32>
    %1773 = arith.mulf %1769, %1768 : vector<2x64xf32>
    %1774 = arith.addf %1772, %1773 : vector<2x64xf32>
    %1775 = math.tanh %1774 : vector<2x64xf32>
    %1776 = arith.mulf %1771, %1775 : vector<2x64xf32>
    %c7_583 = arith.constant 7 : index
    %c0_584 = arith.constant 0 : index
    %c0_585 = arith.constant 0 : index
    %1777 = vector.load %arg0[%c7_583, %c0_584, %c0_585] : memref<8x2x256xf32, #tpu.memory_space<vmem>>, vector<1x2x256xf32>
    %1778 = vector.shape_cast %1777 : vector<1x2x256xf32> to vector<2x256xf32>
    %1779 = arith.truncf %1551 : vector<2x64xf32> to vector<2x64xbf16>
    %c0_586 = arith.constant 0 : index
    %c0_587 = arith.constant 0 : index
    %1780 = vector.load %arg1[%c0_586, %c0_587] : memref<64x256xbf16, #tpu.memory_space<vmem>>, vector<64x256xbf16>
    %cst_588 = arith.constant dense<0.000000e+00> : vector<2x256xf32>
    %1781 = tpu.matmul %1779, %1780, %cst_588 {dimension_numbers = #tpu.dot_dimension_numbers<[1], [0], [0], [1], [0, 0, 1, 1], [], []>} : vector<2x64xbf16>, vector<64x256xbf16>, vector<2x256xf32> -> vector<2x256xf32>
    %1782 = arith.addf %1778, %1781 : vector<2x256xf32>
    %c0_589 = arith.constant 0 : index
    %c0_590 = arith.constant 0 : index
    %c0_591 = arith.constant 0 : index
    %1783 = vector.load %arg3[%c0_589, %c0_590, %c0_591] : memref<10x1x256xf32, #tpu.memory_space<vmem>>, vector<1x1x256xf32>
    %1784 = vector.shape_cast %1783 : vector<1x1x256xf32> to vector<1x256xf32>
    %1785 = vector.broadcast %1784 : vector<1x256xf32> to vector<2x256xf32>
    %1786 = arith.addf %1782, %1785 : vector<2x256xf32>
    %1787 = vector.extract_strided_slice %1786 {offsets = [0, 0], sizes = [2, 192], strides = [1, 1]} : vector<2x256xf32> to vector<2x192xf32>
    %1788 = arith.negf %1787 : vector<2x192xf32>
    %1789 = math.exp %1788 : vector<2x192xf32>
    %cst_592 = arith.constant 1.000000e+00 : f32
    %1790 = vector.broadcast %cst_592 : f32 to vector<2x192xf32>
    %1791 = arith.addf %1790, %1789 : vector<2x192xf32>
    %1792 = arith.divf %1790, %1791 : vector<2x192xf32>
    %1793 = vector.extract_strided_slice %1786 {offsets = [0, 192], sizes = [2, 64], strides = [1, 1]} : vector<2x256xf32> to vector<2x64xf32>
    %1794 = math.tanh %1793 : vector<2x64xf32>
    %1795 = vector.extract_strided_slice %1792 {offsets = [0, 0], sizes = [2, 64], strides = [1, 1]} : vector<2x192xf32> to vector<2x64xf32>
    %1796 = vector.extract_strided_slice %1792 {offsets = [0, 64], sizes = [2, 64], strides = [1, 1]} : vector<2x192xf32> to vector<2x64xf32>
    %1797 = vector.extract_strided_slice %1792 {offsets = [0, 128], sizes = [2, 64], strides = [1, 1]} : vector<2x192xf32> to vector<2x64xf32>
    %1798 = arith.mulf %1796, %1549 : vector<2x64xf32>
    %1799 = arith.mulf %1795, %1794 : vector<2x64xf32>
    %1800 = arith.addf %1798, %1799 : vector<2x64xf32>
    %1801 = math.tanh %1800 : vector<2x64xf32>
    %1802 = arith.mulf %1797, %1801 : vector<2x64xf32>
    %1803 = tpu.concatenate %1802, %1576 in 1 : vector<2x64xf32>, vector<2x64xf32> -> vector<2x128xf32>
    %1804 = arith.truncf %1803 : vector<2x128xf32> to vector<2x128xbf16>
    %c0_593 = arith.constant 0 : index
    %c0_594 = arith.constant 0 : index
    %c0_595 = arith.constant 0 : index
    %1805 = vector.load %arg2[%c0_593, %c0_594, %c0_595] : memref<9x128x256xbf16, #tpu.memory_space<vmem>>, vector<1x128x256xbf16>
    %1806 = vector.shape_cast %1805 : vector<1x128x256xbf16> to vector<128x256xbf16>
    %cst_596 = arith.constant dense<0.000000e+00> : vector<2x256xf32>
    %1807 = tpu.matmul %1804, %1806, %cst_596 {dimension_numbers = #tpu.dot_dimension_numbers<[1], [0], [0], [1], [0, 0, 1, 1], [], []>} : vector<2x128xbf16>, vector<128x256xbf16>, vector<2x256xf32> -> vector<2x256xf32>
    %c1_597 = arith.constant 1 : index
    %c0_598 = arith.constant 0 : index
    %c0_599 = arith.constant 0 : index
    %1808 = vector.load %arg3[%c1_597, %c0_598, %c0_599] : memref<10x1x256xf32, #tpu.memory_space<vmem>>, vector<1x1x256xf32>
    %1809 = vector.shape_cast %1808 : vector<1x1x256xf32> to vector<1x256xf32>
    %1810 = vector.broadcast %1809 : vector<1x256xf32> to vector<2x256xf32>
    %1811 = arith.addf %1807, %1810 : vector<2x256xf32>
    %1812 = vector.extract_strided_slice %1811 {offsets = [0, 0], sizes = [2, 192], strides = [1, 1]} : vector<2x256xf32> to vector<2x192xf32>
    %1813 = arith.negf %1812 : vector<2x192xf32>
    %1814 = math.exp %1813 : vector<2x192xf32>
    %cst_600 = arith.constant 1.000000e+00 : f32
    %1815 = vector.broadcast %cst_600 : f32 to vector<2x192xf32>
    %1816 = arith.addf %1815, %1814 : vector<2x192xf32>
    %1817 = arith.divf %1815, %1816 : vector<2x192xf32>
    %1818 = vector.extract_strided_slice %1811 {offsets = [0, 192], sizes = [2, 64], strides = [1, 1]} : vector<2x256xf32> to vector<2x64xf32>
    %1819 = math.tanh %1818 : vector<2x64xf32>
    %1820 = vector.extract_strided_slice %1817 {offsets = [0, 0], sizes = [2, 64], strides = [1, 1]} : vector<2x192xf32> to vector<2x64xf32>
    %1821 = vector.extract_strided_slice %1817 {offsets = [0, 64], sizes = [2, 64], strides = [1, 1]} : vector<2x192xf32> to vector<2x64xf32>
    %1822 = vector.extract_strided_slice %1817 {offsets = [0, 128], sizes = [2, 64], strides = [1, 1]} : vector<2x192xf32> to vector<2x64xf32>
    %1823 = arith.mulf %1821, %1574 : vector<2x64xf32>
    %1824 = arith.mulf %1820, %1819 : vector<2x64xf32>
    %1825 = arith.addf %1823, %1824 : vector<2x64xf32>
    %1826 = math.tanh %1825 : vector<2x64xf32>
    %1827 = arith.mulf %1822, %1826 : vector<2x64xf32>
    %1828 = tpu.concatenate %1827, %1601 in 1 : vector<2x64xf32>, vector<2x64xf32> -> vector<2x128xf32>
    %1829 = arith.truncf %1828 : vector<2x128xf32> to vector<2x128xbf16>
    %c1_601 = arith.constant 1 : index
    %c0_602 = arith.constant 0 : index
    %c0_603 = arith.constant 0 : index
    %1830 = vector.load %arg2[%c1_601, %c0_602, %c0_603] : memref<9x128x256xbf16, #tpu.memory_space<vmem>>, vector<1x128x256xbf16>
    %1831 = vector.shape_cast %1830 : vector<1x128x256xbf16> to vector<128x256xbf16>
    %cst_604 = arith.constant dense<0.000000e+00> : vector<2x256xf32>
    %1832 = tpu.matmul %1829, %1831, %cst_604 {dimension_numbers = #tpu.dot_dimension_numbers<[1], [0], [0], [1], [0, 0, 1, 1], [], []>} : vector<2x128xbf16>, vector<128x256xbf16>, vector<2x256xf32> -> vector<2x256xf32>
    %c2_605 = arith.constant 2 : index
    %c0_606 = arith.constant 0 : index
    %c0_607 = arith.constant 0 : index
    %1833 = vector.load %arg3[%c2_605, %c0_606, %c0_607] : memref<10x1x256xf32, #tpu.memory_space<vmem>>, vector<1x1x256xf32>
    %1834 = vector.shape_cast %1833 : vector<1x1x256xf32> to vector<1x256xf32>
    %1835 = vector.broadcast %1834 : vector<1x256xf32> to vector<2x256xf32>
    %1836 = arith.addf %1832, %1835 : vector<2x256xf32>
    %1837 = vector.extract_strided_slice %1836 {offsets = [0, 0], sizes = [2, 192], strides = [1, 1]} : vector<2x256xf32> to vector<2x192xf32>
    %1838 = arith.negf %1837 : vector<2x192xf32>
    %1839 = math.exp %1838 : vector<2x192xf32>
    %cst_608 = arith.constant 1.000000e+00 : f32
    %1840 = vector.broadcast %cst_608 : f32 to vector<2x192xf32>
    %1841 = arith.addf %1840, %1839 : vector<2x192xf32>
    %1842 = arith.divf %1840, %1841 : vector<2x192xf32>
    %1843 = vector.extract_strided_slice %1836 {offsets = [0, 192], sizes = [2, 64], strides = [1, 1]} : vector<2x256xf32> to vector<2x64xf32>
    %1844 = math.tanh %1843 : vector<2x64xf32>
    %1845 = vector.extract_strided_slice %1842 {offsets = [0, 0], sizes = [2, 64], strides = [1, 1]} : vector<2x192xf32> to vector<2x64xf32>
    %1846 = vector.extract_strided_slice %1842 {offsets = [0, 64], sizes = [2, 64], strides = [1, 1]} : vector<2x192xf32> to vector<2x64xf32>
    %1847 = vector.extract_strided_slice %1842 {offsets = [0, 128], sizes = [2, 64], strides = [1, 1]} : vector<2x192xf32> to vector<2x64xf32>
    %1848 = arith.mulf %1846, %1599 : vector<2x64xf32>
    %1849 = arith.mulf %1845, %1844 : vector<2x64xf32>
    %1850 = arith.addf %1848, %1849 : vector<2x64xf32>
    %1851 = math.tanh %1850 : vector<2x64xf32>
    %1852 = arith.mulf %1847, %1851 : vector<2x64xf32>
    %1853 = tpu.concatenate %1852, %1626 in 1 : vector<2x64xf32>, vector<2x64xf32> -> vector<2x128xf32>
    %1854 = arith.truncf %1853 : vector<2x128xf32> to vector<2x128xbf16>
    %c2_609 = arith.constant 2 : index
    %c0_610 = arith.constant 0 : index
    %c0_611 = arith.constant 0 : index
    %1855 = vector.load %arg2[%c2_609, %c0_610, %c0_611] : memref<9x128x256xbf16, #tpu.memory_space<vmem>>, vector<1x128x256xbf16>
    %1856 = vector.shape_cast %1855 : vector<1x128x256xbf16> to vector<128x256xbf16>
    %cst_612 = arith.constant dense<0.000000e+00> : vector<2x256xf32>
    %1857 = tpu.matmul %1854, %1856, %cst_612 {dimension_numbers = #tpu.dot_dimension_numbers<[1], [0], [0], [1], [0, 0, 1, 1], [], []>} : vector<2x128xbf16>, vector<128x256xbf16>, vector<2x256xf32> -> vector<2x256xf32>
    %c3_613 = arith.constant 3 : index
    %c0_614 = arith.constant 0 : index
    %c0_615 = arith.constant 0 : index
    %1858 = vector.load %arg3[%c3_613, %c0_614, %c0_615] : memref<10x1x256xf32, #tpu.memory_space<vmem>>, vector<1x1x256xf32>
    %1859 = vector.shape_cast %1858 : vector<1x1x256xf32> to vector<1x256xf32>
    %1860 = vector.broadcast %1859 : vector<1x256xf32> to vector<2x256xf32>
    %1861 = arith.addf %1857, %1860 : vector<2x256xf32>
    %1862 = vector.extract_strided_slice %1861 {offsets = [0, 0], sizes = [2, 192], strides = [1, 1]} : vector<2x256xf32> to vector<2x192xf32>
    %1863 = arith.negf %1862 : vector<2x192xf32>
    %1864 = math.exp %1863 : vector<2x192xf32>
    %cst_616 = arith.constant 1.000000e+00 : f32
    %1865 = vector.broadcast %cst_616 : f32 to vector<2x192xf32>
    %1866 = arith.addf %1865, %1864 : vector<2x192xf32>
    %1867 = arith.divf %1865, %1866 : vector<2x192xf32>
    %1868 = vector.extract_strided_slice %1861 {offsets = [0, 192], sizes = [2, 64], strides = [1, 1]} : vector<2x256xf32> to vector<2x64xf32>
    %1869 = math.tanh %1868 : vector<2x64xf32>
    %1870 = vector.extract_strided_slice %1867 {offsets = [0, 0], sizes = [2, 64], strides = [1, 1]} : vector<2x192xf32> to vector<2x64xf32>
    %1871 = vector.extract_strided_slice %1867 {offsets = [0, 64], sizes = [2, 64], strides = [1, 1]} : vector<2x192xf32> to vector<2x64xf32>
    %1872 = vector.extract_strided_slice %1867 {offsets = [0, 128], sizes = [2, 64], strides = [1, 1]} : vector<2x192xf32> to vector<2x64xf32>
    %1873 = arith.mulf %1871, %1624 : vector<2x64xf32>
    %1874 = arith.mulf %1870, %1869 : vector<2x64xf32>
    %1875 = arith.addf %1873, %1874 : vector<2x64xf32>
    %1876 = math.tanh %1875 : vector<2x64xf32>
    %1877 = arith.mulf %1872, %1876 : vector<2x64xf32>
    %1878 = tpu.concatenate %1877, %1651 in 1 : vector<2x64xf32>, vector<2x64xf32> -> vector<2x128xf32>
    %1879 = arith.truncf %1878 : vector<2x128xf32> to vector<2x128xbf16>
    %c3_617 = arith.constant 3 : index
    %c0_618 = arith.constant 0 : index
    %c0_619 = arith.constant 0 : index
    %1880 = vector.load %arg2[%c3_617, %c0_618, %c0_619] : memref<9x128x256xbf16, #tpu.memory_space<vmem>>, vector<1x128x256xbf16>
    %1881 = vector.shape_cast %1880 : vector<1x128x256xbf16> to vector<128x256xbf16>
    %cst_620 = arith.constant dense<0.000000e+00> : vector<2x256xf32>
    %1882 = tpu.matmul %1879, %1881, %cst_620 {dimension_numbers = #tpu.dot_dimension_numbers<[1], [0], [0], [1], [0, 0, 1, 1], [], []>} : vector<2x128xbf16>, vector<128x256xbf16>, vector<2x256xf32> -> vector<2x256xf32>
    %c4_621 = arith.constant 4 : index
    %c0_622 = arith.constant 0 : index
    %c0_623 = arith.constant 0 : index
    %1883 = vector.load %arg3[%c4_621, %c0_622, %c0_623] : memref<10x1x256xf32, #tpu.memory_space<vmem>>, vector<1x1x256xf32>
    %1884 = vector.shape_cast %1883 : vector<1x1x256xf32> to vector<1x256xf32>
    %1885 = vector.broadcast %1884 : vector<1x256xf32> to vector<2x256xf32>
    %1886 = arith.addf %1882, %1885 : vector<2x256xf32>
    %1887 = vector.extract_strided_slice %1886 {offsets = [0, 0], sizes = [2, 192], strides = [1, 1]} : vector<2x256xf32> to vector<2x192xf32>
    %1888 = arith.negf %1887 : vector<2x192xf32>
    %1889 = math.exp %1888 : vector<2x192xf32>
    %cst_624 = arith.constant 1.000000e+00 : f32
    %1890 = vector.broadcast %cst_624 : f32 to vector<2x192xf32>
    %1891 = arith.addf %1890, %1889 : vector<2x192xf32>
    %1892 = arith.divf %1890, %1891 : vector<2x192xf32>
    %1893 = vector.extract_strided_slice %1886 {offsets = [0, 192], sizes = [2, 64], strides = [1, 1]} : vector<2x256xf32> to vector<2x64xf32>
    %1894 = math.tanh %1893 : vector<2x64xf32>
    %1895 = vector.extract_strided_slice %1892 {offsets = [0, 0], sizes = [2, 64], strides = [1, 1]} : vector<2x192xf32> to vector<2x64xf32>
    %1896 = vector.extract_strided_slice %1892 {offsets = [0, 64], sizes = [2, 64], strides = [1, 1]} : vector<2x192xf32> to vector<2x64xf32>
    %1897 = vector.extract_strided_slice %1892 {offsets = [0, 128], sizes = [2, 64], strides = [1, 1]} : vector<2x192xf32> to vector<2x64xf32>
    %1898 = arith.mulf %1896, %1649 : vector<2x64xf32>
    %1899 = arith.mulf %1895, %1894 : vector<2x64xf32>
    %1900 = arith.addf %1898, %1899 : vector<2x64xf32>
    %1901 = math.tanh %1900 : vector<2x64xf32>
    %1902 = arith.mulf %1897, %1901 : vector<2x64xf32>
    %1903 = tpu.concatenate %1902, %1676 in 1 : vector<2x64xf32>, vector<2x64xf32> -> vector<2x128xf32>
    %1904 = arith.truncf %1903 : vector<2x128xf32> to vector<2x128xbf16>
    %c4_625 = arith.constant 4 : index
    %c0_626 = arith.constant 0 : index
    %c0_627 = arith.constant 0 : index
    %1905 = vector.load %arg2[%c4_625, %c0_626, %c0_627] : memref<9x128x256xbf16, #tpu.memory_space<vmem>>, vector<1x128x256xbf16>
    %1906 = vector.shape_cast %1905 : vector<1x128x256xbf16> to vector<128x256xbf16>
    %cst_628 = arith.constant dense<0.000000e+00> : vector<2x256xf32>
    %1907 = tpu.matmul %1904, %1906, %cst_628 {dimension_numbers = #tpu.dot_dimension_numbers<[1], [0], [0], [1], [0, 0, 1, 1], [], []>} : vector<2x128xbf16>, vector<128x256xbf16>, vector<2x256xf32> -> vector<2x256xf32>
    %c5_629 = arith.constant 5 : index
    %c0_630 = arith.constant 0 : index
    %c0_631 = arith.constant 0 : index
    %1908 = vector.load %arg3[%c5_629, %c0_630, %c0_631] : memref<10x1x256xf32, #tpu.memory_space<vmem>>, vector<1x1x256xf32>
    %1909 = vector.shape_cast %1908 : vector<1x1x256xf32> to vector<1x256xf32>
    %1910 = vector.broadcast %1909 : vector<1x256xf32> to vector<2x256xf32>
    %1911 = arith.addf %1907, %1910 : vector<2x256xf32>
    %1912 = vector.extract_strided_slice %1911 {offsets = [0, 0], sizes = [2, 192], strides = [1, 1]} : vector<2x256xf32> to vector<2x192xf32>
    %1913 = arith.negf %1912 : vector<2x192xf32>
    %1914 = math.exp %1913 : vector<2x192xf32>
    %cst_632 = arith.constant 1.000000e+00 : f32
    %1915 = vector.broadcast %cst_632 : f32 to vector<2x192xf32>
    %1916 = arith.addf %1915, %1914 : vector<2x192xf32>
    %1917 = arith.divf %1915, %1916 : vector<2x192xf32>
    %1918 = vector.extract_strided_slice %1911 {offsets = [0, 192], sizes = [2, 64], strides = [1, 1]} : vector<2x256xf32> to vector<2x64xf32>
    %1919 = math.tanh %1918 : vector<2x64xf32>
    %1920 = vector.extract_strided_slice %1917 {offsets = [0, 0], sizes = [2, 64], strides = [1, 1]} : vector<2x192xf32> to vector<2x64xf32>
    %1921 = vector.extract_strided_slice %1917 {offsets = [0, 64], sizes = [2, 64], strides = [1, 1]} : vector<2x192xf32> to vector<2x64xf32>
    %1922 = vector.extract_strided_slice %1917 {offsets = [0, 128], sizes = [2, 64], strides = [1, 1]} : vector<2x192xf32> to vector<2x64xf32>
    %1923 = arith.mulf %1921, %1674 : vector<2x64xf32>
    %1924 = arith.mulf %1920, %1919 : vector<2x64xf32>
    %1925 = arith.addf %1923, %1924 : vector<2x64xf32>
    %1926 = math.tanh %1925 : vector<2x64xf32>
    %1927 = arith.mulf %1922, %1926 : vector<2x64xf32>
    %1928 = tpu.concatenate %1927, %1701 in 1 : vector<2x64xf32>, vector<2x64xf32> -> vector<2x128xf32>
    %1929 = arith.truncf %1928 : vector<2x128xf32> to vector<2x128xbf16>
    %c5_633 = arith.constant 5 : index
    %c0_634 = arith.constant 0 : index
    %c0_635 = arith.constant 0 : index
    %1930 = vector.load %arg2[%c5_633, %c0_634, %c0_635] : memref<9x128x256xbf16, #tpu.memory_space<vmem>>, vector<1x128x256xbf16>
    %1931 = vector.shape_cast %1930 : vector<1x128x256xbf16> to vector<128x256xbf16>
    %cst_636 = arith.constant dense<0.000000e+00> : vector<2x256xf32>
    %1932 = tpu.matmul %1929, %1931, %cst_636 {dimension_numbers = #tpu.dot_dimension_numbers<[1], [0], [0], [1], [0, 0, 1, 1], [], []>} : vector<2x128xbf16>, vector<128x256xbf16>, vector<2x256xf32> -> vector<2x256xf32>
    %c6_637 = arith.constant 6 : index
    %c0_638 = arith.constant 0 : index
    %c0_639 = arith.constant 0 : index
    %1933 = vector.load %arg3[%c6_637, %c0_638, %c0_639] : memref<10x1x256xf32, #tpu.memory_space<vmem>>, vector<1x1x256xf32>
    %1934 = vector.shape_cast %1933 : vector<1x1x256xf32> to vector<1x256xf32>
    %1935 = vector.broadcast %1934 : vector<1x256xf32> to vector<2x256xf32>
    %1936 = arith.addf %1932, %1935 : vector<2x256xf32>
    %1937 = vector.extract_strided_slice %1936 {offsets = [0, 0], sizes = [2, 192], strides = [1, 1]} : vector<2x256xf32> to vector<2x192xf32>
    %1938 = arith.negf %1937 : vector<2x192xf32>
    %1939 = math.exp %1938 : vector<2x192xf32>
    %cst_640 = arith.constant 1.000000e+00 : f32
    %1940 = vector.broadcast %cst_640 : f32 to vector<2x192xf32>
    %1941 = arith.addf %1940, %1939 : vector<2x192xf32>
    %1942 = arith.divf %1940, %1941 : vector<2x192xf32>
    %1943 = vector.extract_strided_slice %1936 {offsets = [0, 192], sizes = [2, 64], strides = [1, 1]} : vector<2x256xf32> to vector<2x64xf32>
    %1944 = math.tanh %1943 : vector<2x64xf32>
    %1945 = vector.extract_strided_slice %1942 {offsets = [0, 0], sizes = [2, 64], strides = [1, 1]} : vector<2x192xf32> to vector<2x64xf32>
    %1946 = vector.extract_strided_slice %1942 {offsets = [0, 64], sizes = [2, 64], strides = [1, 1]} : vector<2x192xf32> to vector<2x64xf32>
    %1947 = vector.extract_strided_slice %1942 {offsets = [0, 128], sizes = [2, 64], strides = [1, 1]} : vector<2x192xf32> to vector<2x64xf32>
    %1948 = arith.mulf %1946, %1699 : vector<2x64xf32>
    %1949 = arith.mulf %1945, %1944 : vector<2x64xf32>
    %1950 = arith.addf %1948, %1949 : vector<2x64xf32>
    %1951 = math.tanh %1950 : vector<2x64xf32>
    %1952 = arith.mulf %1947, %1951 : vector<2x64xf32>
    %1953 = tpu.concatenate %1952, %1726 in 1 : vector<2x64xf32>, vector<2x64xf32> -> vector<2x128xf32>
    %1954 = arith.truncf %1953 : vector<2x128xf32> to vector<2x128xbf16>
    %c6_641 = arith.constant 6 : index
    %c0_642 = arith.constant 0 : index
    %c0_643 = arith.constant 0 : index
    %1955 = vector.load %arg2[%c6_641, %c0_642, %c0_643] : memref<9x128x256xbf16, #tpu.memory_space<vmem>>, vector<1x128x256xbf16>
    %1956 = vector.shape_cast %1955 : vector<1x128x256xbf16> to vector<128x256xbf16>
    %cst_644 = arith.constant dense<0.000000e+00> : vector<2x256xf32>
    %1957 = tpu.matmul %1954, %1956, %cst_644 {dimension_numbers = #tpu.dot_dimension_numbers<[1], [0], [0], [1], [0, 0, 1, 1], [], []>} : vector<2x128xbf16>, vector<128x256xbf16>, vector<2x256xf32> -> vector<2x256xf32>
    %c7_645 = arith.constant 7 : index
    %c0_646 = arith.constant 0 : index
    %c0_647 = arith.constant 0 : index
    %1958 = vector.load %arg3[%c7_645, %c0_646, %c0_647] : memref<10x1x256xf32, #tpu.memory_space<vmem>>, vector<1x1x256xf32>
    %1959 = vector.shape_cast %1958 : vector<1x1x256xf32> to vector<1x256xf32>
    %1960 = vector.broadcast %1959 : vector<1x256xf32> to vector<2x256xf32>
    %1961 = arith.addf %1957, %1960 : vector<2x256xf32>
    %1962 = vector.extract_strided_slice %1961 {offsets = [0, 0], sizes = [2, 192], strides = [1, 1]} : vector<2x256xf32> to vector<2x192xf32>
    %1963 = arith.negf %1962 : vector<2x192xf32>
    %1964 = math.exp %1963 : vector<2x192xf32>
    %cst_648 = arith.constant 1.000000e+00 : f32
    %1965 = vector.broadcast %cst_648 : f32 to vector<2x192xf32>
    %1966 = arith.addf %1965, %1964 : vector<2x192xf32>
    %1967 = arith.divf %1965, %1966 : vector<2x192xf32>
    %1968 = vector.extract_strided_slice %1961 {offsets = [0, 192], sizes = [2, 64], strides = [1, 1]} : vector<2x256xf32> to vector<2x64xf32>
    %1969 = math.tanh %1968 : vector<2x64xf32>
    %1970 = vector.extract_strided_slice %1967 {offsets = [0, 0], sizes = [2, 64], strides = [1, 1]} : vector<2x192xf32> to vector<2x64xf32>
    %1971 = vector.extract_strided_slice %1967 {offsets = [0, 64], sizes = [2, 64], strides = [1, 1]} : vector<2x192xf32> to vector<2x64xf32>
    %1972 = vector.extract_strided_slice %1967 {offsets = [0, 128], sizes = [2, 64], strides = [1, 1]} : vector<2x192xf32> to vector<2x64xf32>
    %1973 = arith.mulf %1971, %1724 : vector<2x64xf32>
    %1974 = arith.mulf %1970, %1969 : vector<2x64xf32>
    %1975 = arith.addf %1973, %1974 : vector<2x64xf32>
    %1976 = math.tanh %1975 : vector<2x64xf32>
    %1977 = arith.mulf %1972, %1976 : vector<2x64xf32>
    %1978 = tpu.concatenate %1977, %1751 in 1 : vector<2x64xf32>, vector<2x64xf32> -> vector<2x128xf32>
    %1979 = arith.truncf %1978 : vector<2x128xf32> to vector<2x128xbf16>
    %c7_649 = arith.constant 7 : index
    %c0_650 = arith.constant 0 : index
    %c0_651 = arith.constant 0 : index
    %1980 = vector.load %arg2[%c7_649, %c0_650, %c0_651] : memref<9x128x256xbf16, #tpu.memory_space<vmem>>, vector<1x128x256xbf16>
    %1981 = vector.shape_cast %1980 : vector<1x128x256xbf16> to vector<128x256xbf16>
    %cst_652 = arith.constant dense<0.000000e+00> : vector<2x256xf32>
    %1982 = tpu.matmul %1979, %1981, %cst_652 {dimension_numbers = #tpu.dot_dimension_numbers<[1], [0], [0], [1], [0, 0, 1, 1], [], []>} : vector<2x128xbf16>, vector<128x256xbf16>, vector<2x256xf32> -> vector<2x256xf32>
    %c8_653 = arith.constant 8 : index
    %c0_654 = arith.constant 0 : index
    %c0_655 = arith.constant 0 : index
    %1983 = vector.load %arg3[%c8_653, %c0_654, %c0_655] : memref<10x1x256xf32, #tpu.memory_space<vmem>>, vector<1x1x256xf32>
    %1984 = vector.shape_cast %1983 : vector<1x1x256xf32> to vector<1x256xf32>
    %1985 = vector.broadcast %1984 : vector<1x256xf32> to vector<2x256xf32>
    %1986 = arith.addf %1982, %1985 : vector<2x256xf32>
    %1987 = vector.extract_strided_slice %1986 {offsets = [0, 0], sizes = [2, 192], strides = [1, 1]} : vector<2x256xf32> to vector<2x192xf32>
    %1988 = arith.negf %1987 : vector<2x192xf32>
    %1989 = math.exp %1988 : vector<2x192xf32>
    %cst_656 = arith.constant 1.000000e+00 : f32
    %1990 = vector.broadcast %cst_656 : f32 to vector<2x192xf32>
    %1991 = arith.addf %1990, %1989 : vector<2x192xf32>
    %1992 = arith.divf %1990, %1991 : vector<2x192xf32>
    %1993 = vector.extract_strided_slice %1986 {offsets = [0, 192], sizes = [2, 64], strides = [1, 1]} : vector<2x256xf32> to vector<2x64xf32>
    %1994 = math.tanh %1993 : vector<2x64xf32>
    %1995 = vector.extract_strided_slice %1992 {offsets = [0, 0], sizes = [2, 64], strides = [1, 1]} : vector<2x192xf32> to vector<2x64xf32>
    %1996 = vector.extract_strided_slice %1992 {offsets = [0, 64], sizes = [2, 64], strides = [1, 1]} : vector<2x192xf32> to vector<2x64xf32>
    %1997 = vector.extract_strided_slice %1992 {offsets = [0, 128], sizes = [2, 64], strides = [1, 1]} : vector<2x192xf32> to vector<2x64xf32>
    %1998 = arith.mulf %1996, %1749 : vector<2x64xf32>
    %1999 = arith.mulf %1995, %1994 : vector<2x64xf32>
    %2000 = arith.addf %1998, %1999 : vector<2x64xf32>
    %2001 = math.tanh %2000 : vector<2x64xf32>
    %2002 = arith.mulf %1997, %2001 : vector<2x64xf32>
    %2003 = tpu.concatenate %2002, %1776 in 1 : vector<2x64xf32>, vector<2x64xf32> -> vector<2x128xf32>
    %2004 = arith.truncf %2003 : vector<2x128xf32> to vector<2x128xbf16>
    %c8_657 = arith.constant 8 : index
    %c0_658 = arith.constant 0 : index
    %c0_659 = arith.constant 0 : index
    %2005 = vector.load %arg2[%c8_657, %c0_658, %c0_659] : memref<9x128x256xbf16, #tpu.memory_space<vmem>>, vector<1x128x256xbf16>
    %2006 = vector.shape_cast %2005 : vector<1x128x256xbf16> to vector<128x256xbf16>
    %cst_660 = arith.constant dense<0.000000e+00> : vector<2x256xf32>
    %2007 = tpu.matmul %2004, %2006, %cst_660 {dimension_numbers = #tpu.dot_dimension_numbers<[1], [0], [0], [1], [0, 0, 1, 1], [], []>} : vector<2x128xbf16>, vector<128x256xbf16>, vector<2x256xf32> -> vector<2x256xf32>
    %c9_661 = arith.constant 9 : index
    %c0_662 = arith.constant 0 : index
    %c0_663 = arith.constant 0 : index
    %2008 = vector.load %arg3[%c9_661, %c0_662, %c0_663] : memref<10x1x256xf32, #tpu.memory_space<vmem>>, vector<1x1x256xf32>
    %2009 = vector.shape_cast %2008 : vector<1x1x256xf32> to vector<1x256xf32>
    %2010 = vector.broadcast %2009 : vector<1x256xf32> to vector<2x256xf32>
    %2011 = arith.addf %2007, %2010 : vector<2x256xf32>
    %2012 = vector.extract_strided_slice %2011 {offsets = [0, 0], sizes = [2, 192], strides = [1, 1]} : vector<2x256xf32> to vector<2x192xf32>
    %2013 = arith.negf %2012 : vector<2x192xf32>
    %2014 = math.exp %2013 : vector<2x192xf32>
    %cst_664 = arith.constant 1.000000e+00 : f32
    %2015 = vector.broadcast %cst_664 : f32 to vector<2x192xf32>
    %2016 = arith.addf %2015, %2014 : vector<2x192xf32>
    %2017 = arith.divf %2015, %2016 : vector<2x192xf32>
    %2018 = vector.extract_strided_slice %2011 {offsets = [0, 192], sizes = [2, 64], strides = [1, 1]} : vector<2x256xf32> to vector<2x64xf32>
    %2019 = math.tanh %2018 : vector<2x64xf32>
    %2020 = vector.extract_strided_slice %2017 {offsets = [0, 0], sizes = [2, 64], strides = [1, 1]} : vector<2x192xf32> to vector<2x64xf32>
    %2021 = vector.extract_strided_slice %2017 {offsets = [0, 64], sizes = [2, 64], strides = [1, 1]} : vector<2x192xf32> to vector<2x64xf32>
    %2022 = vector.extract_strided_slice %2017 {offsets = [0, 128], sizes = [2, 64], strides = [1, 1]} : vector<2x192xf32> to vector<2x64xf32>
    %2023 = arith.mulf %2021, %1774 : vector<2x64xf32>
    %2024 = arith.mulf %2020, %2019 : vector<2x64xf32>
    %2025 = arith.addf %2023, %2024 : vector<2x64xf32>
    %2026 = math.tanh %2025 : vector<2x64xf32>
    %2027 = arith.mulf %2022, %2026 : vector<2x64xf32>
    %c0_665 = arith.constant 0 : index
    %c0_666 = arith.constant 0 : index
    %2028 = vector.load %arg4[%c0_665, %c0_666] : memref<64x10xf32, #tpu.memory_space<vmem>>, vector<64x10xf32>
    %cst_667 = arith.constant dense<0.000000e+00> : vector<2x10xf32>
    %2029 = tpu.matmul %2027, %2028, %cst_667 {dimension_numbers = #tpu.dot_dimension_numbers<[1], [0], [0], [1], [0, 0, 1, 1], [], []>} : vector<2x64xf32>, vector<64x10xf32>, vector<2x10xf32> -> vector<2x10xf32>
    %c0_668 = arith.constant 0 : index
    %c0_669 = arith.constant 0 : index
    %2030 = vector.load %arg5[%c0_668, %c0_669] : memref<1x10xf32, #tpu.memory_space<vmem>>, vector<1x10xf32>
    %2031 = vector.broadcast %2030 : vector<1x10xf32> to vector<2x10xf32>
    %2032 = arith.addf %2029, %2031 : vector<2x10xf32>
    %c0_670 = arith.constant 0 : index
    %c0_671 = arith.constant 0 : index
    %2033 = vector.load %arg6[%c0_670, %c0_671] : memref<2x10xf32, #tpu.memory_space<vmem>>, vector<2x10xf32>
    tpu.vector_store %arg6[%c0_670, %c0_671], %2032 {strides = array<i32>} : memref<2x10xf32, #tpu.memory_space<vmem>>, vector<2x10xf32>,
    return
  }
}

</mosaic_0001>

<llo_original>
// kernel: tpu_custom_call.1
$region0: #{tpu_custom_call.1}
  #allocation0 [shape = 'u32[]', space=smem, size = 0x4, offset = 0x4, fixed_abs, tag = 'smem constant byte address 0x4 - core index']
  #allocation1 [shape = 'u32[144,128]{1,0:T(1,128)}', space=vmem, size = 0x12000, scoped, tag = 'internal scratch']
  %s0 = inlined_call_operand.hbm [shape: f32[8,2,256], index: 0, kind: input, shape index: {}]
  %s1 = inlined_call_operand.vmem [shape: bf16[64,256], index: 1, kind: input, shape index: {}]
  %s2 = inlined_call_operand.hbm [shape: bf16[9,128,256], index: 2, kind: input, shape index: {}]
  %s3 = inlined_call_operand.vmem [shape: f32[10,1,256], index: 3, kind: input, shape index: {}]
  %s4 = inlined_call_operand.vmem [shape: f32[64,10], index: 4, kind: input, shape index: {}]
  %s5 = inlined_call_operand.vmem [shape: f32[1,10], index: 5, kind: input, shape index: {}]
  %s6 = inlined_call_operand.hbm [shape: f32[2,10], index: 6, kind: output, shape index: {}]
  %s7 = sld [smem:[#allocation0]]
  $region42: #{tpu_custom_call.1} parent=0
    _
  %s9 = ssub.s32 1, %s7
  %s10 = scalar_select 0, %s9, %s7
  $region1: #{tpu_custom_call.1} parent=0
    #allocation2 [shape = 'u8[16384]{0}', space=vmem, size = 0x4000, scoped, tag = 'input window, operand 0, single buffered']
    #allocation3 [shape = 's32[1]{0}', space=sflag, size = 0x4, scoped, tag = 'scoped memory for tpu_custom_call.1']
    #allocation4 [shape = 's32[1]{0}', space=sflag, size = 0x4, scoped, tag = 'scoped memory for tpu_custom_call.1']
    #allocation5 [shape = 'u8[589824]{0}', space=vmem, size = 0x90000, scoped, tag = 'input window, operand 2, single buffered']
    #allocation6 [shape = 's32[1]{0}', space=sflag, size = 0x4, scoped, tag = 'scoped memory for tpu_custom_call.1']
    #allocation7 [shape = 'u8[1024]{0}', space=vmem, size = 0x400, scoped, tag = 'output window, operand 0, single buffered']
    %11 = vsyncpa [#allocation3], 0
    %12 = vsyncpa [#allocation6], 0
    %13 = vsyncpa [#allocation4], 0
    // Predicated region
    $region2: #{tpu_custom_call.1} parent=1 // pred_check
      _
    $region3: #{tpu_custom_call.1} parent=1 // pred_check_branch
      %15 = sbr.rel (0) target = $region5
    $region4: #{tpu_custom_call.1} parent=1 // pred_region
      %s17 = ssub.s32 512, 512
      %18 = vsyncadd [#allocation3], %s17
      %s19 = sshll.u32 [#allocation2], 4
      %s20 = int_to_ptr.vmem [resolvable:$true] %s19
      %25 = dma.hbm_to_vmem [thread:$0]  %s0, 512, %s20, [#allocation3], 64, 64, 4
    $region5: #{tpu_custom_call.1} parent=1 // pred_fallthru
      _
    // Predicated region
    $region6: #{tpu_custom_call.1} parent=1 // pred_check
      _
    $region7: #{tpu_custom_call.1} parent=1 // pred_check_branch
      %27 = sbr.rel (0) target = $region9
    $region8: #{tpu_custom_call.1} parent=1 // pred_region
      _
    $region9: #{tpu_custom_call.1} parent=1 // pred_fallthru
      _
    // Predicated region
    $region10: #{tpu_custom_call.1} parent=1 // pred_check
      _
    $region11: #{tpu_custom_call.1} parent=1 // pred_check_branch
      %29 = sbr.rel (0) target = $region13
    $region12: #{tpu_custom_call.1} parent=1 // pred_region
      %s31 = ssub.s32 18432, 18432
      %32 = vsyncadd [#allocation6], %s31
      %s33 = sshll.u32 [#allocation5], 4
      %s34 = int_to_ptr.vmem [resolvable:$true] %s33
      %39 = dma.hbm_to_vmem [thread:$0]  %s2, 18432, %s34, [#allocation6], 128, 128, 8
    $region13: #{tpu_custom_call.1} parent=1 // pred_fallthru
      _
    // Predicated region
    $region14: #{tpu_custom_call.1} parent=1 // pred_check
      _
    $region15: #{tpu_custom_call.1} parent=1 // pred_check_branch
      %41 = sbr.rel (0) target = $region17
    $region16: #{tpu_custom_call.1} parent=1 // pred_region
      _
    $region17: #{tpu_custom_call.1} parent=1 // pred_fallthru
      _
    // Predicated region
    $region18: #{tpu_custom_call.1} parent=1 // pred_check
      _
    $region19: #{tpu_custom_call.1} parent=1 // pred_check_branch
      %43 = sbr.rel (0) target = $region21
    $region20: #{tpu_custom_call.1} parent=1 // pred_region
      _
    $region21: #{tpu_custom_call.1} parent=1 // pred_fallthru
      _
    // Predicated region
    $region22: #{tpu_custom_call.1} parent=1 // pred_check
      _
    $region23: #{tpu_custom_call.1} parent=1 // pred_check_branch
      %45 = sbr.rel (0) target = $region25
    $region24: #{tpu_custom_call.1} parent=1 // pred_region
      _
    $region25: #{tpu_custom_call.1} parent=1 // pred_fallthru
      _
    // Predicated region
    $region26: #{tpu_custom_call.1} parent=1 // pred_check
      _
    $region27: #{tpu_custom_call.1} parent=1 // pred_check_branch
      %47 = sbr.rel (0) target = $region29
    $region28: #{tpu_custom_call.1} parent=1 // pred_region
      %48 = dma.done [#allocation3], 512
    $region29: #{tpu_custom_call.1} parent=1 // pred_fallthru
      _
    // Predicated region
    $region30: #{tpu_custom_call.1} parent=1 // pred_check
      _
    $region31: #{tpu_custom_call.1} parent=1 // pred_check_branch
      %50 = sbr.rel (0) target = $region33
    $region32: #{tpu_custom_call.1} parent=1 // pred_region
      %51 = dma.done [#allocation6], 18432
    $region33: #{tpu_custom_call.1} parent=1 // pred_fallthru
      _
    %v53 = vld [vmem:[#allocation2] sm:$0xf]
    %v54 = vld [vmem:[%s1] sm:$0xff]
    %v55 = vld [vmem:[%s1 + $0x8] sm:$0xff]
    %v56 = vld [vmem:[%s1 + $0x10] sm:$0xff]
    %v57 = vld [vmem:[%s1 + $0x18] sm:$0xff]
    %v58 = vld [vmem:[%s1 + $0x20] sm:$0xff]
    %v59 = vld [vmem:[%s1 + $0x28] sm:$0xff]
    %v60 = vld [vmem:[%s1 + $0x30] sm:$0xff]
    %v61 = vld [vmem:[%s1 + $0x38] sm:$0xff]
    %v70 = vunpack.c.l.b16 %v54
    %v71 = vunpack.c.h.b16 %v54
    %v72 = vunpack.c.l.b16 %v55
    %v73 = vunpack.c.h.b16 %v55
    %v74 = vunpack.c.l.b16 %v56
    %v75 = vunpack.c.h.b16 %v56
    %v76 = vunpack.c.l.b16 %v57
    %v77 = vunpack.c.h.b16 %v57
    %v78 = vunpack.c.l.b16 %v58
    %v79 = vunpack.c.h.b16 %v58
    %v80 = vunpack.c.l.b16 %v59
    %v81 = vunpack.c.h.b16 %v59
    %v82 = vunpack.c.l.b16 %v60
    %v83 = vunpack.c.h.b16 %v60
    %v84 = vunpack.c.l.b16 %v61
    %v85 = vunpack.c.h.b16 %v61
    %v86 = vpack.c.b16 %v72, %v70
    %v87 = vpack.c.b16 %v73, %v71
    %v88 = vpack.c.b16 %v76, %v74
    %v89 = vpack.c.b16 %v77, %v75
    %v90 = vpack.c.b16 %v80, %v78
    %v91 = vpack.c.b16 %v81, %v79
    %v92 = vpack.c.b16 %v84, %v82
    %v93 = vpack.c.b16 %v85, %v83
    %vm102 = vcmask 523264
    %v104 = vsel %vm102, 0, 0
    %106 = vmatprep.subr.bf16.mxu0 0
    %107 = vmatpush1.bf16.msra.mxu0 0
    %108 = vmatprep.subr.bf16.mxu0 0
    %109 = vmatpush1.bf16.msra.mxu0 0
    %110 = vmatprep.subr.bf16.mxu0 0
    %111 = vmatpush1.bf16.msra.mxu0 0
    %112 = vmatprep.subr.bf16.mxu0 0
    %113 = vmatpush1.bf16.msra.mxu0 0
    %114 = vmatprep.subr.bf16.mxu0 %v93
    %115 = vmatpush1.bf16.msra.mxu0 %v92
    %116 = vmatprep.subr.bf16.mxu0 %v91
    %117 = vmatpush1.bf16.msra.mxu0 %v90
    %118 = vmatprep.subr.bf16.mxu0 %v89
    %119 = vmatpush1.bf16.msra.mxu0 %v88
    %120 = vmatprep.subr.bf16.mxu0 %v87
    %121 = vmatpush1.bf16.msra.mxu0 %v86
    %122 = vmatprep.subr.bf16.mxu0 0
    %123 = vmatpush2.bf16.msra.mxu0 0
    %124 = vmatprep.subr.bf16.mxu0 0
    %125 = vmatpush2.bf16.msra.mxu0 0
    %126 = vmatprep.subr.bf16.mxu0 0
    %127 = vmatpush2.bf16.msra.mxu0 0
    %128 = vmatprep.subr.bf16.mxu0 0
    %129 = vmatpush2.bf16.msra.mxu0 0
    %130 = vmatprep.subr.bf16.mxu0 0
    %131 = vmatpush2.bf16.msra.mxu0 0
    %132 = vmatprep.subr.bf16.mxu0 0
    %133 = vmatpush2.bf16.msra.mxu0 0
    %134 = vmatprep.subr.bf16.mxu0 0
    %135 = vmatpush2.bf16.msra.mxu0 0
    %136 = vmatprep.subr.bf16.mxu0 0
    %137 = vmatpush2.bf16.msra.mxu0 0
    %138 = vmatprep.mubr.bf16.mxu0 0
    %139 = vmatmul.mubr.bf16.gmra.mxu0 %v104
    %v140 = vpop.f32.mrf.mxu0
    %v141 = vadd.f32 0.0, %v140
    %v142 = vpop.f32.mrf.mxu0
    %v143 = vadd.f32 0.0, %v142
    %v144 = vpop.f32.mrf.mxu0
    %v145 = vpop.f32.mrf.mxu0
    %146 = vdwg.mxu0
    %v149 = vcombine.low %v141, %v143
    %v151 = vunpack.c.l.s4 1983009808
    %v152 = vunpack.c.0.s8 %v151
    %v153 = vlaneseq
    %v154 = vshrl.u32 %v153, 7
    %v155 = vsub.s32 %v152, %v154
    %v156 = vrot.slane %v149, %v155
    %v158 = vadd.f32 %v53, %v156
    %v159 = vld [vmem:[%s3] sm:$0x3]
    %v161 = vlaneseq
    %v162 = vshrl.u32 %v161, 7
    %v163 = vsub.s32 0, %v162
    %v164 = vrot.slane %v159, %v163
    %v165 = vlaneseq
    %v166 = vshrl.u32 %v165, 7
    %v167 = vsub.s32 1, %v166
    %v168 = vrot.slane %v159, %v167
    %v169 = vcombine.low %v164, %v168
    %v171 = vunpack.c.l.s4 1983009808
    %v172 = vunpack.c.0.s8 %v171
    %v173 = vlaneseq
    %v174 = vshrl.u32 %v173, 7
    %v175 = vsub.s32 %v172, %v174
    %v176 = vrot.slane %v169, %v175
    %v178 = vadd.f32 %v158, %v176
    %v179 = vxor.u32 %v178, 2147483648
    %v180 = vmul.f32 %v179, 1.442695
    %v181 = vpow.pop %v180
    %v182 = vadd.f32 %v181, 1.0
    %v183 = vrcp.pop %v182
    %v184 = vmul.f32 1.0, %v183
    %186 = vrot.lane.b32.xlu0 %v178, 64
    %v187 = vpop.permute.xlu0 %186
    %v188 = vrot.slane %v187, 2
    %v190 = vtanh.pop %v188
    %v191 = vmul.f32 %v184, 0.0
    %v192 = vmul.f32 %v184, %v190
    %194 = vrot.lane.b32.xlu0 %v192, 64
    %v195 = vpop.permute.xlu0 %194
    %v197 = vadd.f32 %v191, %v195
    %v198 = vtanh.pop %v197
    %v200 = vrot.slane %v184, 2
    %203 = vrot.lane.b32.xlu0 %v198, 64
    %v204 = vpop.permute.xlu0 %203
    %v206 = vmul.f32 %v200, %v204
    %v207 = vsel %vm102, %v206, 0.0
    %v208 = vpack.c.bf16 %v207, %v207
    %v209 = vld [vmem:[#allocation5] sm:$0xff]
    %v210 = vld [vmem:[#allocation5 + $0x8] sm:$0xff]
    %v211 = vld [vmem:[#allocation5 + $0x10] sm:$0xff]
    %v212 = vld [vmem:[#allocation5 + $0x18] sm:$0xff]
    %v213 = vld [vmem:[#allocation5 + $0x20] sm:$0xff]
    %v214 = vld [vmem:[#allocation5 + $0x28] sm:$0xff]
    %v215 = vld [vmem:[#allocation5 + $0x30] sm:$0xff]
    %v216 = vld [vmem:[#allocation5 + $0x38] sm:$0xff]
    %v217 = vld [vmem:[#allocation5 + $0x40] sm:$0xff]
    %v218 = vld [vmem:[#allocation5 + $0x48] sm:$0xff]
    %v219 = vld [vmem:[#allocation5 + $0x50] sm:$0xff]
    %v220 = vld [vmem:[#allocation5 + $0x58] sm:$0xff]
    %v221 = vld [vmem:[#allocation5 + $0x60] sm:$0xff]
    %v222 = vld [vmem:[#allocation5 + $0x68] sm:$0xff]
    %v223 = vld [vmem:[#allocation5 + $0x70] sm:$0xff]
    %v224 = vld [vmem:[#allocation5 + $0x78] sm:$0xff]
    %s225 = scalar_lea.vmem %s3, 2
    %v226 = vld [vmem:[%s225] sm:$0x3]
    %v228 = vlaneseq
    %v229 = vshrl.u32 %v228, 7
    %v230 = vsub.s32 0, %v229
    %v231 = vrot.slane %v226, %v230
    %v232 = vlaneseq
    %v233 = vshrl.u32 %v232, 7
    %v234 = vsub.s32 1, %v233
    %v235 = vrot.slane %v226, %v234
    %v254 = vunpack.c.l.b16 %v209
    %v255 = vunpack.c.h.b16 %v209
    %v256 = vunpack.c.l.b16 %v210
    %v257 = vunpack.c.h.b16 %v210
    %v258 = vunpack.c.l.b16 %v211
    %v259 = vunpack.c.h.b16 %v211
    %v260 = vunpack.c.l.b16 %v212
    %v261 = vunpack.c.h.b16 %v212
    %v262 = vunpack.c.l.b16 %v213
    %v263 = vunpack.c.h.b16 %v213
    %v264 = vunpack.c.l.b16 %v214
    %v265 = vunpack.c.h.b16 %v214
    %v266 = vunpack.c.l.b16 %v215
    %v267 = vunpack.c.h.b16 %v215
    %v268 = vunpack.c.l.b16 %v216
    %v269 = vunpack.c.h.b16 %v216
    %v270 = vunpack.c.l.b16 %v217
    %v271 = vunpack.c.h.b16 %v217
    %v272 = vunpack.c.l.b16 %v218
    %v273 = vunpack.c.h.b16 %v218
    %v274 = vunpack.c.l.b16 %v219
    %v275 = vunpack.c.h.b16 %v219
    %v276 = vunpack.c.l.b16 %v220
    %v277 = vunpack.c.h.b16 %v220
    %v278 = vunpack.c.l.b16 %v221
    %v279 = vunpack.c.h.b16 %v221
    %v280 = vunpack.c.l.b16 %v222
    %v281 = vunpack.c.h.b16 %v222
    %v282 = vunpack.c.l.b16 %v223
    %v283 = vunpack.c.h.b16 %v223
    %v284 = vunpack.c.l.b16 %v224
    %v285 = vunpack.c.h.b16 %v224
    %v286 = vpack.c.b16 %v256, %v254
    %v287 = vpack.c.b16 %v257, %v255
    %v288 = vpack.c.b16 %v260, %v258
    %v289 = vpack.c.b16 %v261, %v259
    %v290 = vpack.c.b16 %v264, %v262
    %v291 = vpack.c.b16 %v265, %v263
    %v292 = vpack.c.b16 %v268, %v266
    %v293 = vpack.c.b16 %v269, %v267
    %v294 = vpack.c.b16 %v272, %v270
    %v295 = vpack.c.b16 %v273, %v271
    %v296 = vpack.c.b16 %v276, %v274
    %v297 = vpack.c.b16 %v277, %v275
    %v298 = vpack.c.b16 %v280, %v278
    %v299 = vpack.c.b16 %v281, %v279
    %v300 = vpack.c.b16 %v284, %v282
    %v301 = vpack.c.b16 %v285, %v283
    %318 = vmatprep.subr.bf16.mxu0 %v301
    %319 = vmatpush1.bf16.msra.mxu0 %v300
    %320 = vmatprep.subr.bf16.mxu0 %v299
    %321 = vmatpush1.bf16.msra.mxu0 %v298
    %322 = vmatprep.subr.bf16.mxu0 %v297
    %323 = vmatpush1.bf16.msra.mxu0 %v296
    %324 = vmatprep.subr.bf16.mxu0 %v295
    %325 = vmatpush1.bf16.msra.mxu0 %v294
    %326 = vmatprep.subr.bf16.mxu0 %v293
    %327 = vmatpush1.bf16.msra.mxu0 %v292
    %328 = vmatprep.subr.bf16.mxu0 %v291
    %329 = vmatpush1.bf16.msra.mxu0 %v290
    %330 = vmatprep.subr.bf16.mxu0 %v289
    %331 = vmatpush1.bf16.msra.mxu0 %v288
    %332 = vmatprep.subr.bf16.mxu0 %v287
    %333 = vmatpush1.bf16.msra.mxu0 %v286
    %334 = vmatprep.subr.bf16.mxu0 0
    %335 = vmatpush2.bf16.msra.mxu0 0
    %336 = vmatprep.subr.bf16.mxu0 0
    %337 = vmatpush2.bf16.msra.mxu0 0
    %338 = vmatprep.subr.bf16.mxu0 0
    %339 = vmatpush2.bf16.msra.mxu0 0
    %340 = vmatprep.subr.bf16.mxu0 0
    %341 = vmatpush2.bf16.msra.mxu0 0
    %342 = vmatprep.subr.bf16.mxu0 0
    %343 = vmatpush2.bf16.msra.mxu0 0
    %344 = vmatprep.subr.bf16.mxu0 0
    %345 = vmatpush2.bf16.msra.mxu0 0
    %346 = vmatprep.subr.bf16.mxu0 0
    %347 = vmatpush2.bf16.msra.mxu0 0
    %348 = vmatprep.subr.bf16.mxu0 0
    %349 = vmatpush2.bf16.msra.mxu0 0
    %350 = vmatprep.mubr.bf16.mxu0 0
    %351 = vmatmul.mubr.bf16.gmra.mxu0 %v208
    %v352 = vpop.f32.mrf.mxu0
    %v353 = vadd.f32 %v231, %v352
    %v354 = vpop.f32.mrf.mxu0
    %v355 = vadd.f32 %v235, %v354
    %v356 = vpop.f32.mrf.mxu0
    %v357 = vpop.f32.mrf.mxu0
    %358 = vdwg.mxu0
    %v359 = vxor.u32 %v353, 2147483648
    %v360 = vxor.u32 %v355, 2147483648
    %v361 = vmul.f32 %v359, 1.442695
    %v362 = vpow.pop %v361
    %v363 = vmul.f32 %v360, 1.442695
    %v364 = vpow.pop %v363
    %v365 = vadd.f32 %v362, 1.0
    %v366 = vadd.f32 %v364, 1.0
    %v367 = vrcp.pop %v365
    %v368 = vmul.f32 1.0, %v367
    %v369 = vrcp.pop %v366
    %v370 = vmul.f32 1.0, %v369
    %v371 = vtanh.pop %v355
    %v372 = vmul.f32 %v368, 0.0
    %374 = vrot.lane.b32.xlu0 %v371, 64
    %v375 = vpop.permute.xlu0 %374
    %v377 = vmul.f32 %v368, %v375
    %379 = vrot.lane.b32.xlu0 %v377, 64
    %v380 = vpop.permute.xlu0 %379
    %v382 = vadd.f32 %v372, %v380
    %v383 = vtanh.pop %v382
    %385 = vrot.lane.b32.xlu0 %v383, 64
    %v386 = vpop.permute.xlu0 %385
    %v388 = vmul.f32 %v370, %v386
    %v389 = vsel %vm102, %v388, 0.0
    %v390 = vpack.c.bf16 %v389, %v389
    %s391 = scalar_lea.vmem [#allocation5], 128
    %v392 = vld [vmem:[%s391] sm:$0xff]
    %v393 = vld [vmem:[%s391 + $0x8] sm:$0xff]
    %v394 = vld [vmem:[%s391 + $0x10] sm:$0xff]
    %v395 = vld [vmem:[%s391 + $0x18] sm:$0xff]
    %v396 = vld [vmem:[%s391 + $0x20] sm:$0xff]
    %v397 = vld [vmem:[%s391 + $0x28] sm:$0xff]
    %v398 = vld [vmem:[%s391 + $0x30] sm:$0xff]
    %v399 = vld [vmem:[%s391 + $0x38] sm:$0xff]
    %v400 = vld [vmem:[%s391 + $0x40] sm:$0xff]
    %v401 = vld [vmem:[%s391 + $0x48] sm:$0xff]
    %v402 = vld [vmem:[%s391 + $0x50] sm:$0xff]
    %v403 = vld [vmem:[%s391 + $0x58] sm:$0xff]
    %v404 = vld [vmem:[%s391 + $0x60] sm:$0xff]
    %v405 = vld [vmem:[%s391 + $0x68] sm:$0xff]
    %v406 = vld [vmem:[%s391 + $0x70] sm:$0xff]
    %v407 = vld [vmem:[%s391 + $0x78] sm:$0xff]
    %s408 = scalar_lea.vmem %s3, 4
    %v409 = vld [vmem:[%s408] sm:$0x3]
    %v411 = vlaneseq
    %v412 = vshrl.u32 %v411, 7
    %v413 = vsub.s32 0, %v412
    %v414 = vrot.slane %v409, %v413
    %v415 = vlaneseq
    %v416 = vshrl.u32 %v415, 7
    %v417 = vsub.s32 1, %v416
    %v418 = vrot.slane %v409, %v417
    %v437 = vunpack.c.l.b16 %v392
    %v438 = vunpack.c.h.b16 %v392
    %v439 = vunpack.c.l.b16 %v393
    %v440 = vunpack.c.h.b16 %v393
    %v441 = vunpack.c.l.b16 %v394
    %v442 = vunpack.c.h.b16 %v394
    %v443 = vunpack.c.l.b16 %v395
    %v444 = vunpack.c.h.b16 %v395
    %v445 = vunpack.c.l.b16 %v396
    %v446 = vunpack.c.h.b16 %v396
    %v447 = vunpack.c.l.b16 %v397
    %v448 = vunpack.c.h.b16 %v397
    %v449 = vunpack.c.l.b16 %v398
    %v450 = vunpack.c.h.b16 %v398
    %v451 = vunpack.c.l.b16 %v399
    %v452 = vunpack.c.h.b16 %v399
    %v453 = vunpack.c.l.b16 %v400
    %v454 = vunpack.c.h.b16 %v400
    %v455 = vunpack.c.l.b16 %v401
    %v456 = vunpack.c.h.b16 %v401
    %v457 = vunpack.c.l.b16 %v402
    %v458 = vunpack.c.h.b16 %v402
    %v459 = vunpack.c.l.b16 %v403
    %v460 = vunpack.c.h.b16 %v403
    %v461 = vunpack.c.l.b16 %v404
    %v462 = vunpack.c.h.b16 %v404
    %v463 = vunpack.c.l.b16 %v405
    %v464 = vunpack.c.h.b16 %v405
    %v465 = vunpack.c.l.b16 %v406
    %v466 = vunpack.c.h.b16 %v406
    %v467 = vunpack.c.l.b16 %v407
    %v468 = vunpack.c.h.b16 %v407
    %v469 = vpack.c.b16 %v439, %v437
    %v470 = vpack.c.b16 %v440, %v438
    %v471 = vpack.c.b16 %v443, %v441
    %v472 = vpack.c.b16 %v444, %v442
    %v473 = vpack.c.b16 %v447, %v445
    %v474 = vpack.c.b16 %v448, %v446
    %v475 = vpack.c.b16 %v451, %v449
    %v476 = vpack.c.b16 %v452, %v450
    %v477 = vpack.c.b16 %v455, %v453
    %v478 = vpack.c.b16 %v456, %v454
    %v479 = vpack.c.b16 %v459, %v457
    %v480 = vpack.c.b16 %v460, %v458
    %v481 = vpack.c.b16 %v463, %v461
    %v482 = vpack.c.b16 %v464, %v462
    %v483 = vpack.c.b16 %v467, %v465
    %v484 = vpack.c.b16 %v468, %v466
    %501 = vmatprep.subr.bf16.mxu0 %v484
    %502 = vmatpush1.bf16.msra.mxu0 %v483
    %503 = vmatprep.subr.bf16.mxu0 %v482
    %504 = vmatpush1.bf16.msra.mxu0 %v481
    %505 = vmatprep.subr.bf16.mxu0 %v480
    %506 = vmatpush1.bf16.msra.mxu0 %v479
    %507 = vmatprep.subr.bf16.mxu0 %v478
    %508 = vmatpush1.bf16.msra.mxu0 %v477
    %509 = vmatprep.subr.bf16.mxu0 %v476
    %510 = vmatpush1.bf16.msra.mxu0 %v475
    %511 = vmatprep.subr.bf16.mxu0 %v474
    %512 = vmatpush1.bf16.msra.mxu0 %v473
    %513 = vmatprep.subr.bf16.mxu0 %v472
    %514 = vmatpush1.bf16.msra.mxu0 %v471
    %515 = vmatprep.subr.bf16.mxu0 %v470
    %516 = vmatpush1.bf16.msra.mxu0 %v469
    %517 = vmatprep.subr.bf16.mxu0 0
    %518 = vmatpush2.bf16.msra.mxu0 0
    %519 = vmatprep.subr.bf16.mxu0 0
    %520 = vmatpush2.bf16.msra.mxu0 0
    %521 = vmatprep.subr.bf16.mxu0 0
    %522 = vmatpush2.bf16.msra.mxu0 0
    %523 = vmatprep.subr.bf16.mxu0 0
    %524 = vmatpush2.bf16.msra.mxu0 0
    %525 = vmatprep.subr.bf16.mxu0 0
    %526 = vmatpush2.bf16.msra.mxu0 0
    %527 = vmatprep.subr.bf16.mxu0 0
    %528 = vmatpush2.bf16.msra.mxu0 0
    %529 = vmatprep.subr.bf16.mxu0 0
    %530 = vmatpush2.bf16.msra.mxu0 0
    %531 = vmatprep.subr.bf16.mxu0 0
    %532 = vmatpush2.bf16.msra.mxu0 0
    %533 = vmatprep.mubr.bf16.mxu0 0
    %534 = vmatmul.mubr.bf16.gmra.mxu0 %v390
    %v535 = vpop.f32.mrf.mxu0
    %v536 = vadd.f32 %v414, %v535
    %v537 = vpop.f32.mrf.mxu0
    %v538 = vadd.f32 %v418, %v537
    %v539 = vpop.f32.mrf.mxu0
    %v540 = vpop.f32.mrf.mxu0
    %541 = vdwg.mxu0
    %v542 = vxor.u32 %v536, 2147483648
    %v543 = vxor.u32 %v538, 2147483648
    %v544 = vmul.f32 %v542, 1.442695
    %v545 = vpow.pop %v544
    %v546 = vmul.f32 %v543, 1.442695
    %v547 = vpow.pop %v546
    %v548 = vadd.f32 %v545, 1.0
    %v549 = vadd.f32 %v547, 1.0
    %v550 = vrcp.pop %v548
    %v551 = vmul.f32 1.0, %v550
    %v552 = vrcp.pop %v549
    %v553 = vmul.f32 1.0, %v552
    %v554 = vtanh.pop %v538
    %v555 = vmul.f32 %v551, 0.0
    %557 = vrot.lane.b32.xlu0 %v554, 64
    %v558 = vpop.permute.xlu0 %557
    %v560 = vmul.f32 %v551, %v558
    %562 = vrot.lane.b32.xlu0 %v560, 64
    %v563 = vpop.permute.xlu0 %562
    %v565 = vadd.f32 %v555, %v563
    %v566 = vtanh.pop %v565
    %568 = vrot.lane.b32.xlu0 %v566, 64
    %v569 = vpop.permute.xlu0 %568
    %v571 = vmul.f32 %v553, %v569
    %v572 = vsel %vm102, %v571, 0.0
    %v573 = vpack.c.bf16 %v572, %v572
    %s574 = scalar_lea.vmem [#allocation5], 256
    %v575 = vld [vmem:[%s574] sm:$0xff]
    %v576 = vld [vmem:[%s574 + $0x8] sm:$0xff]
    %v577 = vld [vmem:[%s574 + $0x10] sm:$0xff]
    %v578 = vld [vmem:[%s574 + $0x18] sm:$0xff]
    %v579 = vld [vmem:[%s574 + $0x20] sm:$0xff]
    %v580 = vld [vmem:[%s574 + $0x28] sm:$0xff]
    %v581 = vld [vmem:[%s574 + $0x30] sm:$0xff]
    %v582 = vld [vmem:[%s574 + $0x38] sm:$0xff]
    %v583 = vld [vmem:[%s574 + $0x40] sm:$0xff]
    %v584 = vld [vmem:[%s574 + $0x48] sm:$0xff]
    %v585 = vld [vmem:[%s574 + $0x50] sm:$0xff]
    %v586 = vld [vmem:[%s574 + $0x58] sm:$0xff]
    %v587 = vld [vmem:[%s574 + $0x60] sm:$0xff]
    %v588 = vld [vmem:[%s574 + $0x68] sm:$0xff]
    %v589 = vld [vmem:[%s574 + $0x70] sm:$0xff]
    %v590 = vld [vmem:[%s574 + $0x78] sm:$0xff]
    %s591 = scalar_lea.vmem %s3, 6
    %v592 = vld [vmem:[%s591] sm:$0x3]
    %v594 = vlaneseq
    %v595 = vshrl.u32 %v594, 7
    %v596 = vsub.s32 0, %v595
    %v597 = vrot.slane %v592, %v596
    %v598 = vlaneseq
    %v599 = vshrl.u32 %v598, 7
    %v600 = vsub.s32 1, %v599
    %v601 = vrot.slane %v592, %v600
    %v620 = vunpack.c.l.b16 %v575
    %v621 = vunpack.c.h.b16 %v575
    %v622 = vunpack.c.l.b16 %v576
    %v623 = vunpack.c.h.b16 %v576
    %v624 = vunpack.c.l.b16 %v577
    %v625 = vunpack.c.h.b16 %v577
    %v626 = vunpack.c.l.b16 %v578
    %v627 = vunpack.c.h.b16 %v578
    %v628 = vunpack.c.l.b16 %v579
    %v629 = vunpack.c.h.b16 %v579
    %v630 = vunpack.c.l.b16 %v580
    %v631 = vunpack.c.h.b16 %v580
    %v632 = vunpack.c.l.b16 %v581
    %v633 = vunpack.c.h.b16 %v581
    %v634 = vunpack.c.l.b16 %v582
    %v635 = vunpack.c.h.b16 %v582
    %v636 = vunpack.c.l.b16 %v583
    %v637 = vunpack.c.h.b16 %v583
    %v638 = vunpack.c.l.b16 %v584
    %v639 = vunpack.c.h.b16 %v584
    %v640 = vunpack.c.l.b16 %v585
    %v641 = vunpack.c.h.b16 %v585
    %v642 = vunpack.c.l.b16 %v586
    %v643 = vunpack.c.h.b16 %v586
    %v644 = vunpack.c.l.b16 %v587
    %v645 = vunpack.c.h.b16 %v587
    %v646 = vunpack.c.l.b16 %v588
    %v647 = vunpack.c.h.b16 %v588
    %v648 = vunpack.c.l.b16 %v589
    %v649 = vunpack.c.h.b16 %v589
    %v650 = vunpack.c.l.b16 %v590
    %v651 = vunpack.c.h.b16 %v590
    %v652 = vpack.c.b16 %v622, %v620
    %v653 = vpack.c.b16 %v623, %v621
    %v654 = vpack.c.b16 %v626, %v624
    %v655 = vpack.c.b16 %v627, %v625
    %v656 = vpack.c.b16 %v630, %v628
    %v657 = vpack.c.b16 %v631, %v629
    %v658 = vpack.c.b16 %v634, %v632
    %v659 = vpack.c.b16 %v635, %v633
    %v660 = vpack.c.b16 %v638, %v636
    %v661 = vpack.c.b16 %v639, %v637
    %v662 = vpack.c.b16 %v642, %v640
    %v663 = vpack.c.b16 %v643, %v641
    %v664 = vpack.c.b16 %v646, %v644
    %v665 = vpack.c.b16 %v647, %v645
    %v666 = vpack.c.b16 %v650, %v648
    %v667 = vpack.c.b16 %v651, %v649
    %684 = vmatprep.subr.bf16.mxu0 %v667
    %685 = vmatpush1.bf16.msra.mxu0 %v666
    %686 = vmatprep.subr.bf16.mxu0 %v665
    %687 = vmatpush1.bf16.msra.mxu0 %v664
    %688 = vmatprep.subr.bf16.mxu0 %v663
    %689 = vmatpush1.bf16.msra.mxu0 %v662
    %690 = vmatprep.subr.bf16.mxu0 %v661
    %691 = vmatpush1.bf16.msra.mxu0 %v660
    %692 = vmatprep.subr.bf16.mxu0 %v659
    %693 = vmatpush1.bf16.msra.mxu0 %v658
    %694 = vmatprep.subr.bf16.mxu0 %v657
    %695 = vmatpush1.bf16.msra.mxu0 %v656
    %696 = vmatprep.subr.bf16.mxu0 %v655
    %697 = vmatpush1.bf16.msra.mxu0 %v654
    %698 = vmatprep.subr.bf16.mxu0 %v653
    %699 = vmatpush1.bf16.msra.mxu0 %v652
    %700 = vmatprep.subr.bf16.mxu0 0
    %701 = vmatpush2.bf16.msra.mxu0 0
    %702 = vmatprep.subr.bf16.mxu0 0
    %703 = vmatpush2.bf16.msra.mxu0 0
    %704 = vmatprep.subr.bf16.mxu0 0
    %705 = vmatpush2.bf16.msra.mxu0 0
    %706 = vmatprep.subr.bf16.mxu0 0
    %707 = vmatpush2.bf16.msra.mxu0 0
    %708 = vmatprep.subr.bf16.mxu0 0
    %709 = vmatpush2.bf16.msra.mxu0 0
    %710 = vmatprep.subr.bf16.mxu0 0
    %711 = vmatpush2.bf16.msra.mxu0 0
    %712 = vmatprep.subr.bf16.mxu0 0
    %713 = vmatpush2.bf16.msra.mxu0 0
    %714 = vmatprep.subr.bf16.mxu0 0
    %715 = vmatpush2.bf16.msra.mxu0 0
    %716 = vmatprep.mubr.bf16.mxu0 0
    %717 = vmatmul.mubr.bf16.gmra.mxu0 %v573
    %v718 = vpop.f32.mrf.mxu0
    %v719 = vadd.f32 %v597, %v718
    %v720 = vpop.f32.mrf.mxu0
    %v721 = vadd.f32 %v601, %v720
    %v722 = vpop.f32.mrf.mxu0
    %v723 = vpop.f32.mrf.mxu0
    %724 = vdwg.mxu0
    %v725 = vxor.u32 %v719, 2147483648
    %v726 = vxor.u32 %v721, 2147483648
    %v727 = vmul.f32 %v725, 1.442695
    %v728 = vpow.pop %v727
    %v729 = vmul.f32 %v726, 1.442695
    %v730 = vpow.pop %v729
    %v731 = vadd.f32 %v728, 1.0
    %v732 = vadd.f32 %v730, 1.0
    %v733 = vrcp.pop %v731
    %v734 = vmul.f32 1.0, %v733
    %v735 = vrcp.pop %v732
    %v736 = vmul.f32 1.0, %v735
    %v737 = vtanh.pop %v721
    %v738 = vmul.f32 %v734, 0.0
    %740 = vrot.lane.b32.xlu0 %v737, 64
    %v741 = vpop.permute.xlu0 %740
    %v743 = vmul.f32 %v734, %v741
    %745 = vrot.lane.b32.xlu0 %v743, 64
    %v746 = vpop.permute.xlu0 %745
    %v748 = vadd.f32 %v738, %v746
    %v749 = vtanh.pop %v748
    %751 = vrot.lane.b32.xlu0 %v749, 64
    %v752 = vpop.permute.xlu0 %751
    %v754 = vmul.f32 %v736, %v752
    %v755 = vsel %vm102, %v754, 0.0
    %v756 = vpack.c.bf16 %v755, %v755
    %s757 = scalar_lea.vmem [#allocation5], 384
    %v758 = vld [vmem:[%s757] sm:$0xff]
    %v759 = vld [vmem:[%s757 + $0x8] sm:$0xff]
    %v760 = vld [vmem:[%s757 + $0x10] sm:$0xff]
    %v761 = vld [vmem:[%s757 + $0x18] sm:$0xff]
    %v762 = vld [vmem:[%s757 + $0x20] sm:$0xff]
    %v763 = vld [vmem:[%s757 + $0x28] sm:$0xff]
    %v764 = vld [vmem:[%s757 + $0x30] sm:$0xff]
    %v765 = vld [vmem:[%s757 + $0x38] sm:$0xff]
    %v766 = vld [vmem:[%s757 + $0x40] sm:$0xff]
    %v767 = vld [vmem:[%s757 + $0x48] sm:$0xff]
    %v768 = vld [vmem:[%s757 + $0x50] sm:$0xff]
    %v769 = vld [vmem:[%s757 + $0x58] sm:$0xff]
    %v770 = vld [vmem:[%s757 + $0x60] sm:$0xff]
    %v771 = vld [vmem:[%s757 + $0x68] sm:$0xff]
    %v772 = vld [vmem:[%s757 + $0x70] sm:$0xff]
    %v773 = vld [vmem:[%s757 + $0x78] sm:$0xff]
    %s774 = scalar_lea.vmem %s3, 8
    %v775 = vld [vmem:[%s774] sm:$0x3]
    %v777 = vlaneseq
    %v778 = vshrl.u32 %v777, 7
    %v779 = vsub.s32 0, %v778
    %v780 = vrot.slane %v775, %v779
    %v781 = vlaneseq
    %v782 = vshrl.u32 %v781, 7
    %v783 = vsub.s32 1, %v782
    %v784 = vrot.slane %v775, %v783
    %v803 = vunpack.c.l.b16 %v758
    %v804 = vunpack.c.h.b16 %v758
    %v805 = vunpack.c.l.b16 %v759
    %v806 = vunpack.c.h.b16 %v759
    %v807 = vunpack.c.l.b16 %v760
    %v808 = vunpack.c.h.b16 %v760
    %v809 = vunpack.c.l.b16 %v761
    %v810 = vunpack.c.h.b16 %v761
    %v811 = vunpack.c.l.b16 %v762
    %v812 = vunpack.c.h.b16 %v762
    %v813 = vunpack.c.l.b16 %v763
    %v814 = vunpack.c.h.b16 %v763
    %v815 = vunpack.c.l.b16 %v764
    %v816 = vunpack.c.h.b16 %v764
    %v817 = vunpack.c.l.b16 %v765
    %v818 = vunpack.c.h.b16 %v765
    %v819 = vunpack.c.l.b16 %v766
    %v820 = vunpack.c.h.b16 %v766
    %v821 = vunpack.c.l.b16 %v767
    %v822 = vunpack.c.h.b16 %v767
    %v823 = vunpack.c.l.b16 %v768
    %v824 = vunpack.c.h.b16 %v768
    %v825 = vunpack.c.l.b16 %v769
    %v826 = vunpack.c.h.b16 %v769
    %v827 = vunpack.c.l.b16 %v770
    %v828 = vunpack.c.h.b16 %v770
    %v829 = vunpack.c.l.b16 %v771
    %v830 = vunpack.c.h.b16 %v771
    %v831 = vunpack.c.l.b16 %v772
    %v832 = vunpack.c.h.b16 %v772
    %v833 = vunpack.c.l.b16 %v773
    %v834 = vunpack.c.h.b16 %v773
    %v835 = vpack.c.b16 %v805, %v803
    %v836 = vpack.c.b16 %v806, %v804
    %v837 = vpack.c.b16 %v809, %v807
    %v838 = vpack.c.b16 %v810, %v808
    %v839 = vpack.c.b16 %v813, %v811
    %v840 = vpack.c.b16 %v814, %v812
    %v841 = vpack.c.b16 %v817, %v815
    %v842 = vpack.c.b16 %v818, %v816
    %v843 = vpack.c.b16 %v821, %v819
    %v844 = vpack.c.b16 %v822, %v820
    %v845 = vpack.c.b16 %v825, %v823
    %v846 = vpack.c.b16 %v826, %v824
    %v847 = vpack.c.b16 %v829, %v827
    %v848 = vpack.c.b16 %v830, %v828
    %v849 = vpack.c.b16 %v833, %v831
    %v850 = vpack.c.b16 %v834, %v832
    %867 = vmatprep.subr.bf16.mxu0 %v850
    %868 = vmatpush1.bf16.msra.mxu0 %v849
    %869 = vmatprep.subr.bf16.mxu0 %v848
    %870 = vmatpush1.bf16.msra.mxu0 %v847
    %871 = vmatprep.subr.bf16.mxu0 %v846
    %872 = vmatpush1.bf16.msra.mxu0 %v845
    %873 = vmatprep.subr.bf16.mxu0 %v844
    %874 = vmatpush1.bf16.msra.mxu0 %v843
    %875 = vmatprep.subr.bf16.mxu0 %v842
    %876 = vmatpush1.bf16.msra.mxu0 %v841
    %877 = vmatprep.subr.bf16.mxu0 %v840
    %878 = vmatpush1.bf16.msra.mxu0 %v839
    %879 = vmatprep.subr.bf16.mxu0 %v838
    %880 = vmatpush1.bf16.msra.mxu0 %v837
    %881 = vmatprep.subr.bf16.mxu0 %v836
    %882 = vmatpush1.bf16.msra.mxu0 %v835
    %883 = vmatprep.subr.bf16.mxu0 0
    %884 = vmatpush2.bf16.msra.mxu0 0
    %885 = vmatprep.subr.bf16.mxu0 0
    %886 = vmatpush2.bf16.msra.mxu0 0
    %887 = vmatprep.subr.bf16.mxu0 0
    %888 = vmatpush2.bf16.msra.mxu0 0
    %889 = vmatprep.subr.bf16.mxu0 0
    %890 = vmatpush2.bf16.msra.mxu0 0
    %891 = vmatprep.subr.bf16.mxu0 0
    %892 = vmatpush2.bf16.msra.mxu0 0
    %893 = vmatprep.subr.bf16.mxu0 0
    %894 = vmatpush2.bf16.msra.mxu0 0
    %895 = vmatprep.subr.bf16.mxu0 0
    %896 = vmatpush2.bf16.msra.mxu0 0
    %897 = vmatprep.subr.bf16.mxu0 0
    %898 = vmatpush2.bf16.msra.mxu0 0
    %899 = vmatprep.mubr.bf16.mxu0 0
    %900 = vmatmul.mubr.bf16.gmra.mxu0 %v756
    %v901 = vpop.f32.mrf.mxu0
    %v902 = vadd.f32 %v780, %v901
    %v903 = vpop.f32.mrf.mxu0
    %v904 = vadd.f32 %v784, %v903
    %v905 = vpop.f32.mrf.mxu0
    %v906 = vpop.f32.mrf.mxu0
    %907 = vdwg.mxu0
    %v908 = vxor.u32 %v902, 2147483648
    %v909 = vxor.u32 %v904, 2147483648
    %v910 = vmul.f32 %v908, 1.442695
    %v911 = vpow.pop %v910
    %v912 = vmul.f32 %v909, 1.442695
    %v913 = vpow.pop %v912
    %v914 = vadd.f32 %v911, 1.0
    %v915 = vadd.f32 %v913, 1.0
    %v916 = vrcp.pop %v914
    %v917 = vmul.f32 1.0, %v916
    %v918 = vrcp.pop %v915
    %v919 = vmul.f32 1.0, %v918
    %v920 = vtanh.pop %v904
    %v921 = vmul.f32 %v917, 0.0
    %923 = vrot.lane.b32.xlu0 %v920, 64
    %v924 = vpop.permute.xlu0 %923
    %v926 = vmul.f32 %v917, %v924
    %928 = vrot.lane.b32.xlu0 %v926, 64
    %v929 = vpop.permute.xlu0 %928
    %v931 = vadd.f32 %v921, %v929
    %v932 = vtanh.pop %v931
    %934 = vrot.lane.b32.xlu0 %v932, 64
    %v935 = vpop.permute.xlu0 %934
    %v937 = vmul.f32 %v919, %v935
    %v938 = vsel %vm102, %v937, 0.0
    %v939 = vpack.c.bf16 %v938, %v938
    %s940 = scalar_lea.vmem [#allocation5], 512
    %v941 = vld [vmem:[%s940] sm:$0xff]
    %v942 = vld [vmem:[%s940 + $0x8] sm:$0xff]
    %v943 = vld [vmem:[%s940 + $0x10] sm:$0xff]
    %v944 = vld [vmem:[%s940 + $0x18] sm:$0xff]
    %v945 = vld [vmem:[%s940 + $0x20] sm:$0xff]
    %v946 = vld [vmem:[%s940 + $0x28] sm:$0xff]
    %v947 = vld [vmem:[%s940 + $0x30] sm:$0xff]
    %v948 = vld [vmem:[%s940 + $0x38] sm:$0xff]
    %v949 = vld [vmem:[%s940 + $0x40] sm:$0xff]
    %v950 = vld [vmem:[%s940 + $0x48] sm:$0xff]
    %v951 = vld [vmem:[%s940 + $0x50] sm:$0xff]
    %v952 = vld [vmem:[%s940 + $0x58] sm:$0xff]
    %v953 = vld [vmem:[%s940 + $0x60] sm:$0xff]
    %v954 = vld [vmem:[%s940 + $0x68] sm:$0xff]
    %v955 = vld [vmem:[%s940 + $0x70] sm:$0xff]
    %v956 = vld [vmem:[%s940 + $0x78] sm:$0xff]
    %s957 = scalar_lea.vmem %s3, 10
    %v958 = vld [vmem:[%s957] sm:$0x3]
    %v960 = vlaneseq
    %v961 = vshrl.u32 %v960, 7
    %v962 = vsub.s32 0, %v961
    %v963 = vrot.slane %v958, %v962
    %v964 = vlaneseq
    %v965 = vshrl.u32 %v964, 7
    %v966 = vsub.s32 1, %v965
    %v967 = vrot.slane %v958, %v966
    %v986 = vunpack.c.l.b16 %v941
    %v987 = vunpack.c.h.b16 %v941
    %v988 = vunpack.c.l.b16 %v942
    %v989 = vunpack.c.h.b16 %v942
    %v990 = vunpack.c.l.b16 %v943
    %v991 = vunpack.c.h.b16 %v943
    %v992 = vunpack.c.l.b16 %v944
    %v993 = vunpack.c.h.b16 %v944
    %v994 = vunpack.c.l.b16 %v945
    %v995 = vunpack.c.h.b16 %v945
    %v996 = vunpack.c.l.b16 %v946
    %v997 = vunpack.c.h.b16 %v946
    %v998 = vunpack.c.l.b16 %v947
    %v999 = vunpack.c.h.b16 %v947
    %v1000 = vunpack.c.l.b16 %v948
    %v1001 = vunpack.c.h.b16 %v948
    %v1002 = vunpack.c.l.b16 %v949
    %v1003 = vunpack.c.h.b16 %v949
    %v1004 = vunpack.c.l.b16 %v950
    %v1005 = vunpack.c.h.b16 %v950
    %v1006 = vunpack.c.l.b16 %v951
    %v1007 = vunpack.c.h.b16 %v951
    %v1008 = vunpack.c.l.b16 %v952
    %v1009 = vunpack.c.h.b16 %v952
    %v1010 = vunpack.c.l.b16 %v953
    %v1011 = vunpack.c.h.b16 %v953
    %v1012 = vunpack.c.l.b16 %v954
    %v1013 = vunpack.c.h.b16 %v954
    %v1014 = vunpack.c.l.b16 %v955
    %v1015 = vunpack.c.h.b16 %v955
    %v1016 = vunpack.c.l.b16 %v956
    %v1017 = vunpack.c.h.b16 %v956
    %v1018 = vpack.c.b16 %v988, %v986
    %v1019 = vpack.c.b16 %v989, %v987
    %v1020 = vpack.c.b16 %v992, %v990
    %v1021 = vpack.c.b16 %v993, %v991
    %v1022 = vpack.c.b16 %v996, %v994
    %v1023 = vpack.c.b16 %v997, %v995
    %v1024 = vpack.c.b16 %v1000, %v998
    %v1025 = vpack.c.b16 %v1001, %v999
    %v1026 = vpack.c.b16 %v1004, %v1002
    %v1027 = vpack.c.b16 %v1005, %v1003
    %v1028 = vpack.c.b16 %v1008, %v1006
    %v1029 = vpack.c.b16 %v1009, %v1007
    %v1030 = vpack.c.b16 %v1012, %v1010
    %v1031 = vpack.c.b16 %v1013, %v1011
    %v1032 = vpack.c.b16 %v1016, %v1014
    %v1033 = vpack.c.b16 %v1017, %v1015
    %1050 = vmatprep.subr.bf16.mxu0 %v1033
    %1051 = vmatpush1.bf16.msra.mxu0 %v1032
    %1052 = vmatprep.subr.bf16.mxu0 %v1031
    %1053 = vmatpush1.bf16.msra.mxu0 %v1030
    %1054 = vmatprep.subr.bf16.mxu0 %v1029
    %1055 = vmatpush1.bf16.msra.mxu0 %v1028
    %1056 = vmatprep.subr.bf16.mxu0 %v1027
    %1057 = vmatpush1.bf16.msra.mxu0 %v1026
    %1058 = vmatprep.subr.bf16.mxu0 %v1025
    %1059 = vmatpush1.bf16.msra.mxu0 %v1024
    %1060 = vmatprep.subr.bf16.mxu0 %v1023
    %1061 = vmatpush1.bf16.msra.mxu0 %v1022
    %1062 = vmatprep.subr.bf16.mxu0 %v1021
    %1063 = vmatpush1.bf16.msra.mxu0 %v1020
    %1064 = vmatprep.subr.bf16.mxu0 %v1019
    %1065 = vmatpush1.bf16.msra.mxu0 %v1018
    %1066 = vmatprep.subr.bf16.mxu0 0
    %1067 = vmatpush2.bf16.msra.mxu0 0
    %1068 = vmatprep.subr.bf16.mxu0 0
    %1069 = vmatpush2.bf16.msra.mxu0 0
    %1070 = vmatprep.subr.bf16.mxu0 0
    %1071 = vmatpush2.bf16.msra.mxu0 0
    %1072 = vmatprep.subr.bf16.mxu0 0
    %1073 = vmatpush2.bf16.msra.mxu0 0
    %1074 = vmatprep.subr.bf16.mxu0 0
    %1075 = vmatpush2.bf16.msra.mxu0 0
    %1076 = vmatprep.subr.bf16.mxu0 0
    %1077 = vmatpush2.bf16.msra.mxu0 0
    %1078 = vmatprep.subr.bf16.mxu0 0
    %1079 = vmatpush2.bf16.msra.mxu0 0
    %1080 = vmatprep.subr.bf16.mxu0 0
    %1081 = vmatpush2.bf16.msra.mxu0 0
    %1082 = vmatprep.mubr.bf16.mxu0 0
    %1083 = vmatmul.mubr.bf16.gmra.mxu0 %v939
    %v1084 = vpop.f32.mrf.mxu0
    %v1085 = vadd.f32 %v963, %v1084
    %v1086 = vpop.f32.mrf.mxu0
    %v1087 = vadd.f32 %v967, %v1086
    %v1088 = vpop.f32.mrf.mxu0
    %v1089 = vpop.f32.mrf.mxu0
    %1090 = vdwg.mxu0
    %v1091 = vxor.u32 %v1085, 2147483648
    %v1092 = vxor.u32 %v1087, 2147483648
    %v1093 = vmul.f32 %v1091, 1.442695
    %v1094 = vpow.pop %v1093
    %v1095 = vmul.f32 %v1092, 1.442695
    %v1096 = vpow.pop %v1095
    %v1097 = vadd.f32 %v1094, 1.0
    %v1098 = vadd.f32 %v1096, 1.0
    %v1099 = vrcp.pop %v1097
    %v1100 = vmul.f32 1.0, %v1099
    %v1101 = vrcp.pop %v1098
    %v1102 = vmul.f32 1.0, %v1101
    %v1103 = vtanh.pop %v1087
    %v1104 = vmul.f32 %v1100, 0.0
    %1106 = vrot.lane.b32.xlu0 %v1103, 64
    %v1107 = vpop.permute.xlu0 %1106
    %v1109 = vmul.f32 %v1100, %v1107
    %1111 = vrot.lane.b32.xlu0 %v1109, 64
    %v1112 = vpop.permute.xlu0 %1111
    %v1114 = vadd.f32 %v1104, %v1112
    %v1115 = vtanh.pop %v1114
    %1117 = vrot.lane.b32.xlu0 %v1115, 64
    %v1118 = vpop.permute.xlu0 %1117
    %v1120 = vmul.f32 %v1102, %v1118
    %v1121 = vsel %vm102, %v1120, 0.0
    %v1122 = vpack.c.bf16 %v1121, %v1121
    %s1123 = scalar_lea.vmem [#allocation5], 640
    %v1124 = vld [vmem:[%s1123] sm:$0xff]
    %v1125 = vld [vmem:[%s1123 + $0x8] sm:$0xff]
    %v1126 = vld [vmem:[%s1123 + $0x10] sm:$0xff]
    %v1127 = vld [vmem:[%s1123 + $0x18] sm:$0xff]
    %v1128 = vld [vmem:[%s1123 + $0x20] sm:$0xff]
    %v1129 = vld [vmem:[%s1123 + $0x28] sm:$0xff]
    %v1130 = vld [vmem:[%s1123 + $0x30] sm:$0xff]
    %v1131 = vld [vmem:[%s1123 + $0x38] sm:$0xff]
    %v1132 = vld [vmem:[%s1123 + $0x40] sm:$0xff]
    %v1133 = vld [vmem:[%s1123 + $0x48] sm:$0xff]
    %v1134 = vld [vmem:[%s1123 + $0x50] sm:$0xff]
    %v1135 = vld [vmem:[%s1123 + $0x58] sm:$0xff]
    %v1136 = vld [vmem:[%s1123 + $0x60] sm:$0xff]
    %v1137 = vld [vmem:[%s1123 + $0x68] sm:$0xff]
    %v1138 = vld [vmem:[%s1123 + $0x70] sm:$0xff]
    %v1139 = vld [vmem:[%s1123 + $0x78] sm:$0xff]
    %s1140 = scalar_lea.vmem %s3, 12
    %v1141 = vld [vmem:[%s1140] sm:$0x3]
    %v1143 = vlaneseq
    %v1144 = vshrl.u32 %v1143, 7
    %v1145 = vsub.s32 0, %v1144
    %v1146 = vrot.slane %v1141, %v1145
    %v1147 = vlaneseq
    %v1148 = vshrl.u32 %v1147, 7
    %v1149 = vsub.s32 1, %v1148
    %v1150 = vrot.slane %v1141, %v1149
    %v1169 = vunpack.c.l.b16 %v1124
    %v1170 = vunpack.c.h.b16 %v1124
    %v1171 = vunpack.c.l.b16 %v1125
    %v1172 = vunpack.c.h.b16 %v1125
    %v1173 = vunpack.c.l.b16 %v1126
    %v1174 = vunpack.c.h.b16 %v1126
    %v1175 = vunpack.c.l.b16 %v1127
    %v1176 = vunpack.c.h.b16 %v1127
    %v1177 = vunpack.c.l.b16 %v1128
    %v1178 = vunpack.c.h.b16 %v1128
    %v1179 = vunpack.c.l.b16 %v1129
    %v1180 = vunpack.c.h.b16 %v1129
    %v1181 = vunpack.c.l.b16 %v1130
    %v1182 = vunpack.c.h.b16 %v1130
    %v1183 = vunpack.c.l.b16 %v1131
    %v1184 = vunpack.c.h.b16 %v1131
    %v1185 = vunpack.c.l.b16 %v1132
    %v1186 = vunpack.c.h.b16 %v1132
    %v1187 = vunpack.c.l.b16 %v1133
    %v1188 = vunpack.c.h.b16 %v1133
    %v1189 = vunpack.c.l.b16 %v1134
    %v1190 = vunpack.c.h.b16 %v1134
    %v1191 = vunpack.c.l.b16 %v1135
    %v1192 = vunpack.c.h.b16 %v1135
    %v1193 = vunpack.c.l.b16 %v1136
    %v1194 = vunpack.c.h.b16 %v1136
    %v1195 = vunpack.c.l.b16 %v1137
    %v1196 = vunpack.c.h.b16 %v1137
    %v1197 = vunpack.c.l.b16 %v1138
    %v1198 = vunpack.c.h.b16 %v1138
    %v1199 = vunpack.c.l.b16 %v1139
    %v1200 = vunpack.c.h.b16 %v1139
    %v1201 = vpack.c.b16 %v1171, %v1169
    %v1202 = vpack.c.b16 %v1172, %v1170
    %v1203 = vpack.c.b16 %v1175, %v1173
    %v1204 = vpack.c.b16 %v1176, %v1174
    %v1205 = vpack.c.b16 %v1179, %v1177
    %v1206 = vpack.c.b16 %v1180, %v1178
    %v1207 = vpack.c.b16 %v1183, %v1181
    %v1208 = vpack.c.b16 %v1184, %v1182
    %v1209 = vpack.c.b16 %v1187, %v1185
    %v1210 = vpack.c.b16 %v1188, %v1186
    %v1211 = vpack.c.b16 %v1191, %v1189
    %v1212 = vpack.c.b16 %v1192, %v1190
    %v1213 = vpack.c.b16 %v1195, %v1193
    %v1214 = vpack.c.b16 %v1196, %v1194
    %v1215 = vpack.c.b16 %v1199, %v1197
    %v1216 = vpack.c.b16 %v1200, %v1198
    %1233 = vmatprep.subr.bf16.mxu0 %v1216
    %1234 = vmatpush1.bf16.msra.mxu0 %v1215
    %1235 = vmatprep.subr.bf16.mxu0 %v1214
    %1236 = vmatpush1.bf16.msra.mxu0 %v1213
    %1237 = vmatprep.subr.bf16.mxu0 %v1212
    %1238 = vmatpush1.bf16.msra.mxu0 %v1211
    %1239 = vmatprep.subr.bf16.mxu0 %v1210
    %1240 = vmatpush1.bf16.msra.mxu0 %v1209
    %1241 = vmatprep.subr.bf16.mxu0 %v1208
    %1242 = vmatpush1.bf16.msra.mxu0 %v1207
    %1243 = vmatprep.subr.bf16.mxu0 %v1206
    %1244 = vmatpush1.bf16.msra.mxu0 %v1205
    %1245 = vmatprep.subr.bf16.mxu0 %v1204
    %1246 = vmatpush1.bf16.msra.mxu0 %v1203
    %1247 = vmatprep.subr.bf16.mxu0 %v1202
    %1248 = vmatpush1.bf16.msra.mxu0 %v1201
    %1249 = vmatprep.subr.bf16.mxu0 0
    %1250 = vmatpush2.bf16.msra.mxu0 0
    %1251 = vmatprep.subr.bf16.mxu0 0
    %1252 = vmatpush2.bf16.msra.mxu0 0
    %1253 = vmatprep.subr.bf16.mxu0 0
    %1254 = vmatpush2.bf16.msra.mxu0 0
    %1255 = vmatprep.subr.bf16.mxu0 0
    %1256 = vmatpush2.bf16.msra.mxu0 0
    %1257 = vmatprep.subr.bf16.mxu0 0
    %1258 = vmatpush2.bf16.msra.mxu0 0
    %1259 = vmatprep.subr.bf16.mxu0 0
    %1260 = vmatpush2.bf16.msra.mxu0 0
    %1261 = vmatprep.subr.bf16.mxu0 0
    %1262 = vmatpush2.bf16.msra.mxu0 0
    %1263 = vmatprep.subr.bf16.mxu0 0
    %1264 = vmatpush2.bf16.msra.mxu0 0
    %1265 = vmatprep.mubr.bf16.mxu0 0
    %1266 = vmatmul.mubr.bf16.gmra.mxu0 %v1122
    %v1267 = vpop.f32.mrf.mxu0
    %v1268 = vadd.f32 %v1146, %v1267
    %v1269 = vpop.f32.mrf.mxu0
    %v1270 = vadd.f32 %v1150, %v1269
    %v1271 = vpop.f32.mrf.mxu0
    %v1272 = vpop.f32.mrf.mxu0
    %1273 = vdwg.mxu0
    %v1274 = vxor.u32 %v1268, 2147483648
    %v1275 = vxor.u32 %v1270, 2147483648
    %v1276 = vmul.f32 %v1274, 1.442695
    %v1277 = vpow.pop %v1276
    %v1278 = vmul.f32 %v1275, 1.442695
    %v1279 = vpow.pop %v1278
    %v1280 = vadd.f32 %v1277, 1.0
    %v1281 = vadd.f32 %v1279, 1.0
    %v1282 = vrcp.pop %v1280
    %v1283 = vmul.f32 1.0, %v1282
    %v1284 = vrcp.pop %v1281
    %v1285 = vmul.f32 1.0, %v1284
    %v1286 = vtanh.pop %v1270
    %v1287 = vmul.f32 %v1283, 0.0
    %1289 = vrot.lane.b32.xlu0 %v1286, 64
    %v1290 = vpop.permute.xlu0 %1289
    %v1292 = vmul.f32 %v1283, %v1290
    %1294 = vrot.lane.b32.xlu0 %v1292, 64
    %v1295 = vpop.permute.xlu0 %1294
    %v1297 = vadd.f32 %v1287, %v1295
    %v1298 = vtanh.pop %v1297
    %1300 = vrot.lane.b32.xlu0 %v1298, 64
    %v1301 = vpop.permute.xlu0 %1300
    %v1303 = vmul.f32 %v1285, %v1301
    %v1304 = vsel %vm102, %v1303, 0.0
    %v1305 = vpack.c.bf16 %v1304, %v1304
    %s1306 = scalar_lea.vmem [#allocation5], 768
    %v1307 = vld [vmem:[%s1306] sm:$0xff]
    %v1308 = vld [vmem:[%s1306 + $0x8] sm:$0xff]
    %v1309 = vld [vmem:[%s1306 + $0x10] sm:$0xff]
    %v1310 = vld [vmem:[%s1306 + $0x18] sm:$0xff]
    %v1311 = vld [vmem:[%s1306 + $0x20] sm:$0xff]
    %v1312 = vld [vmem:[%s1306 + $0x28] sm:$0xff]
    %v1313 = vld [vmem:[%s1306 + $0x30] sm:$0xff]
    %v1314 = vld [vmem:[%s1306 + $0x38] sm:$0xff]
    %v1315 = vld [vmem:[%s1306 + $0x40] sm:$0xff]
    %v1316 = vld [vmem:[%s1306 + $0x48] sm:$0xff]
    %v1317 = vld [vmem:[%s1306 + $0x50] sm:$0xff]
    %v1318 = vld [vmem:[%s1306 + $0x58] sm:$0xff]
    %v1319 = vld [vmem:[%s1306 + $0x60] sm:$0xff]
    %v1320 = vld [vmem:[%s1306 + $0x68] sm:$0xff]
    %v1321 = vld [vmem:[%s1306 + $0x70] sm:$0xff]
    %v1322 = vld [vmem:[%s1306 + $0x78] sm:$0xff]
    %s1323 = scalar_lea.vmem %s3, 14
    %v1324 = vld [vmem:[%s1323] sm:$0x3]
    %v1326 = vlaneseq
    %v1327 = vshrl.u32 %v1326, 7
    %v1328 = vsub.s32 0, %v1327
    %v1329 = vrot.slane %v1324, %v1328
    %v1330 = vlaneseq
    %v1331 = vshrl.u32 %v1330, 7
    %v1332 = vsub.s32 1, %v1331
    %v1333 = vrot.slane %v1324, %v1332
    %v1352 = vunpack.c.l.b16 %v1307
    %v1353 = vunpack.c.h.b16 %v1307
    %v1354 = vunpack.c.l.b16 %v1308
    %v1355 = vunpack.c.h.b16 %v1308
    %v1356 = vunpack.c.l.b16 %v1309
    %v1357 = vunpack.c.h.b16 %v1309
    %v1358 = vunpack.c.l.b16 %v1310
    %v1359 = vunpack.c.h.b16 %v1310
    %v1360 = vunpack.c.l.b16 %v1311
    %v1361 = vunpack.c.h.b16 %v1311
    %v1362 = vunpack.c.l.b16 %v1312
    %v1363 = vunpack.c.h.b16 %v1312
    %v1364 = vunpack.c.l.b16 %v1313
    %v1365 = vunpack.c.h.b16 %v1313
    %v1366 = vunpack.c.l.b16 %v1314
    %v1367 = vunpack.c.h.b16 %v1314
    %v1368 = vunpack.c.l.b16 %v1315
    %v1369 = vunpack.c.h.b16 %v1315
    %v1370 = vunpack.c.l.b16 %v1316
    %v1371 = vunpack.c.h.b16 %v1316
    %v1372 = vunpack.c.l.b16 %v1317
    %v1373 = vunpack.c.h.b16 %v1317
    %v1374 = vunpack.c.l.b16 %v1318
    %v1375 = vunpack.c.h.b16 %v1318
    %v1376 = vunpack.c.l.b16 %v1319
    %v1377 = vunpack.c.h.b16 %v1319
    %v1378 = vunpack.c.l.b16 %v1320
    %v1379 = vunpack.c.h.b16 %v1320
    %v1380 = vunpack.c.l.b16 %v1321
    %v1381 = vunpack.c.h.b16 %v1321
    %v1382 = vunpack.c.l.b16 %v1322
    %v1383 = vunpack.c.h.b16 %v1322
    %v1384 = vpack.c.b16 %v1354, %v1352
    %v1385 = vpack.c.b16 %v1355, %v1353
    %v1386 = vpack.c.b16 %v1358, %v1356
    %v1387 = vpack.c.b16 %v1359, %v1357
    %v1388 = vpack.c.b16 %v1362, %v1360
    %v1389 = vpack.c.b16 %v1363, %v1361
    %v1390 = vpack.c.b16 %v1366, %v1364
    %v1391 = vpack.c.b16 %v1367, %v1365
    %v1392 = vpack.c.b16 %v1370, %v1368
    %v1393 = vpack.c.b16 %v1371, %v1369
    %v1394 = vpack.c.b16 %v1374, %v1372
    %v1395 = vpack.c.b16 %v1375, %v1373
    %v1396 = vpack.c.b16 %v1378, %v1376
    %v1397 = vpack.c.b16 %v1379, %v1377
    %v1398 = vpack.c.b16 %v1382, %v1380
    %v1399 = vpack.c.b16 %v1383, %v1381
    %1416 = vmatprep.subr.bf16.mxu0 %v1399
    %1417 = vmatpush1.bf16.msra.mxu0 %v1398
    %1418 = vmatprep.subr.bf16.mxu0 %v1397
    %1419 = vmatpush1.bf16.msra.mxu0 %v1396
    %1420 = vmatprep.subr.bf16.mxu0 %v1395
    %1421 = vmatpush1.bf16.msra.mxu0 %v1394
    %1422 = vmatprep.subr.bf16.mxu0 %v1393
    %1423 = vmatpush1.bf16.msra.mxu0 %v1392
    %1424 = vmatprep.subr.bf16.mxu0 %v1391
    %1425 = vmatpush1.bf16.msra.mxu0 %v1390
    %1426 = vmatprep.subr.bf16.mxu0 %v1389
    %1427 = vmatpush1.bf16.msra.mxu0 %v1388
    %1428 = vmatprep.subr.bf16.mxu0 %v1387
    %1429 = vmatpush1.bf16.msra.mxu0 %v1386
    %1430 = vmatprep.subr.bf16.mxu0 %v1385
    %1431 = vmatpush1.bf16.msra.mxu0 %v1384
    %1432 = vmatprep.subr.bf16.mxu0 0
    %1433 = vmatpush2.bf16.msra.mxu0 0
    %1434 = vmatprep.subr.bf16.mxu0 0
    %1435 = vmatpush2.bf16.msra.mxu0 0
    %1436 = vmatprep.subr.bf16.mxu0 0
    %1437 = vmatpush2.bf16.msra.mxu0 0
    %1438 = vmatprep.subr.bf16.mxu0 0
    %1439 = vmatpush2.bf16.msra.mxu0 0
    %1440 = vmatprep.subr.bf16.mxu0 0
    %1441 = vmatpush2.bf16.msra.mxu0 0
    %1442 = vmatprep.subr.bf16.mxu0 0
    %1443 = vmatpush2.bf16.msra.mxu0 0
    %1444 = vmatprep.subr.bf16.mxu0 0
    %1445 = vmatpush2.bf16.msra.mxu0 0
    %1446 = vmatprep.subr.bf16.mxu0 0
    %1447 = vmatpush2.bf16.msra.mxu0 0
    %1448 = vmatprep.mubr.bf16.mxu0 0
    %1449 = vmatmul.mubr.bf16.gmra.mxu0 %v1305
    %v1450 = vpop.f32.mrf.mxu0
    %v1451 = vadd.f32 %v1329, %v1450
    %v1452 = vpop.f32.mrf.mxu0
    %v1453 = vadd.f32 %v1333, %v1452
    %v1454 = vpop.f32.mrf.mxu0
    %v1455 = vpop.f32.mrf.mxu0
    %1456 = vdwg.mxu0
    %v1457 = vxor.u32 %v1451, 2147483648
    %v1458 = vxor.u32 %v1453, 2147483648
    %v1459 = vmul.f32 %v1457, 1.442695
    %v1460 = vpow.pop %v1459
    %v1461 = vmul.f32 %v1458, 1.442695
    %v1462 = vpow.pop %v1461
    %v1463 = vadd.f32 %v1460, 1.0
    %v1464 = vadd.f32 %v1462, 1.0
    %v1465 = vrcp.pop %v1463
    %v1466 = vmul.f32 1.0, %v1465
    %v1467 = vrcp.pop %v1464
    %v1468 = vmul.f32 1.0, %v1467
    %v1469 = vtanh.pop %v1453
    %v1470 = vmul.f32 %v1466, 0.0
    %1472 = vrot.lane.b32.xlu0 %v1469, 64
    %v1473 = vpop.permute.xlu0 %1472
    %v1475 = vmul.f32 %v1466, %v1473
    %1477 = vrot.lane.b32.xlu0 %v1475, 64
    %v1478 = vpop.permute.xlu0 %1477
    %v1480 = vadd.f32 %v1470, %v1478
    %v1481 = vtanh.pop %v1480
    %1483 = vrot.lane.b32.xlu0 %v1481, 64
    %v1484 = vpop.permute.xlu0 %1483
    %v1486 = vmul.f32 %v1468, %v1484
    %v1487 = vsel %vm102, %v1486, 0.0
    %v1488 = vpack.c.bf16 %v1487, %v1487
    %s1489 = scalar_lea.vmem [#allocation5], 896
    %v1490 = vld [vmem:[%s1489] sm:$0xff]
    %v1491 = vld [vmem:[%s1489 + $0x8] sm:$0xff]
    %v1492 = vld [vmem:[%s1489 + $0x10] sm:$0xff]
    %v1493 = vld [vmem:[%s1489 + $0x18] sm:$0xff]
    %v1494 = vld [vmem:[%s1489 + $0x20] sm:$0xff]
    %v1495 = vld [vmem:[%s1489 + $0x28] sm:$0xff]
    %v1496 = vld [vmem:[%s1489 + $0x30] sm:$0xff]
    %v1497 = vld [vmem:[%s1489 + $0x38] sm:$0xff]
    %v1498 = vld [vmem:[%s1489 + $0x40] sm:$0xff]
    %v1499 = vld [vmem:[%s1489 + $0x48] sm:$0xff]
    %v1500 = vld [vmem:[%s1489 + $0x50] sm:$0xff]
    %v1501 = vld [vmem:[%s1489 + $0x58] sm:$0xff]
    %v1502 = vld [vmem:[%s1489 + $0x60] sm:$0xff]
    %v1503 = vld [vmem:[%s1489 + $0x68] sm:$0xff]
    %v1504 = vld [vmem:[%s1489 + $0x70] sm:$0xff]
    %v1505 = vld [vmem:[%s1489 + $0x78] sm:$0xff]
    %s1506 = scalar_lea.vmem %s3, 16
    %v1507 = vld [vmem:[%s1506] sm:$0x3]
    %v1509 = vlaneseq
    %v1510 = vshrl.u32 %v1509, 7
    %v1511 = vsub.s32 0, %v1510
    %v1512 = vrot.slane %v1507, %v1511
    %v1513 = vlaneseq
    %v1514 = vshrl.u32 %v1513, 7
    %v1515 = vsub.s32 1, %v1514
    %v1516 = vrot.slane %v1507, %v1515
    %v1535 = vunpack.c.l.b16 %v1490
    %v1536 = vunpack.c.h.b16 %v1490
    %v1537 = vunpack.c.l.b16 %v1491
    %v1538 = vunpack.c.h.b16 %v1491
    %v1539 = vunpack.c.l.b16 %v1492
    %v1540 = vunpack.c.h.b16 %v1492
    %v1541 = vunpack.c.l.b16 %v1493
    %v1542 = vunpack.c.h.b16 %v1493
    %v1543 = vunpack.c.l.b16 %v1494
    %v1544 = vunpack.c.h.b16 %v1494
    %v1545 = vunpack.c.l.b16 %v1495
    %v1546 = vunpack.c.h.b16 %v1495
    %v1547 = vunpack.c.l.b16 %v1496
    %v1548 = vunpack.c.h.b16 %v1496
    %v1549 = vunpack.c.l.b16 %v1497
    %v1550 = vunpack.c.h.b16 %v1497
    %v1551 = vunpack.c.l.b16 %v1498
    %v1552 = vunpack.c.h.b16 %v1498
    %v1553 = vunpack.c.l.b16 %v1499
    %v1554 = vunpack.c.h.b16 %v1499
    %v1555 = vunpack.c.l.b16 %v1500
    %v1556 = vunpack.c.h.b16 %v1500
    %v1557 = vunpack.c.l.b16 %v1501
    %v1558 = vunpack.c.h.b16 %v1501
    %v1559 = vunpack.c.l.b16 %v1502
    %v1560 = vunpack.c.h.b16 %v1502
    %v1561 = vunpack.c.l.b16 %v1503
    %v1562 = vunpack.c.h.b16 %v1503
    %v1563 = vunpack.c.l.b16 %v1504
    %v1564 = vunpack.c.h.b16 %v1504
    %v1565 = vunpack.c.l.b16 %v1505
    %v1566 = vunpack.c.h.b16 %v1505
    %v1567 = vpack.c.b16 %v1537, %v1535
    %v1568 = vpack.c.b16 %v1538, %v1536
    %v1569 = vpack.c.b16 %v1541, %v1539
    %v1570 = vpack.c.b16 %v1542, %v1540
    %v1571 = vpack.c.b16 %v1545, %v1543
    %v1572 = vpack.c.b16 %v1546, %v1544
    %v1573 = vpack.c.b16 %v1549, %v1547
    %v1574 = vpack.c.b16 %v1550, %v1548
    %v1575 = vpack.c.b16 %v1553, %v1551
    %v1576 = vpack.c.b16 %v1554, %v1552
    %v1577 = vpack.c.b16 %v1557, %v1555
    %v1578 = vpack.c.b16 %v1558, %v1556
    %v1579 = vpack.c.b16 %v1561, %v1559
    %v1580 = vpack.c.b16 %v1562, %v1560
    %v1581 = vpack.c.b16 %v1565, %v1563
    %v1582 = vpack.c.b16 %v1566, %v1564
    %1599 = vmatprep.subr.bf16.mxu0 %v1582
    %1600 = vmatpush1.bf16.msra.mxu0 %v1581
    %1601 = vmatprep.subr.bf16.mxu0 %v1580
    %1602 = vmatpush1.bf16.msra.mxu0 %v1579
    %1603 = vmatprep.subr.bf16.mxu0 %v1578
    %1604 = vmatpush1.bf16.msra.mxu0 %v1577
    %1605 = vmatprep.subr.bf16.mxu0 %v1576
    %1606 = vmatpush1.bf16.msra.mxu0 %v1575
    %1607 = vmatprep.subr.bf16.mxu0 %v1574
    %1608 = vmatpush1.bf16.msra.mxu0 %v1573
    %1609 = vmatprep.subr.bf16.mxu0 %v1572
    %1610 = vmatpush1.bf16.msra.mxu0 %v1571
    %1611 = vmatprep.subr.bf16.mxu0 %v1570
    %1612 = vmatpush1.bf16.msra.mxu0 %v1569
    %1613 = vmatprep.subr.bf16.mxu0 %v1568
    %1614 = vmatpush1.bf16.msra.mxu0 %v1567
    %1615 = vmatprep.subr.bf16.mxu0 0
    %1616 = vmatpush2.bf16.msra.mxu0 0
    %1617 = vmatprep.subr.bf16.mxu0 0
    %1618 = vmatpush2.bf16.msra.mxu0 0
    %1619 = vmatprep.subr.bf16.mxu0 0
    %1620 = vmatpush2.bf16.msra.mxu0 0
    %1621 = vmatprep.subr.bf16.mxu0 0
    %1622 = vmatpush2.bf16.msra.mxu0 0
    %1623 = vmatprep.subr.bf16.mxu0 0
    %1624 = vmatpush2.bf16.msra.mxu0 0
    %1625 = vmatprep.subr.bf16.mxu0 0
    %1626 = vmatpush2.bf16.msra.mxu0 0
    %1627 = vmatprep.subr.bf16.mxu0 0
    %1628 = vmatpush2.bf16.msra.mxu0 0
    %1629 = vmatprep.subr.bf16.mxu0 0
    %1630 = vmatpush2.bf16.msra.mxu0 0
    %1631 = vmatprep.mubr.bf16.mxu0 0
    %1632 = vmatmul.mubr.bf16.gmra.mxu0 %v1488
    %v1633 = vpop.f32.mrf.mxu0
    %v1634 = vadd.f32 %v1512, %v1633
    %v1635 = vpop.f32.mrf.mxu0
    %v1636 = vadd.f32 %v1516, %v1635
    %v1637 = vpop.f32.mrf.mxu0
    %v1638 = vpop.f32.mrf.mxu0
    %1639 = vdwg.mxu0
    %v1640 = vxor.u32 %v1634, 2147483648
    %v1641 = vxor.u32 %v1636, 2147483648
    %v1642 = vmul.f32 %v1640, 1.442695
    %v1643 = vpow.pop %v1642
    %v1644 = vmul.f32 %v1641, 1.442695
    %v1645 = vpow.pop %v1644
    %v1646 = vadd.f32 %v1643, 1.0
    %v1647 = vadd.f32 %v1645, 1.0
    %v1648 = vrcp.pop %v1646
    %v1649 = vmul.f32 1.0, %v1648
    %v1650 = vrcp.pop %v1647
    %v1651 = vmul.f32 1.0, %v1650
    %v1652 = vtanh.pop %v1636
    %v1653 = vmul.f32 %v1649, 0.0
    %1655 = vrot.lane.b32.xlu0 %v1652, 64
    %v1656 = vpop.permute.xlu0 %1655
    %v1658 = vmul.f32 %v1649, %v1656
    %1660 = vrot.lane.b32.xlu0 %v1658, 64
    %v1661 = vpop.permute.xlu0 %1660
    %v1663 = vadd.f32 %v1653, %v1661
    %v1664 = vtanh.pop %v1663
    %1666 = vrot.lane.b32.xlu0 %v1664, 64
    %v1667 = vpop.permute.xlu0 %1666
    %v1669 = vmul.f32 %v1651, %v1667
    %v1670 = vsel %vm102, %v1669, 0.0
    %v1671 = vpack.c.bf16 %v1670, %v1670
    %s1672 = scalar_lea.vmem [#allocation5], 1024
    %v1673 = vld [vmem:[%s1672] sm:$0xff]
    %v1674 = vld [vmem:[%s1672 + $0x8] sm:$0xff]
    %v1675 = vld [vmem:[%s1672 + $0x10] sm:$0xff]
    %v1676 = vld [vmem:[%s1672 + $0x18] sm:$0xff]
    %v1677 = vld [vmem:[%s1672 + $0x20] sm:$0xff]
    %v1678 = vld [vmem:[%s1672 + $0x28] sm:$0xff]
    %v1679 = vld [vmem:[%s1672 + $0x30] sm:$0xff]
    %v1680 = vld [vmem:[%s1672 + $0x38] sm:$0xff]
    %v1681 = vld [vmem:[%s1672 + $0x40] sm:$0xff]
    %v1682 = vld [vmem:[%s1672 + $0x48] sm:$0xff]
    %v1683 = vld [vmem:[%s1672 + $0x50] sm:$0xff]
    %v1684 = vld [vmem:[%s1672 + $0x58] sm:$0xff]
    %v1685 = vld [vmem:[%s1672 + $0x60] sm:$0xff]
    %v1686 = vld [vmem:[%s1672 + $0x68] sm:$0xff]
    %v1687 = vld [vmem:[%s1672 + $0x70] sm:$0xff]
    %v1688 = vld [vmem:[%s1672 + $0x78] sm:$0xff]
    %s1689 = scalar_lea.vmem %s3, 18
    %v1690 = vld [vmem:[%s1689] sm:$0x3]
    %v1692 = vlaneseq
    %v1693 = vshrl.u32 %v1692, 7
    %v1694 = vsub.s32 0, %v1693
    %v1695 = vrot.slane %v1690, %v1694
    %v1696 = vlaneseq
    %v1697 = vshrl.u32 %v1696, 7
    %v1698 = vsub.s32 1, %v1697
    %v1699 = vrot.slane %v1690, %v1698
    %v1718 = vunpack.c.l.b16 %v1673
    %v1719 = vunpack.c.h.b16 %v1673
    %v1720 = vunpack.c.l.b16 %v1674
    %v1721 = vunpack.c.h.b16 %v1674
    %v1722 = vunpack.c.l.b16 %v1675
    %v1723 = vunpack.c.h.b16 %v1675
    %v1724 = vunpack.c.l.b16 %v1676
    %v1725 = vunpack.c.h.b16 %v1676
    %v1726 = vunpack.c.l.b16 %v1677
    %v1727 = vunpack.c.h.b16 %v1677
    %v1728 = vunpack.c.l.b16 %v1678
    %v1729 = vunpack.c.h.b16 %v1678
    %v1730 = vunpack.c.l.b16 %v1679
    %v1731 = vunpack.c.h.b16 %v1679
    %v1732 = vunpack.c.l.b16 %v1680
    %v1733 = vunpack.c.h.b16 %v1680
    %v1734 = vunpack.c.l.b16 %v1681
    %v1735 = vunpack.c.h.b16 %v1681
    %v1736 = vunpack.c.l.b16 %v1682
    %v1737 = vunpack.c.h.b16 %v1682
    %v1738 = vunpack.c.l.b16 %v1683
    %v1739 = vunpack.c.h.b16 %v1683
    %v1740 = vunpack.c.l.b16 %v1684
    %v1741 = vunpack.c.h.b16 %v1684
    %v1742 = vunpack.c.l.b16 %v1685
    %v1743 = vunpack.c.h.b16 %v1685
    %v1744 = vunpack.c.l.b16 %v1686
    %v1745 = vunpack.c.h.b16 %v1686
    %v1746 = vunpack.c.l.b16 %v1687
    %v1747 = vunpack.c.h.b16 %v1687
    %v1748 = vunpack.c.l.b16 %v1688
    %v1749 = vunpack.c.h.b16 %v1688
    %v1750 = vpack.c.b16 %v1720, %v1718
    %v1751 = vpack.c.b16 %v1721, %v1719
    %v1752 = vpack.c.b16 %v1724, %v1722
    %v1753 = vpack.c.b16 %v1725, %v1723
    %v1754 = vpack.c.b16 %v1728, %v1726
    %v1755 = vpack.c.b16 %v1729, %v1727
    %v1756 = vpack.c.b16 %v1732, %v1730
    %v1757 = vpack.c.b16 %v1733, %v1731
    %v1758 = vpack.c.b16 %v1736, %v1734
    %v1759 = vpack.c.b16 %v1737, %v1735
    %v1760 = vpack.c.b16 %v1740, %v1738
    %v1761 = vpack.c.b16 %v1741, %v1739
    %v1762 = vpack.c.b16 %v1744, %v1742
    %v1763 = vpack.c.b16 %v1745, %v1743
    %v1764 = vpack.c.b16 %v1748, %v1746
    %v1765 = vpack.c.b16 %v1749, %v1747
    %1782 = vmatprep.subr.bf16.mxu0 %v1765
    %1783 = vmatpush1.bf16.msra.mxu0 %v1764
    %1784 = vmatprep.subr.bf16.mxu0 %v1763
    %1785 = vmatpush1.bf16.msra.mxu0 %v1762
    %1786 = vmatprep.subr.bf16.mxu0 %v1761
    %1787 = vmatpush1.bf16.msra.mxu0 %v1760
    %1788 = vmatprep.subr.bf16.mxu0 %v1759
    %1789 = vmatpush1.bf16.msra.mxu0 %v1758
    %1790 = vmatprep.subr.bf16.mxu0 %v1757
    %1791 = vmatpush1.bf16.msra.mxu0 %v1756
    %1792 = vmatprep.subr.bf16.mxu0 %v1755
    %1793 = vmatpush1.bf16.msra.mxu0 %v1754
    %1794 = vmatprep.subr.bf16.mxu0 %v1753
    %1795 = vmatpush1.bf16.msra.mxu0 %v1752
    %1796 = vmatprep.subr.bf16.mxu0 %v1751
    %1797 = vmatpush1.bf16.msra.mxu0 %v1750
    %1798 = vmatprep.subr.bf16.mxu0 0
    %1799 = vmatpush2.bf16.msra.mxu0 0
    %1800 = vmatprep.subr.bf16.mxu0 0
    %1801 = vmatpush2.bf16.msra.mxu0 0
    %1802 = vmatprep.subr.bf16.mxu0 0
    %1803 = vmatpush2.bf16.msra.mxu0 0
    %1804 = vmatprep.subr.bf16.mxu0 0
    %1805 = vmatpush2.bf16.msra.mxu0 0
    %1806 = vmatprep.subr.bf16.mxu0 0
    %1807 = vmatpush2.bf16.msra.mxu0 0
    %1808 = vmatprep.subr.bf16.mxu0 0
    %1809 = vmatpush2.bf16.msra.mxu0 0
    %1810 = vmatprep.subr.bf16.mxu0 0
    %1811 = vmatpush2.bf16.msra.mxu0 0
    %1812 = vmatprep.subr.bf16.mxu0 0
    %1813 = vmatpush2.bf16.msra.mxu0 0
    %1814 = vmatprep.mubr.bf16.mxu0 0
    %1815 = vmatmul.mubr.bf16.gmra.mxu0 %v1671
    %v1816 = vpop.f32.mrf.mxu0
    %v1817 = vadd.f32 %v1695, %v1816
    %v1818 = vpop.f32.mrf.mxu0
    %v1819 = vadd.f32 %v1699, %v1818
    %v1820 = vpop.f32.mrf.mxu0
    %v1821 = vpop.f32.mrf.mxu0
    %1822 = vdwg.mxu0
    %v1823 = vxor.u32 %v1817, 2147483648
    %v1824 = vxor.u32 %v1819, 2147483648
    %v1825 = vmul.f32 %v1823, 1.442695
    %v1826 = vpow.pop %v1825
    %v1827 = vmul.f32 %v1824, 1.442695
    %v1828 = vpow.pop %v1827
    %v1829 = vadd.f32 %v1826, 1.0
    %v1830 = vadd.f32 %v1828, 1.0
    %v1831 = vrcp.pop %v1829
    %v1832 = vmul.f32 1.0, %v1831
    %v1833 = vrcp.pop %v1830
    %v1834 = vmul.f32 1.0, %v1833
    %v1835 = vtanh.pop %v1819
    %v1836 = vmul.f32 %v1832, 0.0
    %1838 = vrot.lane.b32.xlu0 %v1835, 64
    %v1839 = vpop.permute.xlu0 %1838
    %v1841 = vmul.f32 %v1832, %v1839
    %1843 = vrot.lane.b32.xlu0 %v1841, 64
    %v1844 = vpop.permute.xlu0 %1843
    %v1846 = vadd.f32 %v1836, %v1844
    %v1847 = vtanh.pop %v1846
    %1849 = vrot.lane.b32.xlu0 %v1847, 64
    %v1850 = vpop.permute.xlu0 %1849
    %v1852 = vmul.f32 %v1834, %v1850
    %s1853 = scalar_lea.vmem [#allocation2], 4
    %v1854 = vld [vmem:[%s1853] sm:$0xf]
    %v1855 = vpack.c.bf16 %v206, %v206
    %v1857 = vsel %vm102, %v1855, 0
    %1859 = vmatprep.subr.bf16.mxu0 0
    %1860 = vmatpush1.bf16.msra.mxu0 0
    %1861 = vmatprep.subr.bf16.mxu0 0
    %1862 = vmatpush1.bf16.msra.mxu0 0
    %1863 = vmatprep.subr.bf16.mxu0 0
    %1864 = vmatpush1.bf16.msra.mxu0 0
    %1865 = vmatprep.subr.bf16.mxu0 0
    %1866 = vmatpush1.bf16.msra.mxu0 0
    %1867 = vmatprep.subr.bf16.mxu0 %v93
    %1868 = vmatpush1.bf16.msra.mxu0 %v92
    %1869 = vmatprep.subr.bf16.mxu0 %v91
    %1870 = vmatpush1.bf16.msra.mxu0 %v90
    %1871 = vmatprep.subr.bf16.mxu0 %v89
    %1872 = vmatpush1.bf16.msra.mxu0 %v88
    %1873 = vmatprep.subr.bf16.mxu0 %v87
    %1874 = vmatpush1.bf16.msra.mxu0 %v86
    %1875 = vmatprep.subr.bf16.mxu0 0
    %1876 = vmatpush2.bf16.msra.mxu0 0
    %1877 = vmatprep.subr.bf16.mxu0 0
    %1878 = vmatpush2.bf16.msra.mxu0 0
    %1879 = vmatprep.subr.bf16.mxu0 0
    %1880 = vmatpush2.bf16.msra.mxu0 0
    %1881 = vmatprep.subr.bf16.mxu0 0
    %1882 = vmatpush2.bf16.msra.mxu0 0
    %1883 = vmatprep.subr.bf16.mxu0 0
    %1884 = vmatpush2.bf16.msra.mxu0 0
    %1885 = vmatprep.subr.bf16.mxu0 0
    %1886 = vmatpush2.bf16.msra.mxu0 0
    %1887 = vmatprep.subr.bf16.mxu0 0
    %1888 = vmatpush2.bf16.msra.mxu0 0
    %1889 = vmatprep.subr.bf16.mxu0 0
    %1890 = vmatpush2.bf16.msra.mxu0 0
    %1891 = vmatprep.mubr.bf16.mxu0 0
    %1892 = vmatmul.mubr.bf16.gmra.mxu0 %v1857
    %v1893 = vpop.f32.mrf.mxu0
    %v1894 = vadd.f32 0.0, %v1893
    %v1895 = vpop.f32.mrf.mxu0
    %v1896 = vadd.f32 0.0, %v1895
    %v1897 = vpop.f32.mrf.mxu0
    %v1898 = vpop.f32.mrf.mxu0
    %1899 = vdwg.mxu0
    %v1902 = vcombine.low %v1894, %v1896
    %v1904 = vunpack.c.l.s4 1983009808
    %v1905 = vunpack.c.0.s8 %v1904
    %v1906 = vlaneseq
    %v1907 = vshrl.u32 %v1906, 7
    %v1908 = vsub.s32 %v1905, %v1907
    %v1909 = vrot.slane %v1902, %v1908
    %v1911 = vadd.f32 %v1854, %v1909
    %v1912 = vadd.f32 %v1911, %v176
    %v1913 = vxor.u32 %v1912, 2147483648
    %v1914 = vmul.f32 %v1913, 1.442695
    %v1915 = vpow.pop %v1914
    %v1916 = vadd.f32 %v1915, 1.0
    %v1917 = vrcp.pop %v1916
    %v1918 = vmul.f32 1.0, %v1917
    %1920 = vrot.lane.b32.xlu0 %v1912, 64
    %v1921 = vpop.permute.xlu0 %1920
    %v1922 = vrot.slane %v1921, 2
    %v1924 = vtanh.pop %v1922
    %v1925 = vmul.f32 %v1918, %v197
    %v1926 = vmul.f32 %v1918, %v1924
    %1928 = vrot.lane.b32.xlu0 %v1926, 64
    %v1929 = vpop.permute.xlu0 %1928
    %v1931 = vadd.f32 %v1925, %v1929
    %v1932 = vtanh.pop %v1931
    %v1934 = vrot.slane %v1918, 2
    %1937 = vrot.lane.b32.xlu0 %v1932, 64
    %v1938 = vpop.permute.xlu0 %1937
    %v1940 = vmul.f32 %v1934, %v1938
    %1942 = vrot.lane.b32.xlu0 %v388, 64
    %v1943 = vpop.permute.xlu0 %1942
    %v1945 = vsel %vm102, %v1940, %v1943
    %v1946 = vpack.c.bf16 %v1945, %v1945
    %1947 = vmatprep.subr.bf16.mxu0 %v301
    %1948 = vmatpush1.bf16.msra.mxu0 %v300
    %1949 = vmatprep.subr.bf16.mxu0 %v299
    %1950 = vmatpush1.bf16.msra.mxu0 %v298
    %1951 = vmatprep.subr.bf16.mxu0 %v297
    %1952 = vmatpush1.bf16.msra.mxu0 %v296
    %1953 = vmatprep.subr.bf16.mxu0 %v295
    %1954 = vmatpush1.bf16.msra.mxu0 %v294
    %1955 = vmatprep.subr.bf16.mxu0 %v293
    %1956 = vmatpush1.bf16.msra.mxu0 %v292
    %1957 = vmatprep.subr.bf16.mxu0 %v291
    %1958 = vmatpush1.bf16.msra.mxu0 %v290
    %1959 = vmatprep.subr.bf16.mxu0 %v289
    %1960 = vmatpush1.bf16.msra.mxu0 %v288
    %1961 = vmatprep.subr.bf16.mxu0 %v287
    %1962 = vmatpush1.bf16.msra.mxu0 %v286
    %1963 = vmatprep.subr.bf16.mxu0 0
    %1964 = vmatpush2.bf16.msra.mxu0 0
    %1965 = vmatprep.subr.bf16.mxu0 0
    %1966 = vmatpush2.bf16.msra.mxu0 0
    %1967 = vmatprep.subr.bf16.mxu0 0
    %1968 = vmatpush2.bf16.msra.mxu0 0
    %1969 = vmatprep.subr.bf16.mxu0 0
    %1970 = vmatpush2.bf16.msra.mxu0 0
    %1971 = vmatprep.subr.bf16.mxu0 0
    %1972 = vmatpush2.bf16.msra.mxu0 0
    %1973 = vmatprep.subr.bf16.mxu0 0
    %1974 = vmatpush2.bf16.msra.mxu0 0
    %1975 = vmatprep.subr.bf16.mxu0 0
    %1976 = vmatpush2.bf16.msra.mxu0 0
    %1977 = vmatprep.subr.bf16.mxu0 0
    %1978 = vmatpush2.bf16.msra.mxu0 0
    %1979 = vmatprep.mubr.bf16.mxu0 0
    %1980 = vmatmul.mubr.bf16.gmra.mxu0 %v1946
    %v1981 = vpop.f32.mrf.mxu0
    %v1982 = vadd.f32 %v231, %v1981
    %v1983 = vpop.f32.mrf.mxu0
    %v1984 = vadd.f32 %v235, %v1983
    %v1985 = vpop.f32.mrf.mxu0
    %v1986 = vpop.f32.mrf.mxu0
    %1987 = vdwg.mxu0
    %v1988 = vxor.u32 %v1982, 2147483648
    %v1989 = vxor.u32 %v1984, 2147483648
    %v1990 = vmul.f32 %v1988, 1.442695
    %v1991 = vpow.pop %v1990
    %v1992 = vmul.f32 %v1989, 1.442695
    %v1993 = vpow.pop %v1992
    %v1994 = vadd.f32 %v1991, 1.0
    %v1995 = vadd.f32 %v1993, 1.0
    %v1996 = vrcp.pop %v1994
    %v1997 = vmul.f32 1.0, %v1996
    %v1998 = vrcp.pop %v1995
    %v1999 = vmul.f32 1.0, %v1998
    %v2000 = vtanh.pop %v1984
    %v2001 = vmul.f32 %v1997, %v382
    %2003 = vrot.lane.b32.xlu0 %v2000, 64
    %v2004 = vpop.permute.xlu0 %2003
    %v2006 = vmul.f32 %v1997, %v2004
    %2008 = vrot.lane.b32.xlu0 %v2006, 64
    %v2009 = vpop.permute.xlu0 %2008
    %v2011 = vadd.f32 %v2001, %v2009
    %v2012 = vtanh.pop %v2011
    %2014 = vrot.lane.b32.xlu0 %v2012, 64
    %v2015 = vpop.permute.xlu0 %2014
    %v2017 = vmul.f32 %v1999, %v2015
    %2019 = vrot.lane.b32.xlu0 %v571, 64
    %v2020 = vpop.permute.xlu0 %2019
    %v2022 = vsel %vm102, %v2017, %v2020
    %v2023 = vpack.c.bf16 %v2022, %v2022
    %2024 = vmatprep.subr.bf16.mxu0 %v484
    %2025 = vmatpush1.bf16.msra.mxu0 %v483
    %2026 = vmatprep.subr.bf16.mxu0 %v482
    %2027 = vmatpush1.bf16.msra.mxu0 %v481
    %2028 = vmatprep.subr.bf16.mxu0 %v480
    %2029 = vmatpush1.bf16.msra.mxu0 %v479
    %2030 = vmatprep.subr.bf16.mxu0 %v478
    %2031 = vmatpush1.bf16.msra.mxu0 %v477
    %2032 = vmatprep.subr.bf16.mxu0 %v476
    %2033 = vmatpush1.bf16.msra.mxu0 %v475
    %2034 = vmatprep.subr.bf16.mxu0 %v474
    %2035 = vmatpush1.bf16.msra.mxu0 %v473
    %2036 = vmatprep.subr.bf16.mxu0 %v472
    %2037 = vmatpush1.bf16.msra.mxu0 %v471
    %2038 = vmatprep.subr.bf16.mxu0 %v470
    %2039 = vmatpush1.bf16.msra.mxu0 %v469
    %2040 = vmatprep.subr.bf16.mxu0 0
    %2041 = vmatpush2.bf16.msra.mxu0 0
    %2042 = vmatprep.subr.bf16.mxu0 0
    %2043 = vmatpush2.bf16.msra.mxu0 0
    %2044 = vmatprep.subr.bf16.mxu0 0
    %2045 = vmatpush2.bf16.msra.mxu0 0
    %2046 = vmatprep.subr.bf16.mxu0 0
    %2047 = vmatpush2.bf16.msra.mxu0 0
    %2048 = vmatprep.subr.bf16.mxu0 0
    %2049 = vmatpush2.bf16.msra.mxu0 0
    %2050 = vmatprep.subr.bf16.mxu0 0
    %2051 = vmatpush2.bf16.msra.mxu0 0
    %2052 = vmatprep.subr.bf16.mxu0 0
    %2053 = vmatpush2.bf16.msra.mxu0 0
    %2054 = vmatprep.subr.bf16.mxu0 0
    %2055 = vmatpush2.bf16.msra.mxu0 0
    %2056 = vmatprep.mubr.bf16.mxu0 0
    %2057 = vmatmul.mubr.bf16.gmra.mxu0 %v2023
    %v2058 = vpop.f32.mrf.mxu0
    %v2059 = vadd.f32 %v414, %v2058
    %v2060 = vpop.f32.mrf.mxu0
    %v2061 = vadd.f32 %v418, %v2060
    %v2062 = vpop.f32.mrf.mxu0
    %v2063 = vpop.f32.mrf.mxu0
    %2064 = vdwg.mxu0
    %v2065 = vxor.u32 %v2059, 2147483648
    %v2066 = vxor.u32 %v2061, 2147483648
    %v2067 = vmul.f32 %v2065, 1.442695
    %v2068 = vpow.pop %v2067
    %v2069 = vmul.f32 %v2066, 1.442695
    %v2070 = vpow.pop %v2069
    %v2071 = vadd.f32 %v2068, 1.0
    %v2072 = vadd.f32 %v2070, 1.0
    %v2073 = vrcp.pop %v2071
    %v2074 = vmul.f32 1.0, %v2073
    %v2075 = vrcp.pop %v2072
    %v2076 = vmul.f32 1.0, %v2075
    %v2077 = vtanh.pop %v2061
    %v2078 = vmul.f32 %v2074, %v565
    %2080 = vrot.lane.b32.xlu0 %v2077, 64
    %v2081 = vpop.permute.xlu0 %2080
    %v2083 = vmul.f32 %v2074, %v2081
    %2085 = vrot.lane.b32.xlu0 %v2083, 64
    %v2086 = vpop.permute.xlu0 %2085
    %v2088 = vadd.f32 %v2078, %v2086
    %v2089 = vtanh.pop %v2088
    %2091 = vrot.lane.b32.xlu0 %v2089, 64
    %v2092 = vpop.permute.xlu0 %2091
    %v2094 = vmul.f32 %v2076, %v2092
    %2096 = vrot.lane.b32.xlu0 %v754, 64
    %v2097 = vpop.permute.xlu0 %2096
    %v2099 = vsel %vm102, %v2094, %v2097
    %v2100 = vpack.c.bf16 %v2099, %v2099
    %2101 = vmatprep.subr.bf16.mxu0 %v667
    %2102 = vmatpush1.bf16.msra.mxu0 %v666
    %2103 = vmatprep.subr.bf16.mxu0 %v665
    %2104 = vmatpush1.bf16.msra.mxu0 %v664
    %2105 = vmatprep.subr.bf16.mxu0 %v663
    %2106 = vmatpush1.bf16.msra.mxu0 %v662
    %2107 = vmatprep.subr.bf16.mxu0 %v661
    %2108 = vmatpush1.bf16.msra.mxu0 %v660
    %2109 = vmatprep.subr.bf16.mxu0 %v659
    %2110 = vmatpush1.bf16.msra.mxu0 %v658
    %2111 = vmatprep.subr.bf16.mxu0 %v657
    %2112 = vmatpush1.bf16.msra.mxu0 %v656
    %2113 = vmatprep.subr.bf16.mxu0 %v655
    %2114 = vmatpush1.bf16.msra.mxu0 %v654
    %2115 = vmatprep.subr.bf16.mxu0 %v653
    %2116 = vmatpush1.bf16.msra.mxu0 %v652
    %2117 = vmatprep.subr.bf16.mxu0 0
    %2118 = vmatpush2.bf16.msra.mxu0 0
    %2119 = vmatprep.subr.bf16.mxu0 0
    %2120 = vmatpush2.bf16.msra.mxu0 0
    %2121 = vmatprep.subr.bf16.mxu0 0
    %2122 = vmatpush2.bf16.msra.mxu0 0
    %2123 = vmatprep.subr.bf16.mxu0 0
    %2124 = vmatpush2.bf16.msra.mxu0 0
    %2125 = vmatprep.subr.bf16.mxu0 0
    %2126 = vmatpush2.bf16.msra.mxu0 0
    %2127 = vmatprep.subr.bf16.mxu0 0
    %2128 = vmatpush2.bf16.msra.mxu0 0
    %2129 = vmatprep.subr.bf16.mxu0 0
    %2130 = vmatpush2.bf16.msra.mxu0 0
    %2131 = vmatprep.subr.bf16.mxu0 0
    %2132 = vmatpush2.bf16.msra.mxu0 0
    %2133 = vmatprep.mubr.bf16.mxu0 0
    %2134 = vmatmul.mubr.bf16.gmra.mxu0 %v2100
    %v2135 = vpop.f32.mrf.mxu0
    %v2136 = vadd.f32 %v597, %v2135
    %v2137 = vpop.f32.mrf.mxu0
    %v2138 = vadd.f32 %v601, %v2137
    %v2139 = vpop.f32.mrf.mxu0
    %v2140 = vpop.f32.mrf.mxu0
    %2141 = vdwg.mxu0
    %v2142 = vxor.u32 %v2136, 2147483648
    %v2143 = vxor.u32 %v2138, 2147483648
    %v2144 = vmul.f32 %v2142, 1.442695
    %v2145 = vpow.pop %v2144
    %v2146 = vmul.f32 %v2143, 1.442695
    %v2147 = vpow.pop %v2146
    %v2148 = vadd.f32 %v2145, 1.0
    %v2149 = vadd.f32 %v2147, 1.0
    %v2150 = vrcp.pop %v2148
    %v2151 = vmul.f32 1.0, %v2150
    %v2152 = vrcp.pop %v2149
    %v2153 = vmul.f32 1.0, %v2152
    %v2154 = vtanh.pop %v2138
    %v2155 = vmul.f32 %v2151, %v748
    %2157 = vrot.lane.b32.xlu0 %v2154, 64
    %v2158 = vpop.permute.xlu0 %2157
    %v2160 = vmul.f32 %v2151, %v2158
    %2162 = vrot.lane.b32.xlu0 %v2160, 64
    %v2163 = vpop.permute.xlu0 %2162
    %v2165 = vadd.f32 %v2155, %v2163
    %v2166 = vtanh.pop %v2165
    %2168 = vrot.lane.b32.xlu0 %v2166, 64
    %v2169 = vpop.permute.xlu0 %2168
    %v2171 = vmul.f32 %v2153, %v2169
    %2173 = vrot.lane.b32.xlu0 %v937, 64
    %v2174 = vpop.permute.xlu0 %2173
    %v2176 = vsel %vm102, %v2171, %v2174
    %v2177 = vpack.c.bf16 %v2176, %v2176
    %2178 = vmatprep.subr.bf16.mxu0 %v850
    %2179 = vmatpush1.bf16.msra.mxu0 %v849
    %2180 = vmatprep.subr.bf16.mxu0 %v848
    %2181 = vmatpush1.bf16.msra.mxu0 %v847
    %2182 = vmatprep.subr.bf16.mxu0 %v846
    %2183 = vmatpush1.bf16.msra.mxu0 %v845
    %2184 = vmatprep.subr.bf16.mxu0 %v844
    %2185 = vmatpush1.bf16.msra.mxu0 %v843
    %2186 = vmatprep.subr.bf16.mxu0 %v842
    %2187 = vmatpush1.bf16.msra.mxu0 %v841
    %2188 = vmatprep.subr.bf16.mxu0 %v840
    %2189 = vmatpush1.bf16.msra.mxu0 %v839
    %2190 = vmatprep.subr.bf16.mxu0 %v838
    %2191 = vmatpush1.bf16.msra.mxu0 %v837
    %2192 = vmatprep.subr.bf16.mxu0 %v836
    %2193 = vmatpush1.bf16.msra.mxu0 %v835
    %2194 = vmatprep.subr.bf16.mxu0 0
    %2195 = vmatpush2.bf16.msra.mxu0 0
    %2196 = vmatprep.subr.bf16.mxu0 0
    %2197 = vmatpush2.bf16.msra.mxu0 0
    %2198 = vmatprep.subr.bf16.mxu0 0
    %2199 = vmatpush2.bf16.msra.mxu0 0
    %2200 = vmatprep.subr.bf16.mxu0 0
    %2201 = vmatpush2.bf16.msra.mxu0 0
    %2202 = vmatprep.subr.bf16.mxu0 0
    %2203 = vmatpush2.bf16.msra.mxu0 0
    %2204 = vmatprep.subr.bf16.mxu0 0
    %2205 = vmatpush2.bf16.msra.mxu0 0
    %2206 = vmatprep.subr.bf16.mxu0 0
    %2207 = vmatpush2.bf16.msra.mxu0 0
    %2208 = vmatprep.subr.bf16.mxu0 0
    %2209 = vmatpush2.bf16.msra.mxu0 0
    %2210 = vmatprep.mubr.bf16.mxu0 0
    %2211 = vmatmul.mubr.bf16.gmra.mxu0 %v2177
    %v2212 = vpop.f32.mrf.mxu0
    %v2213 = vadd.f32 %v780, %v2212
    %v2214 = vpop.f32.mrf.mxu0
    %v2215 = vadd.f32 %v784, %v2214
    %v2216 = vpop.f32.mrf.mxu0
    %v2217 = vpop.f32.mrf.mxu0
    %2218 = vdwg.mxu0
    %v2219 = vxor.u32 %v2213, 2147483648
    %v2220 = vxor.u32 %v2215, 2147483648
    %v2221 = vmul.f32 %v2219, 1.442695
    %v2222 = vpow.pop %v2221
    %v2223 = vmul.f32 %v2220, 1.442695
    %v2224 = vpow.pop %v2223
    %v2225 = vadd.f32 %v2222, 1.0
    %v2226 = vadd.f32 %v2224, 1.0
    %v2227 = vrcp.pop %v2225
    %v2228 = vmul.f32 1.0, %v2227
    %v2229 = vrcp.pop %v2226
    %v2230 = vmul.f32 1.0, %v2229
    %v2231 = vtanh.pop %v2215
    %v2232 = vmul.f32 %v2228, %v931
    %2234 = vrot.lane.b32.xlu0 %v2231, 64
    %v2235 = vpop.permute.xlu0 %2234
    %v2237 = vmul.f32 %v2228, %v2235
    %2239 = vrot.lane.b32.xlu0 %v2237, 64
    %v2240 = vpop.permute.xlu0 %2239
    %v2242 = vadd.f32 %v2232, %v2240
    %v2243 = vtanh.pop %v2242
    %2245 = vrot.lane.b32.xlu0 %v2243, 64
    %v2246 = vpop.permute.xlu0 %2245
    %v2248 = vmul.f32 %v2230, %v2246
    %2250 = vrot.lane.b32.xlu0 %v1120, 64
    %v2251 = vpop.permute.xlu0 %2250
    %v2253 = vsel %vm102, %v2248, %v2251
    %v2254 = vpack.c.bf16 %v2253, %v2253
    %2255 = vmatprep.subr.bf16.mxu0 %v1033
    %2256 = vmatpush1.bf16.msra.mxu0 %v1032
    %2257 = vmatprep.subr.bf16.mxu0 %v1031
    %2258 = vmatpush1.bf16.msra.mxu0 %v1030
    %2259 = vmatprep.subr.bf16.mxu0 %v1029
    %2260 = vmatpush1.bf16.msra.mxu0 %v1028
    %2261 = vmatprep.subr.bf16.mxu0 %v1027
    %2262 = vmatpush1.bf16.msra.mxu0 %v1026
    %2263 = vmatprep.subr.bf16.mxu0 %v1025
    %2264 = vmatpush1.bf16.msra.mxu0 %v1024
    %2265 = vmatprep.subr.bf16.mxu0 %v1023
    %2266 = vmatpush1.bf16.msra.mxu0 %v1022
    %2267 = vmatprep.subr.bf16.mxu0 %v1021
    %2268 = vmatpush1.bf16.msra.mxu0 %v1020
    %2269 = vmatprep.subr.bf16.mxu0 %v1019
    %2270 = vmatpush1.bf16.msra.mxu0 %v1018
    %2271 = vmatprep.subr.bf16.mxu0 0
    %2272 = vmatpush2.bf16.msra.mxu0 0
    %2273 = vmatprep.subr.bf16.mxu0 0
    %2274 = vmatpush2.bf16.msra.mxu0 0
    %2275 = vmatprep.subr.bf16.mxu0 0
    %2276 = vmatpush2.bf16.msra.mxu0 0
    %2277 = vmatprep.subr.bf16.mxu0 0
    %2278 = vmatpush2.bf16.msra.mxu0 0
    %2279 = vmatprep.subr.bf16.mxu0 0
    %2280 = vmatpush2.bf16.msra.mxu0 0
    %2281 = vmatprep.subr.bf16.mxu0 0
    %2282 = vmatpush2.bf16.msra.mxu0 0
    %2283 = vmatprep.subr.bf16.mxu0 0
    %2284 = vmatpush2.bf16.msra.mxu0 0
    %2285 = vmatprep.subr.bf16.mxu0 0
    %2286 = vmatpush2.bf16.msra.mxu0 0
    %2287 = vmatprep.mubr.bf16.mxu0 0
    %2288 = vmatmul.mubr.bf16.gmra.mxu0 %v2254
    %v2289 = vpop.f32.mrf.mxu0
    %v2290 = vadd.f32 %v963, %v2289
    %v2291 = vpop.f32.mrf.mxu0
    %v2292 = vadd.f32 %v967, %v2291
    %v2293 = vpop.f32.mrf.mxu0
    %v2294 = vpop.f32.mrf.mxu0
    %2295 = vdwg.mxu0
    %v2296 = vxor.u32 %v2290, 2147483648
    %v2297 = vxor.u32 %v2292, 2147483648
    %v2298 = vmul.f32 %v2296, 1.442695
    %v2299 = vpow.pop %v2298
    %v2300 = vmul.f32 %v2297, 1.442695
    %v2301 = vpow.pop %v2300
    %v2302 = vadd.f32 %v2299, 1.0
    %v2303 = vadd.f32 %v2301, 1.0
    %v2304 = vrcp.pop %v2302
    %v2305 = vmul.f32 1.0, %v2304
    %v2306 = vrcp.pop %v2303
    %v2307 = vmul.f32 1.0, %v2306
    %v2308 = vtanh.pop %v2292
    %v2309 = vmul.f32 %v2305, %v1114
    %2311 = vrot.lane.b32.xlu0 %v2308, 64
    %v2312 = vpop.permute.xlu0 %2311
    %v2314 = vmul.f32 %v2305, %v2312
    %2316 = vrot.lane.b32.xlu0 %v2314, 64
    %v2317 = vpop.permute.xlu0 %2316
    %v2319 = vadd.f32 %v2309, %v2317
    %v2320 = vtanh.pop %v2319
    %2322 = vrot.lane.b32.xlu0 %v2320, 64
    %v2323 = vpop.permute.xlu0 %2322
    %v2325 = vmul.f32 %v2307, %v2323
    %2327 = vrot.lane.b32.xlu0 %v1303, 64
    %v2328 = vpop.permute.xlu0 %2327
    %v2330 = vsel %vm102, %v2325, %v2328
    %v2331 = vpack.c.bf16 %v2330, %v2330
    %2332 = vmatprep.subr.bf16.mxu0 %v1216
    %2333 = vmatpush1.bf16.msra.mxu0 %v1215
    %2334 = vmatprep.subr.bf16.mxu0 %v1214
    %2335 = vmatpush1.bf16.msra.mxu0 %v1213
    %2336 = vmatprep.subr.bf16.mxu0 %v1212
    %2337 = vmatpush1.bf16.msra.mxu0 %v1211
    %2338 = vmatprep.subr.bf16.mxu0 %v1210
    %2339 = vmatpush1.bf16.msra.mxu0 %v1209
    %2340 = vmatprep.subr.bf16.mxu0 %v1208
    %2341 = vmatpush1.bf16.msra.mxu0 %v1207
    %2342 = vmatprep.subr.bf16.mxu0 %v1206
    %2343 = vmatpush1.bf16.msra.mxu0 %v1205
    %2344 = vmatprep.subr.bf16.mxu0 %v1204
    %2345 = vmatpush1.bf16.msra.mxu0 %v1203
    %2346 = vmatprep.subr.bf16.mxu0 %v1202
    %2347 = vmatpush1.bf16.msra.mxu0 %v1201
    %2348 = vmatprep.subr.bf16.mxu0 0
    %2349 = vmatpush2.bf16.msra.mxu0 0
    %2350 = vmatprep.subr.bf16.mxu0 0
    %2351 = vmatpush2.bf16.msra.mxu0 0
    %2352 = vmatprep.subr.bf16.mxu0 0
    %2353 = vmatpush2.bf16.msra.mxu0 0
    %2354 = vmatprep.subr.bf16.mxu0 0
    %2355 = vmatpush2.bf16.msra.mxu0 0
    %2356 = vmatprep.subr.bf16.mxu0 0
    %2357 = vmatpush2.bf16.msra.mxu0 0
    %2358 = vmatprep.subr.bf16.mxu0 0
    %2359 = vmatpush2.bf16.msra.mxu0 0
    %2360 = vmatprep.subr.bf16.mxu0 0
    %2361 = vmatpush2.bf16.msra.mxu0 0
    %2362 = vmatprep.subr.bf16.mxu0 0
    %2363 = vmatpush2.bf16.msra.mxu0 0
    %2364 = vmatprep.mubr.bf16.mxu0 0
    %2365 = vmatmul.mubr.bf16.gmra.mxu0 %v2331
    %v2366 = vpop.f32.mrf.mxu0
    %v2367 = vadd.f32 %v1146, %v2366
    %v2368 = vpop.f32.mrf.mxu0
    %v2369 = vadd.f32 %v1150, %v2368
    %v2370 = vpop.f32.mrf.mxu0
    %v2371 = vpop.f32.mrf.mxu0
    %2372 = vdwg.mxu0
    %v2373 = vxor.u32 %v2367, 2147483648
    %v2374 = vxor.u32 %v2369, 2147483648
    %v2375 = vmul.f32 %v2373, 1.442695
    %v2376 = vpow.pop %v2375
    %v2377 = vmul.f32 %v2374, 1.442695
    %v2378 = vpow.pop %v2377
    %v2379 = vadd.f32 %v2376, 1.0
    %v2380 = vadd.f32 %v2378, 1.0
    %v2381 = vrcp.pop %v2379
    %v2382 = vmul.f32 1.0, %v2381
    %v2383 = vrcp.pop %v2380
    %v2384 = vmul.f32 1.0, %v2383
    %v2385 = vtanh.pop %v2369
    %v2386 = vmul.f32 %v2382, %v1297
    %2388 = vrot.lane.b32.xlu0 %v2385, 64
    %v2389 = vpop.permute.xlu0 %2388
    %v2391 = vmul.f32 %v2382, %v2389
    %2393 = vrot.lane.b32.xlu0 %v2391, 64
    %v2394 = vpop.permute.xlu0 %2393
    %v2396 = vadd.f32 %v2386, %v2394
    %v2397 = vtanh.pop %v2396
    %2399 = vrot.lane.b32.xlu0 %v2397, 64
    %v2400 = vpop.permute.xlu0 %2399
    %v2402 = vmul.f32 %v2384, %v2400
    %2404 = vrot.lane.b32.xlu0 %v1486, 64
    %v2405 = vpop.permute.xlu0 %2404
    %v2407 = vsel %vm102, %v2402, %v2405
    %v2408 = vpack.c.bf16 %v2407, %v2407
    %2409 = vmatprep.subr.bf16.mxu0 %v1399
    %2410 = vmatpush1.bf16.msra.mxu0 %v1398
    %2411 = vmatprep.subr.bf16.mxu0 %v1397
    %2412 = vmatpush1.bf16.msra.mxu0 %v1396
    %2413 = vmatprep.subr.bf16.mxu0 %v1395
    %2414 = vmatpush1.bf16.msra.mxu0 %v1394
    %2415 = vmatprep.subr.bf16.mxu0 %v1393
    %2416 = vmatpush1.bf16.msra.mxu0 %v1392
    %2417 = vmatprep.subr.bf16.mxu0 %v1391
    %2418 = vmatpush1.bf16.msra.mxu0 %v1390
    %2419 = vmatprep.subr.bf16.mxu0 %v1389
    %2420 = vmatpush1.bf16.msra.mxu0 %v1388
    %2421 = vmatprep.subr.bf16.mxu0 %v1387
    %2422 = vmatpush1.bf16.msra.mxu0 %v1386
    %2423 = vmatprep.subr.bf16.mxu0 %v1385
    %2424 = vmatpush1.bf16.msra.mxu0 %v1384
    %2425 = vmatprep.subr.bf16.mxu0 0
    %2426 = vmatpush2.bf16.msra.mxu0 0
    %2427 = vmatprep.subr.bf16.mxu0 0
    %2428 = vmatpush2.bf16.msra.mxu0 0
    %2429 = vmatprep.subr.bf16.mxu0 0
    %2430 = vmatpush2.bf16.msra.mxu0 0
    %2431 = vmatprep.subr.bf16.mxu0 0
    %2432 = vmatpush2.bf16.msra.mxu0 0
    %2433 = vmatprep.subr.bf16.mxu0 0
    %2434 = vmatpush2.bf16.msra.mxu0 0
    %2435 = vmatprep.subr.bf16.mxu0 0
    %2436 = vmatpush2.bf16.msra.mxu0 0
    %2437 = vmatprep.subr.bf16.mxu0 0
    %2438 = vmatpush2.bf16.msra.mxu0 0
    %2439 = vmatprep.subr.bf16.mxu0 0
    %2440 = vmatpush2.bf16.msra.mxu0 0
    %2441 = vmatprep.mubr.bf16.mxu0 0
    %2442 = vmatmul.mubr.bf16.gmra.mxu0 %v2408
    %v2443 = vpop.f32.mrf.mxu0
    %v2444 = vadd.f32 %v1329, %v2443
    %v2445 = vpop.f32.mrf.mxu0
    %v2446 = vadd.f32 %v1333, %v2445
    %v2447 = vpop.f32.mrf.mxu0
    %v2448 = vpop.f32.mrf.mxu0
    %2449 = vdwg.mxu0
    %v2450 = vxor.u32 %v2444, 2147483648
    %v2451 = vxor.u32 %v2446, 2147483648
    %v2452 = vmul.f32 %v2450, 1.442695
    %v2453 = vpow.pop %v2452
    %v2454 = vmul.f32 %v2451, 1.442695
    %v2455 = vpow.pop %v2454
    %v2456 = vadd.f32 %v2453, 1.0
    %v2457 = vadd.f32 %v2455, 1.0
    %v2458 = vrcp.pop %v2456
    %v2459 = vmul.f32 1.0, %v2458
    %v2460 = vrcp.pop %v2457
    %v2461 = vmul.f32 1.0, %v2460
    %v2462 = vtanh.pop %v2446
    %v2463 = vmul.f32 %v2459, %v1480
    %2465 = vrot.lane.b32.xlu0 %v2462, 64
    %v2466 = vpop.permute.xlu0 %2465
    %v2468 = vmul.f32 %v2459, %v2466
    %2470 = vrot.lane.b32.xlu0 %v2468, 64
    %v2471 = vpop.permute.xlu0 %2470
    %v2473 = vadd.f32 %v2463, %v2471
    %v2474 = vtanh.pop %v2473
    %2476 = vrot.lane.b32.xlu0 %v2474, 64
    %v2477 = vpop.permute.xlu0 %2476
    %v2479 = vmul.f32 %v2461, %v2477
    %2481 = vrot.lane.b32.xlu0 %v1669, 64
    %v2482 = vpop.permute.xlu0 %2481
    %v2484 = vsel %vm102, %v2479, %v2482
    %v2485 = vpack.c.bf16 %v2484, %v2484
    %2486 = vmatprep.subr.bf16.mxu0 %v1582
    %2487 = vmatpush1.bf16.msra.mxu0 %v1581
    %2488 = vmatprep.subr.bf16.mxu0 %v1580
    %2489 = vmatpush1.bf16.msra.mxu0 %v1579
    %2490 = vmatprep.subr.bf16.mxu0 %v1578
    %2491 = vmatpush1.bf16.msra.mxu0 %v1577
    %2492 = vmatprep.subr.bf16.mxu0 %v1576
    %2493 = vmatpush1.bf16.msra.mxu0 %v1575
    %2494 = vmatprep.subr.bf16.mxu0 %v1574
    %2495 = vmatpush1.bf16.msra.mxu0 %v1573
    %2496 = vmatprep.subr.bf16.mxu0 %v1572
    %2497 = vmatpush1.bf16.msra.mxu0 %v1571
    %2498 = vmatprep.subr.bf16.mxu0 %v1570
    %2499 = vmatpush1.bf16.msra.mxu0 %v1569
    %2500 = vmatprep.subr.bf16.mxu0 %v1568
    %2501 = vmatpush1.bf16.msra.mxu0 %v1567
    %2502 = vmatprep.subr.bf16.mxu0 0
    %2503 = vmatpush2.bf16.msra.mxu0 0
    %2504 = vmatprep.subr.bf16.mxu0 0
    %2505 = vmatpush2.bf16.msra.mxu0 0
    %2506 = vmatprep.subr.bf16.mxu0 0
    %2507 = vmatpush2.bf16.msra.mxu0 0
    %2508 = vmatprep.subr.bf16.mxu0 0
    %2509 = vmatpush2.bf16.msra.mxu0 0
    %2510 = vmatprep.subr.bf16.mxu0 0
    %2511 = vmatpush2.bf16.msra.mxu0 0
    %2512 = vmatprep.subr.bf16.mxu0 0
    %2513 = vmatpush2.bf16.msra.mxu0 0
    %2514 = vmatprep.subr.bf16.mxu0 0
    %2515 = vmatpush2.bf16.msra.mxu0 0
    %2516 = vmatprep.subr.bf16.mxu0 0
    %2517 = vmatpush2.bf16.msra.mxu0 0
    %2518 = vmatprep.mubr.bf16.mxu0 0
    %2519 = vmatmul.mubr.bf16.gmra.mxu0 %v2485
    %v2520 = vpop.f32.mrf.mxu0
    %v2521 = vadd.f32 %v1512, %v2520
    %v2522 = vpop.f32.mrf.mxu0
    %v2523 = vadd.f32 %v1516, %v2522
    %v2524 = vpop.f32.mrf.mxu0
    %v2525 = vpop.f32.mrf.mxu0
    %2526 = vdwg.mxu0
    %v2527 = vxor.u32 %v2521, 2147483648
    %v2528 = vxor.u32 %v2523, 2147483648
    %v2529 = vmul.f32 %v2527, 1.442695
    %v2530 = vpow.pop %v2529
    %v2531 = vmul.f32 %v2528, 1.442695
    %v2532 = vpow.pop %v2531
    %v2533 = vadd.f32 %v2530, 1.0
    %v2534 = vadd.f32 %v2532, 1.0
    %v2535 = vrcp.pop %v2533
    %v2536 = vmul.f32 1.0, %v2535
    %v2537 = vrcp.pop %v2534
    %v2538 = vmul.f32 1.0, %v2537
    %v2539 = vtanh.pop %v2523
    %v2540 = vmul.f32 %v2536, %v1663
    %2542 = vrot.lane.b32.xlu0 %v2539, 64
    %v2543 = vpop.permute.xlu0 %2542
    %v2545 = vmul.f32 %v2536, %v2543
    %2547 = vrot.lane.b32.xlu0 %v2545, 64
    %v2548 = vpop.permute.xlu0 %2547
    %v2550 = vadd.f32 %v2540, %v2548
    %v2551 = vtanh.pop %v2550
    %2553 = vrot.lane.b32.xlu0 %v2551, 64
    %v2554 = vpop.permute.xlu0 %2553
    %v2556 = vmul.f32 %v2538, %v2554
    %2558 = vrot.lane.b32.xlu0 %v1852, 64
    %v2559 = vpop.permute.xlu0 %2558
    %v2561 = vsel %vm102, %v2556, %v2559
    %v2562 = vpack.c.bf16 %v2561, %v2561
    %2563 = vmatprep.subr.bf16.mxu0 %v1765
    %2564 = vmatpush1.bf16.msra.mxu0 %v1764
    %2565 = vmatprep.subr.bf16.mxu0 %v1763
    %2566 = vmatpush1.bf16.msra.mxu0 %v1762
    %2567 = vmatprep.subr.bf16.mxu0 %v1761
    %2568 = vmatpush1.bf16.msra.mxu0 %v1760
    %2569 = vmatprep.subr.bf16.mxu0 %v1759
    %2570 = vmatpush1.bf16.msra.mxu0 %v1758
    %2571 = vmatprep.subr.bf16.mxu0 %v1757
    %2572 = vmatpush1.bf16.msra.mxu0 %v1756
    %2573 = vmatprep.subr.bf16.mxu0 %v1755
    %2574 = vmatpush1.bf16.msra.mxu0 %v1754
    %2575 = vmatprep.subr.bf16.mxu0 %v1753
    %2576 = vmatpush1.bf16.msra.mxu0 %v1752
    %2577 = vmatprep.subr.bf16.mxu0 %v1751
    %2578 = vmatpush1.bf16.msra.mxu0 %v1750
    %2579 = vmatprep.subr.bf16.mxu0 0
    %2580 = vmatpush2.bf16.msra.mxu0 0
    %2581 = vmatprep.subr.bf16.mxu0 0
    %2582 = vmatpush2.bf16.msra.mxu0 0
    %2583 = vmatprep.subr.bf16.mxu0 0
    %2584 = vmatpush2.bf16.msra.mxu0 0
    %2585 = vmatprep.subr.bf16.mxu0 0
    %2586 = vmatpush2.bf16.msra.mxu0 0
    %2587 = vmatprep.subr.bf16.mxu0 0
    %2588 = vmatpush2.bf16.msra.mxu0 0
    %2589 = vmatprep.subr.bf16.mxu0 0
    %2590 = vmatpush2.bf16.msra.mxu0 0
    %2591 = vmatprep.subr.bf16.mxu0 0
    %2592 = vmatpush2.bf16.msra.mxu0 0
    %2593 = vmatprep.subr.bf16.mxu0 0
    %2594 = vmatpush2.bf16.msra.mxu0 0
    %2595 = vmatprep.mubr.bf16.mxu0 0
    %2596 = vmatmul.mubr.bf16.gmra.mxu0 %v2562
    %v2597 = vpop.f32.mrf.mxu0
    %v2598 = vadd.f32 %v1695, %v2597
    %v2599 = vpop.f32.mrf.mxu0
    %v2600 = vadd.f32 %v1699, %v2599
    %v2601 = vpop.f32.mrf.mxu0
    %v2602 = vpop.f32.mrf.mxu0
    %2603 = vdwg.mxu0
    %v2604 = vxor.u32 %v2598, 2147483648
    %v2605 = vxor.u32 %v2600, 2147483648
    %v2606 = vmul.f32 %v2604, 1.442695
    %v2607 = vpow.pop %v2606
    %v2608 = vmul.f32 %v2605, 1.442695
    %v2609 = vpow.pop %v2608
    %v2610 = vadd.f32 %v2607, 1.0
    %v2611 = vadd.f32 %v2609, 1.0
    %v2612 = vrcp.pop %v2610
    %v2613 = vmul.f32 1.0, %v2612
    %v2614 = vrcp.pop %v2611
    %v2615 = vmul.f32 1.0, %v2614
    %v2616 = vtanh.pop %v2600
    %v2617 = vmul.f32 %v2613, %v1846
    %2619 = vrot.lane.b32.xlu0 %v2616, 64
    %v2620 = vpop.permute.xlu0 %2619
    %v2622 = vmul.f32 %v2613, %v2620
    %2624 = vrot.lane.b32.xlu0 %v2622, 64
    %v2625 = vpop.permute.xlu0 %2624
    %v2627 = vadd.f32 %v2617, %v2625
    %v2628 = vtanh.pop %v2627
    %2630 = vrot.lane.b32.xlu0 %v2628, 64
    %v2631 = vpop.permute.xlu0 %2630
    %v2633 = vmul.f32 %v2615, %v2631
    %s2634 = scalar_lea.vmem [#allocation2], 8
    %v2635 = vld [vmem:[%s2634] sm:$0xf]
    %v2636 = vpack.c.bf16 %v1940, %v1940
    %v2638 = vsel %vm102, %v2636, 0
    %2640 = vmatprep.subr.bf16.mxu0 0
    %2641 = vmatpush1.bf16.msra.mxu0 0
    %2642 = vmatprep.subr.bf16.mxu0 0
    %2643 = vmatpush1.bf16.msra.mxu0 0
    %2644 = vmatprep.subr.bf16.mxu0 0
    %2645 = vmatpush1.bf16.msra.mxu0 0
    %2646 = vmatprep.subr.bf16.mxu0 0
    %2647 = vmatpush1.bf16.msra.mxu0 0
    %2648 = vmatprep.subr.bf16.mxu0 %v93
    %2649 = vmatpush1.bf16.msra.mxu0 %v92
    %2650 = vmatprep.subr.bf16.mxu0 %v91
    %2651 = vmatpush1.bf16.msra.mxu0 %v90
    %2652 = vmatprep.subr.bf16.mxu0 %v89
    %2653 = vmatpush1.bf16.msra.mxu0 %v88
    %2654 = vmatprep.subr.bf16.mxu0 %v87
    %2655 = vmatpush1.bf16.msra.mxu0 %v86
    %2656 = vmatprep.subr.bf16.mxu0 0
    %2657 = vmatpush2.bf16.msra.mxu0 0
    %2658 = vmatprep.subr.bf16.mxu0 0
    %2659 = vmatpush2.bf16.msra.mxu0 0
    %2660 = vmatprep.subr.bf16.mxu0 0
    %2661 = vmatpush2.bf16.msra.mxu0 0
    %2662 = vmatprep.subr.bf16.mxu0 0
    %2663 = vmatpush2.bf16.msra.mxu0 0
    %2664 = vmatprep.subr.bf16.mxu0 0
    %2665 = vmatpush2.bf16.msra.mxu0 0
    %2666 = vmatprep.subr.bf16.mxu0 0
    %2667 = vmatpush2.bf16.msra.mxu0 0
    %2668 = vmatprep.subr.bf16.mxu0 0
    %2669 = vmatpush2.bf16.msra.mxu0 0
    %2670 = vmatprep.subr.bf16.mxu0 0
    %2671 = vmatpush2.bf16.msra.mxu0 0
    %2672 = vmatprep.mubr.bf16.mxu0 0
    %2673 = vmatmul.mubr.bf16.gmra.mxu0 %v2638
    %v2674 = vpop.f32.mrf.mxu0
    %v2675 = vadd.f32 0.0, %v2674
    %v2676 = vpop.f32.mrf.mxu0
    %v2677 = vadd.f32 0.0, %v2676
    %v2678 = vpop.f32.mrf.mxu0
    %v2679 = vpop.f32.mrf.mxu0
    %2680 = vdwg.mxu0
    %v2683 = vcombine.low %v2675, %v2677
    %v2685 = vunpack.c.l.s4 1983009808
    %v2686 = vunpack.c.0.s8 %v2685
    %v2687 = vlaneseq
    %v2688 = vshrl.u32 %v2687, 7
    %v2689 = vsub.s32 %v2686, %v2688
    %v2690 = vrot.slane %v2683, %v2689
    %v2692 = vadd.f32 %v2635, %v2690
    %v2693 = vadd.f32 %v2692, %v176
    %v2694 = vxor.u32 %v2693, 2147483648
    %v2695 = vmul.f32 %v2694, 1.442695
    %v2696 = vpow.pop %v2695
    %v2697 = vadd.f32 %v2696, 1.0
    %v2698 = vrcp.pop %v2697
    %v2699 = vmul.f32 1.0, %v2698
    %2701 = vrot.lane.b32.xlu0 %v2693, 64
    %v2702 = vpop.permute.xlu0 %2701
    %v2703 = vrot.slane %v2702, 2
    %v2705 = vtanh.pop %v2703
    %v2706 = vmul.f32 %v2699, %v1931
    %v2707 = vmul.f32 %v2699, %v2705
    %2709 = vrot.lane.b32.xlu0 %v2707, 64
    %v2710 = vpop.permute.xlu0 %2709
    %v2712 = vadd.f32 %v2706, %v2710
    %v2713 = vtanh.pop %v2712
    %v2715 = vrot.slane %v2699, 2
    %2718 = vrot.lane.b32.xlu0 %v2713, 64
    %v2719 = vpop.permute.xlu0 %2718
    %v2721 = vmul.f32 %v2715, %v2719
    %2723 = vrot.lane.b32.xlu0 %v2017, 64
    %v2724 = vpop.permute.xlu0 %2723
    %v2726 = vsel %vm102, %v2721, %v2724
    %v2727 = vpack.c.bf16 %v2726, %v2726
    %2728 = vmatprep.subr.bf16.mxu0 %v301
    %2729 = vmatpush1.bf16.msra.mxu0 %v300
    %2730 = vmatprep.subr.bf16.mxu0 %v299
    %2731 = vmatpush1.bf16.msra.mxu0 %v298
    %2732 = vmatprep.subr.bf16.mxu0 %v297
    %2733 = vmatpush1.bf16.msra.mxu0 %v296
    %2734 = vmatprep.subr.bf16.mxu0 %v295
    %2735 = vmatpush1.bf16.msra.mxu0 %v294
    %2736 = vmatprep.subr.bf16.mxu0 %v293
    %2737 = vmatpush1.bf16.msra.mxu0 %v292
    %2738 = vmatprep.subr.bf16.mxu0 %v291
    %2739 = vmatpush1.bf16.msra.mxu0 %v290
    %2740 = vmatprep.subr.bf16.mxu0 %v289
    %2741 = vmatpush1.bf16.msra.mxu0 %v288
    %2742 = vmatprep.subr.bf16.mxu0 %v287
    %2743 = vmatpush1.bf16.msra.mxu0 %v286
    %2744 = vmatprep.subr.bf16.mxu0 0
    %2745 = vmatpush2.bf16.msra.mxu0 0
    %2746 = vmatprep.subr.bf16.mxu0 0
    %2747 = vmatpush2.bf16.msra.mxu0 0
    %2748 = vmatprep.subr.bf16.mxu0 0
    %2749 = vmatpush2.bf16.msra.mxu0 0
    %2750 = vmatprep.subr.bf16.mxu0 0
    %2751 = vmatpush2.bf16.msra.mxu0 0
    %2752 = vmatprep.subr.bf16.mxu0 0
    %2753 = vmatpush2.bf16.msra.mxu0 0
    %2754 = vmatprep.subr.bf16.mxu0 0
    %2755 = vmatpush2.bf16.msra.mxu0 0
    %2756 = vmatprep.subr.bf16.mxu0 0
    %2757 = vmatpush2.bf16.msra.mxu0 0
    %2758 = vmatprep.subr.bf16.mxu0 0
    %2759 = vmatpush2.bf16.msra.mxu0 0
    %2760 = vmatprep.mubr.bf16.mxu0 0
    %2761 = vmatmul.mubr.bf16.gmra.mxu0 %v2727
    %v2762 = vpop.f32.mrf.mxu0
    %v2763 = vadd.f32 %v231, %v2762
    %v2764 = vpop.f32.mrf.mxu0
    %v2765 = vadd.f32 %v235, %v2764
    %v2766 = vpop.f32.mrf.mxu0
    %v2767 = vpop.f32.mrf.mxu0
    %2768 = vdwg.mxu0
    %v2769 = vxor.u32 %v2763, 2147483648
    %v2770 = vxor.u32 %v2765, 2147483648
    %v2771 = vmul.f32 %v2769, 1.442695
    %v2772 = vpow.pop %v2771
    %v2773 = vmul.f32 %v2770, 1.442695
    %v2774 = vpow.pop %v2773
    %v2775 = vadd.f32 %v2772, 1.0
    %v2776 = vadd.f32 %v2774, 1.0
    %v2777 = vrcp.pop %v2775
    %v2778 = vmul.f32 1.0, %v2777
    %v2779 = vrcp.pop %v2776
    %v2780 = vmul.f32 1.0, %v2779
    %v2781 = vtanh.pop %v2765
    %v2782 = vmul.f32 %v2778, %v2011
    %2784 = vrot.lane.b32.xlu0 %v2781, 64
    %v2785 = vpop.permute.xlu0 %2784
    %v2787 = vmul.f32 %v2778, %v2785
    %2789 = vrot.lane.b32.xlu0 %v2787, 64
    %v2790 = vpop.permute.xlu0 %2789
    %v2792 = vadd.f32 %v2782, %v2790
    %v2793 = vtanh.pop %v2792
    %2795 = vrot.lane.b32.xlu0 %v2793, 64
    %v2796 = vpop.permute.xlu0 %2795
    %v2798 = vmul.f32 %v2780, %v2796
    %2800 = vrot.lane.b32.xlu0 %v2094, 64
    %v2801 = vpop.permute.xlu0 %2800
    %v2803 = vsel %vm102, %v2798, %v2801
    %v2804 = vpack.c.bf16 %v2803, %v2803
    %2805 = vmatprep.subr.bf16.mxu0 %v484
    %2806 = vmatpush1.bf16.msra.mxu0 %v483
    %2807 = vmatprep.subr.bf16.mxu0 %v482
    %2808 = vmatpush1.bf16.msra.mxu0 %v481
    %2809 = vmatprep.subr.bf16.mxu0 %v480
    %2810 = vmatpush1.bf16.msra.mxu0 %v479
    %2811 = vmatprep.subr.bf16.mxu0 %v478
    %2812 = vmatpush1.bf16.msra.mxu0 %v477
    %2813 = vmatprep.subr.bf16.mxu0 %v476
    %2814 = vmatpush1.bf16.msra.mxu0 %v475
    %2815 = vmatprep.subr.bf16.mxu0 %v474
    %2816 = vmatpush1.bf16.msra.mxu0 %v473
    %2817 = vmatprep.subr.bf16.mxu0 %v472
    %2818 = vmatpush1.bf16.msra.mxu0 %v471
    %2819 = vmatprep.subr.bf16.mxu0 %v470
    %2820 = vmatpush1.bf16.msra.mxu0 %v469
    %2821 = vmatprep.subr.bf16.mxu0 0
    %2822 = vmatpush2.bf16.msra.mxu0 0
    %2823 = vmatprep.subr.bf16.mxu0 0
    %2824 = vmatpush2.bf16.msra.mxu0 0
    %2825 = vmatprep.subr.bf16.mxu0 0
    %2826 = vmatpush2.bf16.msra.mxu0 0
    %2827 = vmatprep.subr.bf16.mxu0 0
    %2828 = vmatpush2.bf16.msra.mxu0 0
    %2829 = vmatprep.subr.bf16.mxu0 0
    %2830 = vmatpush2.bf16.msra.mxu0 0
    %2831 = vmatprep.subr.bf16.mxu0 0
    %2832 = vmatpush2.bf16.msra.mxu0 0
    %2833 = vmatprep.subr.bf16.mxu0 0
    %2834 = vmatpush2.bf16.msra.mxu0 0
    %2835 = vmatprep.subr.bf16.mxu0 0
    %2836 = vmatpush2.bf16.msra.mxu0 0
    %2837 = vmatprep.mubr.bf16.mxu0 0
    %2838 = vmatmul.mubr.bf16.gmra.mxu0 %v2804
    %v2839 = vpop.f32.mrf.mxu0
    %v2840 = vadd.f32 %v414, %v2839
    %v2841 = vpop.f32.mrf.mxu0
    %v2842 = vadd.f32 %v418, %v2841
    %v2843 = vpop.f32.mrf.mxu0
    %v2844 = vpop.f32.mrf.mxu0
    %2845 = vdwg.mxu0
    %v2846 = vxor.u32 %v2840, 2147483648
    %v2847 = vxor.u32 %v2842, 2147483648
    %v2848 = vmul.f32 %v2846, 1.442695
    %v2849 = vpow.pop %v2848
    %v2850 = vmul.f32 %v2847, 1.442695
    %v2851 = vpow.pop %v2850
    %v2852 = vadd.f32 %v2849, 1.0
    %v2853 = vadd.f32 %v2851, 1.0
    %v2854 = vrcp.pop %v2852
    %v2855 = vmul.f32 1.0, %v2854
    %v2856 = vrcp.pop %v2853
    %v2857 = vmul.f32 1.0, %v2856
    %v2858 = vtanh.pop %v2842
    %v2859 = vmul.f32 %v2855, %v2088
    %2861 = vrot.lane.b32.xlu0 %v2858, 64
    %v2862 = vpop.permute.xlu0 %2861
    %v2864 = vmul.f32 %v2855, %v2862
    %2866 = vrot.lane.b32.xlu0 %v2864, 64
    %v2867 = vpop.permute.xlu0 %2866
    %v2869 = vadd.f32 %v2859, %v2867
    %v2870 = vtanh.pop %v2869
    %2872 = vrot.lane.b32.xlu0 %v2870, 64
    %v2873 = vpop.permute.xlu0 %2872
    %v2875 = vmul.f32 %v2857, %v2873
    %2877 = vrot.lane.b32.xlu0 %v2171, 64
    %v2878 = vpop.permute.xlu0 %2877
    %v2880 = vsel %vm102, %v2875, %v2878
    %v2881 = vpack.c.bf16 %v2880, %v2880
    %2882 = vmatprep.subr.bf16.mxu0 %v667
    %2883 = vmatpush1.bf16.msra.mxu0 %v666
    %2884 = vmatprep.subr.bf16.mxu0 %v665
    %2885 = vmatpush1.bf16.msra.mxu0 %v664
    %2886 = vmatprep.subr.bf16.mxu0 %v663
    %2887 = vmatpush1.bf16.msra.mxu0 %v662
    %2888 = vmatprep.subr.bf16.mxu0 %v661
    %2889 = vmatpush1.bf16.msra.mxu0 %v660
    %2890 = vmatprep.subr.bf16.mxu0 %v659
    %2891 = vmatpush1.bf16.msra.mxu0 %v658
    %2892 = vmatprep.subr.bf16.mxu0 %v657
    %2893 = vmatpush1.bf16.msra.mxu0 %v656
    %2894 = vmatprep.subr.bf16.mxu0 %v655
    %2895 = vmatpush1.bf16.msra.mxu0 %v654
    %2896 = vmatprep.subr.bf16.mxu0 %v653
    %2897 = vmatpush1.bf16.msra.mxu0 %v652
    %2898 = vmatprep.subr.bf16.mxu0 0
    %2899 = vmatpush2.bf16.msra.mxu0 0
    %2900 = vmatprep.subr.bf16.mxu0 0
    %2901 = vmatpush2.bf16.msra.mxu0 0
    %2902 = vmatprep.subr.bf16.mxu0 0
    %2903 = vmatpush2.bf16.msra.mxu0 0
    %2904 = vmatprep.subr.bf16.mxu0 0
    %2905 = vmatpush2.bf16.msra.mxu0 0
    %2906 = vmatprep.subr.bf16.mxu0 0
    %2907 = vmatpush2.bf16.msra.mxu0 0
    %2908 = vmatprep.subr.bf16.mxu0 0
    %2909 = vmatpush2.bf16.msra.mxu0 0
    %2910 = vmatprep.subr.bf16.mxu0 0
    %2911 = vmatpush2.bf16.msra.mxu0 0
    %2912 = vmatprep.subr.bf16.mxu0 0
    %2913 = vmatpush2.bf16.msra.mxu0 0
    %2914 = vmatprep.mubr.bf16.mxu0 0
    %2915 = vmatmul.mubr.bf16.gmra.mxu0 %v2881
    %v2916 = vpop.f32.mrf.mxu0
    %v2917 = vadd.f32 %v597, %v2916
    %v2918 = vpop.f32.mrf.mxu0
    %v2919 = vadd.f32 %v601, %v2918
    %v2920 = vpop.f32.mrf.mxu0
    %v2921 = vpop.f32.mrf.mxu0
    %2922 = vdwg.mxu0
    %v2923 = vxor.u32 %v2917, 2147483648
    %v2924 = vxor.u32 %v2919, 2147483648
    %v2925 = vmul.f32 %v2923, 1.442695
    %v2926 = vpow.pop %v2925
    %v2927 = vmul.f32 %v2924, 1.442695
    %v2928 = vpow.pop %v2927
    %v2929 = vadd.f32 %v2926, 1.0
    %v2930 = vadd.f32 %v2928, 1.0
    %v2931 = vrcp.pop %v2929
    %v2932 = vmul.f32 1.0, %v2931
    %v2933 = vrcp.pop %v2930
    %v2934 = vmul.f32 1.0, %v2933
    %v2935 = vtanh.pop %v2919
    %v2936 = vmul.f32 %v2932, %v2165
    %2938 = vrot.lane.b32.xlu0 %v2935, 64
    %v2939 = vpop.permute.xlu0 %2938
    %v2941 = vmul.f32 %v2932, %v2939
    %2943 = vrot.lane.b32.xlu0 %v2941, 64
    %v2944 = vpop.permute.xlu0 %2943
    %v2946 = vadd.f32 %v2936, %v2944
    %v2947 = vtanh.pop %v2946
    %2949 = vrot.lane.b32.xlu0 %v2947, 64
    %v2950 = vpop.permute.xlu0 %2949
    %v2952 = vmul.f32 %v2934, %v2950
    %2954 = vrot.lane.b32.xlu0 %v2248, 64
    %v2955 = vpop.permute.xlu0 %2954
    %v2957 = vsel %vm102, %v2952, %v2955
    %v2958 = vpack.c.bf16 %v2957, %v2957
    %2959 = vmatprep.subr.bf16.mxu0 %v850
    %2960 = vmatpush1.bf16.msra.mxu0 %v849
    %2961 = vmatprep.subr.bf16.mxu0 %v848
    %2962 = vmatpush1.bf16.msra.mxu0 %v847
    %2963 = vmatprep.subr.bf16.mxu0 %v846
    %2964 = vmatpush1.bf16.msra.mxu0 %v845
    %2965 = vmatprep.subr.bf16.mxu0 %v844
    %2966 = vmatpush1.bf16.msra.mxu0 %v843
    %2967 = vmatprep.subr.bf16.mxu0 %v842
    %2968 = vmatpush1.bf16.msra.mxu0 %v841
    %2969 = vmatprep.subr.bf16.mxu0 %v840
    %2970 = vmatpush1.bf16.msra.mxu0 %v839
    %2971 = vmatprep.subr.bf16.mxu0 %v838
    %2972 = vmatpush1.bf16.msra.mxu0 %v837
    %2973 = vmatprep.subr.bf16.mxu0 %v836
    %2974 = vmatpush1.bf16.msra.mxu0 %v835
    %2975 = vmatprep.subr.bf16.mxu0 0
    %2976 = vmatpush2.bf16.msra.mxu0 0
    %2977 = vmatprep.subr.bf16.mxu0 0
    %2978 = vmatpush2.bf16.msra.mxu0 0
    %2979 = vmatprep.subr.bf16.mxu0 0
    %2980 = vmatpush2.bf16.msra.mxu0 0
    %2981 = vmatprep.subr.bf16.mxu0 0
    %2982 = vmatpush2.bf16.msra.mxu0 0
    %2983 = vmatprep.subr.bf16.mxu0 0
    %2984 = vmatpush2.bf16.msra.mxu0 0
    %2985 = vmatprep.subr.bf16.mxu0 0
    %2986 = vmatpush2.bf16.msra.mxu0 0
    %2987 = vmatprep.subr.bf16.mxu0 0
    %2988 = vmatpush2.bf16.msra.mxu0 0
    %2989 = vmatprep.subr.bf16.mxu0 0
    %2990 = vmatpush2.bf16.msra.mxu0 0
    %2991 = vmatprep.mubr.bf16.mxu0 0
    %2992 = vmatmul.mubr.bf16.gmra.mxu0 %v2958
    %v2993 = vpop.f32.mrf.mxu0
    %v2994 = vadd.f32 %v780, %v2993
    %v2995 = vpop.f32.mrf.mxu0
    %v2996 = vadd.f32 %v784, %v2995
    %v2997 = vpop.f32.mrf.mxu0
    %v2998 = vpop.f32.mrf.mxu0
    %2999 = vdwg.mxu0
    %v3000 = vxor.u32 %v2994, 2147483648
    %v3001 = vxor.u32 %v2996, 2147483648
    %v3002 = vmul.f32 %v3000, 1.442695
    %v3003 = vpow.pop %v3002
    %v3004 = vmul.f32 %v3001, 1.442695
    %v3005 = vpow.pop %v3004
    %v3006 = vadd.f32 %v3003, 1.0
    %v3007 = vadd.f32 %v3005, 1.0
    %v3008 = vrcp.pop %v3006
    %v3009 = vmul.f32 1.0, %v3008
    %v3010 = vrcp.pop %v3007
    %v3011 = vmul.f32 1.0, %v3010
    %v3012 = vtanh.pop %v2996
    %v3013 = vmul.f32 %v3009, %v2242
    %3015 = vrot.lane.b32.xlu0 %v3012, 64
    %v3016 = vpop.permute.xlu0 %3015
    %v3018 = vmul.f32 %v3009, %v3016
    %3020 = vrot.lane.b32.xlu0 %v3018, 64
    %v3021 = vpop.permute.xlu0 %3020
    %v3023 = vadd.f32 %v3013, %v3021
    %v3024 = vtanh.pop %v3023
    %3026 = vrot.lane.b32.xlu0 %v3024, 64
    %v3027 = vpop.permute.xlu0 %3026
    %v3029 = vmul.f32 %v3011, %v3027
    %3031 = vrot.lane.b32.xlu0 %v2325, 64
    %v3032 = vpop.permute.xlu0 %3031
    %v3034 = vsel %vm102, %v3029, %v3032
    %v3035 = vpack.c.bf16 %v3034, %v3034
    %3036 = vmatprep.subr.bf16.mxu0 %v1033
    %3037 = vmatpush1.bf16.msra.mxu0 %v1032
    %3038 = vmatprep.subr.bf16.mxu0 %v1031
    %3039 = vmatpush1.bf16.msra.mxu0 %v1030
    %3040 = vmatprep.subr.bf16.mxu0 %v1029
    %3041 = vmatpush1.bf16.msra.mxu0 %v1028
    %3042 = vmatprep.subr.bf16.mxu0 %v1027
    %3043 = vmatpush1.bf16.msra.mxu0 %v1026
    %3044 = vmatprep.subr.bf16.mxu0 %v1025
    %3045 = vmatpush1.bf16.msra.mxu0 %v1024
    %3046 = vmatprep.subr.bf16.mxu0 %v1023
    %3047 = vmatpush1.bf16.msra.mxu0 %v1022
    %3048 = vmatprep.subr.bf16.mxu0 %v1021
    %3049 = vmatpush1.bf16.msra.mxu0 %v1020
    %3050 = vmatprep.subr.bf16.mxu0 %v1019
    %3051 = vmatpush1.bf16.msra.mxu0 %v1018
    %3052 = vmatprep.subr.bf16.mxu0 0
    %3053 = vmatpush2.bf16.msra.mxu0 0
    %3054 = vmatprep.subr.bf16.mxu0 0
    %3055 = vmatpush2.bf16.msra.mxu0 0
    %3056 = vmatprep.subr.bf16.mxu0 0
    %3057 = vmatpush2.bf16.msra.mxu0 0
    %3058 = vmatprep.subr.bf16.mxu0 0
    %3059 = vmatpush2.bf16.msra.mxu0 0
    %3060 = vmatprep.subr.bf16.mxu0 0
    %3061 = vmatpush2.bf16.msra.mxu0 0
    %3062 = vmatprep.subr.bf16.mxu0 0
    %3063 = vmatpush2.bf16.msra.mxu0 0
    %3064 = vmatprep.subr.bf16.mxu0 0
    %3065 = vmatpush2.bf16.msra.mxu0 0
    %3066 = vmatprep.subr.bf16.mxu0 0
    %3067 = vmatpush2.bf16.msra.mxu0 0
    %3068 = vmatprep.mubr.bf16.mxu0 0
    %3069 = vmatmul.mubr.bf16.gmra.mxu0 %v3035
    %v3070 = vpop.f32.mrf.mxu0
    %v3071 = vadd.f32 %v963, %v3070
    %v3072 = vpop.f32.mrf.mxu0
    %v3073 = vadd.f32 %v967, %v3072
    %v3074 = vpop.f32.mrf.mxu0
    %v3075 = vpop.f32.mrf.mxu0
    %3076 = vdwg.mxu0
    %v3077 = vxor.u32 %v3071, 2147483648
    %v3078 = vxor.u32 %v3073, 2147483648
    %v3079 = vmul.f32 %v3077, 1.442695
    %v3080 = vpow.pop %v3079
    %v3081 = vmul.f32 %v3078, 1.442695
    %v3082 = vpow.pop %v3081
    %v3083 = vadd.f32 %v3080, 1.0
    %v3084 = vadd.f32 %v3082, 1.0
    %v3085 = vrcp.pop %v3083
    %v3086 = vmul.f32 1.0, %v3085
    %v3087 = vrcp.pop %v3084
    %v3088 = vmul.f32 1.0, %v3087
    %v3089 = vtanh.pop %v3073
    %v3090 = vmul.f32 %v3086, %v2319
    %3092 = vrot.lane.b32.xlu0 %v3089, 64
    %v3093 = vpop.permute.xlu0 %3092
    %v3095 = vmul.f32 %v3086, %v3093
    %3097 = vrot.lane.b32.xlu0 %v3095, 64
    %v3098 = vpop.permute.xlu0 %3097
    %v3100 = vadd.f32 %v3090, %v3098
    %v3101 = vtanh.pop %v3100
    %3103 = vrot.lane.b32.xlu0 %v3101, 64
    %v3104 = vpop.permute.xlu0 %3103
    %v3106 = vmul.f32 %v3088, %v3104
    %3108 = vrot.lane.b32.xlu0 %v2402, 64
    %v3109 = vpop.permute.xlu0 %3108
    %v3111 = vsel %vm102, %v3106, %v3109
    %v3112 = vpack.c.bf16 %v3111, %v3111
    %3113 = vmatprep.subr.bf16.mxu0 %v1216
    %3114 = vmatpush1.bf16.msra.mxu0 %v1215
    %3115 = vmatprep.subr.bf16.mxu0 %v1214
    %3116 = vmatpush1.bf16.msra.mxu0 %v1213
    %3117 = vmatprep.subr.bf16.mxu0 %v1212
    %3118 = vmatpush1.bf16.msra.mxu0 %v1211
    %3119 = vmatprep.subr.bf16.mxu0 %v1210
    %3120 = vmatpush1.bf16.msra.mxu0 %v1209
    %3121 = vmatprep.subr.bf16.mxu0 %v1208
    %3122 = vmatpush1.bf16.msra.mxu0 %v1207
    %3123 = vmatprep.subr.bf16.mxu0 %v1206
    %3124 = vmatpush1.bf16.msra.mxu0 %v1205
    %3125 = vmatprep.subr.bf16.mxu0 %v1204
    %3126 = vmatpush1.bf16.msra.mxu0 %v1203
    %3127 = vmatprep.subr.bf16.mxu0 %v1202
    %3128 = vmatpush1.bf16.msra.mxu0 %v1201
    %3129 = vmatprep.subr.bf16.mxu0 0
    %3130 = vmatpush2.bf16.msra.mxu0 0
    %3131 = vmatprep.subr.bf16.mxu0 0
    %3132 = vmatpush2.bf16.msra.mxu0 0
    %3133 = vmatprep.subr.bf16.mxu0 0
    %3134 = vmatpush2.bf16.msra.mxu0 0
    %3135 = vmatprep.subr.bf16.mxu0 0
    %3136 = vmatpush2.bf16.msra.mxu0 0
    %3137 = vmatprep.subr.bf16.mxu0 0
    %3138 = vmatpush2.bf16.msra.mxu0 0
    %3139 = vmatprep.subr.bf16.mxu0 0
    %3140 = vmatpush2.bf16.msra.mxu0 0
    %3141 = vmatprep.subr.bf16.mxu0 0
    %3142 = vmatpush2.bf16.msra.mxu0 0
    %3143 = vmatprep.subr.bf16.mxu0 0
    %3144 = vmatpush2.bf16.msra.mxu0 0
    %3145 = vmatprep.mubr.bf16.mxu0 0
    %3146 = vmatmul.mubr.bf16.gmra.mxu0 %v3112
    %v3147 = vpop.f32.mrf.mxu0
    %v3148 = vadd.f32 %v1146, %v3147
    %v3149 = vpop.f32.mrf.mxu0
    %v3150 = vadd.f32 %v1150, %v3149
    %v3151 = vpop.f32.mrf.mxu0
    %v3152 = vpop.f32.mrf.mxu0
    %3153 = vdwg.mxu0
    %v3154 = vxor.u32 %v3148, 2147483648
    %v3155 = vxor.u32 %v3150, 2147483648
    %v3156 = vmul.f32 %v3154, 1.442695
    %v3157 = vpow.pop %v3156
    %v3158 = vmul.f32 %v3155, 1.442695
    %v3159 = vpow.pop %v3158
    %v3160 = vadd.f32 %v3157, 1.0
    %v3161 = vadd.f32 %v3159, 1.0
    %v3162 = vrcp.pop %v3160
    %v3163 = vmul.f32 1.0, %v3162
    %v3164 = vrcp.pop %v3161
    %v3165 = vmul.f32 1.0, %v3164
    %v3166 = vtanh.pop %v3150
    %v3167 = vmul.f32 %v3163, %v2396
    %3169 = vrot.lane.b32.xlu0 %v3166, 64
    %v3170 = vpop.permute.xlu0 %3169
    %v3172 = vmul.f32 %v3163, %v3170
    %3174 = vrot.lane.b32.xlu0 %v3172, 64
    %v3175 = vpop.permute.xlu0 %3174
    %v3177 = vadd.f32 %v3167, %v3175
    %v3178 = vtanh.pop %v3177
    %3180 = vrot.lane.b32.xlu0 %v3178, 64
    %v3181 = vpop.permute.xlu0 %3180
    %v3183 = vmul.f32 %v3165, %v3181
    %3185 = vrot.lane.b32.xlu0 %v2479, 64
    %v3186 = vpop.permute.xlu0 %3185
    %v3188 = vsel %vm102, %v3183, %v3186
    %v3189 = vpack.c.bf16 %v3188, %v3188
    %3190 = vmatprep.subr.bf16.mxu0 %v1399
    %3191 = vmatpush1.bf16.msra.mxu0 %v1398
    %3192 = vmatprep.subr.bf16.mxu0 %v1397
    %3193 = vmatpush1.bf16.msra.mxu0 %v1396
    %3194 = vmatprep.subr.bf16.mxu0 %v1395
    %3195 = vmatpush1.bf16.msra.mxu0 %v1394
    %3196 = vmatprep.subr.bf16.mxu0 %v1393
    %3197 = vmatpush1.bf16.msra.mxu0 %v1392
    %3198 = vmatprep.subr.bf16.mxu0 %v1391
    %3199 = vmatpush1.bf16.msra.mxu0 %v1390
    %3200 = vmatprep.subr.bf16.mxu0 %v1389
    %3201 = vmatpush1.bf16.msra.mxu0 %v1388
    %3202 = vmatprep.subr.bf16.mxu0 %v1387
    %3203 = vmatpush1.bf16.msra.mxu0 %v1386
    %3204 = vmatprep.subr.bf16.mxu0 %v1385
    %3205 = vmatpush1.bf16.msra.mxu0 %v1384
    %3206 = vmatprep.subr.bf16.mxu0 0
    %3207 = vmatpush2.bf16.msra.mxu0 0
    %3208 = vmatprep.subr.bf16.mxu0 0
    %3209 = vmatpush2.bf16.msra.mxu0 0
    %3210 = vmatprep.subr.bf16.mxu0 0
    %3211 = vmatpush2.bf16.msra.mxu0 0
    %3212 = vmatprep.subr.bf16.mxu0 0
    %3213 = vmatpush2.bf16.msra.mxu0 0
    %3214 = vmatprep.subr.bf16.mxu0 0
    %3215 = vmatpush2.bf16.msra.mxu0 0
    %3216 = vmatprep.subr.bf16.mxu0 0
    %3217 = vmatpush2.bf16.msra.mxu0 0
    %3218 = vmatprep.subr.bf16.mxu0 0
    %3219 = vmatpush2.bf16.msra.mxu0 0
    %3220 = vmatprep.subr.bf16.mxu0 0
    %3221 = vmatpush2.bf16.msra.mxu0 0
    %3222 = vmatprep.mubr.bf16.mxu0 0
    %3223 = vmatmul.mubr.bf16.gmra.mxu0 %v3189
    %v3224 = vpop.f32.mrf.mxu0
    %v3225 = vadd.f32 %v1329, %v3224
    %v3226 = vpop.f32.mrf.mxu0
    %v3227 = vadd.f32 %v1333, %v3226
    %v3228 = vpop.f32.mrf.mxu0
    %v3229 = vpop.f32.mrf.mxu0
    %3230 = vdwg.mxu0
    %v3231 = vxor.u32 %v3225, 2147483648
    %v3232 = vxor.u32 %v3227, 2147483648
    %v3233 = vmul.f32 %v3231, 1.442695
    %v3234 = vpow.pop %v3233
    %v3235 = vmul.f32 %v3232, 1.442695
    %v3236 = vpow.pop %v3235
    %v3237 = vadd.f32 %v3234, 1.0
    %v3238 = vadd.f32 %v3236, 1.0
    %v3239 = vrcp.pop %v3237
    %v3240 = vmul.f32 1.0, %v3239
    %v3241 = vrcp.pop %v3238
    %v3242 = vmul.f32 1.0, %v3241
    %v3243 = vtanh.pop %v3227
    %v3244 = vmul.f32 %v3240, %v2473
    %3246 = vrot.lane.b32.xlu0 %v3243, 64
    %v3247 = vpop.permute.xlu0 %3246
    %v3249 = vmul.f32 %v3240, %v3247
    %3251 = vrot.lane.b32.xlu0 %v3249, 64
    %v3252 = vpop.permute.xlu0 %3251
    %v3254 = vadd.f32 %v3244, %v3252
    %v3255 = vtanh.pop %v3254
    %3257 = vrot.lane.b32.xlu0 %v3255, 64
    %v3258 = vpop.permute.xlu0 %3257
    %v3260 = vmul.f32 %v3242, %v3258
    %3262 = vrot.lane.b32.xlu0 %v2556, 64
    %v3263 = vpop.permute.xlu0 %3262
    %v3265 = vsel %vm102, %v3260, %v3263
    %v3266 = vpack.c.bf16 %v3265, %v3265
    %3267 = vmatprep.subr.bf16.mxu0 %v1582
    %3268 = vmatpush1.bf16.msra.mxu0 %v1581
    %3269 = vmatprep.subr.bf16.mxu0 %v1580
    %3270 = vmatpush1.bf16.msra.mxu0 %v1579
    %3271 = vmatprep.subr.bf16.mxu0 %v1578
    %3272 = vmatpush1.bf16.msra.mxu0 %v1577
    %3273 = vmatprep.subr.bf16.mxu0 %v1576
    %3274 = vmatpush1.bf16.msra.mxu0 %v1575
    %3275 = vmatprep.subr.bf16.mxu0 %v1574
    %3276 = vmatpush1.bf16.msra.mxu0 %v1573
    %3277 = vmatprep.subr.bf16.mxu0 %v1572
    %3278 = vmatpush1.bf16.msra.mxu0 %v1571
    %3279 = vmatprep.subr.bf16.mxu0 %v1570
    %3280 = vmatpush1.bf16.msra.mxu0 %v1569
    %3281 = vmatprep.subr.bf16.mxu0 %v1568
    %3282 = vmatpush1.bf16.msra.mxu0 %v1567
    %3283 = vmatprep.subr.bf16.mxu0 0
    %3284 = vmatpush2.bf16.msra.mxu0 0
    %3285 = vmatprep.subr.bf16.mxu0 0
    %3286 = vmatpush2.bf16.msra.mxu0 0
    %3287 = vmatprep.subr.bf16.mxu0 0
    %3288 = vmatpush2.bf16.msra.mxu0 0
    %3289 = vmatprep.subr.bf16.mxu0 0
    %3290 = vmatpush2.bf16.msra.mxu0 0
    %3291 = vmatprep.subr.bf16.mxu0 0
    %3292 = vmatpush2.bf16.msra.mxu0 0
    %3293 = vmatprep.subr.bf16.mxu0 0
    %3294 = vmatpush2.bf16.msra.mxu0 0
    %3295 = vmatprep.subr.bf16.mxu0 0
    %3296 = vmatpush2.bf16.msra.mxu0 0
    %3297 = vmatprep.subr.bf16.mxu0 0
    %3298 = vmatpush2.bf16.msra.mxu0 0
    %3299 = vmatprep.mubr.bf16.mxu0 0
    %3300 = vmatmul.mubr.bf16.gmra.mxu0 %v3266
    %v3301 = vpop.f32.mrf.mxu0
    %v3302 = vadd.f32 %v1512, %v3301
    %v3303 = vpop.f32.mrf.mxu0
    %v3304 = vadd.f32 %v1516, %v3303
    %v3305 = vpop.f32.mrf.mxu0
    %v3306 = vpop.f32.mrf.mxu0
    %3307 = vdwg.mxu0
    %v3308 = vxor.u32 %v3302, 2147483648
    %v3309 = vxor.u32 %v3304, 2147483648
    %v3310 = vmul.f32 %v3308, 1.442695
    %v3311 = vpow.pop %v3310
    %v3312 = vmul.f32 %v3309, 1.442695
    %v3313 = vpow.pop %v3312
    %v3314 = vadd.f32 %v3311, 1.0
    %v3315 = vadd.f32 %v3313, 1.0
    %v3316 = vrcp.pop %v3314
    %v3317 = vmul.f32 1.0, %v3316
    %v3318 = vrcp.pop %v3315
    %v3319 = vmul.f32 1.0, %v3318
    %v3320 = vtanh.pop %v3304
    %v3321 = vmul.f32 %v3317, %v2550
    %3323 = vrot.lane.b32.xlu0 %v3320, 64
    %v3324 = vpop.permute.xlu0 %3323
    %v3326 = vmul.f32 %v3317, %v3324
    %3328 = vrot.lane.b32.xlu0 %v3326, 64
    %v3329 = vpop.permute.xlu0 %3328
    %v3331 = vadd.f32 %v3321, %v3329
    %v3332 = vtanh.pop %v3331
    %3334 = vrot.lane.b32.xlu0 %v3332, 64
    %v3335 = vpop.permute.xlu0 %3334
    %v3337 = vmul.f32 %v3319, %v3335
    %3339 = vrot.lane.b32.xlu0 %v2633, 64
    %v3340 = vpop.permute.xlu0 %3339
    %v3342 = vsel %vm102, %v3337, %v3340
    %v3343 = vpack.c.bf16 %v3342, %v3342
    %3344 = vmatprep.subr.bf16.mxu0 %v1765
    %3345 = vmatpush1.bf16.msra.mxu0 %v1764
    %3346 = vmatprep.subr.bf16.mxu0 %v1763
    %3347 = vmatpush1.bf16.msra.mxu0 %v1762
    %3348 = vmatprep.subr.bf16.mxu0 %v1761
    %3349 = vmatpush1.bf16.msra.mxu0 %v1760
    %3350 = vmatprep.subr.bf16.mxu0 %v1759
    %3351 = vmatpush1.bf16.msra.mxu0 %v1758
    %3352 = vmatprep.subr.bf16.mxu0 %v1757
    %3353 = vmatpush1.bf16.msra.mxu0 %v1756
    %3354 = vmatprep.subr.bf16.mxu0 %v1755
    %3355 = vmatpush1.bf16.msra.mxu0 %v1754
    %3356 = vmatprep.subr.bf16.mxu0 %v1753
    %3357 = vmatpush1.bf16.msra.mxu0 %v1752
    %3358 = vmatprep.subr.bf16.mxu0 %v1751
    %3359 = vmatpush1.bf16.msra.mxu0 %v1750
    %3360 = vmatprep.subr.bf16.mxu0 0
    %3361 = vmatpush2.bf16.msra.mxu0 0
    %3362 = vmatprep.subr.bf16.mxu0 0
    %3363 = vmatpush2.bf16.msra.mxu0 0
    %3364 = vmatprep.subr.bf16.mxu0 0
    %3365 = vmatpush2.bf16.msra.mxu0 0
    %3366 = vmatprep.subr.bf16.mxu0 0
    %3367 = vmatpush2.bf16.msra.mxu0 0
    %3368 = vmatprep.subr.bf16.mxu0 0
    %3369 = vmatpush2.bf16.msra.mxu0 0
    %3370 = vmatprep.subr.bf16.mxu0 0
    %3371 = vmatpush2.bf16.msra.mxu0 0
    %3372 = vmatprep.subr.bf16.mxu0 0
    %3373 = vmatpush2.bf16.msra.mxu0 0
    %3374 = vmatprep.subr.bf16.mxu0 0
    %3375 = vmatpush2.bf16.msra.mxu0 0
    %3376 = vmatprep.mubr.bf16.mxu0 0
    %3377 = vmatmul.mubr.bf16.gmra.mxu0 %v3343
    %v3378 = vpop.f32.mrf.mxu0
    %v3379 = vadd.f32 %v1695, %v3378
    %v3380 = vpop.f32.mrf.mxu0
    %v3381 = vadd.f32 %v1699, %v3380
    %v3382 = vpop.f32.mrf.mxu0
    %v3383 = vpop.f32.mrf.mxu0
    %3384 = vdwg.mxu0
    %v3385 = vxor.u32 %v3379, 2147483648
    %v3386 = vxor.u32 %v3381, 2147483648
    %v3387 = vmul.f32 %v3385, 1.442695
    %v3388 = vpow.pop %v3387
    %v3389 = vmul.f32 %v3386, 1.442695
    %v3390 = vpow.pop %v3389
    %v3391 = vadd.f32 %v3388, 1.0
    %v3392 = vadd.f32 %v3390, 1.0
    %v3393 = vrcp.pop %v3391
    %v3394 = vmul.f32 1.0, %v3393
    %v3395 = vrcp.pop %v3392
    %v3396 = vmul.f32 1.0, %v3395
    %v3397 = vtanh.pop %v3381
    %v3398 = vmul.f32 %v3394, %v2627
    %3400 = vrot.lane.b32.xlu0 %v3397, 64
    %v3401 = vpop.permute.xlu0 %3400
    %v3403 = vmul.f32 %v3394, %v3401
    %3405 = vrot.lane.b32.xlu0 %v3403, 64
    %v3406 = vpop.permute.xlu0 %3405
    %v3408 = vadd.f32 %v3398, %v3406
    %v3409 = vtanh.pop %v3408
    %3411 = vrot.lane.b32.xlu0 %v3409, 64
    %v3412 = vpop.permute.xlu0 %3411
    %v3414 = vmul.f32 %v3396, %v3412
    %s3415 = scalar_lea.vmem [#allocation2], 12
    %v3416 = vld [vmem:[%s3415] sm:$0xf]
    %v3417 = vpack.c.bf16 %v2721, %v2721
    %v3419 = vsel %vm102, %v3417, 0
    %3421 = vmatprep.subr.bf16.mxu0 0
    %3422 = vmatpush1.bf16.msra.mxu0 0
    %3423 = vmatprep.subr.bf16.mxu0 0
    %3424 = vmatpush1.bf16.msra.mxu0 0
    %3425 = vmatprep.subr.bf16.mxu0 0
    %3426 = vmatpush1.bf16.msra.mxu0 0
    %3427 = vmatprep.subr.bf16.mxu0 0
    %3428 = vmatpush1.bf16.msra.mxu0 0
    %3429 = vmatprep.subr.bf16.mxu0 %v93
    %3430 = vmatpush1.bf16.msra.mxu0 %v92
    %3431 = vmatprep.subr.bf16.mxu0 %v91
    %3432 = vmatpush1.bf16.msra.mxu0 %v90
    %3433 = vmatprep.subr.bf16.mxu0 %v89
    %3434 = vmatpush1.bf16.msra.mxu0 %v88
    %3435 = vmatprep.subr.bf16.mxu0 %v87
    %3436 = vmatpush1.bf16.msra.mxu0 %v86
    %3437 = vmatprep.subr.bf16.mxu0 0
    %3438 = vmatpush2.bf16.msra.mxu0 0
    %3439 = vmatprep.subr.bf16.mxu0 0
    %3440 = vmatpush2.bf16.msra.mxu0 0
    %3441 = vmatprep.subr.bf16.mxu0 0
    %3442 = vmatpush2.bf16.msra.mxu0 0
    %3443 = vmatprep.subr.bf16.mxu0 0
    %3444 = vmatpush2.bf16.msra.mxu0 0
    %3445 = vmatprep.subr.bf16.mxu0 0
    %3446 = vmatpush2.bf16.msra.mxu0 0
    %3447 = vmatprep.subr.bf16.mxu0 0
    %3448 = vmatpush2.bf16.msra.mxu0 0
    %3449 = vmatprep.subr.bf16.mxu0 0
    %3450 = vmatpush2.bf16.msra.mxu0 0
    %3451 = vmatprep.subr.bf16.mxu0 0
    %3452 = vmatpush2.bf16.msra.mxu0 0
    %3453 = vmatprep.mubr.bf16.mxu0 0
    %3454 = vmatmul.mubr.bf16.gmra.mxu0 %v3419
    %v3455 = vpop.f32.mrf.mxu0
    %v3456 = vadd.f32 0.0, %v3455
    %v3457 = vpop.f32.mrf.mxu0
    %v3458 = vadd.f32 0.0, %v3457
    %v3459 = vpop.f32.mrf.mxu0
    %v3460 = vpop.f32.mrf.mxu0
    %3461 = vdwg.mxu0
    %v3464 = vcombine.low %v3456, %v3458
    %v3466 = vunpack.c.l.s4 1983009808
    %v3467 = vunpack.c.0.s8 %v3466
    %v3468 = vlaneseq
    %v3469 = vshrl.u32 %v3468, 7
    %v3470 = vsub.s32 %v3467, %v3469
    %v3471 = vrot.slane %v3464, %v3470
    %v3473 = vadd.f32 %v3416, %v3471
    %v3474 = vadd.f32 %v3473, %v176
    %v3475 = vxor.u32 %v3474, 2147483648
    %v3476 = vmul.f32 %v3475, 1.442695
    %v3477 = vpow.pop %v3476
    %v3478 = vadd.f32 %v3477, 1.0
    %v3479 = vrcp.pop %v3478
    %v3480 = vmul.f32 1.0, %v3479
    %3482 = vrot.lane.b32.xlu0 %v3474, 64
    %v3483 = vpop.permute.xlu0 %3482
    %v3484 = vrot.slane %v3483, 2
    %v3486 = vtanh.pop %v3484
    %v3487 = vmul.f32 %v3480, %v2712
    %v3488 = vmul.f32 %v3480, %v3486
    %3490 = vrot.lane.b32.xlu0 %v3488, 64
    %v3491 = vpop.permute.xlu0 %3490
    %v3493 = vadd.f32 %v3487, %v3491
    %v3494 = vtanh.pop %v3493
    %v3496 = vrot.slane %v3480, 2
    %3499 = vrot.lane.b32.xlu0 %v3494, 64
    %v3500 = vpop.permute.xlu0 %3499
    %v3502 = vmul.f32 %v3496, %v3500
    %3504 = vrot.lane.b32.xlu0 %v2798, 64
    %v3505 = vpop.permute.xlu0 %3504
    %v3507 = vsel %vm102, %v3502, %v3505
    %v3508 = vpack.c.bf16 %v3507, %v3507
    %3509 = vmatprep.subr.bf16.mxu0 %v301
    %3510 = vmatpush1.bf16.msra.mxu0 %v300
    %3511 = vmatprep.subr.bf16.mxu0 %v299
    %3512 = vmatpush1.bf16.msra.mxu0 %v298
    %3513 = vmatprep.subr.bf16.mxu0 %v297
    %3514 = vmatpush1.bf16.msra.mxu0 %v296
    %3515 = vmatprep.subr.bf16.mxu0 %v295
    %3516 = vmatpush1.bf16.msra.mxu0 %v294
    %3517 = vmatprep.subr.bf16.mxu0 %v293
    %3518 = vmatpush1.bf16.msra.mxu0 %v292
    %3519 = vmatprep.subr.bf16.mxu0 %v291
    %3520 = vmatpush1.bf16.msra.mxu0 %v290
    %3521 = vmatprep.subr.bf16.mxu0 %v289
    %3522 = vmatpush1.bf16.msra.mxu0 %v288
    %3523 = vmatprep.subr.bf16.mxu0 %v287
    %3524 = vmatpush1.bf16.msra.mxu0 %v286
    %3525 = vmatprep.subr.bf16.mxu0 0
    %3526 = vmatpush2.bf16.msra.mxu0 0
    %3527 = vmatprep.subr.bf16.mxu0 0
    %3528 = vmatpush2.bf16.msra.mxu0 0
    %3529 = vmatprep.subr.bf16.mxu0 0
    %3530 = vmatpush2.bf16.msra.mxu0 0
    %3531 = vmatprep.subr.bf16.mxu0 0
    %3532 = vmatpush2.bf16.msra.mxu0 0
    %3533 = vmatprep.subr.bf16.mxu0 0
    %3534 = vmatpush2.bf16.msra.mxu0 0
    %3535 = vmatprep.subr.bf16.mxu0 0
    %3536 = vmatpush2.bf16.msra.mxu0 0
    %3537 = vmatprep.subr.bf16.mxu0 0
    %3538 = vmatpush2.bf16.msra.mxu0 0
    %3539 = vmatprep.subr.bf16.mxu0 0
    %3540 = vmatpush2.bf16.msra.mxu0 0
    %3541 = vmatprep.mubr.bf16.mxu0 0
    %3542 = vmatmul.mubr.bf16.gmra.mxu0 %v3508
    %v3543 = vpop.f32.mrf.mxu0
    %v3544 = vadd.f32 %v231, %v3543
    %v3545 = vpop.f32.mrf.mxu0
    %v3546 = vadd.f32 %v235, %v3545
    %v3547 = vpop.f32.mrf.mxu0
    %v3548 = vpop.f32.mrf.mxu0
    %3549 = vdwg.mxu0
    %v3550 = vxor.u32 %v3544, 2147483648
    %v3551 = vxor.u32 %v3546, 2147483648
    %v3552 = vmul.f32 %v3550, 1.442695
    %v3553 = vpow.pop %v3552
    %v3554 = vmul.f32 %v3551, 1.442695
    %v3555 = vpow.pop %v3554
    %v3556 = vadd.f32 %v3553, 1.0
    %v3557 = vadd.f32 %v3555, 1.0
    %v3558 = vrcp.pop %v3556
    %v3559 = vmul.f32 1.0, %v3558
    %v3560 = vrcp.pop %v3557
    %v3561 = vmul.f32 1.0, %v3560
    %v3562 = vtanh.pop %v3546
    %v3563 = vmul.f32 %v3559, %v2792
    %3565 = vrot.lane.b32.xlu0 %v3562, 64
    %v3566 = vpop.permute.xlu0 %3565
    %v3568 = vmul.f32 %v3559, %v3566
    %3570 = vrot.lane.b32.xlu0 %v3568, 64
    %v3571 = vpop.permute.xlu0 %3570
    %v3573 = vadd.f32 %v3563, %v3571
    %v3574 = vtanh.pop %v3573
    %3576 = vrot.lane.b32.xlu0 %v3574, 64
    %v3577 = vpop.permute.xlu0 %3576
    %v3579 = vmul.f32 %v3561, %v3577
    %3581 = vrot.lane.b32.xlu0 %v2875, 64
    %v3582 = vpop.permute.xlu0 %3581
    %v3584 = vsel %vm102, %v3579, %v3582
    %v3585 = vpack.c.bf16 %v3584, %v3584
    %3586 = vmatprep.subr.bf16.mxu0 %v484
    %3587 = vmatpush1.bf16.msra.mxu0 %v483
    %3588 = vmatprep.subr.bf16.mxu0 %v482
    %3589 = vmatpush1.bf16.msra.mxu0 %v481
    %3590 = vmatprep.subr.bf16.mxu0 %v480
    %3591 = vmatpush1.bf16.msra.mxu0 %v479
    %3592 = vmatprep.subr.bf16.mxu0 %v478
    %3593 = vmatpush1.bf16.msra.mxu0 %v477
    %3594 = vmatprep.subr.bf16.mxu0 %v476
    %3595 = vmatpush1.bf16.msra.mxu0 %v475
    %3596 = vmatprep.subr.bf16.mxu0 %v474
    %3597 = vmatpush1.bf16.msra.mxu0 %v473
    %3598 = vmatprep.subr.bf16.mxu0 %v472
    %3599 = vmatpush1.bf16.msra.mxu0 %v471
    %3600 = vmatprep.subr.bf16.mxu0 %v470
    %3601 = vmatpush1.bf16.msra.mxu0 %v469
    %3602 = vmatprep.subr.bf16.mxu0 0
    %3603 = vmatpush2.bf16.msra.mxu0 0
    %3604 = vmatprep.subr.bf16.mxu0 0
    %3605 = vmatpush2.bf16.msra.mxu0 0
    %3606 = vmatprep.subr.bf16.mxu0 0
    %3607 = vmatpush2.bf16.msra.mxu0 0
    %3608 = vmatprep.subr.bf16.mxu0 0
    %3609 = vmatpush2.bf16.msra.mxu0 0
    %3610 = vmatprep.subr.bf16.mxu0 0
    %3611 = vmatpush2.bf16.msra.mxu0 0
    %3612 = vmatprep.subr.bf16.mxu0 0
    %3613 = vmatpush2.bf16.msra.mxu0 0
    %3614 = vmatprep.subr.bf16.mxu0 0
    %3615 = vmatpush2.bf16.msra.mxu0 0
    %3616 = vmatprep.subr.bf16.mxu0 0
    %3617 = vmatpush2.bf16.msra.mxu0 0
    %3618 = vmatprep.mubr.bf16.mxu0 0
    %3619 = vmatmul.mubr.bf16.gmra.mxu0 %v3585
    %v3620 = vpop.f32.mrf.mxu0
    %v3621 = vadd.f32 %v414, %v3620
    %v3622 = vpop.f32.mrf.mxu0
    %v3623 = vadd.f32 %v418, %v3622
    %v3624 = vpop.f32.mrf.mxu0
    %v3625 = vpop.f32.mrf.mxu0
    %3626 = vdwg.mxu0
    %v3627 = vxor.u32 %v3621, 2147483648
    %v3628 = vxor.u32 %v3623, 2147483648
    %v3629 = vmul.f32 %v3627, 1.442695
    %v3630 = vpow.pop %v3629
    %v3631 = vmul.f32 %v3628, 1.442695
    %v3632 = vpow.pop %v3631
    %v3633 = vadd.f32 %v3630, 1.0
    %v3634 = vadd.f32 %v3632, 1.0
    %v3635 = vrcp.pop %v3633
    %v3636 = vmul.f32 1.0, %v3635
    %v3637 = vrcp.pop %v3634
    %v3638 = vmul.f32 1.0, %v3637
    %v3639 = vtanh.pop %v3623
    %v3640 = vmul.f32 %v3636, %v2869
    %3642 = vrot.lane.b32.xlu0 %v3639, 64
    %v3643 = vpop.permute.xlu0 %3642
    %v3645 = vmul.f32 %v3636, %v3643
    %3647 = vrot.lane.b32.xlu0 %v3645, 64
    %v3648 = vpop.permute.xlu0 %3647
    %v3650 = vadd.f32 %v3640, %v3648
    %v3651 = vtanh.pop %v3650
    %3653 = vrot.lane.b32.xlu0 %v3651, 64
    %v3654 = vpop.permute.xlu0 %3653
    %v3656 = vmul.f32 %v3638, %v3654
    %3658 = vrot.lane.b32.xlu0 %v2952, 64
    %v3659 = vpop.permute.xlu0 %3658
    %v3661 = vsel %vm102, %v3656, %v3659
    %v3662 = vpack.c.bf16 %v3661, %v3661
    %3663 = vmatprep.subr.bf16.mxu0 %v667
    %3664 = vmatpush1.bf16.msra.mxu0 %v666
    %3665 = vmatprep.subr.bf16.mxu0 %v665
    %3666 = vmatpush1.bf16.msra.mxu0 %v664
    %3667 = vmatprep.subr.bf16.mxu0 %v663
    %3668 = vmatpush1.bf16.msra.mxu0 %v662
    %3669 = vmatprep.subr.bf16.mxu0 %v661
    %3670 = vmatpush1.bf16.msra.mxu0 %v660
    %3671 = vmatprep.subr.bf16.mxu0 %v659
    %3672 = vmatpush1.bf16.msra.mxu0 %v658
    %3673 = vmatprep.subr.bf16.mxu0 %v657
    %3674 = vmatpush1.bf16.msra.mxu0 %v656
    %3675 = vmatprep.subr.bf16.mxu0 %v655
    %3676 = vmatpush1.bf16.msra.mxu0 %v654
    %3677 = vmatprep.subr.bf16.mxu0 %v653
    %3678 = vmatpush1.bf16.msra.mxu0 %v652
    %3679 = vmatprep.subr.bf16.mxu0 0
    %3680 = vmatpush2.bf16.msra.mxu0 0
    %3681 = vmatprep.subr.bf16.mxu0 0
    %3682 = vmatpush2.bf16.msra.mxu0 0
    %3683 = vmatprep.subr.bf16.mxu0 0
    %3684 = vmatpush2.bf16.msra.mxu0 0
    %3685 = vmatprep.subr.bf16.mxu0 0
    %3686 = vmatpush2.bf16.msra.mxu0 0
    %3687 = vmatprep.subr.bf16.mxu0 0
    %3688 = vmatpush2.bf16.msra.mxu0 0
    %3689 = vmatprep.subr.bf16.mxu0 0
    %3690 = vmatpush2.bf16.msra.mxu0 0
    %3691 = vmatprep.subr.bf16.mxu0 0
    %3692 = vmatpush2.bf16.msra.mxu0 0
    %3693 = vmatprep.subr.bf16.mxu0 0
    %3694 = vmatpush2.bf16.msra.mxu0 0
    %3695 = vmatprep.mubr.bf16.mxu0 0
    %3696 = vmatmul.mubr.bf16.gmra.mxu0 %v3662
    %v3697 = vpop.f32.mrf.mxu0
    %v3698 = vadd.f32 %v597, %v3697
    %v3699 = vpop.f32.mrf.mxu0
    %v3700 = vadd.f32 %v601, %v3699
    %v3701 = vpop.f32.mrf.mxu0
    %v3702 = vpop.f32.mrf.mxu0
    %3703 = vdwg.mxu0
    %v3704 = vxor.u32 %v3698, 2147483648
    %v3705 = vxor.u32 %v3700, 2147483648
    %v3706 = vmul.f32 %v3704, 1.442695
    %v3707 = vpow.pop %v3706
    %v3708 = vmul.f32 %v3705, 1.442695
    %v3709 = vpow.pop %v3708
    %v3710 = vadd.f32 %v3707, 1.0
    %v3711 = vadd.f32 %v3709, 1.0
    %v3712 = vrcp.pop %v3710
    %v3713 = vmul.f32 1.0, %v3712
    %v3714 = vrcp.pop %v3711
    %v3715 = vmul.f32 1.0, %v3714
    %v3716 = vtanh.pop %v3700
    %v3717 = vmul.f32 %v3713, %v2946
    %3719 = vrot.lane.b32.xlu0 %v3716, 64
    %v3720 = vpop.permute.xlu0 %3719
    %v3722 = vmul.f32 %v3713, %v3720
    %3724 = vrot.lane.b32.xlu0 %v3722, 64
    %v3725 = vpop.permute.xlu0 %3724
    %v3727 = vadd.f32 %v3717, %v3725
    %v3728 = vtanh.pop %v3727
    %3730 = vrot.lane.b32.xlu0 %v3728, 64
    %v3731 = vpop.permute.xlu0 %3730
    %v3733 = vmul.f32 %v3715, %v3731
    %3735 = vrot.lane.b32.xlu0 %v3029, 64
    %v3736 = vpop.permute.xlu0 %3735
    %v3738 = vsel %vm102, %v3733, %v3736
    %v3739 = vpack.c.bf16 %v3738, %v3738
    %3740 = vmatprep.subr.bf16.mxu0 %v850
    %3741 = vmatpush1.bf16.msra.mxu0 %v849
    %3742 = vmatprep.subr.bf16.mxu0 %v848
    %3743 = vmatpush1.bf16.msra.mxu0 %v847
    %3744 = vmatprep.subr.bf16.mxu0 %v846
    %3745 = vmatpush1.bf16.msra.mxu0 %v845
    %3746 = vmatprep.subr.bf16.mxu0 %v844
    %3747 = vmatpush1.bf16.msra.mxu0 %v843
    %3748 = vmatprep.subr.bf16.mxu0 %v842
    %3749 = vmatpush1.bf16.msra.mxu0 %v841
    %3750 = vmatprep.subr.bf16.mxu0 %v840
    %3751 = vmatpush1.bf16.msra.mxu0 %v839
    %3752 = vmatprep.subr.bf16.mxu0 %v838
    %3753 = vmatpush1.bf16.msra.mxu0 %v837
    %3754 = vmatprep.subr.bf16.mxu0 %v836
    %3755 = vmatpush1.bf16.msra.mxu0 %v835
    %3756 = vmatprep.subr.bf16.mxu0 0
    %3757 = vmatpush2.bf16.msra.mxu0 0
    %3758 = vmatprep.subr.bf16.mxu0 0
    %3759 = vmatpush2.bf16.msra.mxu0 0
    %3760 = vmatprep.subr.bf16.mxu0 0
    %3761 = vmatpush2.bf16.msra.mxu0 0
    %3762 = vmatprep.subr.bf16.mxu0 0
    %3763 = vmatpush2.bf16.msra.mxu0 0
    %3764 = vmatprep.subr.bf16.mxu0 0
    %3765 = vmatpush2.bf16.msra.mxu0 0
    %3766 = vmatprep.subr.bf16.mxu0 0
    %3767 = vmatpush2.bf16.msra.mxu0 0
    %3768 = vmatprep.subr.bf16.mxu0 0
    %3769 = vmatpush2.bf16.msra.mxu0 0
    %3770 = vmatprep.subr.bf16.mxu0 0
    %3771 = vmatpush2.bf16.msra.mxu0 0
    %3772 = vmatprep.mubr.bf16.mxu0 0
    %3773 = vmatmul.mubr.bf16.gmra.mxu0 %v3739
    %v3774 = vpop.f32.mrf.mxu0
    %v3775 = vadd.f32 %v780, %v3774
    %v3776 = vpop.f32.mrf.mxu0
    %v3777 = vadd.f32 %v784, %v3776
    %v3778 = vpop.f32.mrf.mxu0
    %v3779 = vpop.f32.mrf.mxu0
    %3780 = vdwg.mxu0
    %v3781 = vxor.u32 %v3775, 2147483648
    %v3782 = vxor.u32 %v3777, 2147483648
    %v3783 = vmul.f32 %v3781, 1.442695
    %v3784 = vpow.pop %v3783
    %v3785 = vmul.f32 %v3782, 1.442695
    %v3786 = vpow.pop %v3785
    %v3787 = vadd.f32 %v3784, 1.0
    %v3788 = vadd.f32 %v3786, 1.0
    %v3789 = vrcp.pop %v3787
    %v3790 = vmul.f32 1.0, %v3789
    %v3791 = vrcp.pop %v3788
    %v3792 = vmul.f32 1.0, %v3791
    %v3793 = vtanh.pop %v3777
    %v3794 = vmul.f32 %v3790, %v3023
    %3796 = vrot.lane.b32.xlu0 %v3793, 64
    %v3797 = vpop.permute.xlu0 %3796
    %v3799 = vmul.f32 %v3790, %v3797
    %3801 = vrot.lane.b32.xlu0 %v3799, 64
    %v3802 = vpop.permute.xlu0 %3801
    %v3804 = vadd.f32 %v3794, %v3802
    %v3805 = vtanh.pop %v3804
    %3807 = vrot.lane.b32.xlu0 %v3805, 64
    %v3808 = vpop.permute.xlu0 %3807
    %v3810 = vmul.f32 %v3792, %v3808
    %3812 = vrot.lane.b32.xlu0 %v3106, 64
    %v3813 = vpop.permute.xlu0 %3812
    %v3815 = vsel %vm102, %v3810, %v3813
    %v3816 = vpack.c.bf16 %v3815, %v3815
    %3817 = vmatprep.subr.bf16.mxu0 %v1033
    %3818 = vmatpush1.bf16.msra.mxu0 %v1032
    %3819 = vmatprep.subr.bf16.mxu0 %v1031
    %3820 = vmatpush1.bf16.msra.mxu0 %v1030
    %3821 = vmatprep.subr.bf16.mxu0 %v1029
    %3822 = vmatpush1.bf16.msra.mxu0 %v1028
    %3823 = vmatprep.subr.bf16.mxu0 %v1027
    %3824 = vmatpush1.bf16.msra.mxu0 %v1026
    %3825 = vmatprep.subr.bf16.mxu0 %v1025
    %3826 = vmatpush1.bf16.msra.mxu0 %v1024
    %3827 = vmatprep.subr.bf16.mxu0 %v1023
    %3828 = vmatpush1.bf16.msra.mxu0 %v1022
    %3829 = vmatprep.subr.bf16.mxu0 %v1021
    %3830 = vmatpush1.bf16.msra.mxu0 %v1020
    %3831 = vmatprep.subr.bf16.mxu0 %v1019
    %3832 = vmatpush1.bf16.msra.mxu0 %v1018
    %3833 = vmatprep.subr.bf16.mxu0 0
    %3834 = vmatpush2.bf16.msra.mxu0 0
    %3835 = vmatprep.subr.bf16.mxu0 0
    %3836 = vmatpush2.bf16.msra.mxu0 0
    %3837 = vmatprep.subr.bf16.mxu0 0
    %3838 = vmatpush2.bf16.msra.mxu0 0
    %3839 = vmatprep.subr.bf16.mxu0 0
    %3840 = vmatpush2.bf16.msra.mxu0 0
    %3841 = vmatprep.subr.bf16.mxu0 0
    %3842 = vmatpush2.bf16.msra.mxu0 0
    %3843 = vmatprep.subr.bf16.mxu0 0
    %3844 = vmatpush2.bf16.msra.mxu0 0
    %3845 = vmatprep.subr.bf16.mxu0 0
    %3846 = vmatpush2.bf16.msra.mxu0 0
    %3847 = vmatprep.subr.bf16.mxu0 0
    %3848 = vmatpush2.bf16.msra.mxu0 0
    %3849 = vmatprep.mubr.bf16.mxu0 0
    %3850 = vmatmul.mubr.bf16.gmra.mxu0 %v3816
    %v3851 = vpop.f32.mrf.mxu0
    %v3852 = vadd.f32 %v963, %v3851
    %v3853 = vpop.f32.mrf.mxu0
    %v3854 = vadd.f32 %v967, %v3853
    %v3855 = vpop.f32.mrf.mxu0
    %v3856 = vpop.f32.mrf.mxu0
    %3857 = vdwg.mxu0
    %v3858 = vxor.u32 %v3852, 2147483648
    %v3859 = vxor.u32 %v3854, 2147483648
    %v3860 = vmul.f32 %v3858, 1.442695
    %v3861 = vpow.pop %v3860
    %v3862 = vmul.f32 %v3859, 1.442695
    %v3863 = vpow.pop %v3862
    %v3864 = vadd.f32 %v3861, 1.0
    %v3865 = vadd.f32 %v3863, 1.0
    %v3866 = vrcp.pop %v3864
    %v3867 = vmul.f32 1.0, %v3866
    %v3868 = vrcp.pop %v3865
    %v3869 = vmul.f32 1.0, %v3868
    %v3870 = vtanh.pop %v3854
    %v3871 = vmul.f32 %v3867, %v3100
    %3873 = vrot.lane.b32.xlu0 %v3870, 64
    %v3874 = vpop.permute.xlu0 %3873
    %v3876 = vmul.f32 %v3867, %v3874
    %3878 = vrot.lane.b32.xlu0 %v3876, 64
    %v3879 = vpop.permute.xlu0 %3878
    %v3881 = vadd.f32 %v3871, %v3879
    %v3882 = vtanh.pop %v3881
    %3884 = vrot.lane.b32.xlu0 %v3882, 64
    %v3885 = vpop.permute.xlu0 %3884
    %v3887 = vmul.f32 %v3869, %v3885
    %3889 = vrot.lane.b32.xlu0 %v3183, 64
    %v3890 = vpop.permute.xlu0 %3889
    %v3892 = vsel %vm102, %v3887, %v3890
    %v3893 = vpack.c.bf16 %v3892, %v3892
    %3894 = vmatprep.subr.bf16.mxu0 %v1216
    %3895 = vmatpush1.bf16.msra.mxu0 %v1215
    %3896 = vmatprep.subr.bf16.mxu0 %v1214
    %3897 = vmatpush1.bf16.msra.mxu0 %v1213
    %3898 = vmatprep.subr.bf16.mxu0 %v1212
    %3899 = vmatpush1.bf16.msra.mxu0 %v1211
    %3900 = vmatprep.subr.bf16.mxu0 %v1210
    %3901 = vmatpush1.bf16.msra.mxu0 %v1209
    %3902 = vmatprep.subr.bf16.mxu0 %v1208
    %3903 = vmatpush1.bf16.msra.mxu0 %v1207
    %3904 = vmatprep.subr.bf16.mxu0 %v1206
    %3905 = vmatpush1.bf16.msra.mxu0 %v1205
    %3906 = vmatprep.subr.bf16.mxu0 %v1204
    %3907 = vmatpush1.bf16.msra.mxu0 %v1203
    %3908 = vmatprep.subr.bf16.mxu0 %v1202
    %3909 = vmatpush1.bf16.msra.mxu0 %v1201
    %3910 = vmatprep.subr.bf16.mxu0 0
    %3911 = vmatpush2.bf16.msra.mxu0 0
    %3912 = vmatprep.subr.bf16.mxu0 0
    %3913 = vmatpush2.bf16.msra.mxu0 0
    %3914 = vmatprep.subr.bf16.mxu0 0
    %3915 = vmatpush2.bf16.msra.mxu0 0
    %3916 = vmatprep.subr.bf16.mxu0 0
    %3917 = vmatpush2.bf16.msra.mxu0 0
    %3918 = vmatprep.subr.bf16.mxu0 0
    %3919 = vmatpush2.bf16.msra.mxu0 0
    %3920 = vmatprep.subr.bf16.mxu0 0
    %3921 = vmatpush2.bf16.msra.mxu0 0
    %3922 = vmatprep.subr.bf16.mxu0 0
    %3923 = vmatpush2.bf16.msra.mxu0 0
    %3924 = vmatprep.subr.bf16.mxu0 0
    %3925 = vmatpush2.bf16.msra.mxu0 0
    %3926 = vmatprep.mubr.bf16.mxu0 0
    %3927 = vmatmul.mubr.bf16.gmra.mxu0 %v3893
    %v3928 = vpop.f32.mrf.mxu0
    %v3929 = vadd.f32 %v1146, %v3928
    %v3930 = vpop.f32.mrf.mxu0
    %v3931 = vadd.f32 %v1150, %v3930
    %v3932 = vpop.f32.mrf.mxu0
    %v3933 = vpop.f32.mrf.mxu0
    %3934 = vdwg.mxu0
    %v3935 = vxor.u32 %v3929, 2147483648
    %v3936 = vxor.u32 %v3931, 2147483648
    %v3937 = vmul.f32 %v3935, 1.442695
    %v3938 = vpow.pop %v3937
    %v3939 = vmul.f32 %v3936, 1.442695
    %v3940 = vpow.pop %v3939
    %v3941 = vadd.f32 %v3938, 1.0
    %v3942 = vadd.f32 %v3940, 1.0
    %v3943 = vrcp.pop %v3941
    %v3944 = vmul.f32 1.0, %v3943
    %v3945 = vrcp.pop %v3942
    %v3946 = vmul.f32 1.0, %v3945
    %v3947 = vtanh.pop %v3931
    %v3948 = vmul.f32 %v3944, %v3177
    %3950 = vrot.lane.b32.xlu0 %v3947, 64
    %v3951 = vpop.permute.xlu0 %3950
    %v3953 = vmul.f32 %v3944, %v3951
    %3955 = vrot.lane.b32.xlu0 %v3953, 64
    %v3956 = vpop.permute.xlu0 %3955
    %v3958 = vadd.f32 %v3948, %v3956
    %v3959 = vtanh.pop %v3958
    %3961 = vrot.lane.b32.xlu0 %v3959, 64
    %v3962 = vpop.permute.xlu0 %3961
    %v3964 = vmul.f32 %v3946, %v3962
    %3966 = vrot.lane.b32.xlu0 %v3260, 64
    %v3967 = vpop.permute.xlu0 %3966
    %v3969 = vsel %vm102, %v3964, %v3967
    %v3970 = vpack.c.bf16 %v3969, %v3969
    %3971 = vmatprep.subr.bf16.mxu0 %v1399
    %3972 = vmatpush1.bf16.msra.mxu0 %v1398
    %3973 = vmatprep.subr.bf16.mxu0 %v1397
    %3974 = vmatpush1.bf16.msra.mxu0 %v1396
    %3975 = vmatprep.subr.bf16.mxu0 %v1395
    %3976 = vmatpush1.bf16.msra.mxu0 %v1394
    %3977 = vmatprep.subr.bf16.mxu0 %v1393
    %3978 = vmatpush1.bf16.msra.mxu0 %v1392
    %3979 = vmatprep.subr.bf16.mxu0 %v1391
    %3980 = vmatpush1.bf16.msra.mxu0 %v1390
    %3981 = vmatprep.subr.bf16.mxu0 %v1389
    %3982 = vmatpush1.bf16.msra.mxu0 %v1388
    %3983 = vmatprep.subr.bf16.mxu0 %v1387
    %3984 = vmatpush1.bf16.msra.mxu0 %v1386
    %3985 = vmatprep.subr.bf16.mxu0 %v1385
    %3986 = vmatpush1.bf16.msra.mxu0 %v1384
    %3987 = vmatprep.subr.bf16.mxu0 0
    %3988 = vmatpush2.bf16.msra.mxu0 0
    %3989 = vmatprep.subr.bf16.mxu0 0
    %3990 = vmatpush2.bf16.msra.mxu0 0
    %3991 = vmatprep.subr.bf16.mxu0 0
    %3992 = vmatpush2.bf16.msra.mxu0 0
    %3993 = vmatprep.subr.bf16.mxu0 0
    %3994 = vmatpush2.bf16.msra.mxu0 0
    %3995 = vmatprep.subr.bf16.mxu0 0
    %3996 = vmatpush2.bf16.msra.mxu0 0
    %3997 = vmatprep.subr.bf16.mxu0 0
    %3998 = vmatpush2.bf16.msra.mxu0 0
    %3999 = vmatprep.subr.bf16.mxu0 0
    %4000 = vmatpush2.bf16.msra.mxu0 0
    %4001 = vmatprep.subr.bf16.mxu0 0
    %4002 = vmatpush2.bf16.msra.mxu0 0
    %4003 = vmatprep.mubr.bf16.mxu0 0
    %4004 = vmatmul.mubr.bf16.gmra.mxu0 %v3970
    %v4005 = vpop.f32.mrf.mxu0
    %v4006 = vadd.f32 %v1329, %v4005
    %v4007 = vpop.f32.mrf.mxu0
    %v4008 = vadd.f32 %v1333, %v4007
    %v4009 = vpop.f32.mrf.mxu0
    %v4010 = vpop.f32.mrf.mxu0
    %4011 = vdwg.mxu0
    %v4012 = vxor.u32 %v4006, 2147483648
    %v4013 = vxor.u32 %v4008, 2147483648
    %v4014 = vmul.f32 %v4012, 1.442695
    %v4015 = vpow.pop %v4014
    %v4016 = vmul.f32 %v4013, 1.442695
    %v4017 = vpow.pop %v4016
    %v4018 = vadd.f32 %v4015, 1.0
    %v4019 = vadd.f32 %v4017, 1.0
    %v4020 = vrcp.pop %v4018
    %v4021 = vmul.f32 1.0, %v4020
    %v4022 = vrcp.pop %v4019
    %v4023 = vmul.f32 1.0, %v4022
    %v4024 = vtanh.pop %v4008
    %v4025 = vmul.f32 %v4021, %v3254
    %4027 = vrot.lane.b32.xlu0 %v4024, 64
    %v4028 = vpop.permute.xlu0 %4027
    %v4030 = vmul.f32 %v4021, %v4028
    %4032 = vrot.lane.b32.xlu0 %v4030, 64
    %v4033 = vpop.permute.xlu0 %4032
    %v4035 = vadd.f32 %v4025, %v4033
    %v4036 = vtanh.pop %v4035
    %4038 = vrot.lane.b32.xlu0 %v4036, 64
    %v4039 = vpop.permute.xlu0 %4038
    %v4041 = vmul.f32 %v4023, %v4039
    %4043 = vrot.lane.b32.xlu0 %v3337, 64
    %v4044 = vpop.permute.xlu0 %4043
    %v4046 = vsel %vm102, %v4041, %v4044
    %v4047 = vpack.c.bf16 %v4046, %v4046
    %4048 = vmatprep.subr.bf16.mxu0 %v1582
    %4049 = vmatpush1.bf16.msra.mxu0 %v1581
    %4050 = vmatprep.subr.bf16.mxu0 %v1580
    %4051 = vmatpush1.bf16.msra.mxu0 %v1579
    %4052 = vmatprep.subr.bf16.mxu0 %v1578
    %4053 = vmatpush1.bf16.msra.mxu0 %v1577
    %4054 = vmatprep.subr.bf16.mxu0 %v1576
    %4055 = vmatpush1.bf16.msra.mxu0 %v1575
    %4056 = vmatprep.subr.bf16.mxu0 %v1574
    %4057 = vmatpush1.bf16.msra.mxu0 %v1573
    %4058 = vmatprep.subr.bf16.mxu0 %v1572
    %4059 = vmatpush1.bf16.msra.mxu0 %v1571
    %4060 = vmatprep.subr.bf16.mxu0 %v1570
    %4061 = vmatpush1.bf16.msra.mxu0 %v1569
    %4062 = vmatprep.subr.bf16.mxu0 %v1568
    %4063 = vmatpush1.bf16.msra.mxu0 %v1567
    %4064 = vmatprep.subr.bf16.mxu0 0
    %4065 = vmatpush2.bf16.msra.mxu0 0
    %4066 = vmatprep.subr.bf16.mxu0 0
    %4067 = vmatpush2.bf16.msra.mxu0 0
    %4068 = vmatprep.subr.bf16.mxu0 0
    %4069 = vmatpush2.bf16.msra.mxu0 0
    %4070 = vmatprep.subr.bf16.mxu0 0
    %4071 = vmatpush2.bf16.msra.mxu0 0
    %4072 = vmatprep.subr.bf16.mxu0 0
    %4073 = vmatpush2.bf16.msra.mxu0 0
    %4074 = vmatprep.subr.bf16.mxu0 0
    %4075 = vmatpush2.bf16.msra.mxu0 0
    %4076 = vmatprep.subr.bf16.mxu0 0
    %4077 = vmatpush2.bf16.msra.mxu0 0
    %4078 = vmatprep.subr.bf16.mxu0 0
    %4079 = vmatpush2.bf16.msra.mxu0 0
    %4080 = vmatprep.mubr.bf16.mxu0 0
    %4081 = vmatmul.mubr.bf16.gmra.mxu0 %v4047
    %v4082 = vpop.f32.mrf.mxu0
    %v4083 = vadd.f32 %v1512, %v4082
    %v4084 = vpop.f32.mrf.mxu0
    %v4085 = vadd.f32 %v1516, %v4084
    %v4086 = vpop.f32.mrf.mxu0
    %v4087 = vpop.f32.mrf.mxu0
    %4088 = vdwg.mxu0
    %v4089 = vxor.u32 %v4083, 2147483648
    %v4090 = vxor.u32 %v4085, 2147483648
    %v4091 = vmul.f32 %v4089, 1.442695
    %v4092 = vpow.pop %v4091
    %v4093 = vmul.f32 %v4090, 1.442695
    %v4094 = vpow.pop %v4093
    %v4095 = vadd.f32 %v4092, 1.0
    %v4096 = vadd.f32 %v4094, 1.0
    %v4097 = vrcp.pop %v4095
    %v4098 = vmul.f32 1.0, %v4097
    %v4099 = vrcp.pop %v4096
    %v4100 = vmul.f32 1.0, %v4099
    %v4101 = vtanh.pop %v4085
    %v4102 = vmul.f32 %v4098, %v3331
    %4104 = vrot.lane.b32.xlu0 %v4101, 64
    %v4105 = vpop.permute.xlu0 %4104
    %v4107 = vmul.f32 %v4098, %v4105
    %4109 = vrot.lane.b32.xlu0 %v4107, 64
    %v4110 = vpop.permute.xlu0 %4109
    %v4112 = vadd.f32 %v4102, %v4110
    %v4113 = vtanh.pop %v4112
    %4115 = vrot.lane.b32.xlu0 %v4113, 64
    %v4116 = vpop.permute.xlu0 %4115
    %v4118 = vmul.f32 %v4100, %v4116
    %4120 = vrot.lane.b32.xlu0 %v3414, 64
    %v4121 = vpop.permute.xlu0 %4120
    %v4123 = vsel %vm102, %v4118, %v4121
    %v4124 = vpack.c.bf16 %v4123, %v4123
    %4125 = vmatprep.subr.bf16.mxu0 %v1765
    %4126 = vmatpush1.bf16.msra.mxu0 %v1764
    %4127 = vmatprep.subr.bf16.mxu0 %v1763
    %4128 = vmatpush1.bf16.msra.mxu0 %v1762
    %4129 = vmatprep.subr.bf16.mxu0 %v1761
    %4130 = vmatpush1.bf16.msra.mxu0 %v1760
    %4131 = vmatprep.subr.bf16.mxu0 %v1759
    %4132 = vmatpush1.bf16.msra.mxu0 %v1758
    %4133 = vmatprep.subr.bf16.mxu0 %v1757
    %4134 = vmatpush1.bf16.msra.mxu0 %v1756
    %4135 = vmatprep.subr.bf16.mxu0 %v1755
    %4136 = vmatpush1.bf16.msra.mxu0 %v1754
    %4137 = vmatprep.subr.bf16.mxu0 %v1753
    %4138 = vmatpush1.bf16.msra.mxu0 %v1752
    %4139 = vmatprep.subr.bf16.mxu0 %v1751
    %4140 = vmatpush1.bf16.msra.mxu0 %v1750
    %4141 = vmatprep.subr.bf16.mxu0 0
    %4142 = vmatpush2.bf16.msra.mxu0 0
    %4143 = vmatprep.subr.bf16.mxu0 0
    %4144 = vmatpush2.bf16.msra.mxu0 0
    %4145 = vmatprep.subr.bf16.mxu0 0
    %4146 = vmatpush2.bf16.msra.mxu0 0
    %4147 = vmatprep.subr.bf16.mxu0 0
    %4148 = vmatpush2.bf16.msra.mxu0 0
    %4149 = vmatprep.subr.bf16.mxu0 0
    %4150 = vmatpush2.bf16.msra.mxu0 0
    %4151 = vmatprep.subr.bf16.mxu0 0
    %4152 = vmatpush2.bf16.msra.mxu0 0
    %4153 = vmatprep.subr.bf16.mxu0 0
    %4154 = vmatpush2.bf16.msra.mxu0 0
    %4155 = vmatprep.subr.bf16.mxu0 0
    %4156 = vmatpush2.bf16.msra.mxu0 0
    %4157 = vmatprep.mubr.bf16.mxu0 0
    %4158 = vmatmul.mubr.bf16.gmra.mxu0 %v4124
    %v4159 = vpop.f32.mrf.mxu0
    %v4160 = vadd.f32 %v1695, %v4159
    %v4161 = vpop.f32.mrf.mxu0
    %v4162 = vadd.f32 %v1699, %v4161
    %v4163 = vpop.f32.mrf.mxu0
    %v4164 = vpop.f32.mrf.mxu0
    %4165 = vdwg.mxu0
    %v4166 = vxor.u32 %v4160, 2147483648
    %v4167 = vxor.u32 %v4162, 2147483648
    %v4168 = vmul.f32 %v4166, 1.442695
    %v4169 = vpow.pop %v4168
    %v4170 = vmul.f32 %v4167, 1.442695
    %v4171 = vpow.pop %v4170
    %v4172 = vadd.f32 %v4169, 1.0
    %v4173 = vadd.f32 %v4171, 1.0
    %v4174 = vrcp.pop %v4172
    %v4175 = vmul.f32 1.0, %v4174
    %v4176 = vrcp.pop %v4173
    %v4177 = vmul.f32 1.0, %v4176
    %v4178 = vtanh.pop %v4162
    %v4179 = vmul.f32 %v4175, %v3408
    %4181 = vrot.lane.b32.xlu0 %v4178, 64
    %v4182 = vpop.permute.xlu0 %4181
    %v4184 = vmul.f32 %v4175, %v4182
    %4186 = vrot.lane.b32.xlu0 %v4184, 64
    %v4187 = vpop.permute.xlu0 %4186
    %v4189 = vadd.f32 %v4179, %v4187
    %v4190 = vtanh.pop %v4189
    %4192 = vrot.lane.b32.xlu0 %v4190, 64
    %v4193 = vpop.permute.xlu0 %4192
    %v4195 = vmul.f32 %v4177, %v4193
    %s4196 = scalar_lea.vmem [#allocation2], 16
    %v4197 = vld [vmem:[%s4196] sm:$0xf]
    %v4198 = vpack.c.bf16 %v3502, %v3502
    %v4200 = vsel %vm102, %v4198, 0
    %4202 = vmatprep.subr.bf16.mxu0 0
    %4203 = vmatpush1.bf16.msra.mxu0 0
    %4204 = vmatprep.subr.bf16.mxu0 0
    %4205 = vmatpush1.bf16.msra.mxu0 0
    %4206 = vmatprep.subr.bf16.mxu0 0
    %4207 = vmatpush1.bf16.msra.mxu0 0
    %4208 = vmatprep.subr.bf16.mxu0 0
    %4209 = vmatpush1.bf16.msra.mxu0 0
    %4210 = vmatprep.subr.bf16.mxu0 %v93
    %4211 = vmatpush1.bf16.msra.mxu0 %v92
    %4212 = vmatprep.subr.bf16.mxu0 %v91
    %4213 = vmatpush1.bf16.msra.mxu0 %v90
    %4214 = vmatprep.subr.bf16.mxu0 %v89
    %4215 = vmatpush1.bf16.msra.mxu0 %v88
    %4216 = vmatprep.subr.bf16.mxu0 %v87
    %4217 = vmatpush1.bf16.msra.mxu0 %v86
    %4218 = vmatprep.subr.bf16.mxu0 0
    %4219 = vmatpush2.bf16.msra.mxu0 0
    %4220 = vmatprep.subr.bf16.mxu0 0
    %4221 = vmatpush2.bf16.msra.mxu0 0
    %4222 = vmatprep.subr.bf16.mxu0 0
    %4223 = vmatpush2.bf16.msra.mxu0 0
    %4224 = vmatprep.subr.bf16.mxu0 0
    %4225 = vmatpush2.bf16.msra.mxu0 0
    %4226 = vmatprep.subr.bf16.mxu0 0
    %4227 = vmatpush2.bf16.msra.mxu0 0
    %4228 = vmatprep.subr.bf16.mxu0 0
    %4229 = vmatpush2.bf16.msra.mxu0 0
    %4230 = vmatprep.subr.bf16.mxu0 0
    %4231 = vmatpush2.bf16.msra.mxu0 0
    %4232 = vmatprep.subr.bf16.mxu0 0
    %4233 = vmatpush2.bf16.msra.mxu0 0
    %4234 = vmatprep.mubr.bf16.mxu0 0
    %4235 = vmatmul.mubr.bf16.gmra.mxu0 %v4200
    %v4236 = vpop.f32.mrf.mxu0
    %v4237 = vadd.f32 0.0, %v4236
    %v4238 = vpop.f32.mrf.mxu0
    %v4239 = vadd.f32 0.0, %v4238
    %v4240 = vpop.f32.mrf.mxu0
    %v4241 = vpop.f32.mrf.mxu0
    %4242 = vdwg.mxu0
    %v4245 = vcombine.low %v4237, %v4239
    %v4247 = vunpack.c.l.s4 1983009808
    %v4248 = vunpack.c.0.s8 %v4247
    %v4249 = vlaneseq
    %v4250 = vshrl.u32 %v4249, 7
    %v4251 = vsub.s32 %v4248, %v4250
    %v4252 = vrot.slane %v4245, %v4251
    %v4254 = vadd.f32 %v4197, %v4252
    %v4255 = vadd.f32 %v4254, %v176
    %v4256 = vxor.u32 %v4255, 2147483648
    %v4257 = vmul.f32 %v4256, 1.442695
    %v4258 = vpow.pop %v4257
    %v4259 = vadd.f32 %v4258, 1.0
    %v4260 = vrcp.pop %v4259
    %v4261 = vmul.f32 1.0, %v4260
    %4263 = vrot.lane.b32.xlu0 %v4255, 64
    %v4264 = vpop.permute.xlu0 %4263
    %v4265 = vrot.slane %v4264, 2
    %v4267 = vtanh.pop %v4265
    %v4268 = vmul.f32 %v4261, %v3493
    %v4269 = vmul.f32 %v4261, %v4267
    %4271 = vrot.lane.b32.xlu0 %v4269, 64
    %v4272 = vpop.permute.xlu0 %4271
    %v4274 = vadd.f32 %v4268, %v4272
    %v4275 = vtanh.pop %v4274
    %v4277 = vrot.slane %v4261, 2
    %4280 = vrot.lane.b32.xlu0 %v4275, 64
    %v4281 = vpop.permute.xlu0 %4280
    %v4283 = vmul.f32 %v4277, %v4281
    %4285 = vrot.lane.b32.xlu0 %v3579, 64
    %v4286 = vpop.permute.xlu0 %4285
    %v4288 = vsel %vm102, %v4283, %v4286
    %v4289 = vpack.c.bf16 %v4288, %v4288
    %4290 = vmatprep.subr.bf16.mxu0 %v301
    %4291 = vmatpush1.bf16.msra.mxu0 %v300
    %4292 = vmatprep.subr.bf16.mxu0 %v299
    %4293 = vmatpush1.bf16.msra.mxu0 %v298
    %4294 = vmatprep.subr.bf16.mxu0 %v297
    %4295 = vmatpush1.bf16.msra.mxu0 %v296
    %4296 = vmatprep.subr.bf16.mxu0 %v295
    %4297 = vmatpush1.bf16.msra.mxu0 %v294
    %4298 = vmatprep.subr.bf16.mxu0 %v293
    %4299 = vmatpush1.bf16.msra.mxu0 %v292
    %4300 = vmatprep.subr.bf16.mxu0 %v291
    %4301 = vmatpush1.bf16.msra.mxu0 %v290
    %4302 = vmatprep.subr.bf16.mxu0 %v289
    %4303 = vmatpush1.bf16.msra.mxu0 %v288
    %4304 = vmatprep.subr.bf16.mxu0 %v287
    %4305 = vmatpush1.bf16.msra.mxu0 %v286
    %4306 = vmatprep.subr.bf16.mxu0 0
    %4307 = vmatpush2.bf16.msra.mxu0 0
    %4308 = vmatprep.subr.bf16.mxu0 0
    %4309 = vmatpush2.bf16.msra.mxu0 0
    %4310 = vmatprep.subr.bf16.mxu0 0
    %4311 = vmatpush2.bf16.msra.mxu0 0
    %4312 = vmatprep.subr.bf16.mxu0 0
    %4313 = vmatpush2.bf16.msra.mxu0 0
    %4314 = vmatprep.subr.bf16.mxu0 0
    %4315 = vmatpush2.bf16.msra.mxu0 0
    %4316 = vmatprep.subr.bf16.mxu0 0
    %4317 = vmatpush2.bf16.msra.mxu0 0
    %4318 = vmatprep.subr.bf16.mxu0 0
    %4319 = vmatpush2.bf16.msra.mxu0 0
    %4320 = vmatprep.subr.bf16.mxu0 0
    %4321 = vmatpush2.bf16.msra.mxu0 0
    %4322 = vmatprep.mubr.bf16.mxu0 0
    %4323 = vmatmul.mubr.bf16.gmra.mxu0 %v4289
    %v4324 = vpop.f32.mrf.mxu0
    %v4325 = vadd.f32 %v231, %v4324
    %v4326 = vpop.f32.mrf.mxu0
    %v4327 = vadd.f32 %v235, %v4326
    %v4328 = vpop.f32.mrf.mxu0
    %v4329 = vpop.f32.mrf.mxu0
    %4330 = vdwg.mxu0
    %v4331 = vxor.u32 %v4325, 2147483648
    %v4332 = vxor.u32 %v4327, 2147483648
    %v4333 = vmul.f32 %v4331, 1.442695
    %v4334 = vpow.pop %v4333
    %v4335 = vmul.f32 %v4332, 1.442695
    %v4336 = vpow.pop %v4335
    %v4337 = vadd.f32 %v4334, 1.0
    %v4338 = vadd.f32 %v4336, 1.0
    %v4339 = vrcp.pop %v4337
    %v4340 = vmul.f32 1.0, %v4339
    %v4341 = vrcp.pop %v4338
    %v4342 = vmul.f32 1.0, %v4341
    %v4343 = vtanh.pop %v4327
    %v4344 = vmul.f32 %v4340, %v3573
    %4346 = vrot.lane.b32.xlu0 %v4343, 64
    %v4347 = vpop.permute.xlu0 %4346
    %v4349 = vmul.f32 %v4340, %v4347
    %4351 = vrot.lane.b32.xlu0 %v4349, 64
    %v4352 = vpop.permute.xlu0 %4351
    %v4354 = vadd.f32 %v4344, %v4352
    %v4355 = vtanh.pop %v4354
    %4357 = vrot.lane.b32.xlu0 %v4355, 64
    %v4358 = vpop.permute.xlu0 %4357
    %v4360 = vmul.f32 %v4342, %v4358
    %4362 = vrot.lane.b32.xlu0 %v3656, 64
    %v4363 = vpop.permute.xlu0 %4362
    %v4365 = vsel %vm102, %v4360, %v4363
    %v4366 = vpack.c.bf16 %v4365, %v4365
    %4367 = vmatprep.subr.bf16.mxu0 %v484
    %4368 = vmatpush1.bf16.msra.mxu0 %v483
    %4369 = vmatprep.subr.bf16.mxu0 %v482
    %4370 = vmatpush1.bf16.msra.mxu0 %v481
    %4371 = vmatprep.subr.bf16.mxu0 %v480
    %4372 = vmatpush1.bf16.msra.mxu0 %v479
    %4373 = vmatprep.subr.bf16.mxu0 %v478
    %4374 = vmatpush1.bf16.msra.mxu0 %v477
    %4375 = vmatprep.subr.bf16.mxu0 %v476
    %4376 = vmatpush1.bf16.msra.mxu0 %v475
    %4377 = vmatprep.subr.bf16.mxu0 %v474
    %4378 = vmatpush1.bf16.msra.mxu0 %v473
    %4379 = vmatprep.subr.bf16.mxu0 %v472
    %4380 = vmatpush1.bf16.msra.mxu0 %v471
    %4381 = vmatprep.subr.bf16.mxu0 %v470
    %4382 = vmatpush1.bf16.msra.mxu0 %v469
    %4383 = vmatprep.subr.bf16.mxu0 0
    %4384 = vmatpush2.bf16.msra.mxu0 0
    %4385 = vmatprep.subr.bf16.mxu0 0
    %4386 = vmatpush2.bf16.msra.mxu0 0
    %4387 = vmatprep.subr.bf16.mxu0 0
    %4388 = vmatpush2.bf16.msra.mxu0 0
    %4389 = vmatprep.subr.bf16.mxu0 0
    %4390 = vmatpush2.bf16.msra.mxu0 0
    %4391 = vmatprep.subr.bf16.mxu0 0
    %4392 = vmatpush2.bf16.msra.mxu0 0
    %4393 = vmatprep.subr.bf16.mxu0 0
    %4394 = vmatpush2.bf16.msra.mxu0 0
    %4395 = vmatprep.subr.bf16.mxu0 0
    %4396 = vmatpush2.bf16.msra.mxu0 0
    %4397 = vmatprep.subr.bf16.mxu0 0
    %4398 = vmatpush2.bf16.msra.mxu0 0
    %4399 = vmatprep.mubr.bf16.mxu0 0
    %4400 = vmatmul.mubr.bf16.gmra.mxu0 %v4366
    %v4401 = vpop.f32.mrf.mxu0
    %v4402 = vadd.f32 %v414, %v4401
    %v4403 = vpop.f32.mrf.mxu0
    %v4404 = vadd.f32 %v418, %v4403
    %v4405 = vpop.f32.mrf.mxu0
    %v4406 = vpop.f32.mrf.mxu0
    %4407 = vdwg.mxu0
    %v4408 = vxor.u32 %v4402, 2147483648
    %v4409 = vxor.u32 %v4404, 2147483648
    %v4410 = vmul.f32 %v4408, 1.442695
    %v4411 = vpow.pop %v4410
    %v4412 = vmul.f32 %v4409, 1.442695
    %v4413 = vpow.pop %v4412
    %v4414 = vadd.f32 %v4411, 1.0
    %v4415 = vadd.f32 %v4413, 1.0
    %v4416 = vrcp.pop %v4414
    %v4417 = vmul.f32 1.0, %v4416
    %v4418 = vrcp.pop %v4415
    %v4419 = vmul.f32 1.0, %v4418
    %v4420 = vtanh.pop %v4404
    %v4421 = vmul.f32 %v4417, %v3650
    %4423 = vrot.lane.b32.xlu0 %v4420, 64
    %v4424 = vpop.permute.xlu0 %4423
    %v4426 = vmul.f32 %v4417, %v4424
    %4428 = vrot.lane.b32.xlu0 %v4426, 64
    %v4429 = vpop.permute.xlu0 %4428
    %v4431 = vadd.f32 %v4421, %v4429
    %v4432 = vtanh.pop %v4431
    %4434 = vrot.lane.b32.xlu0 %v4432, 64
    %v4435 = vpop.permute.xlu0 %4434
    %v4437 = vmul.f32 %v4419, %v4435
    %4439 = vrot.lane.b32.xlu0 %v3733, 64
    %v4440 = vpop.permute.xlu0 %4439
    %v4442 = vsel %vm102, %v4437, %v4440
    %v4443 = vpack.c.bf16 %v4442, %v4442
    %4444 = vmatprep.subr.bf16.mxu0 %v667
    %4445 = vmatpush1.bf16.msra.mxu0 %v666
    %4446 = vmatprep.subr.bf16.mxu0 %v665
    %4447 = vmatpush1.bf16.msra.mxu0 %v664
    %4448 = vmatprep.subr.bf16.mxu0 %v663
    %4449 = vmatpush1.bf16.msra.mxu0 %v662
    %4450 = vmatprep.subr.bf16.mxu0 %v661
    %4451 = vmatpush1.bf16.msra.mxu0 %v660
    %4452 = vmatprep.subr.bf16.mxu0 %v659
    %4453 = vmatpush1.bf16.msra.mxu0 %v658
    %4454 = vmatprep.subr.bf16.mxu0 %v657
    %4455 = vmatpush1.bf16.msra.mxu0 %v656
    %4456 = vmatprep.subr.bf16.mxu0 %v655
    %4457 = vmatpush1.bf16.msra.mxu0 %v654
    %4458 = vmatprep.subr.bf16.mxu0 %v653
    %4459 = vmatpush1.bf16.msra.mxu0 %v652
    %4460 = vmatprep.subr.bf16.mxu0 0
    %4461 = vmatpush2.bf16.msra.mxu0 0
    %4462 = vmatprep.subr.bf16.mxu0 0
    %4463 = vmatpush2.bf16.msra.mxu0 0
    %4464 = vmatprep.subr.bf16.mxu0 0
    %4465 = vmatpush2.bf16.msra.mxu0 0
    %4466 = vmatprep.subr.bf16.mxu0 0
    %4467 = vmatpush2.bf16.msra.mxu0 0
    %4468 = vmatprep.subr.bf16.mxu0 0
    %4469 = vmatpush2.bf16.msra.mxu0 0
    %4470 = vmatprep.subr.bf16.mxu0 0
    %4471 = vmatpush2.bf16.msra.mxu0 0
    %4472 = vmatprep.subr.bf16.mxu0 0
    %4473 = vmatpush2.bf16.msra.mxu0 0
    %4474 = vmatprep.subr.bf16.mxu0 0
    %4475 = vmatpush2.bf16.msra.mxu0 0
    %4476 = vmatprep.mubr.bf16.mxu0 0
    %4477 = vmatmul.mubr.bf16.gmra.mxu0 %v4443
    %v4478 = vpop.f32.mrf.mxu0
    %v4479 = vadd.f32 %v597, %v4478
    %v4480 = vpop.f32.mrf.mxu0
    %v4481 = vadd.f32 %v601, %v4480
    %v4482 = vpop.f32.mrf.mxu0
    %v4483 = vpop.f32.mrf.mxu0
    %4484 = vdwg.mxu0
    %v4485 = vxor.u32 %v4479, 2147483648
    %v4486 = vxor.u32 %v4481, 2147483648
    %v4487 = vmul.f32 %v4485, 1.442695
    %v4488 = vpow.pop %v4487
    %v4489 = vmul.f32 %v4486, 1.442695
    %v4490 = vpow.pop %v4489
    %v4491 = vadd.f32 %v4488, 1.0
    %v4492 = vadd.f32 %v4490, 1.0
    %v4493 = vrcp.pop %v4491
    %v4494 = vmul.f32 1.0, %v4493
    %v4495 = vrcp.pop %v4492
    %v4496 = vmul.f32 1.0, %v4495
    %v4497 = vtanh.pop %v4481
    %v4498 = vmul.f32 %v4494, %v3727
    %4500 = vrot.lane.b32.xlu0 %v4497, 64
    %v4501 = vpop.permute.xlu0 %4500
    %v4503 = vmul.f32 %v4494, %v4501
    %4505 = vrot.lane.b32.xlu0 %v4503, 64
    %v4506 = vpop.permute.xlu0 %4505
    %v4508 = vadd.f32 %v4498, %v4506
    %v4509 = vtanh.pop %v4508
    %4511 = vrot.lane.b32.xlu0 %v4509, 64
    %v4512 = vpop.permute.xlu0 %4511
    %v4514 = vmul.f32 %v4496, %v4512
    %4516 = vrot.lane.b32.xlu0 %v3810, 64
    %v4517 = vpop.permute.xlu0 %4516
    %v4519 = vsel %vm102, %v4514, %v4517
    %v4520 = vpack.c.bf16 %v4519, %v4519
    %4521 = vmatprep.subr.bf16.mxu0 %v850
    %4522 = vmatpush1.bf16.msra.mxu0 %v849
    %4523 = vmatprep.subr.bf16.mxu0 %v848
    %4524 = vmatpush1.bf16.msra.mxu0 %v847
    %4525 = vmatprep.subr.bf16.mxu0 %v846
    %4526 = vmatpush1.bf16.msra.mxu0 %v845
    %4527 = vmatprep.subr.bf16.mxu0 %v844
    %4528 = vmatpush1.bf16.msra.mxu0 %v843
    %4529 = vmatprep.subr.bf16.mxu0 %v842
    %4530 = vmatpush1.bf16.msra.mxu0 %v841
    %4531 = vmatprep.subr.bf16.mxu0 %v840
    %4532 = vmatpush1.bf16.msra.mxu0 %v839
    %4533 = vmatprep.subr.bf16.mxu0 %v838
    %4534 = vmatpush1.bf16.msra.mxu0 %v837
    %4535 = vmatprep.subr.bf16.mxu0 %v836
    %4536 = vmatpush1.bf16.msra.mxu0 %v835
    %4537 = vmatprep.subr.bf16.mxu0 0
    %4538 = vmatpush2.bf16.msra.mxu0 0
    %4539 = vmatprep.subr.bf16.mxu0 0
    %4540 = vmatpush2.bf16.msra.mxu0 0
    %4541 = vmatprep.subr.bf16.mxu0 0
    %4542 = vmatpush2.bf16.msra.mxu0 0
    %4543 = vmatprep.subr.bf16.mxu0 0
    %4544 = vmatpush2.bf16.msra.mxu0 0
    %4545 = vmatprep.subr.bf16.mxu0 0
    %4546 = vmatpush2.bf16.msra.mxu0 0
    %4547 = vmatprep.subr.bf16.mxu0 0
    %4548 = vmatpush2.bf16.msra.mxu0 0
    %4549 = vmatprep.subr.bf16.mxu0 0
    %4550 = vmatpush2.bf16.msra.mxu0 0
    %4551 = vmatprep.subr.bf16.mxu0 0
    %4552 = vmatpush2.bf16.msra.mxu0 0
    %4553 = vmatprep.mubr.bf16.mxu0 0
    %4554 = vmatmul.mubr.bf16.gmra.mxu0 %v4520
    %v4555 = vpop.f32.mrf.mxu0
    %v4556 = vadd.f32 %v780, %v4555
    %v4557 = vpop.f32.mrf.mxu0
    %v4558 = vadd.f32 %v784, %v4557
    %v4559 = vpop.f32.mrf.mxu0
    %v4560 = vpop.f32.mrf.mxu0
    %4561 = vdwg.mxu0
    %v4562 = vxor.u32 %v4556, 2147483648
    %v4563 = vxor.u32 %v4558, 2147483648
    %v4564 = vmul.f32 %v4562, 1.442695
    %v4565 = vpow.pop %v4564
    %v4566 = vmul.f32 %v4563, 1.442695
    %v4567 = vpow.pop %v4566
    %v4568 = vadd.f32 %v4565, 1.0
    %v4569 = vadd.f32 %v4567, 1.0
    %v4570 = vrcp.pop %v4568
    %v4571 = vmul.f32 1.0, %v4570
    %v4572 = vrcp.pop %v4569
    %v4573 = vmul.f32 1.0, %v4572
    %v4574 = vtanh.pop %v4558
    %v4575 = vmul.f32 %v4571, %v3804
    %4577 = vrot.lane.b32.xlu0 %v4574, 64
    %v4578 = vpop.permute.xlu0 %4577
    %v4580 = vmul.f32 %v4571, %v4578
    %4582 = vrot.lane.b32.xlu0 %v4580, 64
    %v4583 = vpop.permute.xlu0 %4582
    %v4585 = vadd.f32 %v4575, %v4583
    %v4586 = vtanh.pop %v4585
    %4588 = vrot.lane.b32.xlu0 %v4586, 64
    %v4589 = vpop.permute.xlu0 %4588
    %v4591 = vmul.f32 %v4573, %v4589
    %4593 = vrot.lane.b32.xlu0 %v3887, 64
    %v4594 = vpop.permute.xlu0 %4593
    %v4596 = vsel %vm102, %v4591, %v4594
    %v4597 = vpack.c.bf16 %v4596, %v4596
    %4598 = vmatprep.subr.bf16.mxu0 %v1033
    %4599 = vmatpush1.bf16.msra.mxu0 %v1032
    %4600 = vmatprep.subr.bf16.mxu0 %v1031
    %4601 = vmatpush1.bf16.msra.mxu0 %v1030
    %4602 = vmatprep.subr.bf16.mxu0 %v1029
    %4603 = vmatpush1.bf16.msra.mxu0 %v1028
    %4604 = vmatprep.subr.bf16.mxu0 %v1027
    %4605 = vmatpush1.bf16.msra.mxu0 %v1026
    %4606 = vmatprep.subr.bf16.mxu0 %v1025
    %4607 = vmatpush1.bf16.msra.mxu0 %v1024
    %4608 = vmatprep.subr.bf16.mxu0 %v1023
    %4609 = vmatpush1.bf16.msra.mxu0 %v1022
    %4610 = vmatprep.subr.bf16.mxu0 %v1021
    %4611 = vmatpush1.bf16.msra.mxu0 %v1020
    %4612 = vmatprep.subr.bf16.mxu0 %v1019
    %4613 = vmatpush1.bf16.msra.mxu0 %v1018
    %4614 = vmatprep.subr.bf16.mxu0 0
    %4615 = vmatpush2.bf16.msra.mxu0 0
    %4616 = vmatprep.subr.bf16.mxu0 0
    %4617 = vmatpush2.bf16.msra.mxu0 0
    %4618 = vmatprep.subr.bf16.mxu0 0
    %4619 = vmatpush2.bf16.msra.mxu0 0
    %4620 = vmatprep.subr.bf16.mxu0 0
    %4621 = vmatpush2.bf16.msra.mxu0 0
    %4622 = vmatprep.subr.bf16.mxu0 0
    %4623 = vmatpush2.bf16.msra.mxu0 0
    %4624 = vmatprep.subr.bf16.mxu0 0
    %4625 = vmatpush2.bf16.msra.mxu0 0
    %4626 = vmatprep.subr.bf16.mxu0 0
    %4627 = vmatpush2.bf16.msra.mxu0 0
    %4628 = vmatprep.subr.bf16.mxu0 0
    %4629 = vmatpush2.bf16.msra.mxu0 0
    %4630 = vmatprep.mubr.bf16.mxu0 0
    %4631 = vmatmul.mubr.bf16.gmra.mxu0 %v4597
    %v4632 = vpop.f32.mrf.mxu0
    %v4633 = vadd.f32 %v963, %v4632
    %v4634 = vpop.f32.mrf.mxu0
    %v4635 = vadd.f32 %v967, %v4634
    %v4636 = vpop.f32.mrf.mxu0
    %v4637 = vpop.f32.mrf.mxu0
    %4638 = vdwg.mxu0
    %v4639 = vxor.u32 %v4633, 2147483648
    %v4640 = vxor.u32 %v4635, 2147483648
    %v4641 = vmul.f32 %v4639, 1.442695
    %v4642 = vpow.pop %v4641
    %v4643 = vmul.f32 %v4640, 1.442695
    %v4644 = vpow.pop %v4643
    %v4645 = vadd.f32 %v4642, 1.0
    %v4646 = vadd.f32 %v4644, 1.0
    %v4647 = vrcp.pop %v4645
    %v4648 = vmul.f32 1.0, %v4647
    %v4649 = vrcp.pop %v4646
    %v4650 = vmul.f32 1.0, %v4649
    %v4651 = vtanh.pop %v4635
    %v4652 = vmul.f32 %v4648, %v3881
    %4654 = vrot.lane.b32.xlu0 %v4651, 64
    %v4655 = vpop.permute.xlu0 %4654
    %v4657 = vmul.f32 %v4648, %v4655
    %4659 = vrot.lane.b32.xlu0 %v4657, 64
    %v4660 = vpop.permute.xlu0 %4659
    %v4662 = vadd.f32 %v4652, %v4660
    %v4663 = vtanh.pop %v4662
    %4665 = vrot.lane.b32.xlu0 %v4663, 64
    %v4666 = vpop.permute.xlu0 %4665
    %v4668 = vmul.f32 %v4650, %v4666
    %4670 = vrot.lane.b32.xlu0 %v3964, 64
    %v4671 = vpop.permute.xlu0 %4670
    %v4673 = vsel %vm102, %v4668, %v4671
    %v4674 = vpack.c.bf16 %v4673, %v4673
    %4675 = vmatprep.subr.bf16.mxu0 %v1216
    %4676 = vmatpush1.bf16.msra.mxu0 %v1215
    %4677 = vmatprep.subr.bf16.mxu0 %v1214
    %4678 = vmatpush1.bf16.msra.mxu0 %v1213
    %4679 = vmatprep.subr.bf16.mxu0 %v1212
    %4680 = vmatpush1.bf16.msra.mxu0 %v1211
    %4681 = vmatprep.subr.bf16.mxu0 %v1210
    %4682 = vmatpush1.bf16.msra.mxu0 %v1209
    %4683 = vmatprep.subr.bf16.mxu0 %v1208
    %4684 = vmatpush1.bf16.msra.mxu0 %v1207
    %4685 = vmatprep.subr.bf16.mxu0 %v1206
    %4686 = vmatpush1.bf16.msra.mxu0 %v1205
    %4687 = vmatprep.subr.bf16.mxu0 %v1204
    %4688 = vmatpush1.bf16.msra.mxu0 %v1203
    %4689 = vmatprep.subr.bf16.mxu0 %v1202
    %4690 = vmatpush1.bf16.msra.mxu0 %v1201
    %4691 = vmatprep.subr.bf16.mxu0 0
    %4692 = vmatpush2.bf16.msra.mxu0 0
    %4693 = vmatprep.subr.bf16.mxu0 0
    %4694 = vmatpush2.bf16.msra.mxu0 0
    %4695 = vmatprep.subr.bf16.mxu0 0
    %4696 = vmatpush2.bf16.msra.mxu0 0
    %4697 = vmatprep.subr.bf16.mxu0 0
    %4698 = vmatpush2.bf16.msra.mxu0 0
    %4699 = vmatprep.subr.bf16.mxu0 0
    %4700 = vmatpush2.bf16.msra.mxu0 0
    %4701 = vmatprep.subr.bf16.mxu0 0
    %4702 = vmatpush2.bf16.msra.mxu0 0
    %4703 = vmatprep.subr.bf16.mxu0 0
    %4704 = vmatpush2.bf16.msra.mxu0 0
    %4705 = vmatprep.subr.bf16.mxu0 0
    %4706 = vmatpush2.bf16.msra.mxu0 0
    %4707 = vmatprep.mubr.bf16.mxu0 0
    %4708 = vmatmul.mubr.bf16.gmra.mxu0 %v4674
    %v4709 = vpop.f32.mrf.mxu0
    %v4710 = vadd.f32 %v1146, %v4709
    %v4711 = vpop.f32.mrf.mxu0
    %v4712 = vadd.f32 %v1150, %v4711
    %v4713 = vpop.f32.mrf.mxu0
    %v4714 = vpop.f32.mrf.mxu0
    %4715 = vdwg.mxu0
    %v4716 = vxor.u32 %v4710, 2147483648
    %v4717 = vxor.u32 %v4712, 2147483648
    %v4718 = vmul.f32 %v4716, 1.442695
    %v4719 = vpow.pop %v4718
    %v4720 = vmul.f32 %v4717, 1.442695
    %v4721 = vpow.pop %v4720
    %v4722 = vadd.f32 %v4719, 1.0
    %v4723 = vadd.f32 %v4721, 1.0
    %v4724 = vrcp.pop %v4722
    %v4725 = vmul.f32 1.0, %v4724
    %v4726 = vrcp.pop %v4723
    %v4727 = vmul.f32 1.0, %v4726
    %v4728 = vtanh.pop %v4712
    %v4729 = vmul.f32 %v4725, %v3958
    %4731 = vrot.lane.b32.xlu0 %v4728, 64
    %v4732 = vpop.permute.xlu0 %4731
    %v4734 = vmul.f32 %v4725, %v4732
    %4736 = vrot.lane.b32.xlu0 %v4734, 64
    %v4737 = vpop.permute.xlu0 %4736
    %v4739 = vadd.f32 %v4729, %v4737
    %v4740 = vtanh.pop %v4739
    %4742 = vrot.lane.b32.xlu0 %v4740, 64
    %v4743 = vpop.permute.xlu0 %4742
    %v4745 = vmul.f32 %v4727, %v4743
    %4747 = vrot.lane.b32.xlu0 %v4041, 64
    %v4748 = vpop.permute.xlu0 %4747
    %v4750 = vsel %vm102, %v4745, %v4748
    %v4751 = vpack.c.bf16 %v4750, %v4750
    %4752 = vmatprep.subr.bf16.mxu0 %v1399
    %4753 = vmatpush1.bf16.msra.mxu0 %v1398
    %4754 = vmatprep.subr.bf16.mxu0 %v1397
    %4755 = vmatpush1.bf16.msra.mxu0 %v1396
    %4756 = vmatprep.subr.bf16.mxu0 %v1395
    %4757 = vmatpush1.bf16.msra.mxu0 %v1394
    %4758 = vmatprep.subr.bf16.mxu0 %v1393
    %4759 = vmatpush1.bf16.msra.mxu0 %v1392
    %4760 = vmatprep.subr.bf16.mxu0 %v1391
    %4761 = vmatpush1.bf16.msra.mxu0 %v1390
    %4762 = vmatprep.subr.bf16.mxu0 %v1389
    %4763 = vmatpush1.bf16.msra.mxu0 %v1388
    %4764 = vmatprep.subr.bf16.mxu0 %v1387
    %4765 = vmatpush1.bf16.msra.mxu0 %v1386
    %4766 = vmatprep.subr.bf16.mxu0 %v1385
    %4767 = vmatpush1.bf16.msra.mxu0 %v1384
    %4768 = vmatprep.subr.bf16.mxu0 0
    %4769 = vmatpush2.bf16.msra.mxu0 0
    %4770 = vmatprep.subr.bf16.mxu0 0
    %4771 = vmatpush2.bf16.msra.mxu0 0
    %4772 = vmatprep.subr.bf16.mxu0 0
    %4773 = vmatpush2.bf16.msra.mxu0 0
    %4774 = vmatprep.subr.bf16.mxu0 0
    %4775 = vmatpush2.bf16.msra.mxu0 0
    %4776 = vmatprep.subr.bf16.mxu0 0
    %4777 = vmatpush2.bf16.msra.mxu0 0
    %4778 = vmatprep.subr.bf16.mxu0 0
    %4779 = vmatpush2.bf16.msra.mxu0 0
    %4780 = vmatprep.subr.bf16.mxu0 0
    %4781 = vmatpush2.bf16.msra.mxu0 0
    %4782 = vmatprep.subr.bf16.mxu0 0
    %4783 = vmatpush2.bf16.msra.mxu0 0
    %4784 = vmatprep.mubr.bf16.mxu0 0
    %4785 = vmatmul.mubr.bf16.gmra.mxu0 %v4751
    %v4786 = vpop.f32.mrf.mxu0
    %v4787 = vadd.f32 %v1329, %v4786
    %v4788 = vpop.f32.mrf.mxu0
    %v4789 = vadd.f32 %v1333, %v4788
    %v4790 = vpop.f32.mrf.mxu0
    %v4791 = vpop.f32.mrf.mxu0
    %4792 = vdwg.mxu0
    %v4793 = vxor.u32 %v4787, 2147483648
    %v4794 = vxor.u32 %v4789, 2147483648
    %v4795 = vmul.f32 %v4793, 1.442695
    %v4796 = vpow.pop %v4795
    %v4797 = vmul.f32 %v4794, 1.442695
    %v4798 = vpow.pop %v4797
    %v4799 = vadd.f32 %v4796, 1.0
    %v4800 = vadd.f32 %v4798, 1.0
    %v4801 = vrcp.pop %v4799
    %v4802 = vmul.f32 1.0, %v4801
    %v4803 = vrcp.pop %v4800
    %v4804 = vmul.f32 1.0, %v4803
    %v4805 = vtanh.pop %v4789
    %v4806 = vmul.f32 %v4802, %v4035
    %4808 = vrot.lane.b32.xlu0 %v4805, 64
    %v4809 = vpop.permute.xlu0 %4808
    %v4811 = vmul.f32 %v4802, %v4809
    %4813 = vrot.lane.b32.xlu0 %v4811, 64
    %v4814 = vpop.permute.xlu0 %4813
    %v4816 = vadd.f32 %v4806, %v4814
    %v4817 = vtanh.pop %v4816
    %4819 = vrot.lane.b32.xlu0 %v4817, 64
    %v4820 = vpop.permute.xlu0 %4819
    %v4822 = vmul.f32 %v4804, %v4820
    %4824 = vrot.lane.b32.xlu0 %v4118, 64
    %v4825 = vpop.permute.xlu0 %4824
    %v4827 = vsel %vm102, %v4822, %v4825
    %v4828 = vpack.c.bf16 %v4827, %v4827
    %4829 = vmatprep.subr.bf16.mxu0 %v1582
    %4830 = vmatpush1.bf16.msra.mxu0 %v1581
    %4831 = vmatprep.subr.bf16.mxu0 %v1580
    %4832 = vmatpush1.bf16.msra.mxu0 %v1579
    %4833 = vmatprep.subr.bf16.mxu0 %v1578
    %4834 = vmatpush1.bf16.msra.mxu0 %v1577
    %4835 = vmatprep.subr.bf16.mxu0 %v1576
    %4836 = vmatpush1.bf16.msra.mxu0 %v1575
    %4837 = vmatprep.subr.bf16.mxu0 %v1574
    %4838 = vmatpush1.bf16.msra.mxu0 %v1573
    %4839 = vmatprep.subr.bf16.mxu0 %v1572
    %4840 = vmatpush1.bf16.msra.mxu0 %v1571
    %4841 = vmatprep.subr.bf16.mxu0 %v1570
    %4842 = vmatpush1.bf16.msra.mxu0 %v1569
    %4843 = vmatprep.subr.bf16.mxu0 %v1568
    %4844 = vmatpush1.bf16.msra.mxu0 %v1567
    %4845 = vmatprep.subr.bf16.mxu0 0
    %4846 = vmatpush2.bf16.msra.mxu0 0
    %4847 = vmatprep.subr.bf16.mxu0 0
    %4848 = vmatpush2.bf16.msra.mxu0 0
    %4849 = vmatprep.subr.bf16.mxu0 0
    %4850 = vmatpush2.bf16.msra.mxu0 0
    %4851 = vmatprep.subr.bf16.mxu0 0
    %4852 = vmatpush2.bf16.msra.mxu0 0
    %4853 = vmatprep.subr.bf16.mxu0 0
    %4854 = vmatpush2.bf16.msra.mxu0 0
    %4855 = vmatprep.subr.bf16.mxu0 0
    %4856 = vmatpush2.bf16.msra.mxu0 0
    %4857 = vmatprep.subr.bf16.mxu0 0
    %4858 = vmatpush2.bf16.msra.mxu0 0
    %4859 = vmatprep.subr.bf16.mxu0 0
    %4860 = vmatpush2.bf16.msra.mxu0 0
    %4861 = vmatprep.mubr.bf16.mxu0 0
    %4862 = vmatmul.mubr.bf16.gmra.mxu0 %v4828
    %v4863 = vpop.f32.mrf.mxu0
    %v4864 = vadd.f32 %v1512, %v4863
    %v4865 = vpop.f32.mrf.mxu0
    %v4866 = vadd.f32 %v1516, %v4865
    %v4867 = vpop.f32.mrf.mxu0
    %v4868 = vpop.f32.mrf.mxu0
    %4869 = vdwg.mxu0
    %v4870 = vxor.u32 %v4864, 2147483648
    %v4871 = vxor.u32 %v4866, 2147483648
    %v4872 = vmul.f32 %v4870, 1.442695
    %v4873 = vpow.pop %v4872
    %v4874 = vmul.f32 %v4871, 1.442695
    %v4875 = vpow.pop %v4874
    %v4876 = vadd.f32 %v4873, 1.0
    %v4877 = vadd.f32 %v4875, 1.0
    %v4878 = vrcp.pop %v4876
    %v4879 = vmul.f32 1.0, %v4878
    %v4880 = vrcp.pop %v4877
    %v4881 = vmul.f32 1.0, %v4880
    %v4882 = vtanh.pop %v4866
    %v4883 = vmul.f32 %v4879, %v4112
    %4885 = vrot.lane.b32.xlu0 %v4882, 64
    %v4886 = vpop.permute.xlu0 %4885
    %v4888 = vmul.f32 %v4879, %v4886
    %4890 = vrot.lane.b32.xlu0 %v4888, 64
    %v4891 = vpop.permute.xlu0 %4890
    %v4893 = vadd.f32 %v4883, %v4891
    %v4894 = vtanh.pop %v4893
    %4896 = vrot.lane.b32.xlu0 %v4894, 64
    %v4897 = vpop.permute.xlu0 %4896
    %v4899 = vmul.f32 %v4881, %v4897
    %4901 = vrot.lane.b32.xlu0 %v4195, 64
    %v4902 = vpop.permute.xlu0 %4901
    %v4904 = vsel %vm102, %v4899, %v4902
    %v4905 = vpack.c.bf16 %v4904, %v4904
    %4906 = vmatprep.subr.bf16.mxu0 %v1765
    %4907 = vmatpush1.bf16.msra.mxu0 %v1764
    %4908 = vmatprep.subr.bf16.mxu0 %v1763
    %4909 = vmatpush1.bf16.msra.mxu0 %v1762
    %4910 = vmatprep.subr.bf16.mxu0 %v1761
    %4911 = vmatpush1.bf16.msra.mxu0 %v1760
    %4912 = vmatprep.subr.bf16.mxu0 %v1759
    %4913 = vmatpush1.bf16.msra.mxu0 %v1758
    %4914 = vmatprep.subr.bf16.mxu0 %v1757
    %4915 = vmatpush1.bf16.msra.mxu0 %v1756
    %4916 = vmatprep.subr.bf16.mxu0 %v1755
    %4917 = vmatpush1.bf16.msra.mxu0 %v1754
    %4918 = vmatprep.subr.bf16.mxu0 %v1753
    %4919 = vmatpush1.bf16.msra.mxu0 %v1752
    %4920 = vmatprep.subr.bf16.mxu0 %v1751
    %4921 = vmatpush1.bf16.msra.mxu0 %v1750
    %4922 = vmatprep.subr.bf16.mxu0 0
    %4923 = vmatpush2.bf16.msra.mxu0 0
    %4924 = vmatprep.subr.bf16.mxu0 0
    %4925 = vmatpush2.bf16.msra.mxu0 0
    %4926 = vmatprep.subr.bf16.mxu0 0
    %4927 = vmatpush2.bf16.msra.mxu0 0
    %4928 = vmatprep.subr.bf16.mxu0 0
    %4929 = vmatpush2.bf16.msra.mxu0 0
    %4930 = vmatprep.subr.bf16.mxu0 0
    %4931 = vmatpush2.bf16.msra.mxu0 0
    %4932 = vmatprep.subr.bf16.mxu0 0
    %4933 = vmatpush2.bf16.msra.mxu0 0
    %4934 = vmatprep.subr.bf16.mxu0 0
    %4935 = vmatpush2.bf16.msra.mxu0 0
    %4936 = vmatprep.subr.bf16.mxu0 0
    %4937 = vmatpush2.bf16.msra.mxu0 0
    %4938 = vmatprep.mubr.bf16.mxu0 0
    %4939 = vmatmul.mubr.bf16.gmra.mxu0 %v4905
    %v4940 = vpop.f32.mrf.mxu0
    %v4941 = vadd.f32 %v1695, %v4940
    %v4942 = vpop.f32.mrf.mxu0
    %v4943 = vadd.f32 %v1699, %v4942
    %v4944 = vpop.f32.mrf.mxu0
    %v4945 = vpop.f32.mrf.mxu0
    %4946 = vdwg.mxu0
    %v4947 = vxor.u32 %v4941, 2147483648
    %v4948 = vxor.u32 %v4943, 2147483648
    %v4949 = vmul.f32 %v4947, 1.442695
    %v4950 = vpow.pop %v4949
    %v4951 = vmul.f32 %v4948, 1.442695
    %v4952 = vpow.pop %v4951
    %v4953 = vadd.f32 %v4950, 1.0
    %v4954 = vadd.f32 %v4952, 1.0
    %v4955 = vrcp.pop %v4953
    %v4956 = vmul.f32 1.0, %v4955
    %v4957 = vrcp.pop %v4954
    %v4958 = vmul.f32 1.0, %v4957
    %v4959 = vtanh.pop %v4943
    %v4960 = vmul.f32 %v4956, %v4189
    %4962 = vrot.lane.b32.xlu0 %v4959, 64
    %v4963 = vpop.permute.xlu0 %4962
    %v4965 = vmul.f32 %v4956, %v4963
    %4967 = vrot.lane.b32.xlu0 %v4965, 64
    %v4968 = vpop.permute.xlu0 %4967
    %v4970 = vadd.f32 %v4960, %v4968
    %v4971 = vtanh.pop %v4970
    %4973 = vrot.lane.b32.xlu0 %v4971, 64
    %v4974 = vpop.permute.xlu0 %4973
    %v4976 = vmul.f32 %v4958, %v4974
    %s4977 = scalar_lea.vmem [#allocation2], 20
    %v4978 = vld [vmem:[%s4977] sm:$0xf]
    %v4979 = vpack.c.bf16 %v4283, %v4283
    %v4981 = vsel %vm102, %v4979, 0
    %4983 = vmatprep.subr.bf16.mxu0 0
    %4984 = vmatpush1.bf16.msra.mxu0 0
    %4985 = vmatprep.subr.bf16.mxu0 0
    %4986 = vmatpush1.bf16.msra.mxu0 0
    %4987 = vmatprep.subr.bf16.mxu0 0
    %4988 = vmatpush1.bf16.msra.mxu0 0
    %4989 = vmatprep.subr.bf16.mxu0 0
    %4990 = vmatpush1.bf16.msra.mxu0 0
    %4991 = vmatprep.subr.bf16.mxu0 %v93
    %4992 = vmatpush1.bf16.msra.mxu0 %v92
    %4993 = vmatprep.subr.bf16.mxu0 %v91
    %4994 = vmatpush1.bf16.msra.mxu0 %v90
    %4995 = vmatprep.subr.bf16.mxu0 %v89
    %4996 = vmatpush1.bf16.msra.mxu0 %v88
    %4997 = vmatprep.subr.bf16.mxu0 %v87
    %4998 = vmatpush1.bf16.msra.mxu0 %v86
    %4999 = vmatprep.subr.bf16.mxu0 0
    %5000 = vmatpush2.bf16.msra.mxu0 0
    %5001 = vmatprep.subr.bf16.mxu0 0
    %5002 = vmatpush2.bf16.msra.mxu0 0
    %5003 = vmatprep.subr.bf16.mxu0 0
    %5004 = vmatpush2.bf16.msra.mxu0 0
    %5005 = vmatprep.subr.bf16.mxu0 0
    %5006 = vmatpush2.bf16.msra.mxu0 0
    %5007 = vmatprep.subr.bf16.mxu0 0
    %5008 = vmatpush2.bf16.msra.mxu0 0
    %5009 = vmatprep.subr.bf16.mxu0 0
    %5010 = vmatpush2.bf16.msra.mxu0 0
    %5011 = vmatprep.subr.bf16.mxu0 0
    %5012 = vmatpush2.bf16.msra.mxu0 0
    %5013 = vmatprep.subr.bf16.mxu0 0
    %5014 = vmatpush2.bf16.msra.mxu0 0
    %5015 = vmatprep.mubr.bf16.mxu0 0
    %5016 = vmatmul.mubr.bf16.gmra.mxu0 %v4981
    %v5017 = vpop.f32.mrf.mxu0
    %v5018 = vadd.f32 0.0, %v5017
    %v5019 = vpop.f32.mrf.mxu0
    %v5020 = vadd.f32 0.0, %v5019
    %v5021 = vpop.f32.mrf.mxu0
    %v5022 = vpop.f32.mrf.mxu0
    %5023 = vdwg.mxu0
    %v5026 = vcombine.low %v5018, %v5020
    %v5028 = vunpack.c.l.s4 1983009808
    %v5029 = vunpack.c.0.s8 %v5028
    %v5030 = vlaneseq
    %v5031 = vshrl.u32 %v5030, 7
    %v5032 = vsub.s32 %v5029, %v5031
    %v5033 = vrot.slane %v5026, %v5032
    %v5035 = vadd.f32 %v4978, %v5033
    %v5036 = vadd.f32 %v5035, %v176
    %v5037 = vxor.u32 %v5036, 2147483648
    %v5038 = vmul.f32 %v5037, 1.442695
    %v5039 = vpow.pop %v5038
    %v5040 = vadd.f32 %v5039, 1.0
    %v5041 = vrcp.pop %v5040
    %v5042 = vmul.f32 1.0, %v5041
    %5044 = vrot.lane.b32.xlu0 %v5036, 64
    %v5045 = vpop.permute.xlu0 %5044
    %v5046 = vrot.slane %v5045, 2
    %v5048 = vtanh.pop %v5046
    %v5049 = vmul.f32 %v5042, %v4274
    %v5050 = vmul.f32 %v5042, %v5048
    %5052 = vrot.lane.b32.xlu0 %v5050, 64
    %v5053 = vpop.permute.xlu0 %5052
    %v5055 = vadd.f32 %v5049, %v5053
    %v5056 = vtanh.pop %v5055
    %v5058 = vrot.slane %v5042, 2
    %5061 = vrot.lane.b32.xlu0 %v5056, 64
    %v5062 = vpop.permute.xlu0 %5061
    %v5064 = vmul.f32 %v5058, %v5062
    %5066 = vrot.lane.b32.xlu0 %v4360, 64
    %v5067 = vpop.permute.xlu0 %5066
    %v5069 = vsel %vm102, %v5064, %v5067
    %v5070 = vpack.c.bf16 %v5069, %v5069
    %5071 = vmatprep.subr.bf16.mxu0 %v301
    %5072 = vmatpush1.bf16.msra.mxu0 %v300
    %5073 = vmatprep.subr.bf16.mxu0 %v299
    %5074 = vmatpush1.bf16.msra.mxu0 %v298
    %5075 = vmatprep.subr.bf16.mxu0 %v297
    %5076 = vmatpush1.bf16.msra.mxu0 %v296
    %5077 = vmatprep.subr.bf16.mxu0 %v295
    %5078 = vmatpush1.bf16.msra.mxu0 %v294
    %5079 = vmatprep.subr.bf16.mxu0 %v293
    %5080 = vmatpush1.bf16.msra.mxu0 %v292
    %5081 = vmatprep.subr.bf16.mxu0 %v291
    %5082 = vmatpush1.bf16.msra.mxu0 %v290
    %5083 = vmatprep.subr.bf16.mxu0 %v289
    %5084 = vmatpush1.bf16.msra.mxu0 %v288
    %5085 = vmatprep.subr.bf16.mxu0 %v287
    %5086 = vmatpush1.bf16.msra.mxu0 %v286
    %5087 = vmatprep.subr.bf16.mxu0 0
    %5088 = vmatpush2.bf16.msra.mxu0 0
    %5089 = vmatprep.subr.bf16.mxu0 0
    %5090 = vmatpush2.bf16.msra.mxu0 0
    %5091 = vmatprep.subr.bf16.mxu0 0
    %5092 = vmatpush2.bf16.msra.mxu0 0
    %5093 = vmatprep.subr.bf16.mxu0 0
    %5094 = vmatpush2.bf16.msra.mxu0 0
    %5095 = vmatprep.subr.bf16.mxu0 0
    %5096 = vmatpush2.bf16.msra.mxu0 0
    %5097 = vmatprep.subr.bf16.mxu0 0
    %5098 = vmatpush2.bf16.msra.mxu0 0
    %5099 = vmatprep.subr.bf16.mxu0 0
    %5100 = vmatpush2.bf16.msra.mxu0 0
    %5101 = vmatprep.subr.bf16.mxu0 0
    %5102 = vmatpush2.bf16.msra.mxu0 0
    %5103 = vmatprep.mubr.bf16.mxu0 0
    %5104 = vmatmul.mubr.bf16.gmra.mxu0 %v5070
    %v5105 = vpop.f32.mrf.mxu0
    %v5106 = vadd.f32 %v231, %v5105
    %v5107 = vpop.f32.mrf.mxu0
    %v5108 = vadd.f32 %v235, %v5107
    %v5109 = vpop.f32.mrf.mxu0
    %v5110 = vpop.f32.mrf.mxu0
    %5111 = vdwg.mxu0
    %v5112 = vxor.u32 %v5106, 2147483648
    %v5113 = vxor.u32 %v5108, 2147483648
    %v5114 = vmul.f32 %v5112, 1.442695
    %v5115 = vpow.pop %v5114
    %v5116 = vmul.f32 %v5113, 1.442695
    %v5117 = vpow.pop %v5116
    %v5118 = vadd.f32 %v5115, 1.0
    %v5119 = vadd.f32 %v5117, 1.0
    %v5120 = vrcp.pop %v5118
    %v5121 = vmul.f32 1.0, %v5120
    %v5122 = vrcp.pop %v5119
    %v5123 = vmul.f32 1.0, %v5122
    %v5124 = vtanh.pop %v5108
    %v5125 = vmul.f32 %v5121, %v4354
    %5127 = vrot.lane.b32.xlu0 %v5124, 64
    %v5128 = vpop.permute.xlu0 %5127
    %v5130 = vmul.f32 %v5121, %v5128
    %5132 = vrot.lane.b32.xlu0 %v5130, 64
    %v5133 = vpop.permute.xlu0 %5132
    %v5135 = vadd.f32 %v5125, %v5133
    %v5136 = vtanh.pop %v5135
    %5138 = vrot.lane.b32.xlu0 %v5136, 64
    %v5139 = vpop.permute.xlu0 %5138
    %v5141 = vmul.f32 %v5123, %v5139
    %5143 = vrot.lane.b32.xlu0 %v4437, 64
    %v5144 = vpop.permute.xlu0 %5143
    %v5146 = vsel %vm102, %v5141, %v5144
    %v5147 = vpack.c.bf16 %v5146, %v5146
    %5148 = vmatprep.subr.bf16.mxu0 %v484
    %5149 = vmatpush1.bf16.msra.mxu0 %v483
    %5150 = vmatprep.subr.bf16.mxu0 %v482
    %5151 = vmatpush1.bf16.msra.mxu0 %v481
    %5152 = vmatprep.subr.bf16.mxu0 %v480
    %5153 = vmatpush1.bf16.msra.mxu0 %v479
    %5154 = vmatprep.subr.bf16.mxu0 %v478
    %5155 = vmatpush1.bf16.msra.mxu0 %v477
    %5156 = vmatprep.subr.bf16.mxu0 %v476
    %5157 = vmatpush1.bf16.msra.mxu0 %v475
    %5158 = vmatprep.subr.bf16.mxu0 %v474
    %5159 = vmatpush1.bf16.msra.mxu0 %v473
    %5160 = vmatprep.subr.bf16.mxu0 %v472
    %5161 = vmatpush1.bf16.msra.mxu0 %v471
    %5162 = vmatprep.subr.bf16.mxu0 %v470
    %5163 = vmatpush1.bf16.msra.mxu0 %v469
    %5164 = vmatprep.subr.bf16.mxu0 0
    %5165 = vmatpush2.bf16.msra.mxu0 0
    %5166 = vmatprep.subr.bf16.mxu0 0
    %5167 = vmatpush2.bf16.msra.mxu0 0
    %5168 = vmatprep.subr.bf16.mxu0 0
    %5169 = vmatpush2.bf16.msra.mxu0 0
    %5170 = vmatprep.subr.bf16.mxu0 0
    %5171 = vmatpush2.bf16.msra.mxu0 0
    %5172 = vmatprep.subr.bf16.mxu0 0
    %5173 = vmatpush2.bf16.msra.mxu0 0
    %5174 = vmatprep.subr.bf16.mxu0 0
    %5175 = vmatpush2.bf16.msra.mxu0 0
    %5176 = vmatprep.subr.bf16.mxu0 0
    %5177 = vmatpush2.bf16.msra.mxu0 0
    %5178 = vmatprep.subr.bf16.mxu0 0
    %5179 = vmatpush2.bf16.msra.mxu0 0
    %5180 = vmatprep.mubr.bf16.mxu0 0
    %5181 = vmatmul.mubr.bf16.gmra.mxu0 %v5147
    %v5182 = vpop.f32.mrf.mxu0
    %v5183 = vadd.f32 %v414, %v5182
    %v5184 = vpop.f32.mrf.mxu0
    %v5185 = vadd.f32 %v418, %v5184
    %v5186 = vpop.f32.mrf.mxu0
    %v5187 = vpop.f32.mrf.mxu0
    %5188 = vdwg.mxu0
    %v5189 = vxor.u32 %v5183, 2147483648
    %v5190 = vxor.u32 %v5185, 2147483648
    %v5191 = vmul.f32 %v5189, 1.442695
    %v5192 = vpow.pop %v5191
    %v5193 = vmul.f32 %v5190, 1.442695
    %v5194 = vpow.pop %v5193
    %v5195 = vadd.f32 %v5192, 1.0
    %v5196 = vadd.f32 %v5194, 1.0
    %v5197 = vrcp.pop %v5195
    %v5198 = vmul.f32 1.0, %v5197
    %v5199 = vrcp.pop %v5196
    %v5200 = vmul.f32 1.0, %v5199
    %v5201 = vtanh.pop %v5185
    %v5202 = vmul.f32 %v5198, %v4431
    %5204 = vrot.lane.b32.xlu0 %v5201, 64
    %v5205 = vpop.permute.xlu0 %5204
    %v5207 = vmul.f32 %v5198, %v5205
    %5209 = vrot.lane.b32.xlu0 %v5207, 64
    %v5210 = vpop.permute.xlu0 %5209
    %v5212 = vadd.f32 %v5202, %v5210
    %v5213 = vtanh.pop %v5212
    %5215 = vrot.lane.b32.xlu0 %v5213, 64
    %v5216 = vpop.permute.xlu0 %5215
    %v5218 = vmul.f32 %v5200, %v5216
    %5220 = vrot.lane.b32.xlu0 %v4514, 64
    %v5221 = vpop.permute.xlu0 %5220
    %v5223 = vsel %vm102, %v5218, %v5221
    %v5224 = vpack.c.bf16 %v5223, %v5223
    %5225 = vmatprep.subr.bf16.mxu0 %v667
    %5226 = vmatpush1.bf16.msra.mxu0 %v666
    %5227 = vmatprep.subr.bf16.mxu0 %v665
    %5228 = vmatpush1.bf16.msra.mxu0 %v664
    %5229 = vmatprep.subr.bf16.mxu0 %v663
    %5230 = vmatpush1.bf16.msra.mxu0 %v662
    %5231 = vmatprep.subr.bf16.mxu0 %v661
    %5232 = vmatpush1.bf16.msra.mxu0 %v660
    %5233 = vmatprep.subr.bf16.mxu0 %v659
    %5234 = vmatpush1.bf16.msra.mxu0 %v658
    %5235 = vmatprep.subr.bf16.mxu0 %v657
    %5236 = vmatpush1.bf16.msra.mxu0 %v656
    %5237 = vmatprep.subr.bf16.mxu0 %v655
    %5238 = vmatpush1.bf16.msra.mxu0 %v654
    %5239 = vmatprep.subr.bf16.mxu0 %v653
    %5240 = vmatpush1.bf16.msra.mxu0 %v652
    %5241 = vmatprep.subr.bf16.mxu0 0
    %5242 = vmatpush2.bf16.msra.mxu0 0
    %5243 = vmatprep.subr.bf16.mxu0 0
    %5244 = vmatpush2.bf16.msra.mxu0 0
    %5245 = vmatprep.subr.bf16.mxu0 0
    %5246 = vmatpush2.bf16.msra.mxu0 0
    %5247 = vmatprep.subr.bf16.mxu0 0
    %5248 = vmatpush2.bf16.msra.mxu0 0
    %5249 = vmatprep.subr.bf16.mxu0 0
    %5250 = vmatpush2.bf16.msra.mxu0 0
    %5251 = vmatprep.subr.bf16.mxu0 0
    %5252 = vmatpush2.bf16.msra.mxu0 0
    %5253 = vmatprep.subr.bf16.mxu0 0
    %5254 = vmatpush2.bf16.msra.mxu0 0
    %5255 = vmatprep.subr.bf16.mxu0 0
    %5256 = vmatpush2.bf16.msra.mxu0 0
    %5257 = vmatprep.mubr.bf16.mxu0 0
    %5258 = vmatmul.mubr.bf16.gmra.mxu0 %v5224
    %v5259 = vpop.f32.mrf.mxu0
    %v5260 = vadd.f32 %v597, %v5259
    %v5261 = vpop.f32.mrf.mxu0
    %v5262 = vadd.f32 %v601, %v5261
    %v5263 = vpop.f32.mrf.mxu0
    %v5264 = vpop.f32.mrf.mxu0
    %5265 = vdwg.mxu0
    %v5266 = vxor.u32 %v5260, 2147483648
    %v5267 = vxor.u32 %v5262, 2147483648
    %v5268 = vmul.f32 %v5266, 1.442695
    %v5269 = vpow.pop %v5268
    %v5270 = vmul.f32 %v5267, 1.442695
    %v5271 = vpow.pop %v5270
    %v5272 = vadd.f32 %v5269, 1.0
    %v5273 = vadd.f32 %v5271, 1.0
    %v5274 = vrcp.pop %v5272
    %v5275 = vmul.f32 1.0, %v5274
    %v5276 = vrcp.pop %v5273
    %v5277 = vmul.f32 1.0, %v5276
    %v5278 = vtanh.pop %v5262
    %v5279 = vmul.f32 %v5275, %v4508
    %5281 = vrot.lane.b32.xlu0 %v5278, 64
    %v5282 = vpop.permute.xlu0 %5281
    %v5284 = vmul.f32 %v5275, %v5282
    %5286 = vrot.lane.b32.xlu0 %v5284, 64
    %v5287 = vpop.permute.xlu0 %5286
    %v5289 = vadd.f32 %v5279, %v5287
    %v5290 = vtanh.pop %v5289
    %5292 = vrot.lane.b32.xlu0 %v5290, 64
    %v5293 = vpop.permute.xlu0 %5292
    %v5295 = vmul.f32 %v5277, %v5293
    %5297 = vrot.lane.b32.xlu0 %v4591, 64
    %v5298 = vpop.permute.xlu0 %5297
    %v5300 = vsel %vm102, %v5295, %v5298
    %v5301 = vpack.c.bf16 %v5300, %v5300
    %5302 = vmatprep.subr.bf16.mxu0 %v850
    %5303 = vmatpush1.bf16.msra.mxu0 %v849
    %5304 = vmatprep.subr.bf16.mxu0 %v848
    %5305 = vmatpush1.bf16.msra.mxu0 %v847
    %5306 = vmatprep.subr.bf16.mxu0 %v846
    %5307 = vmatpush1.bf16.msra.mxu0 %v845
    %5308 = vmatprep.subr.bf16.mxu0 %v844
    %5309 = vmatpush1.bf16.msra.mxu0 %v843
    %5310 = vmatprep.subr.bf16.mxu0 %v842
    %5311 = vmatpush1.bf16.msra.mxu0 %v841
    %5312 = vmatprep.subr.bf16.mxu0 %v840
    %5313 = vmatpush1.bf16.msra.mxu0 %v839
    %5314 = vmatprep.subr.bf16.mxu0 %v838
    %5315 = vmatpush1.bf16.msra.mxu0 %v837
    %5316 = vmatprep.subr.bf16.mxu0 %v836
    %5317 = vmatpush1.bf16.msra.mxu0 %v835
    %5318 = vmatprep.subr.bf16.mxu0 0
    %5319 = vmatpush2.bf16.msra.mxu0 0
    %5320 = vmatprep.subr.bf16.mxu0 0
    %5321 = vmatpush2.bf16.msra.mxu0 0
    %5322 = vmatprep.subr.bf16.mxu0 0
    %5323 = vmatpush2.bf16.msra.mxu0 0
    %5324 = vmatprep.subr.bf16.mxu0 0
    %5325 = vmatpush2.bf16.msra.mxu0 0
    %5326 = vmatprep.subr.bf16.mxu0 0
    %5327 = vmatpush2.bf16.msra.mxu0 0
    %5328 = vmatprep.subr.bf16.mxu0 0
    %5329 = vmatpush2.bf16.msra.mxu0 0
    %5330 = vmatprep.subr.bf16.mxu0 0
    %5331 = vmatpush2.bf16.msra.mxu0 0
    %5332 = vmatprep.subr.bf16.mxu0 0
    %5333 = vmatpush2.bf16.msra.mxu0 0
    %5334 = vmatprep.mubr.bf16.mxu0 0
    %5335 = vmatmul.mubr.bf16.gmra.mxu0 %v5301
    %v5336 = vpop.f32.mrf.mxu0
    %v5337 = vadd.f32 %v780, %v5336
    %v5338 = vpop.f32.mrf.mxu0
    %v5339 = vadd.f32 %v784, %v5338
    %v5340 = vpop.f32.mrf.mxu0
    %v5341 = vpop.f32.mrf.mxu0
    %5342 = vdwg.mxu0
    %v5343 = vxor.u32 %v5337, 2147483648
    %v5344 = vxor.u32 %v5339, 2147483648
    %v5345 = vmul.f32 %v5343, 1.442695
    %v5346 = vpow.pop %v5345
    %v5347 = vmul.f32 %v5344, 1.442695
    %v5348 = vpow.pop %v5347
    %v5349 = vadd.f32 %v5346, 1.0
    %v5350 = vadd.f32 %v5348, 1.0
    %v5351 = vrcp.pop %v5349
    %v5352 = vmul.f32 1.0, %v5351
    %v5353 = vrcp.pop %v5350
    %v5354 = vmul.f32 1.0, %v5353
    %v5355 = vtanh.pop %v5339
    %v5356 = vmul.f32 %v5352, %v4585
    %5358 = vrot.lane.b32.xlu0 %v5355, 64
    %v5359 = vpop.permute.xlu0 %5358
    %v5361 = vmul.f32 %v5352, %v5359
    %5363 = vrot.lane.b32.xlu0 %v5361, 64
    %v5364 = vpop.permute.xlu0 %5363
    %v5366 = vadd.f32 %v5356, %v5364
    %v5367 = vtanh.pop %v5366
    %5369 = vrot.lane.b32.xlu0 %v5367, 64
    %v5370 = vpop.permute.xlu0 %5369
    %v5372 = vmul.f32 %v5354, %v5370
    %5374 = vrot.lane.b32.xlu0 %v4668, 64
    %v5375 = vpop.permute.xlu0 %5374
    %v5377 = vsel %vm102, %v5372, %v5375
    %v5378 = vpack.c.bf16 %v5377, %v5377
    %5379 = vmatprep.subr.bf16.mxu0 %v1033
    %5380 = vmatpush1.bf16.msra.mxu0 %v1032
    %5381 = vmatprep.subr.bf16.mxu0 %v1031
    %5382 = vmatpush1.bf16.msra.mxu0 %v1030
    %5383 = vmatprep.subr.bf16.mxu0 %v1029
    %5384 = vmatpush1.bf16.msra.mxu0 %v1028
    %5385 = vmatprep.subr.bf16.mxu0 %v1027
    %5386 = vmatpush1.bf16.msra.mxu0 %v1026
    %5387 = vmatprep.subr.bf16.mxu0 %v1025
    %5388 = vmatpush1.bf16.msra.mxu0 %v1024
    %5389 = vmatprep.subr.bf16.mxu0 %v1023
    %5390 = vmatpush1.bf16.msra.mxu0 %v1022
    %5391 = vmatprep.subr.bf16.mxu0 %v1021
    %5392 = vmatpush1.bf16.msra.mxu0 %v1020
    %5393 = vmatprep.subr.bf16.mxu0 %v1019
    %5394 = vmatpush1.bf16.msra.mxu0 %v1018
    %5395 = vmatprep.subr.bf16.mxu0 0
    %5396 = vmatpush2.bf16.msra.mxu0 0
    %5397 = vmatprep.subr.bf16.mxu0 0
    %5398 = vmatpush2.bf16.msra.mxu0 0
    %5399 = vmatprep.subr.bf16.mxu0 0
    %5400 = vmatpush2.bf16.msra.mxu0 0
    %5401 = vmatprep.subr.bf16.mxu0 0
    %5402 = vmatpush2.bf16.msra.mxu0 0
    %5403 = vmatprep.subr.bf16.mxu0 0
    %5404 = vmatpush2.bf16.msra.mxu0 0
    %5405 = vmatprep.subr.bf16.mxu0 0
    %5406 = vmatpush2.bf16.msra.mxu0 0
    %5407 = vmatprep.subr.bf16.mxu0 0
    %5408 = vmatpush2.bf16.msra.mxu0 0
    %5409 = vmatprep.subr.bf16.mxu0 0
    %5410 = vmatpush2.bf16.msra.mxu0 0
    %5411 = vmatprep.mubr.bf16.mxu0 0
    %5412 = vmatmul.mubr.bf16.gmra.mxu0 %v5378
    %v5413 = vpop.f32.mrf.mxu0
    %v5414 = vadd.f32 %v963, %v5413
    %v5415 = vpop.f32.mrf.mxu0
    %v5416 = vadd.f32 %v967, %v5415
    %v5417 = vpop.f32.mrf.mxu0
    %v5418 = vpop.f32.mrf.mxu0
    %5419 = vdwg.mxu0
    %v5420 = vxor.u32 %v5414, 2147483648
    %v5421 = vxor.u32 %v5416, 2147483648
    %v5422 = vmul.f32 %v5420, 1.442695
    %v5423 = vpow.pop %v5422
    %v5424 = vmul.f32 %v5421, 1.442695
    %v5425 = vpow.pop %v5424
    %v5426 = vadd.f32 %v5423, 1.0
    %v5427 = vadd.f32 %v5425, 1.0
    %v5428 = vrcp.pop %v5426
    %v5429 = vmul.f32 1.0, %v5428
    %v5430 = vrcp.pop %v5427
    %v5431 = vmul.f32 1.0, %v5430
    %v5432 = vtanh.pop %v5416
    %v5433 = vmul.f32 %v5429, %v4662
    %5435 = vrot.lane.b32.xlu0 %v5432, 64
    %v5436 = vpop.permute.xlu0 %5435
    %v5438 = vmul.f32 %v5429, %v5436
    %5440 = vrot.lane.b32.xlu0 %v5438, 64
    %v5441 = vpop.permute.xlu0 %5440
    %v5443 = vadd.f32 %v5433, %v5441
    %v5444 = vtanh.pop %v5443
    %5446 = vrot.lane.b32.xlu0 %v5444, 64
    %v5447 = vpop.permute.xlu0 %5446
    %v5449 = vmul.f32 %v5431, %v5447
    %5451 = vrot.lane.b32.xlu0 %v4745, 64
    %v5452 = vpop.permute.xlu0 %5451
    %v5454 = vsel %vm102, %v5449, %v5452
    %v5455 = vpack.c.bf16 %v5454, %v5454
    %5456 = vmatprep.subr.bf16.mxu0 %v1216
    %5457 = vmatpush1.bf16.msra.mxu0 %v1215
    %5458 = vmatprep.subr.bf16.mxu0 %v1214
    %5459 = vmatpush1.bf16.msra.mxu0 %v1213
    %5460 = vmatprep.subr.bf16.mxu0 %v1212
    %5461 = vmatpush1.bf16.msra.mxu0 %v1211
    %5462 = vmatprep.subr.bf16.mxu0 %v1210
    %5463 = vmatpush1.bf16.msra.mxu0 %v1209
    %5464 = vmatprep.subr.bf16.mxu0 %v1208
    %5465 = vmatpush1.bf16.msra.mxu0 %v1207
    %5466 = vmatprep.subr.bf16.mxu0 %v1206
    %5467 = vmatpush1.bf16.msra.mxu0 %v1205
    %5468 = vmatprep.subr.bf16.mxu0 %v1204
    %5469 = vmatpush1.bf16.msra.mxu0 %v1203
    %5470 = vmatprep.subr.bf16.mxu0 %v1202
    %5471 = vmatpush1.bf16.msra.mxu0 %v1201
    %5472 = vmatprep.subr.bf16.mxu0 0
    %5473 = vmatpush2.bf16.msra.mxu0 0
    %5474 = vmatprep.subr.bf16.mxu0 0
    %5475 = vmatpush2.bf16.msra.mxu0 0
    %5476 = vmatprep.subr.bf16.mxu0 0
    %5477 = vmatpush2.bf16.msra.mxu0 0
    %5478 = vmatprep.subr.bf16.mxu0 0
    %5479 = vmatpush2.bf16.msra.mxu0 0
    %5480 = vmatprep.subr.bf16.mxu0 0
    %5481 = vmatpush2.bf16.msra.mxu0 0
    %5482 = vmatprep.subr.bf16.mxu0 0
    %5483 = vmatpush2.bf16.msra.mxu0 0
    %5484 = vmatprep.subr.bf16.mxu0 0
    %5485 = vmatpush2.bf16.msra.mxu0 0
    %5486 = vmatprep.subr.bf16.mxu0 0
    %5487 = vmatpush2.bf16.msra.mxu0 0
    %5488 = vmatprep.mubr.bf16.mxu0 0
    %5489 = vmatmul.mubr.bf16.gmra.mxu0 %v5455
    %v5490 = vpop.f32.mrf.mxu0
    %v5491 = vadd.f32 %v1146, %v5490
    %v5492 = vpop.f32.mrf.mxu0
    %v5493 = vadd.f32 %v1150, %v5492
    %v5494 = vpop.f32.mrf.mxu0
    %v5495 = vpop.f32.mrf.mxu0
    %5496 = vdwg.mxu0
    %v5497 = vxor.u32 %v5491, 2147483648
    %v5498 = vxor.u32 %v5493, 2147483648
    %v5499 = vmul.f32 %v5497, 1.442695
    %v5500 = vpow.pop %v5499
    %v5501 = vmul.f32 %v5498, 1.442695
    %v5502 = vpow.pop %v5501
    %v5503 = vadd.f32 %v5500, 1.0
    %v5504 = vadd.f32 %v5502, 1.0
    %v5505 = vrcp.pop %v5503
    %v5506 = vmul.f32 1.0, %v5505
    %v5507 = vrcp.pop %v5504
    %v5508 = vmul.f32 1.0, %v5507
    %v5509 = vtanh.pop %v5493
    %v5510 = vmul.f32 %v5506, %v4739
    %5512 = vrot.lane.b32.xlu0 %v5509, 64
    %v5513 = vpop.permute.xlu0 %5512
    %v5515 = vmul.f32 %v5506, %v5513
    %5517 = vrot.lane.b32.xlu0 %v5515, 64
    %v5518 = vpop.permute.xlu0 %5517
    %v5520 = vadd.f32 %v5510, %v5518
    %v5521 = vtanh.pop %v5520
    %5523 = vrot.lane.b32.xlu0 %v5521, 64
    %v5524 = vpop.permute.xlu0 %5523
    %v5526 = vmul.f32 %v5508, %v5524
    %5528 = vrot.lane.b32.xlu0 %v4822, 64
    %v5529 = vpop.permute.xlu0 %5528
    %v5531 = vsel %vm102, %v5526, %v5529
    %v5532 = vpack.c.bf16 %v5531, %v5531
    %5533 = vmatprep.subr.bf16.mxu0 %v1399
    %5534 = vmatpush1.bf16.msra.mxu0 %v1398
    %5535 = vmatprep.subr.bf16.mxu0 %v1397
    %5536 = vmatpush1.bf16.msra.mxu0 %v1396
    %5537 = vmatprep.subr.bf16.mxu0 %v1395
    %5538 = vmatpush1.bf16.msra.mxu0 %v1394
    %5539 = vmatprep.subr.bf16.mxu0 %v1393
    %5540 = vmatpush1.bf16.msra.mxu0 %v1392
    %5541 = vmatprep.subr.bf16.mxu0 %v1391
    %5542 = vmatpush1.bf16.msra.mxu0 %v1390
    %5543 = vmatprep.subr.bf16.mxu0 %v1389
    %5544 = vmatpush1.bf16.msra.mxu0 %v1388
    %5545 = vmatprep.subr.bf16.mxu0 %v1387
    %5546 = vmatpush1.bf16.msra.mxu0 %v1386
    %5547 = vmatprep.subr.bf16.mxu0 %v1385
    %5548 = vmatpush1.bf16.msra.mxu0 %v1384
    %5549 = vmatprep.subr.bf16.mxu0 0
    %5550 = vmatpush2.bf16.msra.mxu0 0
    %5551 = vmatprep.subr.bf16.mxu0 0
    %5552 = vmatpush2.bf16.msra.mxu0 0
    %5553 = vmatprep.subr.bf16.mxu0 0
    %5554 = vmatpush2.bf16.msra.mxu0 0
    %5555 = vmatprep.subr.bf16.mxu0 0
    %5556 = vmatpush2.bf16.msra.mxu0 0
    %5557 = vmatprep.subr.bf16.mxu0 0
    %5558 = vmatpush2.bf16.msra.mxu0 0
    %5559 = vmatprep.subr.bf16.mxu0 0
    %5560 = vmatpush2.bf16.msra.mxu0 0
    %5561 = vmatprep.subr.bf16.mxu0 0
    %5562 = vmatpush2.bf16.msra.mxu0 0
    %5563 = vmatprep.subr.bf16.mxu0 0
    %5564 = vmatpush2.bf16.msra.mxu0 0
    %5565 = vmatprep.mubr.bf16.mxu0 0
    %5566 = vmatmul.mubr.bf16.gmra.mxu0 %v5532
    %v5567 = vpop.f32.mrf.mxu0
    %v5568 = vadd.f32 %v1329, %v5567
    %v5569 = vpop.f32.mrf.mxu0
    %v5570 = vadd.f32 %v1333, %v5569
    %v5571 = vpop.f32.mrf.mxu0
    %v5572 = vpop.f32.mrf.mxu0
    %5573 = vdwg.mxu0
    %v5574 = vxor.u32 %v5568, 2147483648
    %v5575 = vxor.u32 %v5570, 2147483648
    %v5576 = vmul.f32 %v5574, 1.442695
    %v5577 = vpow.pop %v5576
    %v5578 = vmul.f32 %v5575, 1.442695
    %v5579 = vpow.pop %v5578
    %v5580 = vadd.f32 %v5577, 1.0
    %v5581 = vadd.f32 %v5579, 1.0
    %v5582 = vrcp.pop %v5580
    %v5583 = vmul.f32 1.0, %v5582
    %v5584 = vrcp.pop %v5581
    %v5585 = vmul.f32 1.0, %v5584
    %v5586 = vtanh.pop %v5570
    %v5587 = vmul.f32 %v5583, %v4816
    %5589 = vrot.lane.b32.xlu0 %v5586, 64
    %v5590 = vpop.permute.xlu0 %5589
    %v5592 = vmul.f32 %v5583, %v5590
    %5594 = vrot.lane.b32.xlu0 %v5592, 64
    %v5595 = vpop.permute.xlu0 %5594
    %v5597 = vadd.f32 %v5587, %v5595
    %v5598 = vtanh.pop %v5597
    %5600 = vrot.lane.b32.xlu0 %v5598, 64
    %v5601 = vpop.permute.xlu0 %5600
    %v5603 = vmul.f32 %v5585, %v5601
    %5605 = vrot.lane.b32.xlu0 %v4899, 64
    %v5606 = vpop.permute.xlu0 %5605
    %v5608 = vsel %vm102, %v5603, %v5606
    %v5609 = vpack.c.bf16 %v5608, %v5608
    %5610 = vmatprep.subr.bf16.mxu0 %v1582
    %5611 = vmatpush1.bf16.msra.mxu0 %v1581
    %5612 = vmatprep.subr.bf16.mxu0 %v1580
    %5613 = vmatpush1.bf16.msra.mxu0 %v1579
    %5614 = vmatprep.subr.bf16.mxu0 %v1578
    %5615 = vmatpush1.bf16.msra.mxu0 %v1577
    %5616 = vmatprep.subr.bf16.mxu0 %v1576
    %5617 = vmatpush1.bf16.msra.mxu0 %v1575
    %5618 = vmatprep.subr.bf16.mxu0 %v1574
    %5619 = vmatpush1.bf16.msra.mxu0 %v1573
    %5620 = vmatprep.subr.bf16.mxu0 %v1572
    %5621 = vmatpush1.bf16.msra.mxu0 %v1571
    %5622 = vmatprep.subr.bf16.mxu0 %v1570
    %5623 = vmatpush1.bf16.msra.mxu0 %v1569
    %5624 = vmatprep.subr.bf16.mxu0 %v1568
    %5625 = vmatpush1.bf16.msra.mxu0 %v1567
    %5626 = vmatprep.subr.bf16.mxu0 0
    %5627 = vmatpush2.bf16.msra.mxu0 0
    %5628 = vmatprep.subr.bf16.mxu0 0
    %5629 = vmatpush2.bf16.msra.mxu0 0
    %5630 = vmatprep.subr.bf16.mxu0 0
    %5631 = vmatpush2.bf16.msra.mxu0 0
    %5632 = vmatprep.subr.bf16.mxu0 0
    %5633 = vmatpush2.bf16.msra.mxu0 0
    %5634 = vmatprep.subr.bf16.mxu0 0
    %5635 = vmatpush2.bf16.msra.mxu0 0
    %5636 = vmatprep.subr.bf16.mxu0 0
    %5637 = vmatpush2.bf16.msra.mxu0 0
    %5638 = vmatprep.subr.bf16.mxu0 0
    %5639 = vmatpush2.bf16.msra.mxu0 0
    %5640 = vmatprep.subr.bf16.mxu0 0
    %5641 = vmatpush2.bf16.msra.mxu0 0
    %5642 = vmatprep.mubr.bf16.mxu0 0
    %5643 = vmatmul.mubr.bf16.gmra.mxu0 %v5609
    %v5644 = vpop.f32.mrf.mxu0
    %v5645 = vadd.f32 %v1512, %v5644
    %v5646 = vpop.f32.mrf.mxu0
    %v5647 = vadd.f32 %v1516, %v5646
    %v5648 = vpop.f32.mrf.mxu0
    %v5649 = vpop.f32.mrf.mxu0
    %5650 = vdwg.mxu0
    %v5651 = vxor.u32 %v5645, 2147483648
    %v5652 = vxor.u32 %v5647, 2147483648
    %v5653 = vmul.f32 %v5651, 1.442695
    %v5654 = vpow.pop %v5653
    %v5655 = vmul.f32 %v5652, 1.442695
    %v5656 = vpow.pop %v5655
    %v5657 = vadd.f32 %v5654, 1.0
    %v5658 = vadd.f32 %v5656, 1.0
    %v5659 = vrcp.pop %v5657
    %v5660 = vmul.f32 1.0, %v5659
    %v5661 = vrcp.pop %v5658
    %v5662 = vmul.f32 1.0, %v5661
    %v5663 = vtanh.pop %v5647
    %v5664 = vmul.f32 %v5660, %v4893
    %5666 = vrot.lane.b32.xlu0 %v5663, 64
    %v5667 = vpop.permute.xlu0 %5666
    %v5669 = vmul.f32 %v5660, %v5667
    %5671 = vrot.lane.b32.xlu0 %v5669, 64
    %v5672 = vpop.permute.xlu0 %5671
    %v5674 = vadd.f32 %v5664, %v5672
    %v5675 = vtanh.pop %v5674
    %5677 = vrot.lane.b32.xlu0 %v5675, 64
    %v5678 = vpop.permute.xlu0 %5677
    %v5680 = vmul.f32 %v5662, %v5678
    %5682 = vrot.lane.b32.xlu0 %v4976, 64
    %v5683 = vpop.permute.xlu0 %5682
    %v5685 = vsel %vm102, %v5680, %v5683
    %v5686 = vpack.c.bf16 %v5685, %v5685
    %5687 = vmatprep.subr.bf16.mxu0 %v1765
    %5688 = vmatpush1.bf16.msra.mxu0 %v1764
    %5689 = vmatprep.subr.bf16.mxu0 %v1763
    %5690 = vmatpush1.bf16.msra.mxu0 %v1762
    %5691 = vmatprep.subr.bf16.mxu0 %v1761
    %5692 = vmatpush1.bf16.msra.mxu0 %v1760
    %5693 = vmatprep.subr.bf16.mxu0 %v1759
    %5694 = vmatpush1.bf16.msra.mxu0 %v1758
    %5695 = vmatprep.subr.bf16.mxu0 %v1757
    %5696 = vmatpush1.bf16.msra.mxu0 %v1756
    %5697 = vmatprep.subr.bf16.mxu0 %v1755
    %5698 = vmatpush1.bf16.msra.mxu0 %v1754
    %5699 = vmatprep.subr.bf16.mxu0 %v1753
    %5700 = vmatpush1.bf16.msra.mxu0 %v1752
    %5701 = vmatprep.subr.bf16.mxu0 %v1751
    %5702 = vmatpush1.bf16.msra.mxu0 %v1750
    %5703 = vmatprep.subr.bf16.mxu0 0
    %5704 = vmatpush2.bf16.msra.mxu0 0
    %5705 = vmatprep.subr.bf16.mxu0 0
    %5706 = vmatpush2.bf16.msra.mxu0 0
    %5707 = vmatprep.subr.bf16.mxu0 0
    %5708 = vmatpush2.bf16.msra.mxu0 0
    %5709 = vmatprep.subr.bf16.mxu0 0
    %5710 = vmatpush2.bf16.msra.mxu0 0
    %5711 = vmatprep.subr.bf16.mxu0 0
    %5712 = vmatpush2.bf16.msra.mxu0 0
    %5713 = vmatprep.subr.bf16.mxu0 0
    %5714 = vmatpush2.bf16.msra.mxu0 0
    %5715 = vmatprep.subr.bf16.mxu0 0
    %5716 = vmatpush2.bf16.msra.mxu0 0
    %5717 = vmatprep.subr.bf16.mxu0 0
    %5718 = vmatpush2.bf16.msra.mxu0 0
    %5719 = vmatprep.mubr.bf16.mxu0 0
    %5720 = vmatmul.mubr.bf16.gmra.mxu0 %v5686
    %v5721 = vpop.f32.mrf.mxu0
    %v5722 = vadd.f32 %v1695, %v5721
    %v5723 = vpop.f32.mrf.mxu0
    %v5724 = vadd.f32 %v1699, %v5723
    %v5725 = vpop.f32.mrf.mxu0
    %v5726 = vpop.f32.mrf.mxu0
    %5727 = vdwg.mxu0
    %v5728 = vxor.u32 %v5722, 2147483648
    %v5729 = vxor.u32 %v5724, 2147483648
    %v5730 = vmul.f32 %v5728, 1.442695
    %v5731 = vpow.pop %v5730
    %v5732 = vmul.f32 %v5729, 1.442695
    %v5733 = vpow.pop %v5732
    %v5734 = vadd.f32 %v5731, 1.0
    %v5735 = vadd.f32 %v5733, 1.0
    %v5736 = vrcp.pop %v5734
    %v5737 = vmul.f32 1.0, %v5736
    %v5738 = vrcp.pop %v5735
    %v5739 = vmul.f32 1.0, %v5738
    %v5740 = vtanh.pop %v5724
    %v5741 = vmul.f32 %v5737, %v4970
    %5743 = vrot.lane.b32.xlu0 %v5740, 64
    %v5744 = vpop.permute.xlu0 %5743
    %v5746 = vmul.f32 %v5737, %v5744
    %5748 = vrot.lane.b32.xlu0 %v5746, 64
    %v5749 = vpop.permute.xlu0 %5748
    %v5751 = vadd.f32 %v5741, %v5749
    %v5752 = vtanh.pop %v5751
    %5754 = vrot.lane.b32.xlu0 %v5752, 64
    %v5755 = vpop.permute.xlu0 %5754
    %v5757 = vmul.f32 %v5739, %v5755
    %s5758 = scalar_lea.vmem [#allocation2], 24
    %v5759 = vld [vmem:[%s5758] sm:$0xf]
    %v5760 = vpack.c.bf16 %v5064, %v5064
    %v5762 = vsel %vm102, %v5760, 0
    %5764 = vmatprep.subr.bf16.mxu0 0
    %5765 = vmatpush1.bf16.msra.mxu0 0
    %5766 = vmatprep.subr.bf16.mxu0 0
    %5767 = vmatpush1.bf16.msra.mxu0 0
    %5768 = vmatprep.subr.bf16.mxu0 0
    %5769 = vmatpush1.bf16.msra.mxu0 0
    %5770 = vmatprep.subr.bf16.mxu0 0
    %5771 = vmatpush1.bf16.msra.mxu0 0
    %5772 = vmatprep.subr.bf16.mxu0 %v93
    %5773 = vmatpush1.bf16.msra.mxu0 %v92
    %5774 = vmatprep.subr.bf16.mxu0 %v91
    %5775 = vmatpush1.bf16.msra.mxu0 %v90
    %5776 = vmatprep.subr.bf16.mxu0 %v89
    %5777 = vmatpush1.bf16.msra.mxu0 %v88
    %5778 = vmatprep.subr.bf16.mxu0 %v87
    %5779 = vmatpush1.bf16.msra.mxu0 %v86
    %5780 = vmatprep.subr.bf16.mxu0 0
    %5781 = vmatpush2.bf16.msra.mxu0 0
    %5782 = vmatprep.subr.bf16.mxu0 0
    %5783 = vmatpush2.bf16.msra.mxu0 0
    %5784 = vmatprep.subr.bf16.mxu0 0
    %5785 = vmatpush2.bf16.msra.mxu0 0
    %5786 = vmatprep.subr.bf16.mxu0 0
    %5787 = vmatpush2.bf16.msra.mxu0 0
    %5788 = vmatprep.subr.bf16.mxu0 0
    %5789 = vmatpush2.bf16.msra.mxu0 0
    %5790 = vmatprep.subr.bf16.mxu0 0
    %5791 = vmatpush2.bf16.msra.mxu0 0
    %5792 = vmatprep.subr.bf16.mxu0 0
    %5793 = vmatpush2.bf16.msra.mxu0 0
    %5794 = vmatprep.subr.bf16.mxu0 0
    %5795 = vmatpush2.bf16.msra.mxu0 0
    %5796 = vmatprep.mubr.bf16.mxu0 0
    %5797 = vmatmul.mubr.bf16.gmra.mxu0 %v5762
    %v5798 = vpop.f32.mrf.mxu0
    %v5799 = vadd.f32 0.0, %v5798
    %v5800 = vpop.f32.mrf.mxu0
    %v5801 = vadd.f32 0.0, %v5800
    %v5802 = vpop.f32.mrf.mxu0
    %v5803 = vpop.f32.mrf.mxu0
    %5804 = vdwg.mxu0
    %v5807 = vcombine.low %v5799, %v5801
    %v5809 = vunpack.c.l.s4 1983009808
    %v5810 = vunpack.c.0.s8 %v5809
    %v5811 = vlaneseq
    %v5812 = vshrl.u32 %v5811, 7
    %v5813 = vsub.s32 %v5810, %v5812
    %v5814 = vrot.slane %v5807, %v5813
    %v5816 = vadd.f32 %v5759, %v5814
    %v5817 = vadd.f32 %v5816, %v176
    %v5818 = vxor.u32 %v5817, 2147483648
    %v5819 = vmul.f32 %v5818, 1.442695
    %v5820 = vpow.pop %v5819
    %v5821 = vadd.f32 %v5820, 1.0
    %v5822 = vrcp.pop %v5821
    %v5823 = vmul.f32 1.0, %v5822
    %5825 = vrot.lane.b32.xlu0 %v5817, 64
    %v5826 = vpop.permute.xlu0 %5825
    %v5827 = vrot.slane %v5826, 2
    %v5829 = vtanh.pop %v5827
    %v5830 = vmul.f32 %v5823, %v5055
    %v5831 = vmul.f32 %v5823, %v5829
    %5833 = vrot.lane.b32.xlu0 %v5831, 64
    %v5834 = vpop.permute.xlu0 %5833
    %v5836 = vadd.f32 %v5830, %v5834
    %v5837 = vtanh.pop %v5836
    %v5839 = vrot.slane %v5823, 2
    %5842 = vrot.lane.b32.xlu0 %v5837, 64
    %v5843 = vpop.permute.xlu0 %5842
    %v5845 = vmul.f32 %v5839, %v5843
    %5847 = vrot.lane.b32.xlu0 %v5141, 64
    %v5848 = vpop.permute.xlu0 %5847
    %v5850 = vsel %vm102, %v5845, %v5848
    %v5851 = vpack.c.bf16 %v5850, %v5850
    %5852 = vmatprep.subr.bf16.mxu0 %v301
    %5853 = vmatpush1.bf16.msra.mxu0 %v300
    %5854 = vmatprep.subr.bf16.mxu0 %v299
    %5855 = vmatpush1.bf16.msra.mxu0 %v298
    %5856 = vmatprep.subr.bf16.mxu0 %v297
    %5857 = vmatpush1.bf16.msra.mxu0 %v296
    %5858 = vmatprep.subr.bf16.mxu0 %v295
    %5859 = vmatpush1.bf16.msra.mxu0 %v294
    %5860 = vmatprep.subr.bf16.mxu0 %v293
    %5861 = vmatpush1.bf16.msra.mxu0 %v292
    %5862 = vmatprep.subr.bf16.mxu0 %v291
    %5863 = vmatpush1.bf16.msra.mxu0 %v290
    %5864 = vmatprep.subr.bf16.mxu0 %v289
    %5865 = vmatpush1.bf16.msra.mxu0 %v288
    %5866 = vmatprep.subr.bf16.mxu0 %v287
    %5867 = vmatpush1.bf16.msra.mxu0 %v286
    %5868 = vmatprep.subr.bf16.mxu0 0
    %5869 = vmatpush2.bf16.msra.mxu0 0
    %5870 = vmatprep.subr.bf16.mxu0 0
    %5871 = vmatpush2.bf16.msra.mxu0 0
    %5872 = vmatprep.subr.bf16.mxu0 0
    %5873 = vmatpush2.bf16.msra.mxu0 0
    %5874 = vmatprep.subr.bf16.mxu0 0
    %5875 = vmatpush2.bf16.msra.mxu0 0
    %5876 = vmatprep.subr.bf16.mxu0 0
    %5877 = vmatpush2.bf16.msra.mxu0 0
    %5878 = vmatprep.subr.bf16.mxu0 0
    %5879 = vmatpush2.bf16.msra.mxu0 0
    %5880 = vmatprep.subr.bf16.mxu0 0
    %5881 = vmatpush2.bf16.msra.mxu0 0
    %5882 = vmatprep.subr.bf16.mxu0 0
    %5883 = vmatpush2.bf16.msra.mxu0 0
    %5884 = vmatprep.mubr.bf16.mxu0 0
    %5885 = vmatmul.mubr.bf16.gmra.mxu0 %v5851
    %v5886 = vpop.f32.mrf.mxu0
    %v5887 = vadd.f32 %v231, %v5886
    %v5888 = vpop.f32.mrf.mxu0
    %v5889 = vadd.f32 %v235, %v5888
    %v5890 = vpop.f32.mrf.mxu0
    %v5891 = vpop.f32.mrf.mxu0
    %5892 = vdwg.mxu0
    %v5893 = vxor.u32 %v5887, 2147483648
    %v5894 = vxor.u32 %v5889, 2147483648
    %v5895 = vmul.f32 %v5893, 1.442695
    %v5896 = vpow.pop %v5895
    %v5897 = vmul.f32 %v5894, 1.442695
    %v5898 = vpow.pop %v5897
    %v5899 = vadd.f32 %v5896, 1.0
    %v5900 = vadd.f32 %v5898, 1.0
    %v5901 = vrcp.pop %v5899
    %v5902 = vmul.f32 1.0, %v5901
    %v5903 = vrcp.pop %v5900
    %v5904 = vmul.f32 1.0, %v5903
    %v5905 = vtanh.pop %v5889
    %v5906 = vmul.f32 %v5902, %v5135
    %5908 = vrot.lane.b32.xlu0 %v5905, 64
    %v5909 = vpop.permute.xlu0 %5908
    %v5911 = vmul.f32 %v5902, %v5909
    %5913 = vrot.lane.b32.xlu0 %v5911, 64
    %v5914 = vpop.permute.xlu0 %5913
    %v5916 = vadd.f32 %v5906, %v5914
    %v5917 = vtanh.pop %v5916
    %5919 = vrot.lane.b32.xlu0 %v5917, 64
    %v5920 = vpop.permute.xlu0 %5919
    %v5922 = vmul.f32 %v5904, %v5920
    %5924 = vrot.lane.b32.xlu0 %v5218, 64
    %v5925 = vpop.permute.xlu0 %5924
    %v5927 = vsel %vm102, %v5922, %v5925
    %v5928 = vpack.c.bf16 %v5927, %v5927
    %5929 = vmatprep.subr.bf16.mxu0 %v484
    %5930 = vmatpush1.bf16.msra.mxu0 %v483
    %5931 = vmatprep.subr.bf16.mxu0 %v482
    %5932 = vmatpush1.bf16.msra.mxu0 %v481
    %5933 = vmatprep.subr.bf16.mxu0 %v480
    %5934 = vmatpush1.bf16.msra.mxu0 %v479
    %5935 = vmatprep.subr.bf16.mxu0 %v478
    %5936 = vmatpush1.bf16.msra.mxu0 %v477
    %5937 = vmatprep.subr.bf16.mxu0 %v476
    %5938 = vmatpush1.bf16.msra.mxu0 %v475
    %5939 = vmatprep.subr.bf16.mxu0 %v474
    %5940 = vmatpush1.bf16.msra.mxu0 %v473
    %5941 = vmatprep.subr.bf16.mxu0 %v472
    %5942 = vmatpush1.bf16.msra.mxu0 %v471
    %5943 = vmatprep.subr.bf16.mxu0 %v470
    %5944 = vmatpush1.bf16.msra.mxu0 %v469
    %5945 = vmatprep.subr.bf16.mxu0 0
    %5946 = vmatpush2.bf16.msra.mxu0 0
    %5947 = vmatprep.subr.bf16.mxu0 0
    %5948 = vmatpush2.bf16.msra.mxu0 0
    %5949 = vmatprep.subr.bf16.mxu0 0
    %5950 = vmatpush2.bf16.msra.mxu0 0
    %5951 = vmatprep.subr.bf16.mxu0 0
    %5952 = vmatpush2.bf16.msra.mxu0 0
    %5953 = vmatprep.subr.bf16.mxu0 0
    %5954 = vmatpush2.bf16.msra.mxu0 0
    %5955 = vmatprep.subr.bf16.mxu0 0
    %5956 = vmatpush2.bf16.msra.mxu0 0
    %5957 = vmatprep.subr.bf16.mxu0 0
    %5958 = vmatpush2.bf16.msra.mxu0 0
    %5959 = vmatprep.subr.bf16.mxu0 0
    %5960 = vmatpush2.bf16.msra.mxu0 0
    %5961 = vmatprep.mubr.bf16.mxu0 0
    %5962 = vmatmul.mubr.bf16.gmra.mxu0 %v5928
    %v5963 = vpop.f32.mrf.mxu0
    %v5964 = vadd.f32 %v414, %v5963
    %v5965 = vpop.f32.mrf.mxu0
    %v5966 = vadd.f32 %v418, %v5965
    %v5967 = vpop.f32.mrf.mxu0
    %v5968 = vpop.f32.mrf.mxu0
    %5969 = vdwg.mxu0
    %v5970 = vxor.u32 %v5964, 2147483648
    %v5971 = vxor.u32 %v5966, 2147483648
    %v5972 = vmul.f32 %v5970, 1.442695
    %v5973 = vpow.pop %v5972
    %v5974 = vmul.f32 %v5971, 1.442695
    %v5975 = vpow.pop %v5974
    %v5976 = vadd.f32 %v5973, 1.0
    %v5977 = vadd.f32 %v5975, 1.0
    %v5978 = vrcp.pop %v5976
    %v5979 = vmul.f32 1.0, %v5978
    %v5980 = vrcp.pop %v5977
    %v5981 = vmul.f32 1.0, %v5980
    %v5982 = vtanh.pop %v5966
    %v5983 = vmul.f32 %v5979, %v5212
    %5985 = vrot.lane.b32.xlu0 %v5982, 64
    %v5986 = vpop.permute.xlu0 %5985
    %v5988 = vmul.f32 %v5979, %v5986
    %5990 = vrot.lane.b32.xlu0 %v5988, 64
    %v5991 = vpop.permute.xlu0 %5990
    %v5993 = vadd.f32 %v5983, %v5991
    %v5994 = vtanh.pop %v5993
    %5996 = vrot.lane.b32.xlu0 %v5994, 64
    %v5997 = vpop.permute.xlu0 %5996
    %v5999 = vmul.f32 %v5981, %v5997
    %6001 = vrot.lane.b32.xlu0 %v5295, 64
    %v6002 = vpop.permute.xlu0 %6001
    %v6004 = vsel %vm102, %v5999, %v6002
    %v6005 = vpack.c.bf16 %v6004, %v6004
    %6006 = vmatprep.subr.bf16.mxu0 %v667
    %6007 = vmatpush1.bf16.msra.mxu0 %v666
    %6008 = vmatprep.subr.bf16.mxu0 %v665
    %6009 = vmatpush1.bf16.msra.mxu0 %v664
    %6010 = vmatprep.subr.bf16.mxu0 %v663
    %6011 = vmatpush1.bf16.msra.mxu0 %v662
    %6012 = vmatprep.subr.bf16.mxu0 %v661
    %6013 = vmatpush1.bf16.msra.mxu0 %v660
    %6014 = vmatprep.subr.bf16.mxu0 %v659
    %6015 = vmatpush1.bf16.msra.mxu0 %v658
    %6016 = vmatprep.subr.bf16.mxu0 %v657
    %6017 = vmatpush1.bf16.msra.mxu0 %v656
    %6018 = vmatprep.subr.bf16.mxu0 %v655
    %6019 = vmatpush1.bf16.msra.mxu0 %v654
    %6020 = vmatprep.subr.bf16.mxu0 %v653
    %6021 = vmatpush1.bf16.msra.mxu0 %v652
    %6022 = vmatprep.subr.bf16.mxu0 0
    %6023 = vmatpush2.bf16.msra.mxu0 0
    %6024 = vmatprep.subr.bf16.mxu0 0
    %6025 = vmatpush2.bf16.msra.mxu0 0
    %6026 = vmatprep.subr.bf16.mxu0 0
    %6027 = vmatpush2.bf16.msra.mxu0 0
    %6028 = vmatprep.subr.bf16.mxu0 0
    %6029 = vmatpush2.bf16.msra.mxu0 0
    %6030 = vmatprep.subr.bf16.mxu0 0
    %6031 = vmatpush2.bf16.msra.mxu0 0
    %6032 = vmatprep.subr.bf16.mxu0 0
    %6033 = vmatpush2.bf16.msra.mxu0 0
    %6034 = vmatprep.subr.bf16.mxu0 0
    %6035 = vmatpush2.bf16.msra.mxu0 0
    %6036 = vmatprep.subr.bf16.mxu0 0
    %6037 = vmatpush2.bf16.msra.mxu0 0
    %6038 = vmatprep.mubr.bf16.mxu0 0
    %6039 = vmatmul.mubr.bf16.gmra.mxu0 %v6005
    %v6040 = vpop.f32.mrf.mxu0
    %v6041 = vadd.f32 %v597, %v6040
    %v6042 = vpop.f32.mrf.mxu0
    %v6043 = vadd.f32 %v601, %v6042
    %v6044 = vpop.f32.mrf.mxu0
    %v6045 = vpop.f32.mrf.mxu0
    %6046 = vdwg.mxu0
    %v6047 = vxor.u32 %v6041, 2147483648
    %v6048 = vxor.u32 %v6043, 2147483648
    %v6049 = vmul.f32 %v6047, 1.442695
    %v6050 = vpow.pop %v6049
    %v6051 = vmul.f32 %v6048, 1.442695
    %v6052 = vpow.pop %v6051
    %v6053 = vadd.f32 %v6050, 1.0
    %v6054 = vadd.f32 %v6052, 1.0
    %v6055 = vrcp.pop %v6053
    %v6056 = vmul.f32 1.0, %v6055
    %v6057 = vrcp.pop %v6054
    %v6058 = vmul.f32 1.0, %v6057
    %v6059 = vtanh.pop %v6043
    %v6060 = vmul.f32 %v6056, %v5289
    %6062 = vrot.lane.b32.xlu0 %v6059, 64
    %v6063 = vpop.permute.xlu0 %6062
    %v6065 = vmul.f32 %v6056, %v6063
    %6067 = vrot.lane.b32.xlu0 %v6065, 64
    %v6068 = vpop.permute.xlu0 %6067
    %v6070 = vadd.f32 %v6060, %v6068
    %v6071 = vtanh.pop %v6070
    %6073 = vrot.lane.b32.xlu0 %v6071, 64
    %v6074 = vpop.permute.xlu0 %6073
    %v6076 = vmul.f32 %v6058, %v6074
    %6078 = vrot.lane.b32.xlu0 %v5372, 64
    %v6079 = vpop.permute.xlu0 %6078
    %v6081 = vsel %vm102, %v6076, %v6079
    %v6082 = vpack.c.bf16 %v6081, %v6081
    %6083 = vmatprep.subr.bf16.mxu0 %v850
    %6084 = vmatpush1.bf16.msra.mxu0 %v849
    %6085 = vmatprep.subr.bf16.mxu0 %v848
    %6086 = vmatpush1.bf16.msra.mxu0 %v847
    %6087 = vmatprep.subr.bf16.mxu0 %v846
    %6088 = vmatpush1.bf16.msra.mxu0 %v845
    %6089 = vmatprep.subr.bf16.mxu0 %v844
    %6090 = vmatpush1.bf16.msra.mxu0 %v843
    %6091 = vmatprep.subr.bf16.mxu0 %v842
    %6092 = vmatpush1.bf16.msra.mxu0 %v841
    %6093 = vmatprep.subr.bf16.mxu0 %v840
    %6094 = vmatpush1.bf16.msra.mxu0 %v839
    %6095 = vmatprep.subr.bf16.mxu0 %v838
    %6096 = vmatpush1.bf16.msra.mxu0 %v837
    %6097 = vmatprep.subr.bf16.mxu0 %v836
    %6098 = vmatpush1.bf16.msra.mxu0 %v835
    %6099 = vmatprep.subr.bf16.mxu0 0
    %6100 = vmatpush2.bf16.msra.mxu0 0
    %6101 = vmatprep.subr.bf16.mxu0 0
    %6102 = vmatpush2.bf16.msra.mxu0 0
    %6103 = vmatprep.subr.bf16.mxu0 0
    %6104 = vmatpush2.bf16.msra.mxu0 0
    %6105 = vmatprep.subr.bf16.mxu0 0
    %6106 = vmatpush2.bf16.msra.mxu0 0
    %6107 = vmatprep.subr.bf16.mxu0 0
    %6108 = vmatpush2.bf16.msra.mxu0 0
    %6109 = vmatprep.subr.bf16.mxu0 0
    %6110 = vmatpush2.bf16.msra.mxu0 0
    %6111 = vmatprep.subr.bf16.mxu0 0
    %6112 = vmatpush2.bf16.msra.mxu0 0
    %6113 = vmatprep.subr.bf16.mxu0 0
    %6114 = vmatpush2.bf16.msra.mxu0 0
    %6115 = vmatprep.mubr.bf16.mxu0 0
    %6116 = vmatmul.mubr.bf16.gmra.mxu0 %v6082
    %v6117 = vpop.f32.mrf.mxu0
    %v6118 = vadd.f32 %v780, %v6117
    %v6119 = vpop.f32.mrf.mxu0
    %v6120 = vadd.f32 %v784, %v6119
    %v6121 = vpop.f32.mrf.mxu0
    %v6122 = vpop.f32.mrf.mxu0
    %6123 = vdwg.mxu0
    %v6124 = vxor.u32 %v6118, 2147483648
    %v6125 = vxor.u32 %v6120, 2147483648
    %v6126 = vmul.f32 %v6124, 1.442695
    %v6127 = vpow.pop %v6126
    %v6128 = vmul.f32 %v6125, 1.442695
    %v6129 = vpow.pop %v6128
    %v6130 = vadd.f32 %v6127, 1.0
    %v6131 = vadd.f32 %v6129, 1.0
    %v6132 = vrcp.pop %v6130
    %v6133 = vmul.f32 1.0, %v6132
    %v6134 = vrcp.pop %v6131
    %v6135 = vmul.f32 1.0, %v6134
    %v6136 = vtanh.pop %v6120
    %v6137 = vmul.f32 %v6133, %v5366
    %6139 = vrot.lane.b32.xlu0 %v6136, 64
    %v6140 = vpop.permute.xlu0 %6139
    %v6142 = vmul.f32 %v6133, %v6140
    %6144 = vrot.lane.b32.xlu0 %v6142, 64
    %v6145 = vpop.permute.xlu0 %6144
    %v6147 = vadd.f32 %v6137, %v6145
    %v6148 = vtanh.pop %v6147
    %6150 = vrot.lane.b32.xlu0 %v6148, 64
    %v6151 = vpop.permute.xlu0 %6150
    %v6153 = vmul.f32 %v6135, %v6151
    %6155 = vrot.lane.b32.xlu0 %v5449, 64
    %v6156 = vpop.permute.xlu0 %6155
    %v6158 = vsel %vm102, %v6153, %v6156
    %v6159 = vpack.c.bf16 %v6158, %v6158
    %6160 = vmatprep.subr.bf16.mxu0 %v1033
    %6161 = vmatpush1.bf16.msra.mxu0 %v1032
    %6162 = vmatprep.subr.bf16.mxu0 %v1031
    %6163 = vmatpush1.bf16.msra.mxu0 %v1030
    %6164 = vmatprep.subr.bf16.mxu0 %v1029
    %6165 = vmatpush1.bf16.msra.mxu0 %v1028
    %6166 = vmatprep.subr.bf16.mxu0 %v1027
    %6167 = vmatpush1.bf16.msra.mxu0 %v1026
    %6168 = vmatprep.subr.bf16.mxu0 %v1025
    %6169 = vmatpush1.bf16.msra.mxu0 %v1024
    %6170 = vmatprep.subr.bf16.mxu0 %v1023
    %6171 = vmatpush1.bf16.msra.mxu0 %v1022
    %6172 = vmatprep.subr.bf16.mxu0 %v1021
    %6173 = vmatpush1.bf16.msra.mxu0 %v1020
    %6174 = vmatprep.subr.bf16.mxu0 %v1019
    %6175 = vmatpush1.bf16.msra.mxu0 %v1018
    %6176 = vmatprep.subr.bf16.mxu0 0
    %6177 = vmatpush2.bf16.msra.mxu0 0
    %6178 = vmatprep.subr.bf16.mxu0 0
    %6179 = vmatpush2.bf16.msra.mxu0 0
    %6180 = vmatprep.subr.bf16.mxu0 0
    %6181 = vmatpush2.bf16.msra.mxu0 0
    %6182 = vmatprep.subr.bf16.mxu0 0
    %6183 = vmatpush2.bf16.msra.mxu0 0
    %6184 = vmatprep.subr.bf16.mxu0 0
    %6185 = vmatpush2.bf16.msra.mxu0 0
    %6186 = vmatprep.subr.bf16.mxu0 0
    %6187 = vmatpush2.bf16.msra.mxu0 0
    %6188 = vmatprep.subr.bf16.mxu0 0
    %6189 = vmatpush2.bf16.msra.mxu0 0
    %6190 = vmatprep.subr.bf16.mxu0 0
    %6191 = vmatpush2.bf16.msra.mxu0 0
    %6192 = vmatprep.mubr.bf16.mxu0 0
    %6193 = vmatmul.mubr.bf16.gmra.mxu0 %v6159
    %v6194 = vpop.f32.mrf.mxu0
    %v6195 = vadd.f32 %v963, %v6194
    %v6196 = vpop.f32.mrf.mxu0
    %v6197 = vadd.f32 %v967, %v6196
    %v6198 = vpop.f32.mrf.mxu0
    %v6199 = vpop.f32.mrf.mxu0
    %6200 = vdwg.mxu0
    %v6201 = vxor.u32 %v6195, 2147483648
    %v6202 = vxor.u32 %v6197, 2147483648
    %v6203 = vmul.f32 %v6201, 1.442695
    %v6204 = vpow.pop %v6203
    %v6205 = vmul.f32 %v6202, 1.442695
    %v6206 = vpow.pop %v6205
    %v6207 = vadd.f32 %v6204, 1.0
    %v6208 = vadd.f32 %v6206, 1.0
    %v6209 = vrcp.pop %v6207
    %v6210 = vmul.f32 1.0, %v6209
    %v6211 = vrcp.pop %v6208
    %v6212 = vmul.f32 1.0, %v6211
    %v6213 = vtanh.pop %v6197
    %v6214 = vmul.f32 %v6210, %v5443
    %6216 = vrot.lane.b32.xlu0 %v6213, 64
    %v6217 = vpop.permute.xlu0 %6216
    %v6219 = vmul.f32 %v6210, %v6217
    %6221 = vrot.lane.b32.xlu0 %v6219, 64
    %v6222 = vpop.permute.xlu0 %6221
    %v6224 = vadd.f32 %v6214, %v6222
    %v6225 = vtanh.pop %v6224
    %6227 = vrot.lane.b32.xlu0 %v6225, 64
    %v6228 = vpop.permute.xlu0 %6227
    %v6230 = vmul.f32 %v6212, %v6228
    %6232 = vrot.lane.b32.xlu0 %v5526, 64
    %v6233 = vpop.permute.xlu0 %6232
    %v6235 = vsel %vm102, %v6230, %v6233
    %v6236 = vpack.c.bf16 %v6235, %v6235
    %6237 = vmatprep.subr.bf16.mxu0 %v1216
    %6238 = vmatpush1.bf16.msra.mxu0 %v1215
    %6239 = vmatprep.subr.bf16.mxu0 %v1214
    %6240 = vmatpush1.bf16.msra.mxu0 %v1213
    %6241 = vmatprep.subr.bf16.mxu0 %v1212
    %6242 = vmatpush1.bf16.msra.mxu0 %v1211
    %6243 = vmatprep.subr.bf16.mxu0 %v1210
    %6244 = vmatpush1.bf16.msra.mxu0 %v1209
    %6245 = vmatprep.subr.bf16.mxu0 %v1208
    %6246 = vmatpush1.bf16.msra.mxu0 %v1207
    %6247 = vmatprep.subr.bf16.mxu0 %v1206
    %6248 = vmatpush1.bf16.msra.mxu0 %v1205
    %6249 = vmatprep.subr.bf16.mxu0 %v1204
    %6250 = vmatpush1.bf16.msra.mxu0 %v1203
    %6251 = vmatprep.subr.bf16.mxu0 %v1202
    %6252 = vmatpush1.bf16.msra.mxu0 %v1201
    %6253 = vmatprep.subr.bf16.mxu0 0
    %6254 = vmatpush2.bf16.msra.mxu0 0
    %6255 = vmatprep.subr.bf16.mxu0 0
    %6256 = vmatpush2.bf16.msra.mxu0 0
    %6257 = vmatprep.subr.bf16.mxu0 0
    %6258 = vmatpush2.bf16.msra.mxu0 0
    %6259 = vmatprep.subr.bf16.mxu0 0
    %6260 = vmatpush2.bf16.msra.mxu0 0
    %6261 = vmatprep.subr.bf16.mxu0 0
    %6262 = vmatpush2.bf16.msra.mxu0 0
    %6263 = vmatprep.subr.bf16.mxu0 0
    %6264 = vmatpush2.bf16.msra.mxu0 0
    %6265 = vmatprep.subr.bf16.mxu0 0
    %6266 = vmatpush2.bf16.msra.mxu0 0
    %6267 = vmatprep.subr.bf16.mxu0 0
    %6268 = vmatpush2.bf16.msra.mxu0 0
    %6269 = vmatprep.mubr.bf16.mxu0 0
    %6270 = vmatmul.mubr.bf16.gmra.mxu0 %v6236
    %v6271 = vpop.f32.mrf.mxu0
    %v6272 = vadd.f32 %v1146, %v6271
    %v6273 = vpop.f32.mrf.mxu0
    %v6274 = vadd.f32 %v1150, %v6273
    %v6275 = vpop.f32.mrf.mxu0
    %v6276 = vpop.f32.mrf.mxu0
    %6277 = vdwg.mxu0
    %v6278 = vxor.u32 %v6272, 2147483648
    %v6279 = vxor.u32 %v6274, 2147483648
    %v6280 = vmul.f32 %v6278, 1.442695
    %v6281 = vpow.pop %v6280
    %v6282 = vmul.f32 %v6279, 1.442695
    %v6283 = vpow.pop %v6282
    %v6284 = vadd.f32 %v6281, 1.0
    %v6285 = vadd.f32 %v6283, 1.0
    %v6286 = vrcp.pop %v6284
    %v6287 = vmul.f32 1.0, %v6286
    %v6288 = vrcp.pop %v6285
    %v6289 = vmul.f32 1.0, %v6288
    %v6290 = vtanh.pop %v6274
    %v6291 = vmul.f32 %v6287, %v5520
    %6293 = vrot.lane.b32.xlu0 %v6290, 64
    %v6294 = vpop.permute.xlu0 %6293
    %v6296 = vmul.f32 %v6287, %v6294
    %6298 = vrot.lane.b32.xlu0 %v6296, 64
    %v6299 = vpop.permute.xlu0 %6298
    %v6301 = vadd.f32 %v6291, %v6299
    %v6302 = vtanh.pop %v6301
    %6304 = vrot.lane.b32.xlu0 %v6302, 64
    %v6305 = vpop.permute.xlu0 %6304
    %v6307 = vmul.f32 %v6289, %v6305
    %6309 = vrot.lane.b32.xlu0 %v5603, 64
    %v6310 = vpop.permute.xlu0 %6309
    %v6312 = vsel %vm102, %v6307, %v6310
    %v6313 = vpack.c.bf16 %v6312, %v6312
    %6314 = vmatprep.subr.bf16.mxu0 %v1399
    %6315 = vmatpush1.bf16.msra.mxu0 %v1398
    %6316 = vmatprep.subr.bf16.mxu0 %v1397
    %6317 = vmatpush1.bf16.msra.mxu0 %v1396
    %6318 = vmatprep.subr.bf16.mxu0 %v1395
    %6319 = vmatpush1.bf16.msra.mxu0 %v1394
    %6320 = vmatprep.subr.bf16.mxu0 %v1393
    %6321 = vmatpush1.bf16.msra.mxu0 %v1392
    %6322 = vmatprep.subr.bf16.mxu0 %v1391
    %6323 = vmatpush1.bf16.msra.mxu0 %v1390
    %6324 = vmatprep.subr.bf16.mxu0 %v1389
    %6325 = vmatpush1.bf16.msra.mxu0 %v1388
    %6326 = vmatprep.subr.bf16.mxu0 %v1387
    %6327 = vmatpush1.bf16.msra.mxu0 %v1386
    %6328 = vmatprep.subr.bf16.mxu0 %v1385
    %6329 = vmatpush1.bf16.msra.mxu0 %v1384
    %6330 = vmatprep.subr.bf16.mxu0 0
    %6331 = vmatpush2.bf16.msra.mxu0 0
    %6332 = vmatprep.subr.bf16.mxu0 0
    %6333 = vmatpush2.bf16.msra.mxu0 0
    %6334 = vmatprep.subr.bf16.mxu0 0
    %6335 = vmatpush2.bf16.msra.mxu0 0
    %6336 = vmatprep.subr.bf16.mxu0 0
    %6337 = vmatpush2.bf16.msra.mxu0 0
    %6338 = vmatprep.subr.bf16.mxu0 0
    %6339 = vmatpush2.bf16.msra.mxu0 0
    %6340 = vmatprep.subr.bf16.mxu0 0
    %6341 = vmatpush2.bf16.msra.mxu0 0
    %6342 = vmatprep.subr.bf16.mxu0 0
    %6343 = vmatpush2.bf16.msra.mxu0 0
    %6344 = vmatprep.subr.bf16.mxu0 0
    %6345 = vmatpush2.bf16.msra.mxu0 0
    %6346 = vmatprep.mubr.bf16.mxu0 0
    %6347 = vmatmul.mubr.bf16.gmra.mxu0 %v6313
    %v6348 = vpop.f32.mrf.mxu0
    %v6349 = vadd.f32 %v1329, %v6348
    %v6350 = vpop.f32.mrf.mxu0
    %v6351 = vadd.f32 %v1333, %v6350
    %v6352 = vpop.f32.mrf.mxu0
    %v6353 = vpop.f32.mrf.mxu0
    %6354 = vdwg.mxu0
    %v6355 = vxor.u32 %v6349, 2147483648
    %v6356 = vxor.u32 %v6351, 2147483648
    %v6357 = vmul.f32 %v6355, 1.442695
    %v6358 = vpow.pop %v6357
    %v6359 = vmul.f32 %v6356, 1.442695
    %v6360 = vpow.pop %v6359
    %v6361 = vadd.f32 %v6358, 1.0
    %v6362 = vadd.f32 %v6360, 1.0
    %v6363 = vrcp.pop %v6361
    %v6364 = vmul.f32 1.0, %v6363
    %v6365 = vrcp.pop %v6362
    %v6366 = vmul.f32 1.0, %v6365
    %v6367 = vtanh.pop %v6351
    %v6368 = vmul.f32 %v6364, %v5597
    %6370 = vrot.lane.b32.xlu0 %v6367, 64
    %v6371 = vpop.permute.xlu0 %6370
    %v6373 = vmul.f32 %v6364, %v6371
    %6375 = vrot.lane.b32.xlu0 %v6373, 64
    %v6376 = vpop.permute.xlu0 %6375
    %v6378 = vadd.f32 %v6368, %v6376
    %v6379 = vtanh.pop %v6378
    %6381 = vrot.lane.b32.xlu0 %v6379, 64
    %v6382 = vpop.permute.xlu0 %6381
    %v6384 = vmul.f32 %v6366, %v6382
    %6386 = vrot.lane.b32.xlu0 %v5680, 64
    %v6387 = vpop.permute.xlu0 %6386
    %v6389 = vsel %vm102, %v6384, %v6387
    %v6390 = vpack.c.bf16 %v6389, %v6389
    %6391 = vmatprep.subr.bf16.mxu0 %v1582
    %6392 = vmatpush1.bf16.msra.mxu0 %v1581
    %6393 = vmatprep.subr.bf16.mxu0 %v1580
    %6394 = vmatpush1.bf16.msra.mxu0 %v1579
    %6395 = vmatprep.subr.bf16.mxu0 %v1578
    %6396 = vmatpush1.bf16.msra.mxu0 %v1577
    %6397 = vmatprep.subr.bf16.mxu0 %v1576
    %6398 = vmatpush1.bf16.msra.mxu0 %v1575
    %6399 = vmatprep.subr.bf16.mxu0 %v1574
    %6400 = vmatpush1.bf16.msra.mxu0 %v1573
    %6401 = vmatprep.subr.bf16.mxu0 %v1572
    %6402 = vmatpush1.bf16.msra.mxu0 %v1571
    %6403 = vmatprep.subr.bf16.mxu0 %v1570
    %6404 = vmatpush1.bf16.msra.mxu0 %v1569
    %6405 = vmatprep.subr.bf16.mxu0 %v1568
    %6406 = vmatpush1.bf16.msra.mxu0 %v1567
    %6407 = vmatprep.subr.bf16.mxu0 0
    %6408 = vmatpush2.bf16.msra.mxu0 0
    %6409 = vmatprep.subr.bf16.mxu0 0
    %6410 = vmatpush2.bf16.msra.mxu0 0
    %6411 = vmatprep.subr.bf16.mxu0 0
    %6412 = vmatpush2.bf16.msra.mxu0 0
    %6413 = vmatprep.subr.bf16.mxu0 0
    %6414 = vmatpush2.bf16.msra.mxu0 0
    %6415 = vmatprep.subr.bf16.mxu0 0
    %6416 = vmatpush2.bf16.msra.mxu0 0
    %6417 = vmatprep.subr.bf16.mxu0 0
    %6418 = vmatpush2.bf16.msra.mxu0 0
    %6419 = vmatprep.subr.bf16.mxu0 0
    %6420 = vmatpush2.bf16.msra.mxu0 0
    %6421 = vmatprep.subr.bf16.mxu0 0
    %6422 = vmatpush2.bf16.msra.mxu0 0
    %6423 = vmatprep.mubr.bf16.mxu0 0
    %6424 = vmatmul.mubr.bf16.gmra.mxu0 %v6390
    %v6425 = vpop.f32.mrf.mxu0
    %v6426 = vadd.f32 %v1512, %v6425
    %v6427 = vpop.f32.mrf.mxu0
    %v6428 = vadd.f32 %v1516, %v6427
    %v6429 = vpop.f32.mrf.mxu0
    %v6430 = vpop.f32.mrf.mxu0
    %6431 = vdwg.mxu0
    %v6432 = vxor.u32 %v6426, 2147483648
    %v6433 = vxor.u32 %v6428, 2147483648
    %v6434 = vmul.f32 %v6432, 1.442695
    %v6435 = vpow.pop %v6434
    %v6436 = vmul.f32 %v6433, 1.442695
    %v6437 = vpow.pop %v6436
    %v6438 = vadd.f32 %v6435, 1.0
    %v6439 = vadd.f32 %v6437, 1.0
    %v6440 = vrcp.pop %v6438
    %v6441 = vmul.f32 1.0, %v6440
    %v6442 = vrcp.pop %v6439
    %v6443 = vmul.f32 1.0, %v6442
    %v6444 = vtanh.pop %v6428
    %v6445 = vmul.f32 %v6441, %v5674
    %6447 = vrot.lane.b32.xlu0 %v6444, 64
    %v6448 = vpop.permute.xlu0 %6447
    %v6450 = vmul.f32 %v6441, %v6448
    %6452 = vrot.lane.b32.xlu0 %v6450, 64
    %v6453 = vpop.permute.xlu0 %6452
    %v6455 = vadd.f32 %v6445, %v6453
    %v6456 = vtanh.pop %v6455
    %6458 = vrot.lane.b32.xlu0 %v6456, 64
    %v6459 = vpop.permute.xlu0 %6458
    %v6461 = vmul.f32 %v6443, %v6459
    %6463 = vrot.lane.b32.xlu0 %v5757, 64
    %v6464 = vpop.permute.xlu0 %6463
    %v6466 = vsel %vm102, %v6461, %v6464
    %v6467 = vpack.c.bf16 %v6466, %v6466
    %6468 = vmatprep.subr.bf16.mxu0 %v1765
    %6469 = vmatpush1.bf16.msra.mxu0 %v1764
    %6470 = vmatprep.subr.bf16.mxu0 %v1763
    %6471 = vmatpush1.bf16.msra.mxu0 %v1762
    %6472 = vmatprep.subr.bf16.mxu0 %v1761
    %6473 = vmatpush1.bf16.msra.mxu0 %v1760
    %6474 = vmatprep.subr.bf16.mxu0 %v1759
    %6475 = vmatpush1.bf16.msra.mxu0 %v1758
    %6476 = vmatprep.subr.bf16.mxu0 %v1757
    %6477 = vmatpush1.bf16.msra.mxu0 %v1756
    %6478 = vmatprep.subr.bf16.mxu0 %v1755
    %6479 = vmatpush1.bf16.msra.mxu0 %v1754
    %6480 = vmatprep.subr.bf16.mxu0 %v1753
    %6481 = vmatpush1.bf16.msra.mxu0 %v1752
    %6482 = vmatprep.subr.bf16.mxu0 %v1751
    %6483 = vmatpush1.bf16.msra.mxu0 %v1750
    %6484 = vmatprep.subr.bf16.mxu0 0
    %6485 = vmatpush2.bf16.msra.mxu0 0
    %6486 = vmatprep.subr.bf16.mxu0 0
    %6487 = vmatpush2.bf16.msra.mxu0 0
    %6488 = vmatprep.subr.bf16.mxu0 0
    %6489 = vmatpush2.bf16.msra.mxu0 0
    %6490 = vmatprep.subr.bf16.mxu0 0
    %6491 = vmatpush2.bf16.msra.mxu0 0
    %6492 = vmatprep.subr.bf16.mxu0 0
    %6493 = vmatpush2.bf16.msra.mxu0 0
    %6494 = vmatprep.subr.bf16.mxu0 0
    %6495 = vmatpush2.bf16.msra.mxu0 0
    %6496 = vmatprep.subr.bf16.mxu0 0
    %6497 = vmatpush2.bf16.msra.mxu0 0
    %6498 = vmatprep.subr.bf16.mxu0 0
    %6499 = vmatpush2.bf16.msra.mxu0 0
    %6500 = vmatprep.mubr.bf16.mxu0 0
    %6501 = vmatmul.mubr.bf16.gmra.mxu0 %v6467
    %v6502 = vpop.f32.mrf.mxu0
    %v6503 = vadd.f32 %v1695, %v6502
    %v6504 = vpop.f32.mrf.mxu0
    %v6505 = vadd.f32 %v1699, %v6504
    %v6506 = vpop.f32.mrf.mxu0
    %v6507 = vpop.f32.mrf.mxu0
    %6508 = vdwg.mxu0
    %v6509 = vxor.u32 %v6503, 2147483648
    %v6510 = vxor.u32 %v6505, 2147483648
    %v6511 = vmul.f32 %v6509, 1.442695
    %v6512 = vpow.pop %v6511
    %v6513 = vmul.f32 %v6510, 1.442695
    %v6514 = vpow.pop %v6513
    %v6515 = vadd.f32 %v6512, 1.0
    %v6516 = vadd.f32 %v6514, 1.0
    %v6517 = vrcp.pop %v6515
    %v6518 = vmul.f32 1.0, %v6517
    %v6519 = vrcp.pop %v6516
    %v6520 = vmul.f32 1.0, %v6519
    %v6521 = vtanh.pop %v6505
    %v6522 = vmul.f32 %v6518, %v5751
    %6524 = vrot.lane.b32.xlu0 %v6521, 64
    %v6525 = vpop.permute.xlu0 %6524
    %v6527 = vmul.f32 %v6518, %v6525
    %6529 = vrot.lane.b32.xlu0 %v6527, 64
    %v6530 = vpop.permute.xlu0 %6529
    %v6532 = vadd.f32 %v6522, %v6530
    %v6533 = vtanh.pop %v6532
    %6535 = vrot.lane.b32.xlu0 %v6533, 64
    %v6536 = vpop.permute.xlu0 %6535
    %v6538 = vmul.f32 %v6520, %v6536
    %s6539 = scalar_lea.vmem [#allocation2], 28
    %v6540 = vld [vmem:[%s6539] sm:$0xf]
    %v6541 = vpack.c.bf16 %v5845, %v5845
    %v6543 = vsel %vm102, %v6541, 0
    %6545 = vmatprep.subr.bf16.mxu0 0
    %6546 = vmatpush1.bf16.msra.mxu0 0
    %6547 = vmatprep.subr.bf16.mxu0 0
    %6548 = vmatpush1.bf16.msra.mxu0 0
    %6549 = vmatprep.subr.bf16.mxu0 0
    %6550 = vmatpush1.bf16.msra.mxu0 0
    %6551 = vmatprep.subr.bf16.mxu0 0
    %6552 = vmatpush1.bf16.msra.mxu0 0
    %6553 = vmatprep.subr.bf16.mxu0 %v93
    %6554 = vmatpush1.bf16.msra.mxu0 %v92
    %6555 = vmatprep.subr.bf16.mxu0 %v91
    %6556 = vmatpush1.bf16.msra.mxu0 %v90
    %6557 = vmatprep.subr.bf16.mxu0 %v89
    %6558 = vmatpush1.bf16.msra.mxu0 %v88
    %6559 = vmatprep.subr.bf16.mxu0 %v87
    %6560 = vmatpush1.bf16.msra.mxu0 %v86
    %6561 = vmatprep.subr.bf16.mxu0 0
    %6562 = vmatpush2.bf16.msra.mxu0 0
    %6563 = vmatprep.subr.bf16.mxu0 0
    %6564 = vmatpush2.bf16.msra.mxu0 0
    %6565 = vmatprep.subr.bf16.mxu0 0
    %6566 = vmatpush2.bf16.msra.mxu0 0
    %6567 = vmatprep.subr.bf16.mxu0 0
    %6568 = vmatpush2.bf16.msra.mxu0 0
    %6569 = vmatprep.subr.bf16.mxu0 0
    %6570 = vmatpush2.bf16.msra.mxu0 0
    %6571 = vmatprep.subr.bf16.mxu0 0
    %6572 = vmatpush2.bf16.msra.mxu0 0
    %6573 = vmatprep.subr.bf16.mxu0 0
    %6574 = vmatpush2.bf16.msra.mxu0 0
    %6575 = vmatprep.subr.bf16.mxu0 0
    %6576 = vmatpush2.bf16.msra.mxu0 0
    %6577 = vmatprep.mubr.bf16.mxu0 0
    %6578 = vmatmul.mubr.bf16.gmra.mxu0 %v6543
    %v6579 = vpop.f32.mrf.mxu0
    %v6580 = vadd.f32 0.0, %v6579
    %v6581 = vpop.f32.mrf.mxu0
    %v6582 = vadd.f32 0.0, %v6581
    %v6583 = vpop.f32.mrf.mxu0
    %v6584 = vpop.f32.mrf.mxu0
    %6585 = vdwg.mxu0
    %v6588 = vcombine.low %v6580, %v6582
    %v6590 = vunpack.c.l.s4 1983009808
    %v6591 = vunpack.c.0.s8 %v6590
    %v6592 = vlaneseq
    %v6593 = vshrl.u32 %v6592, 7
    %v6594 = vsub.s32 %v6591, %v6593
    %v6595 = vrot.slane %v6588, %v6594
    %v6597 = vadd.f32 %v6540, %v6595
    %v6598 = vadd.f32 %v6597, %v176
    %v6599 = vxor.u32 %v6598, 2147483648
    %v6600 = vmul.f32 %v6599, 1.442695
    %v6601 = vpow.pop %v6600
    %v6602 = vadd.f32 %v6601, 1.0
    %v6603 = vrcp.pop %v6602
    %v6604 = vmul.f32 1.0, %v6603
    %6606 = vrot.lane.b32.xlu0 %v6598, 64
    %v6607 = vpop.permute.xlu0 %6606
    %v6608 = vrot.slane %v6607, 2
    %v6610 = vtanh.pop %v6608
    %v6611 = vmul.f32 %v6604, %v5836
    %v6612 = vmul.f32 %v6604, %v6610
    %6614 = vrot.lane.b32.xlu0 %v6612, 64
    %v6615 = vpop.permute.xlu0 %6614
    %v6617 = vadd.f32 %v6611, %v6615
    %v6618 = vtanh.pop %v6617
    %v6620 = vrot.slane %v6604, 2
    %6623 = vrot.lane.b32.xlu0 %v6618, 64
    %v6624 = vpop.permute.xlu0 %6623
    %v6626 = vmul.f32 %v6620, %v6624
    %6628 = vrot.lane.b32.xlu0 %v5922, 64
    %v6629 = vpop.permute.xlu0 %6628
    %v6631 = vsel %vm102, %v6626, %v6629
    %v6632 = vpack.c.bf16 %v6631, %v6631
    %6633 = vmatprep.subr.bf16.mxu0 %v301
    %6634 = vmatpush1.bf16.msra.mxu0 %v300
    %6635 = vmatprep.subr.bf16.mxu0 %v299
    %6636 = vmatpush1.bf16.msra.mxu0 %v298
    %6637 = vmatprep.subr.bf16.mxu0 %v297
    %6638 = vmatpush1.bf16.msra.mxu0 %v296
    %6639 = vmatprep.subr.bf16.mxu0 %v295
    %6640 = vmatpush1.bf16.msra.mxu0 %v294
    %6641 = vmatprep.subr.bf16.mxu0 %v293
    %6642 = vmatpush1.bf16.msra.mxu0 %v292
    %6643 = vmatprep.subr.bf16.mxu0 %v291
    %6644 = vmatpush1.bf16.msra.mxu0 %v290
    %6645 = vmatprep.subr.bf16.mxu0 %v289
    %6646 = vmatpush1.bf16.msra.mxu0 %v288
    %6647 = vmatprep.subr.bf16.mxu0 %v287
    %6648 = vmatpush1.bf16.msra.mxu0 %v286
    %6649 = vmatprep.subr.bf16.mxu0 0
    %6650 = vmatpush2.bf16.msra.mxu0 0
    %6651 = vmatprep.subr.bf16.mxu0 0
    %6652 = vmatpush2.bf16.msra.mxu0 0
    %6653 = vmatprep.subr.bf16.mxu0 0
    %6654 = vmatpush2.bf16.msra.mxu0 0
    %6655 = vmatprep.subr.bf16.mxu0 0
    %6656 = vmatpush2.bf16.msra.mxu0 0
    %6657 = vmatprep.subr.bf16.mxu0 0
    %6658 = vmatpush2.bf16.msra.mxu0 0
    %6659 = vmatprep.subr.bf16.mxu0 0
    %6660 = vmatpush2.bf16.msra.mxu0 0
    %6661 = vmatprep.subr.bf16.mxu0 0
    %6662 = vmatpush2.bf16.msra.mxu0 0
    %6663 = vmatprep.subr.bf16.mxu0 0
    %6664 = vmatpush2.bf16.msra.mxu0 0
    %6665 = vmatprep.mubr.bf16.mxu0 0
    %6666 = vmatmul.mubr.bf16.gmra.mxu0 %v6632
    %v6667 = vpop.f32.mrf.mxu0
    %v6668 = vadd.f32 %v231, %v6667
    %v6669 = vpop.f32.mrf.mxu0
    %v6670 = vadd.f32 %v235, %v6669
    %v6671 = vpop.f32.mrf.mxu0
    %v6672 = vpop.f32.mrf.mxu0
    %6673 = vdwg.mxu0
    %v6674 = vxor.u32 %v6668, 2147483648
    %v6675 = vxor.u32 %v6670, 2147483648
    %v6676 = vmul.f32 %v6674, 1.442695
    %v6677 = vpow.pop %v6676
    %v6678 = vmul.f32 %v6675, 1.442695
    %v6679 = vpow.pop %v6678
    %v6680 = vadd.f32 %v6677, 1.0
    %v6681 = vadd.f32 %v6679, 1.0
    %v6682 = vrcp.pop %v6680
    %v6683 = vmul.f32 1.0, %v6682
    %v6684 = vrcp.pop %v6681
    %v6685 = vmul.f32 1.0, %v6684
    %v6686 = vtanh.pop %v6670
    %v6687 = vmul.f32 %v6683, %v5916
    %6689 = vrot.lane.b32.xlu0 %v6686, 64
    %v6690 = vpop.permute.xlu0 %6689
    %v6692 = vmul.f32 %v6683, %v6690
    %6694 = vrot.lane.b32.xlu0 %v6692, 64
    %v6695 = vpop.permute.xlu0 %6694
    %v6697 = vadd.f32 %v6687, %v6695
    %v6698 = vtanh.pop %v6697
    %6700 = vrot.lane.b32.xlu0 %v6698, 64
    %v6701 = vpop.permute.xlu0 %6700
    %v6703 = vmul.f32 %v6685, %v6701
    %6705 = vrot.lane.b32.xlu0 %v5999, 64
    %v6706 = vpop.permute.xlu0 %6705
    %v6708 = vsel %vm102, %v6703, %v6706
    %v6709 = vpack.c.bf16 %v6708, %v6708
    %6710 = vmatprep.subr.bf16.mxu0 %v484
    %6711 = vmatpush1.bf16.msra.mxu0 %v483
    %6712 = vmatprep.subr.bf16.mxu0 %v482
    %6713 = vmatpush1.bf16.msra.mxu0 %v481
    %6714 = vmatprep.subr.bf16.mxu0 %v480
    %6715 = vmatpush1.bf16.msra.mxu0 %v479
    %6716 = vmatprep.subr.bf16.mxu0 %v478
    %6717 = vmatpush1.bf16.msra.mxu0 %v477
    %6718 = vmatprep.subr.bf16.mxu0 %v476
    %6719 = vmatpush1.bf16.msra.mxu0 %v475
    %6720 = vmatprep.subr.bf16.mxu0 %v474
    %6721 = vmatpush1.bf16.msra.mxu0 %v473
    %6722 = vmatprep.subr.bf16.mxu0 %v472
    %6723 = vmatpush1.bf16.msra.mxu0 %v471
    %6724 = vmatprep.subr.bf16.mxu0 %v470
    %6725 = vmatpush1.bf16.msra.mxu0 %v469
    %6726 = vmatprep.subr.bf16.mxu0 0
    %6727 = vmatpush2.bf16.msra.mxu0 0
    %6728 = vmatprep.subr.bf16.mxu0 0
    %6729 = vmatpush2.bf16.msra.mxu0 0
    %6730 = vmatprep.subr.bf16.mxu0 0
    %6731 = vmatpush2.bf16.msra.mxu0 0
    %6732 = vmatprep.subr.bf16.mxu0 0
    %6733 = vmatpush2.bf16.msra.mxu0 0
    %6734 = vmatprep.subr.bf16.mxu0 0
    %6735 = vmatpush2.bf16.msra.mxu0 0
    %6736 = vmatprep.subr.bf16.mxu0 0
    %6737 = vmatpush2.bf16.msra.mxu0 0
    %6738 = vmatprep.subr.bf16.mxu0 0
    %6739 = vmatpush2.bf16.msra.mxu0 0
    %6740 = vmatprep.subr.bf16.mxu0 0
    %6741 = vmatpush2.bf16.msra.mxu0 0
    %6742 = vmatprep.mubr.bf16.mxu0 0
    %6743 = vmatmul.mubr.bf16.gmra.mxu0 %v6709
    %v6744 = vpop.f32.mrf.mxu0
    %v6745 = vadd.f32 %v414, %v6744
    %v6746 = vpop.f32.mrf.mxu0
    %v6747 = vadd.f32 %v418, %v6746
    %v6748 = vpop.f32.mrf.mxu0
    %v6749 = vpop.f32.mrf.mxu0
    %6750 = vdwg.mxu0
    %v6751 = vxor.u32 %v6745, 2147483648
    %v6752 = vxor.u32 %v6747, 2147483648
    %v6753 = vmul.f32 %v6751, 1.442695
    %v6754 = vpow.pop %v6753
    %v6755 = vmul.f32 %v6752, 1.442695
    %v6756 = vpow.pop %v6755
    %v6757 = vadd.f32 %v6754, 1.0
    %v6758 = vadd.f32 %v6756, 1.0
    %v6759 = vrcp.pop %v6757
    %v6760 = vmul.f32 1.0, %v6759
    %v6761 = vrcp.pop %v6758
    %v6762 = vmul.f32 1.0, %v6761
    %v6763 = vtanh.pop %v6747
    %v6764 = vmul.f32 %v6760, %v5993
    %6766 = vrot.lane.b32.xlu0 %v6763, 64
    %v6767 = vpop.permute.xlu0 %6766
    %v6769 = vmul.f32 %v6760, %v6767
    %6771 = vrot.lane.b32.xlu0 %v6769, 64
    %v6772 = vpop.permute.xlu0 %6771
    %v6774 = vadd.f32 %v6764, %v6772
    %v6775 = vtanh.pop %v6774
    %6777 = vrot.lane.b32.xlu0 %v6775, 64
    %v6778 = vpop.permute.xlu0 %6777
    %v6780 = vmul.f32 %v6762, %v6778
    %6782 = vrot.lane.b32.xlu0 %v6076, 64
    %v6783 = vpop.permute.xlu0 %6782
    %v6785 = vsel %vm102, %v6780, %v6783
    %v6786 = vpack.c.bf16 %v6785, %v6785
    %6787 = vmatprep.subr.bf16.mxu0 %v667
    %6788 = vmatpush1.bf16.msra.mxu0 %v666
    %6789 = vmatprep.subr.bf16.mxu0 %v665
    %6790 = vmatpush1.bf16.msra.mxu0 %v664
    %6791 = vmatprep.subr.bf16.mxu0 %v663
    %6792 = vmatpush1.bf16.msra.mxu0 %v662
    %6793 = vmatprep.subr.bf16.mxu0 %v661
    %6794 = vmatpush1.bf16.msra.mxu0 %v660
    %6795 = vmatprep.subr.bf16.mxu0 %v659
    %6796 = vmatpush1.bf16.msra.mxu0 %v658
    %6797 = vmatprep.subr.bf16.mxu0 %v657
    %6798 = vmatpush1.bf16.msra.mxu0 %v656
    %6799 = vmatprep.subr.bf16.mxu0 %v655
    %6800 = vmatpush1.bf16.msra.mxu0 %v654
    %6801 = vmatprep.subr.bf16.mxu0 %v653
    %6802 = vmatpush1.bf16.msra.mxu0 %v652
    %6803 = vmatprep.subr.bf16.mxu0 0
    %6804 = vmatpush2.bf16.msra.mxu0 0
    %6805 = vmatprep.subr.bf16.mxu0 0
    %6806 = vmatpush2.bf16.msra.mxu0 0
    %6807 = vmatprep.subr.bf16.mxu0 0
    %6808 = vmatpush2.bf16.msra.mxu0 0
    %6809 = vmatprep.subr.bf16.mxu0 0
    %6810 = vmatpush2.bf16.msra.mxu0 0
    %6811 = vmatprep.subr.bf16.mxu0 0
    %6812 = vmatpush2.bf16.msra.mxu0 0
    %6813 = vmatprep.subr.bf16.mxu0 0
    %6814 = vmatpush2.bf16.msra.mxu0 0
    %6815 = vmatprep.subr.bf16.mxu0 0
    %6816 = vmatpush2.bf16.msra.mxu0 0
    %6817 = vmatprep.subr.bf16.mxu0 0
    %6818 = vmatpush2.bf16.msra.mxu0 0
    %6819 = vmatprep.mubr.bf16.mxu0 0
    %6820 = vmatmul.mubr.bf16.gmra.mxu0 %v6786
    %v6821 = vpop.f32.mrf.mxu0
    %v6822 = vadd.f32 %v597, %v6821
    %v6823 = vpop.f32.mrf.mxu0
    %v6824 = vadd.f32 %v601, %v6823
    %v6825 = vpop.f32.mrf.mxu0
    %v6826 = vpop.f32.mrf.mxu0
    %6827 = vdwg.mxu0
    %v6828 = vxor.u32 %v6822, 2147483648
    %v6829 = vxor.u32 %v6824, 2147483648
    %v6830 = vmul.f32 %v6828, 1.442695
    %v6831 = vpow.pop %v6830
    %v6832 = vmul.f32 %v6829, 1.442695
    %v6833 = vpow.pop %v6832
    %v6834 = vadd.f32 %v6831, 1.0
    %v6835 = vadd.f32 %v6833, 1.0
    %v6836 = vrcp.pop %v6834
    %v6837 = vmul.f32 1.0, %v6836
    %v6838 = vrcp.pop %v6835
    %v6839 = vmul.f32 1.0, %v6838
    %v6840 = vtanh.pop %v6824
    %v6841 = vmul.f32 %v6837, %v6070
    %6843 = vrot.lane.b32.xlu0 %v6840, 64
    %v6844 = vpop.permute.xlu0 %6843
    %v6846 = vmul.f32 %v6837, %v6844
    %6848 = vrot.lane.b32.xlu0 %v6846, 64
    %v6849 = vpop.permute.xlu0 %6848
    %v6851 = vadd.f32 %v6841, %v6849
    %v6852 = vtanh.pop %v6851
    %6854 = vrot.lane.b32.xlu0 %v6852, 64
    %v6855 = vpop.permute.xlu0 %6854
    %v6857 = vmul.f32 %v6839, %v6855
    %6859 = vrot.lane.b32.xlu0 %v6153, 64
    %v6860 = vpop.permute.xlu0 %6859
    %v6862 = vsel %vm102, %v6857, %v6860
    %v6863 = vpack.c.bf16 %v6862, %v6862
    %6864 = vmatprep.subr.bf16.mxu0 %v850
    %6865 = vmatpush1.bf16.msra.mxu0 %v849
    %6866 = vmatprep.subr.bf16.mxu0 %v848
    %6867 = vmatpush1.bf16.msra.mxu0 %v847
    %6868 = vmatprep.subr.bf16.mxu0 %v846
    %6869 = vmatpush1.bf16.msra.mxu0 %v845
    %6870 = vmatprep.subr.bf16.mxu0 %v844
    %6871 = vmatpush1.bf16.msra.mxu0 %v843
    %6872 = vmatprep.subr.bf16.mxu0 %v842
    %6873 = vmatpush1.bf16.msra.mxu0 %v841
    %6874 = vmatprep.subr.bf16.mxu0 %v840
    %6875 = vmatpush1.bf16.msra.mxu0 %v839
    %6876 = vmatprep.subr.bf16.mxu0 %v838
    %6877 = vmatpush1.bf16.msra.mxu0 %v837
    %6878 = vmatprep.subr.bf16.mxu0 %v836
    %6879 = vmatpush1.bf16.msra.mxu0 %v835
    %6880 = vmatprep.subr.bf16.mxu0 0
    %6881 = vmatpush2.bf16.msra.mxu0 0
    %6882 = vmatprep.subr.bf16.mxu0 0
    %6883 = vmatpush2.bf16.msra.mxu0 0
    %6884 = vmatprep.subr.bf16.mxu0 0
    %6885 = vmatpush2.bf16.msra.mxu0 0
    %6886 = vmatprep.subr.bf16.mxu0 0
    %6887 = vmatpush2.bf16.msra.mxu0 0
    %6888 = vmatprep.subr.bf16.mxu0 0
    %6889 = vmatpush2.bf16.msra.mxu0 0
    %6890 = vmatprep.subr.bf16.mxu0 0
    %6891 = vmatpush2.bf16.msra.mxu0 0
    %6892 = vmatprep.subr.bf16.mxu0 0
    %6893 = vmatpush2.bf16.msra.mxu0 0
    %6894 = vmatprep.subr.bf16.mxu0 0
    %6895 = vmatpush2.bf16.msra.mxu0 0
    %6896 = vmatprep.mubr.bf16.mxu0 0
    %6897 = vmatmul.mubr.bf16.gmra.mxu0 %v6863
    %v6898 = vpop.f32.mrf.mxu0
    %v6899 = vadd.f32 %v780, %v6898
    %v6900 = vpop.f32.mrf.mxu0
    %v6901 = vadd.f32 %v784, %v6900
    %v6902 = vpop.f32.mrf.mxu0
    %v6903 = vpop.f32.mrf.mxu0
    %6904 = vdwg.mxu0
    %v6905 = vxor.u32 %v6899, 2147483648
    %v6906 = vxor.u32 %v6901, 2147483648
    %v6907 = vmul.f32 %v6905, 1.442695
    %v6908 = vpow.pop %v6907
    %v6909 = vmul.f32 %v6906, 1.442695
    %v6910 = vpow.pop %v6909
    %v6911 = vadd.f32 %v6908, 1.0
    %v6912 = vadd.f32 %v6910, 1.0
    %v6913 = vrcp.pop %v6911
    %v6914 = vmul.f32 1.0, %v6913
    %v6915 = vrcp.pop %v6912
    %v6916 = vmul.f32 1.0, %v6915
    %v6917 = vtanh.pop %v6901
    %v6918 = vmul.f32 %v6914, %v6147
    %6920 = vrot.lane.b32.xlu0 %v6917, 64
    %v6921 = vpop.permute.xlu0 %6920
    %v6923 = vmul.f32 %v6914, %v6921
    %6925 = vrot.lane.b32.xlu0 %v6923, 64
    %v6926 = vpop.permute.xlu0 %6925
    %v6928 = vadd.f32 %v6918, %v6926
    %v6929 = vtanh.pop %v6928
    %6931 = vrot.lane.b32.xlu0 %v6929, 64
    %v6932 = vpop.permute.xlu0 %6931
    %v6934 = vmul.f32 %v6916, %v6932
    %6936 = vrot.lane.b32.xlu0 %v6230, 64
    %v6937 = vpop.permute.xlu0 %6936
    %v6939 = vsel %vm102, %v6934, %v6937
    %v6940 = vpack.c.bf16 %v6939, %v6939
    %6941 = vmatprep.subr.bf16.mxu0 %v1033
    %6942 = vmatpush1.bf16.msra.mxu0 %v1032
    %6943 = vmatprep.subr.bf16.mxu0 %v1031
    %6944 = vmatpush1.bf16.msra.mxu0 %v1030
    %6945 = vmatprep.subr.bf16.mxu0 %v1029
    %6946 = vmatpush1.bf16.msra.mxu0 %v1028
    %6947 = vmatprep.subr.bf16.mxu0 %v1027
    %6948 = vmatpush1.bf16.msra.mxu0 %v1026
    %6949 = vmatprep.subr.bf16.mxu0 %v1025
    %6950 = vmatpush1.bf16.msra.mxu0 %v1024
    %6951 = vmatprep.subr.bf16.mxu0 %v1023
    %6952 = vmatpush1.bf16.msra.mxu0 %v1022
    %6953 = vmatprep.subr.bf16.mxu0 %v1021
    %6954 = vmatpush1.bf16.msra.mxu0 %v1020
    %6955 = vmatprep.subr.bf16.mxu0 %v1019
    %6956 = vmatpush1.bf16.msra.mxu0 %v1018
    %6957 = vmatprep.subr.bf16.mxu0 0
    %6958 = vmatpush2.bf16.msra.mxu0 0
    %6959 = vmatprep.subr.bf16.mxu0 0
    %6960 = vmatpush2.bf16.msra.mxu0 0
    %6961 = vmatprep.subr.bf16.mxu0 0
    %6962 = vmatpush2.bf16.msra.mxu0 0
    %6963 = vmatprep.subr.bf16.mxu0 0
    %6964 = vmatpush2.bf16.msra.mxu0 0
    %6965 = vmatprep.subr.bf16.mxu0 0
    %6966 = vmatpush2.bf16.msra.mxu0 0
    %6967 = vmatprep.subr.bf16.mxu0 0
    %6968 = vmatpush2.bf16.msra.mxu0 0
    %6969 = vmatprep.subr.bf16.mxu0 0
    %6970 = vmatpush2.bf16.msra.mxu0 0
    %6971 = vmatprep.subr.bf16.mxu0 0
    %6972 = vmatpush2.bf16.msra.mxu0 0
    %6973 = vmatprep.mubr.bf16.mxu0 0
    %6974 = vmatmul.mubr.bf16.gmra.mxu0 %v6940
    %v6975 = vpop.f32.mrf.mxu0
    %v6976 = vadd.f32 %v963, %v6975
    %v6977 = vpop.f32.mrf.mxu0
    %v6978 = vadd.f32 %v967, %v6977
    %v6979 = vpop.f32.mrf.mxu0
    %v6980 = vpop.f32.mrf.mxu0
    %6981 = vdwg.mxu0
    %v6982 = vxor.u32 %v6976, 2147483648
    %v6983 = vxor.u32 %v6978, 2147483648
    %v6984 = vmul.f32 %v6982, 1.442695
    %v6985 = vpow.pop %v6984
    %v6986 = vmul.f32 %v6983, 1.442695
    %v6987 = vpow.pop %v6986
    %v6988 = vadd.f32 %v6985, 1.0
    %v6989 = vadd.f32 %v6987, 1.0
    %v6990 = vrcp.pop %v6988
    %v6991 = vmul.f32 1.0, %v6990
    %v6992 = vrcp.pop %v6989
    %v6993 = vmul.f32 1.0, %v6992
    %v6994 = vtanh.pop %v6978
    %v6995 = vmul.f32 %v6991, %v6224
    %6997 = vrot.lane.b32.xlu0 %v6994, 64
    %v6998 = vpop.permute.xlu0 %6997
    %v7000 = vmul.f32 %v6991, %v6998
    %7002 = vrot.lane.b32.xlu0 %v7000, 64
    %v7003 = vpop.permute.xlu0 %7002
    %v7005 = vadd.f32 %v6995, %v7003
    %v7006 = vtanh.pop %v7005
    %7008 = vrot.lane.b32.xlu0 %v7006, 64
    %v7009 = vpop.permute.xlu0 %7008
    %v7011 = vmul.f32 %v6993, %v7009
    %7013 = vrot.lane.b32.xlu0 %v6307, 64
    %v7014 = vpop.permute.xlu0 %7013
    %v7016 = vsel %vm102, %v7011, %v7014
    %v7017 = vpack.c.bf16 %v7016, %v7016
    %7018 = vmatprep.subr.bf16.mxu0 %v1216
    %7019 = vmatpush1.bf16.msra.mxu0 %v1215
    %7020 = vmatprep.subr.bf16.mxu0 %v1214
    %7021 = vmatpush1.bf16.msra.mxu0 %v1213
    %7022 = vmatprep.subr.bf16.mxu0 %v1212
    %7023 = vmatpush1.bf16.msra.mxu0 %v1211
    %7024 = vmatprep.subr.bf16.mxu0 %v1210
    %7025 = vmatpush1.bf16.msra.mxu0 %v1209
    %7026 = vmatprep.subr.bf16.mxu0 %v1208
    %7027 = vmatpush1.bf16.msra.mxu0 %v1207
    %7028 = vmatprep.subr.bf16.mxu0 %v1206
    %7029 = vmatpush1.bf16.msra.mxu0 %v1205
    %7030 = vmatprep.subr.bf16.mxu0 %v1204
    %7031 = vmatpush1.bf16.msra.mxu0 %v1203
    %7032 = vmatprep.subr.bf16.mxu0 %v1202
    %7033 = vmatpush1.bf16.msra.mxu0 %v1201
    %7034 = vmatprep.subr.bf16.mxu0 0
    %7035 = vmatpush2.bf16.msra.mxu0 0
    %7036 = vmatprep.subr.bf16.mxu0 0
    %7037 = vmatpush2.bf16.msra.mxu0 0
    %7038 = vmatprep.subr.bf16.mxu0 0
    %7039 = vmatpush2.bf16.msra.mxu0 0
    %7040 = vmatprep.subr.bf16.mxu0 0
    %7041 = vmatpush2.bf16.msra.mxu0 0
    %7042 = vmatprep.subr.bf16.mxu0 0
    %7043 = vmatpush2.bf16.msra.mxu0 0
    %7044 = vmatprep.subr.bf16.mxu0 0
    %7045 = vmatpush2.bf16.msra.mxu0 0
    %7046 = vmatprep.subr.bf16.mxu0 0
    %7047 = vmatpush2.bf16.msra.mxu0 0
    %7048 = vmatprep.subr.bf16.mxu0 0
    %7049 = vmatpush2.bf16.msra.mxu0 0
    %7050 = vmatprep.mubr.bf16.mxu0 0
    %7051 = vmatmul.mubr.bf16.gmra.mxu0 %v7017
    %v7052 = vpop.f32.mrf.mxu0
    %v7053 = vadd.f32 %v1146, %v7052
    %v7054 = vpop.f32.mrf.mxu0
    %v7055 = vadd.f32 %v1150, %v7054
    %v7056 = vpop.f32.mrf.mxu0
    %v7057 = vpop.f32.mrf.mxu0
    %7058 = vdwg.mxu0
    %v7059 = vxor.u32 %v7053, 2147483648
    %v7060 = vxor.u32 %v7055, 2147483648
    %v7061 = vmul.f32 %v7059, 1.442695
    %v7062 = vpow.pop %v7061
    %v7063 = vmul.f32 %v7060, 1.442695
    %v7064 = vpow.pop %v7063
    %v7065 = vadd.f32 %v7062, 1.0
    %v7066 = vadd.f32 %v7064, 1.0
    %v7067 = vrcp.pop %v7065
    %v7068 = vmul.f32 1.0, %v7067
    %v7069 = vrcp.pop %v7066
    %v7070 = vmul.f32 1.0, %v7069
    %v7071 = vtanh.pop %v7055
    %v7072 = vmul.f32 %v7068, %v6301
    %7074 = vrot.lane.b32.xlu0 %v7071, 64
    %v7075 = vpop.permute.xlu0 %7074
    %v7077 = vmul.f32 %v7068, %v7075
    %7079 = vrot.lane.b32.xlu0 %v7077, 64
    %v7080 = vpop.permute.xlu0 %7079
    %v7082 = vadd.f32 %v7072, %v7080
    %v7083 = vtanh.pop %v7082
    %7085 = vrot.lane.b32.xlu0 %v7083, 64
    %v7086 = vpop.permute.xlu0 %7085
    %v7088 = vmul.f32 %v7070, %v7086
    %7090 = vrot.lane.b32.xlu0 %v6384, 64
    %v7091 = vpop.permute.xlu0 %7090
    %v7093 = vsel %vm102, %v7088, %v7091
    %v7094 = vpack.c.bf16 %v7093, %v7093
    %7095 = vmatprep.subr.bf16.mxu0 %v1399
    %7096 = vmatpush1.bf16.msra.mxu0 %v1398
    %7097 = vmatprep.subr.bf16.mxu0 %v1397
    %7098 = vmatpush1.bf16.msra.mxu0 %v1396
    %7099 = vmatprep.subr.bf16.mxu0 %v1395
    %7100 = vmatpush1.bf16.msra.mxu0 %v1394
    %7101 = vmatprep.subr.bf16.mxu0 %v1393
    %7102 = vmatpush1.bf16.msra.mxu0 %v1392
    %7103 = vmatprep.subr.bf16.mxu0 %v1391
    %7104 = vmatpush1.bf16.msra.mxu0 %v1390
    %7105 = vmatprep.subr.bf16.mxu0 %v1389
    %7106 = vmatpush1.bf16.msra.mxu0 %v1388
    %7107 = vmatprep.subr.bf16.mxu0 %v1387
    %7108 = vmatpush1.bf16.msra.mxu0 %v1386
    %7109 = vmatprep.subr.bf16.mxu0 %v1385
    %7110 = vmatpush1.bf16.msra.mxu0 %v1384
    %7111 = vmatprep.subr.bf16.mxu0 0
    %7112 = vmatpush2.bf16.msra.mxu0 0
    %7113 = vmatprep.subr.bf16.mxu0 0
    %7114 = vmatpush2.bf16.msra.mxu0 0
    %7115 = vmatprep.subr.bf16.mxu0 0
    %7116 = vmatpush2.bf16.msra.mxu0 0
    %7117 = vmatprep.subr.bf16.mxu0 0
    %7118 = vmatpush2.bf16.msra.mxu0 0
    %7119 = vmatprep.subr.bf16.mxu0 0
    %7120 = vmatpush2.bf16.msra.mxu0 0
    %7121 = vmatprep.subr.bf16.mxu0 0
    %7122 = vmatpush2.bf16.msra.mxu0 0
    %7123 = vmatprep.subr.bf16.mxu0 0
    %7124 = vmatpush2.bf16.msra.mxu0 0
    %7125 = vmatprep.subr.bf16.mxu0 0
    %7126 = vmatpush2.bf16.msra.mxu0 0
    %7127 = vmatprep.mubr.bf16.mxu0 0
    %7128 = vmatmul.mubr.bf16.gmra.mxu0 %v7094
    %v7129 = vpop.f32.mrf.mxu0
    %v7130 = vadd.f32 %v1329, %v7129
    %v7131 = vpop.f32.mrf.mxu0
    %v7132 = vadd.f32 %v1333, %v7131
    %v7133 = vpop.f32.mrf.mxu0
    %v7134 = vpop.f32.mrf.mxu0
    %7135 = vdwg.mxu0
    %v7136 = vxor.u32 %v7130, 2147483648
    %v7137 = vxor.u32 %v7132, 2147483648
    %v7138 = vmul.f32 %v7136, 1.442695
    %v7139 = vpow.pop %v7138
    %v7140 = vmul.f32 %v7137, 1.442695
    %v7141 = vpow.pop %v7140
    %v7142 = vadd.f32 %v7139, 1.0
    %v7143 = vadd.f32 %v7141, 1.0
    %v7144 = vrcp.pop %v7142
    %v7145 = vmul.f32 1.0, %v7144
    %v7146 = vrcp.pop %v7143
    %v7147 = vmul.f32 1.0, %v7146
    %v7148 = vtanh.pop %v7132
    %v7149 = vmul.f32 %v7145, %v6378
    %7151 = vrot.lane.b32.xlu0 %v7148, 64
    %v7152 = vpop.permute.xlu0 %7151
    %v7154 = vmul.f32 %v7145, %v7152
    %7156 = vrot.lane.b32.xlu0 %v7154, 64
    %v7157 = vpop.permute.xlu0 %7156
    %v7159 = vadd.f32 %v7149, %v7157
    %v7160 = vtanh.pop %v7159
    %7162 = vrot.lane.b32.xlu0 %v7160, 64
    %v7163 = vpop.permute.xlu0 %7162
    %v7165 = vmul.f32 %v7147, %v7163
    %7167 = vrot.lane.b32.xlu0 %v6461, 64
    %v7168 = vpop.permute.xlu0 %7167
    %v7170 = vsel %vm102, %v7165, %v7168
    %v7171 = vpack.c.bf16 %v7170, %v7170
    %7172 = vmatprep.subr.bf16.mxu0 %v1582
    %7173 = vmatpush1.bf16.msra.mxu0 %v1581
    %7174 = vmatprep.subr.bf16.mxu0 %v1580
    %7175 = vmatpush1.bf16.msra.mxu0 %v1579
    %7176 = vmatprep.subr.bf16.mxu0 %v1578
    %7177 = vmatpush1.bf16.msra.mxu0 %v1577
    %7178 = vmatprep.subr.bf16.mxu0 %v1576
    %7179 = vmatpush1.bf16.msra.mxu0 %v1575
    %7180 = vmatprep.subr.bf16.mxu0 %v1574
    %7181 = vmatpush1.bf16.msra.mxu0 %v1573
    %7182 = vmatprep.subr.bf16.mxu0 %v1572
    %7183 = vmatpush1.bf16.msra.mxu0 %v1571
    %7184 = vmatprep.subr.bf16.mxu0 %v1570
    %7185 = vmatpush1.bf16.msra.mxu0 %v1569
    %7186 = vmatprep.subr.bf16.mxu0 %v1568
    %7187 = vmatpush1.bf16.msra.mxu0 %v1567
    %7188 = vmatprep.subr.bf16.mxu0 0
    %7189 = vmatpush2.bf16.msra.mxu0 0
    %7190 = vmatprep.subr.bf16.mxu0 0
    %7191 = vmatpush2.bf16.msra.mxu0 0
    %7192 = vmatprep.subr.bf16.mxu0 0
    %7193 = vmatpush2.bf16.msra.mxu0 0
    %7194 = vmatprep.subr.bf16.mxu0 0
    %7195 = vmatpush2.bf16.msra.mxu0 0
    %7196 = vmatprep.subr.bf16.mxu0 0
    %7197 = vmatpush2.bf16.msra.mxu0 0
    %7198 = vmatprep.subr.bf16.mxu0 0
    %7199 = vmatpush2.bf16.msra.mxu0 0
    %7200 = vmatprep.subr.bf16.mxu0 0
    %7201 = vmatpush2.bf16.msra.mxu0 0
    %7202 = vmatprep.subr.bf16.mxu0 0
    %7203 = vmatpush2.bf16.msra.mxu0 0
    %7204 = vmatprep.mubr.bf16.mxu0 0
    %7205 = vmatmul.mubr.bf16.gmra.mxu0 %v7171
    %v7206 = vpop.f32.mrf.mxu0
    %v7207 = vadd.f32 %v1512, %v7206
    %v7208 = vpop.f32.mrf.mxu0
    %v7209 = vadd.f32 %v1516, %v7208
    %v7210 = vpop.f32.mrf.mxu0
    %v7211 = vpop.f32.mrf.mxu0
    %7212 = vdwg.mxu0
    %v7213 = vxor.u32 %v7207, 2147483648
    %v7214 = vxor.u32 %v7209, 2147483648
    %v7215 = vmul.f32 %v7213, 1.442695
    %v7216 = vpow.pop %v7215
    %v7217 = vmul.f32 %v7214, 1.442695
    %v7218 = vpow.pop %v7217
    %v7219 = vadd.f32 %v7216, 1.0
    %v7220 = vadd.f32 %v7218, 1.0
    %v7221 = vrcp.pop %v7219
    %v7222 = vmul.f32 1.0, %v7221
    %v7223 = vrcp.pop %v7220
    %v7224 = vmul.f32 1.0, %v7223
    %v7225 = vtanh.pop %v7209
    %v7226 = vmul.f32 %v7222, %v6455
    %7228 = vrot.lane.b32.xlu0 %v7225, 64
    %v7229 = vpop.permute.xlu0 %7228
    %v7231 = vmul.f32 %v7222, %v7229
    %7233 = vrot.lane.b32.xlu0 %v7231, 64
    %v7234 = vpop.permute.xlu0 %7233
    %v7236 = vadd.f32 %v7226, %v7234
    %v7237 = vtanh.pop %v7236
    %7239 = vrot.lane.b32.xlu0 %v7237, 64
    %v7240 = vpop.permute.xlu0 %7239
    %v7242 = vmul.f32 %v7224, %v7240
    %7244 = vrot.lane.b32.xlu0 %v6538, 64
    %v7245 = vpop.permute.xlu0 %7244
    %v7247 = vsel %vm102, %v7242, %v7245
    %v7248 = vpack.c.bf16 %v7247, %v7247
    %7249 = vmatprep.subr.bf16.mxu0 %v1765
    %7250 = vmatpush1.bf16.msra.mxu0 %v1764
    %7251 = vmatprep.subr.bf16.mxu0 %v1763
    %7252 = vmatpush1.bf16.msra.mxu0 %v1762
    %7253 = vmatprep.subr.bf16.mxu0 %v1761
    %7254 = vmatpush1.bf16.msra.mxu0 %v1760
    %7255 = vmatprep.subr.bf16.mxu0 %v1759
    %7256 = vmatpush1.bf16.msra.mxu0 %v1758
    %7257 = vmatprep.subr.bf16.mxu0 %v1757
    %7258 = vmatpush1.bf16.msra.mxu0 %v1756
    %7259 = vmatprep.subr.bf16.mxu0 %v1755
    %7260 = vmatpush1.bf16.msra.mxu0 %v1754
    %7261 = vmatprep.subr.bf16.mxu0 %v1753
    %7262 = vmatpush1.bf16.msra.mxu0 %v1752
    %7263 = vmatprep.subr.bf16.mxu0 %v1751
    %7264 = vmatpush1.bf16.msra.mxu0 %v1750
    %7265 = vmatprep.subr.bf16.mxu0 0
    %7266 = vmatpush2.bf16.msra.mxu0 0
    %7267 = vmatprep.subr.bf16.mxu0 0
    %7268 = vmatpush2.bf16.msra.mxu0 0
    %7269 = vmatprep.subr.bf16.mxu0 0
    %7270 = vmatpush2.bf16.msra.mxu0 0
    %7271 = vmatprep.subr.bf16.mxu0 0
    %7272 = vmatpush2.bf16.msra.mxu0 0
    %7273 = vmatprep.subr.bf16.mxu0 0
    %7274 = vmatpush2.bf16.msra.mxu0 0
    %7275 = vmatprep.subr.bf16.mxu0 0
    %7276 = vmatpush2.bf16.msra.mxu0 0
    %7277 = vmatprep.subr.bf16.mxu0 0
    %7278 = vmatpush2.bf16.msra.mxu0 0
    %7279 = vmatprep.subr.bf16.mxu0 0
    %7280 = vmatpush2.bf16.msra.mxu0 0
    %7281 = vmatprep.mubr.bf16.mxu0 0
    %7282 = vmatmul.mubr.bf16.gmra.mxu0 %v7248
    %v7283 = vpop.f32.mrf.mxu0
    %v7284 = vadd.f32 %v1695, %v7283
    %v7285 = vpop.f32.mrf.mxu0
    %v7286 = vadd.f32 %v1699, %v7285
    %v7287 = vpop.f32.mrf.mxu0
    %v7288 = vpop.f32.mrf.mxu0
    %7289 = vdwg.mxu0
    %v7290 = vxor.u32 %v7284, 2147483648
    %v7291 = vxor.u32 %v7286, 2147483648
    %v7292 = vmul.f32 %v7290, 1.442695
    %v7293 = vpow.pop %v7292
    %v7294 = vmul.f32 %v7291, 1.442695
    %v7295 = vpow.pop %v7294
    %v7296 = vadd.f32 %v7293, 1.0
    %v7297 = vadd.f32 %v7295, 1.0
    %v7298 = vrcp.pop %v7296
    %v7299 = vmul.f32 1.0, %v7298
    %v7300 = vrcp.pop %v7297
    %v7301 = vmul.f32 1.0, %v7300
    %v7302 = vtanh.pop %v7286
    %v7303 = vmul.f32 %v7299, %v6532
    %7305 = vrot.lane.b32.xlu0 %v7302, 64
    %v7306 = vpop.permute.xlu0 %7305
    %v7308 = vmul.f32 %v7299, %v7306
    %7310 = vrot.lane.b32.xlu0 %v7308, 64
    %v7311 = vpop.permute.xlu0 %7310
    %v7313 = vadd.f32 %v7303, %v7311
    %v7314 = vtanh.pop %v7313
    %7316 = vrot.lane.b32.xlu0 %v7314, 64
    %v7317 = vpop.permute.xlu0 %7316
    %v7319 = vmul.f32 %v7301, %v7317
    %v7320 = vld [vmem:[%s4] sm:$0xff]
    %v7321 = vld [vmem:[%s4 + $0x8] sm:$0xff]
    %v7322 = vld [vmem:[%s4 + $0x10] sm:$0xff]
    %v7323 = vld [vmem:[%s4 + $0x18] sm:$0xff]
    %v7324 = vld [vmem:[%s4 + $0x20] sm:$0xff]
    %v7325 = vld [vmem:[%s4 + $0x28] sm:$0xff]
    %v7326 = vld [vmem:[%s4 + $0x30] sm:$0xff]
    %v7327 = vld [vmem:[%s4 + $0x38] sm:$0xff]
    %v7328 = vld [vmem:[%s5] sm:$0x1]
    %v7330 = vlaneseq
    %v7331 = vshrl.u32 %v7330, 7
    %v7332 = vsub.s32 0, %v7331
    %v7333 = vrot.slane %v7328, %v7332
    %v7336 = vsel %vm102, %v7319, 0
    %7338 = vmatprep.subr.mxu0 0.0
    %7339 = vmatpush1.msra.mxu0 0.0
    %7340 = vmatprep.subr.mxu0 0.0
    %7341 = vmatpush1.msra.mxu0 0.0
    %7342 = vmatprep.subr.mxu0 0.0
    %7343 = vmatpush1.msra.mxu0 0.0
    %7344 = vmatprep.subr.mxu0 0.0
    %7345 = vmatpush1.msra.mxu0 0.0
    %7346 = vmatprep.subr.mxu0 0.0
    %7347 = vmatpush1.msra.mxu0 0.0
    %7348 = vmatprep.subr.mxu0 0.0
    %7349 = vmatpush1.msra.mxu0 0.0
    %7350 = vmatprep.subr.mxu0 0.0
    %7351 = vmatpush1.msra.mxu0 0.0
    %7352 = vmatprep.subr.mxu0 0.0
    %7353 = vmatpush1.msra.mxu0 0.0
    %7354 = vmatprep.subr.mxu0 0.0
    %7355 = vmatpush1.msra.mxu0 %v7327
    %7356 = vmatprep.subr.mxu0 0.0
    %7357 = vmatpush1.msra.mxu0 %v7326
    %7358 = vmatprep.subr.mxu0 0.0
    %7359 = vmatpush1.msra.mxu0 %v7325
    %7360 = vmatprep.subr.mxu0 0.0
    %7361 = vmatpush1.msra.mxu0 %v7324
    %7362 = vmatprep.subr.mxu0 0.0
    %7363 = vmatpush1.msra.mxu0 %v7323
    %7364 = vmatprep.subr.mxu0 0.0
    %7365 = vmatpush1.msra.mxu0 %v7322
    %7366 = vmatprep.subr.mxu0 0.0
    %7367 = vmatpush1.msra.mxu0 %v7321
    %7368 = vmatprep.subr.mxu0 0.0
    %7369 = vmatpush1.msra.mxu0 %v7320
    %7370 = vmatprep.subr.mxu0 0.0
    %7371 = vmatpush2.msra.mxu0 0.0
    %7372 = vmatprep.subr.mxu0 0.0
    %7373 = vmatpush2.msra.mxu0 0.0
    %7374 = vmatprep.subr.mxu0 0.0
    %7375 = vmatpush2.msra.mxu0 0.0
    %7376 = vmatprep.subr.mxu0 0.0
    %7377 = vmatpush2.msra.mxu0 0.0
    %7378 = vmatprep.subr.mxu0 0.0
    %7379 = vmatpush2.msra.mxu0 0.0
    %7380 = vmatprep.subr.mxu0 0.0
    %7381 = vmatpush2.msra.mxu0 0.0
    %7382 = vmatprep.subr.mxu0 0.0
    %7383 = vmatpush2.msra.mxu0 0.0
    %7384 = vmatprep.subr.mxu0 0.0
    %7385 = vmatpush2.msra.mxu0 0.0
    %7386 = vmatprep.subr.mxu0 0.0
    %7387 = vmatpush2.msra.mxu0 0.0
    %7388 = vmatprep.subr.mxu0 0.0
    %7389 = vmatpush2.msra.mxu0 0.0
    %7390 = vmatprep.subr.mxu0 0.0
    %7391 = vmatpush2.msra.mxu0 0.0
    %7392 = vmatprep.subr.mxu0 0.0
    %7393 = vmatpush2.msra.mxu0 0.0
    %7394 = vmatprep.subr.mxu0 0.0
    %7395 = vmatpush2.msra.mxu0 0.0
    %7396 = vmatprep.subr.mxu0 0.0
    %7397 = vmatpush2.msra.mxu0 0.0
    %7398 = vmatprep.subr.mxu0 0.0
    %7399 = vmatpush2.msra.mxu0 0.0
    %7400 = vmatprep.subr.mxu0 0.0
    %7401 = vmatpush2.msra.mxu0 0.0
    %7402 = vmatprep.mubr.f32.mxu0 0.0
    %7403 = vmatmul.mubr.f32.gmra.mxu0 %v7336
    %v7404 = vpop.f32.mrf.mxu0
    %v7405 = vadd.f32 %v7333, %v7404
    %v7406 = vpop.f32.mrf.mxu0
    %7407 = vdwg.mxu0
    %vm7408 = vcmask 74752
    %7409 = vst.msk [vmem:[#allocation7] sm:$0x3] %vm7408, %v7405
    // Predicated region
    $region34: #{tpu_custom_call.1} parent=1 // pred_check
      _
    $region35: #{tpu_custom_call.1} parent=1 // pred_check_branch
      %7411 = sbr.rel (0) target = $region37
    $region36: #{tpu_custom_call.1} parent=1 // pred_region
      %s7413 = ssub.s32 32, 32
      %7414 = vsyncadd [#allocation4], %s7413
      %s7416 = sshll.u32 [#allocation7], 4
      %s7417 = int_to_ptr.vmem [resolvable:$true] %s7416
      %7419 = dma.vmem_to_hbm [thread:$0]  %s7417, 32, %s6, [#allocation4]
    $region37: #{tpu_custom_call.1} parent=1 // pred_fallthru
      _
    // Predicated region
    $region38: #{tpu_custom_call.1} parent=1 // pred_check
      _
    $region39: #{tpu_custom_call.1} parent=1 // pred_check_branch
      %7421 = sbr.rel (0) target = $region41
    $region40: #{tpu_custom_call.1} parent=1 // pred_region
      %7422 = dma.done [#allocation4], 32
    $region41: #{tpu_custom_call.1} parent=1 // pred_fallthru
      _
    %7423 = vsyncpa [#allocation3], 1
    %7424 = vsyncpa [#allocation6], 1
    %7425 = vsyncpa [#allocation4], 1

</llo_original>
